<compile_context>
chip_gen: v5e
topology: v5e:2x2
jax: 0.10.0
libtpu: 0.0.40
codegen_flags: <defaults>
</compile_context>

<pallas_src>
import jax
import jax.numpy as jnp
from jax.experimental import pallas as pl
from jax.experimental.pallas import tpu as pltpu

IN_DIM = 784
IN_DIM_PAD = 896          # 7 * 128
HIDDEN = 1024
LATENT = 256
OUT_DIM = 10
OUT_DIM_PAD = 128


def vib_kernel(x_ref, eps_ref,
               w1_ref, b1_ref,
               w2_ref, b2_ref,
               wh_ref, bh_ref,
               wd_ref, bd_ref,
               y_ref, mu_ref, lv_ref):
    # Weights are bf16; matmuls accumulate in f32 on the MXU. Elementwise math stays f32
    # (v5e has no bf16 VPU/EUP).
    x = x_ref[...].astype(jnp.bfloat16)

    # Encoder: Linear(784(pad 896)->1024) + ReLU
    h1 = jnp.dot(x, w1_ref[...], preferred_element_type=jnp.float32) + b1_ref[...]
    h1 = jnp.maximum(h1, 0.0).astype(jnp.bfloat16)

    # Encoder: Linear(1024->1024) + ReLU
    h2 = jnp.dot(h1, w2_ref[...], preferred_element_type=jnp.float32) + b2_ref[...]
    h2 = jnp.maximum(h2, 0.0).astype(jnp.bfloat16)

    # Fused mu / log_var heads: single (1024, 512) matmul, lane-aligned slices.
    heads = jnp.dot(h2, wh_ref[...], preferred_element_type=jnp.float32) + bh_ref[...]
    mu = heads[:, :LATENT]
    lv = heads[:, LATENT:]

    # Reparametrize (training mode): z = mu + eps * exp(0.5 * logvar).
    # eps ~ N(0,1) generated on the host so the kernel stays deterministic.
    z = mu + eps_ref[...] * jnp.exp(0.5 * lv)

    # Decoder: Linear(256->10), lane-padded to 128 output columns.
    y = jnp.dot(z.astype(jnp.bfloat16), wd_ref[...],
                preferred_element_type=jnp.float32) + bd_ref[...]

    y_ref[...] = y
    mu_ref[...] = mu
    lv_ref[...] = lv


def _pack_params(params):
    """f32 (in, out) params -> padded / fused bf16 kernel params (+ f32 (1, N) biases)."""
    w1, b1, w2, b2, wmu, bmu, wlv, blv, wd, bd = params

    w1p = jnp.zeros((IN_DIM_PAD, HIDDEN), jnp.float32).at[:IN_DIM].set(w1)
    wh = jnp.concatenate([wmu, wlv], axis=1)                    # (1024, 512)
    bh = jnp.concatenate([bmu, blv], axis=0)                    # (512,)
    wdp = jnp.zeros((LATENT, OUT_DIM_PAD), jnp.float32).at[:, :OUT_DIM].set(wd)
    bdp = jnp.zeros((OUT_DIM_PAD,), jnp.float32).at[:OUT_DIM].set(bd)

    return (w1p.astype(jnp.bfloat16), b1.reshape(1, -1),
            w2.astype(jnp.bfloat16), b2.reshape(1, -1),
            wh.astype(jnp.bfloat16), bh.reshape(1, -1),
            wdp.astype(jnp.bfloat16), bdp.reshape(1, -1))


def vib_forward(x, eps, params, *, block_b=256):
    """x: (B, 784) f32, eps: (B, 256) f32. Returns (y_hat, mu, logvar)."""
    B = x.shape[0]
    w1p, b1, w2p, b2, whp, bh, wdp, bdp = _pack_params(params)

    # Batch tile: 256 rows fills the 2x256x256 MXU on v6e/v7x; tiny batches use one
    # 8-row-aligned tile.  TODO(synk): prefer TB=128 on v5e (4x128x128 MXU).
    if B >= block_b:
        tb = block_b
    else:
        tb = max(8, ((B + 7) // 8) * 8)
    nb = pl.cdiv(B, tb)
    b_pad = nb * tb

    xp = jnp.zeros((b_pad, IN_DIM_PAD), jnp.float32).at[:B, :IN_DIM].set(x)
    ep = jnp.zeros((b_pad, LATENT), jnp.float32).at[:B].set(eps)

    def act_spec(n):
        return pl.BlockSpec((tb, n), lambda i: (i, 0))

    def const_spec(shape):
        return pl.BlockSpec(shape, lambda i: (0, 0))       # VMEM-resident across the grid

    y, mu, lv = pl.pallas_call(
        vib_kernel,
        out_shape=(
            jax.ShapeDtypeStruct((b_pad, OUT_DIM_PAD), jnp.float32),  # y_hat (padded)
            jax.ShapeDtypeStruct((b_pad, LATENT), jnp.float32),       # latent_mu
            jax.ShapeDtypeStruct((b_pad, LATENT), jnp.float32),       # latent_logvar
        ),
        grid_spec=pltpu.PrefetchScalarGridSpec(
            num_scalar_prefetch=0,
            grid=(nb,),
            in_specs=[
                act_spec(IN_DIM_PAD),                 # x
                act_spec(LATENT),                     # eps
                const_spec((IN_DIM_PAD, HIDDEN)),     # w1
                const_spec((1, HIDDEN)),              # b1
                const_spec((HIDDEN, HIDDEN)),         # w2
                const_spec((1, HIDDEN)),              # b2
                const_spec((HIDDEN, 2 * LATENT)),     # w_heads (mu|logvar fused)
                const_spec((1, 2 * LATENT)),          # b_heads
                const_spec((LATENT, OUT_DIM_PAD)),    # w_dec (lane-padded)
                const_spec((1, OUT_DIM_PAD)),         # b_dec
            ],
            out_specs=[
                act_spec(OUT_DIM_PAD),
                act_spec(LATENT),
                act_spec(LATENT),
            ],
        ),
        compiler_params=pltpu.CompilerParams(
            dimension_semantics=("parallel",),
            vmem_limit_bytes=32 << 20,
        ),
    )(xp, ep, w1p, b1, w2p, b2, whp, bh, wdp, bdp)

    return y[:B, :OUT_DIM], mu[:B], lv[:B]


def init_params(key):
    """Deterministic parameter init matching the PyTorch module's shapes.

    PyTorch stores Linear weights as (out, in); here we build them as (in, out)
    so the kernel computes x @ W + b.
    """
    def linear(key, fan_in, fan_out):
        kw, kb = jax.random.split(key)
        bound = 1.0 / jnp.sqrt(fan_in)
        w = jax.random.uniform(kw, (fan_in, fan_out), jnp.float32, -bound, bound)
        b = jax.random.uniform(kb, (fan_out,), jnp.float32, -bound, bound)
        return w, b

    k1, k2, k3, k4, k5 = jax.random.split(key, 5)
    w1, b1 = linear(k1, IN_DIM, HIDDEN)       # encoder.shared1
    w2, b2 = linear(k2, HIDDEN, HIDDEN)       # encoder.shared2
    wmu, bmu = linear(k3, HIDDEN, LATENT)     # encoder.fc_mu
    wlv, blv = linear(k4, HIDDEN, LATENT)     # encoder.fc_log_var
    wd, bd = linear(k5, LATENT, OUT_DIM)      # decoder.shared1
    return (w1, b1, w2, b2, wmu, bmu, wlv, blv, wd, bd)


def vib_reference(x, eps, params):
    """Pure-JAX reference that mirrors the kernel's bf16-weight / f32-accumulate math."""
    w1, b1, w2, b2, wmu, bmu, wlv, blv, wd, bd = params
    bf, f32 = jnp.bfloat16, jnp.float32
    h1 = jnp.maximum(jnp.dot(x.astype(bf), w1.astype(bf), preferred_element_type=f32) + b1, 0.0)
    h2 = jnp.maximum(jnp.dot(h1.astype(bf), w2.astype(bf), preferred_element_type=f32) + b2, 0.0)
    mu = jnp.dot(h2.astype(bf), wmu.astype(bf), preferred_element_type=f32) + bmu
    lv = jnp.dot(h2.astype(bf), wlv.astype(bf), preferred_element_type=f32) + blv
    z = mu + eps * jnp.exp(0.5 * lv)
    y = jnp.dot(z.astype(bf), wd.astype(bf), preferred_element_type=f32) + bd
    return y, mu, lv


if __name__ == "__main__":
    key = jax.random.PRNGKey(0)
    kp, kx, ke = jax.random.split(key, 3)

    B = 8
    params = init_params(kp)
    x = jax.random.normal(kx, (B, IN_DIM), jnp.float32)
    eps = jax.random.normal(ke, (B, LATENT), jnp.float32)   # training-mode noise

    fwd = jax.jit(lambda x, eps: vib_forward(x, eps, params))
    y_hat, mu, logvar = fwd(x, eps)
    jax.block_until_ready((y_hat, mu, logvar))

    # sanity check against pure-JAX (bf16-matched) reference
    y_ref, mu_ref, lv_ref = vib_reference(x, eps, params)
    assert y_hat.shape == (B, OUT_DIM) and mu.shape == (B, LATENT) and logvar.shape == (B, LATENT)
    assert jnp.allclose(mu, mu_ref, atol=1e-2, rtol=1e-2)
    assert jnp.allclose(logvar, lv_ref, atol=1e-2, rtol=1e-2)
    assert jnp.allclose(y_hat, y_ref, atol=1e-2, rtol=1e-2)

    print("KERNEL_OK")
</pallas_src>

<mosaic_0001>
module attributes {stable_mosaic.version = 11 : i64} {
  func.func @vib_kernel(%arg0: i32, %arg1: memref<8x896xf32, #tpu.memory_space<vmem>>, %arg2: memref<8x256xf32, #tpu.memory_space<vmem>>, %arg3: memref<896x1024xbf16, #tpu.memory_space<vmem>>, %arg4: memref<1x1024xf32, #tpu.memory_space<vmem>>, %arg5: memref<1024x1024xbf16, #tpu.memory_space<vmem>>, %arg6: memref<1x1024xf32, #tpu.memory_space<vmem>>, %arg7: memref<1024x512xbf16, #tpu.memory_space<vmem>>, %arg8: memref<1x512xf32, #tpu.memory_space<vmem>>, %arg9: memref<256x128xbf16, #tpu.memory_space<vmem>>, %arg10: memref<1x128xf32, #tpu.memory_space<vmem>>, %arg11: memref<8x128xf32, #tpu.memory_space<vmem>>, %arg12: memref<8x256xf32, #tpu.memory_space<vmem>>, %arg13: memref<8x256xf32, #tpu.memory_space<vmem>>) attributes {dimension_semantics = [#tpu.dimension_semantics<parallel>], iteration_bounds = array<i64: 1>, scalar_prefetch = 0 : i64, scratch_operands = 0 : i64, tpu.core_type = #tpu.core_type<tc>, window_params = [{transform_indices = @transform_0, window_bounds = array<i64: 8, 896>}, {transform_indices = @transform_1, window_bounds = array<i64: 8, 256>}, {pipeline_mode = #tpu.pipeline_mode<synchronous>, transform_indices = @transform_2, window_bounds = array<i64: 896, 1024>}, {pipeline_mode = #tpu.pipeline_mode<synchronous>, transform_indices = @transform_3, window_bounds = array<i64: 1, 1024>}, {pipeline_mode = #tpu.pipeline_mode<synchronous>, transform_indices = @transform_4, window_bounds = array<i64: 1024, 1024>}, {pipeline_mode = #tpu.pipeline_mode<synchronous>, transform_indices = @transform_5, window_bounds = array<i64: 1, 1024>}, {pipeline_mode = #tpu.pipeline_mode<synchronous>, transform_indices = @transform_6, window_bounds = array<i64: 1024, 512>}, {pipeline_mode = #tpu.pipeline_mode<synchronous>, transform_indices = @transform_7, window_bounds = array<i64: 1, 512>}, {pipeline_mode = #tpu.pipeline_mode<synchronous>, transform_indices = @transform_8, window_bounds = array<i64: 256, 128>}, {pipeline_mode = #tpu.pipeline_mode<synchronous>, transform_indices = @transform_9, window_bounds = array<i64: 1, 128>}, {transform_indices = @transform_10, window_bounds = array<i64: 8, 128>}, {transform_indices = @transform_11, window_bounds = array<i64: 8, 256>}, {transform_indices = @transform_12, window_bounds = array<i64: 8, 256>}]} {
    %c0 = arith.constant 0 : index
    %c0_0 = arith.constant 0 : index
    %0 = vector.load %arg1[%c0, %c0_0] : memref<8x896xf32, #tpu.memory_space<vmem>>, vector<8x896xf32>
    %1 = arith.truncf %0 : vector<8x896xf32> to vector<8x896xbf16>
    %c0_1 = arith.constant 0 : index
    %c0_2 = arith.constant 0 : index
    %2 = vector.load %arg3[%c0_1, %c0_2] : memref<896x1024xbf16, #tpu.memory_space<vmem>>, vector<896x1024xbf16>
    %cst = arith.constant dense<0.000000e+00> : vector<8x1024xf32>
    %3 = tpu.matmul %1, %2, %cst {dimension_numbers = #tpu.dot_dimension_numbers<[1], [0], [0], [1], [0, 0, 1, 1], [], []>} : vector<8x896xbf16>, vector<896x1024xbf16>, vector<8x1024xf32> -> vector<8x1024xf32>
    %c0_3 = arith.constant 0 : index
    %c0_4 = arith.constant 0 : index
    %4 = vector.load %arg4[%c0_3, %c0_4] : memref<1x1024xf32, #tpu.memory_space<vmem>>, vector<1x1024xf32>
    %5 = vector.broadcast %4 : vector<1x1024xf32> to vector<8x1024xf32>
    %6 = arith.addf %3, %5 : vector<8x1024xf32>
    %cst_5 = arith.constant 0.000000e+00 : f32
    %7 = vector.broadcast %cst_5 : f32 to vector<8x1024xf32>
    %8 = arith.maximumf %6, %7 : vector<8x1024xf32>
    %9 = arith.truncf %8 : vector<8x1024xf32> to vector<8x1024xbf16>
    %c0_6 = arith.constant 0 : index
    %c0_7 = arith.constant 0 : index
    %10 = vector.load %arg5[%c0_6, %c0_7] : memref<1024x1024xbf16, #tpu.memory_space<vmem>>, vector<1024x1024xbf16>
    %cst_8 = arith.constant dense<0.000000e+00> : vector<8x1024xf32>
    %11 = tpu.matmul %9, %10, %cst_8 {dimension_numbers = #tpu.dot_dimension_numbers<[1], [0], [0], [1], [0, 0, 1, 1], [], []>} : vector<8x1024xbf16>, vector<1024x1024xbf16>, vector<8x1024xf32> -> vector<8x1024xf32>
    %c0_9 = arith.constant 0 : index
    %c0_10 = arith.constant 0 : index
    %12 = vector.load %arg6[%c0_9, %c0_10] : memref<1x1024xf32, #tpu.memory_space<vmem>>, vector<1x1024xf32>
    %13 = vector.broadcast %12 : vector<1x1024xf32> to vector<8x1024xf32>
    %14 = arith.addf %11, %13 : vector<8x1024xf32>
    %cst_11 = arith.constant 0.000000e+00 : f32
    %15 = vector.broadcast %cst_11 : f32 to vector<8x1024xf32>
    %16 = arith.maximumf %14, %15 : vector<8x1024xf32>
    %17 = arith.truncf %16 : vector<8x1024xf32> to vector<8x1024xbf16>
    %c0_12 = arith.constant 0 : index
    %c0_13 = arith.constant 0 : index
    %18 = vector.load %arg7[%c0_12, %c0_13] : memref<1024x512xbf16, #tpu.memory_space<vmem>>, vector<1024x512xbf16>
    %cst_14 = arith.constant dense<0.000000e+00> : vector<8x512xf32>
    %19 = tpu.matmul %17, %18, %cst_14 {dimension_numbers = #tpu.dot_dimension_numbers<[1], [0], [0], [1], [0, 0, 1, 1], [], []>} : vector<8x1024xbf16>, vector<1024x512xbf16>, vector<8x512xf32> -> vector<8x512xf32>
    %c0_15 = arith.constant 0 : index
    %c0_16 = arith.constant 0 : index
    %20 = vector.load %arg8[%c0_15, %c0_16] : memref<1x512xf32, #tpu.memory_space<vmem>>, vector<1x512xf32>
    %21 = vector.broadcast %20 : vector<1x512xf32> to vector<8x512xf32>
    %22 = arith.addf %19, %21 : vector<8x512xf32>
    %23 = vector.extract_strided_slice %22 {offsets = [0, 0], sizes = [8, 256], strides = [1, 1]} : vector<8x512xf32> to vector<8x256xf32>
    %24 = vector.extract_strided_slice %22 {offsets = [0, 256], sizes = [8, 256], strides = [1, 1]} : vector<8x512xf32> to vector<8x256xf32>
    %c0_17 = arith.constant 0 : index
    %c0_18 = arith.constant 0 : index
    %25 = vector.load %arg2[%c0_17, %c0_18] : memref<8x256xf32, #tpu.memory_space<vmem>>, vector<8x256xf32>
    %cst_19 = arith.constant 5.000000e-01 : f32
    %26 = vector.broadcast %cst_19 : f32 to vector<8x256xf32>
    %27 = arith.mulf %26, %24 : vector<8x256xf32>
    %28 = math.exp %27 : vector<8x256xf32>
    %29 = arith.mulf %25, %28 : vector<8x256xf32>
    %30 = arith.addf %23, %29 : vector<8x256xf32>
    %31 = arith.truncf %30 : vector<8x256xf32> to vector<8x256xbf16>
    %c0_20 = arith.constant 0 : index
    %c0_21 = arith.constant 0 : index
    %32 = vector.load %arg9[%c0_20, %c0_21] : memref<256x128xbf16, #tpu.memory_space<vmem>>, vector<256x128xbf16>
    %cst_22 = arith.constant dense<0.000000e+00> : vector<8x128xf32>
    %33 = tpu.matmul %31, %32, %cst_22 {dimension_numbers = #tpu.dot_dimension_numbers<[1], [0], [0], [1], [0, 0, 1, 1], [], []>} : vector<8x256xbf16>, vector<256x128xbf16>, vector<8x128xf32> -> vector<8x128xf32>
    %c0_23 = arith.constant 0 : index
    %c0_24 = arith.constant 0 : index
    %34 = vector.load %arg10[%c0_23, %c0_24] : memref<1x128xf32, #tpu.memory_space<vmem>>, vector<1x128xf32>
    %35 = vector.broadcast %34 : vector<1x128xf32> to vector<8x128xf32>
    %36 = arith.addf %33, %35 : vector<8x128xf32>
    %c0_25 = arith.constant 0 : index
    %c0_26 = arith.constant 0 : index
    %37 = vector.load %arg11[%c0_25, %c0_26] : memref<8x128xf32, #tpu.memory_space<vmem>>, vector<8x128xf32>
    tpu.vector_store %arg11[%c0_25, %c0_26], %36 {strides = array<i32>} : memref<8x128xf32, #tpu.memory_space<vmem>>, vector<8x128xf32>,
    %c0_27 = arith.constant 0 : index
    %c0_28 = arith.constant 0 : index
    %38 = vector.load %arg12[%c0_27, %c0_28] : memref<8x256xf32, #tpu.memory_space<vmem>>, vector<8x256xf32>
    tpu.vector_store %arg12[%c0_27, %c0_28], %23 {strides = array<i32>} : memref<8x256xf32, #tpu.memory_space<vmem>>, vector<8x256xf32>,
    %c0_29 = arith.constant 0 : index
    %c0_30 = arith.constant 0 : index
    %39 = vector.load %arg13[%c0_29, %c0_30] : memref<8x256xf32, #tpu.memory_space<vmem>>, vector<8x256xf32>
    tpu.vector_store %arg13[%c0_29, %c0_30], %24 {strides = array<i32>} : memref<8x256xf32, #tpu.memory_space<vmem>>, vector<8x256xf32>,
    return
  }
  func.func @transform_0(%arg0: i32) -> (i32, i32) {
    %c0_i32 = arith.constant 0 : i32
    %c0_i32_0 = arith.constant 0 : i32
    return %arg0, %c0_i32 : i32, i32
  }
  func.func @transform_1(%arg0: i32) -> (i32, i32) {
    %c0_i32 = arith.constant 0 : i32
    %c0_i32_0 = arith.constant 0 : i32
    return %arg0, %c0_i32 : i32, i32
  }
  func.func @transform_2(%arg0: i32) -> (i32, i32) {
    %c0_i32 = arith.constant 0 : i32
    %c0_i32_0 = arith.constant 0 : i32
    %c0_i32_1 = arith.constant 0 : i32
    return %c0_i32, %c0_i32_0 : i32, i32
  }
  func.func @transform_3(%arg0: i32) -> (i32, i32) {
    %c0_i32 = arith.constant 0 : i32
    %c0_i32_0 = arith.constant 0 : i32
    %c0_i32_1 = arith.constant 0 : i32
    return %c0_i32, %c0_i32_0 : i32, i32
  }
  func.func @transform_4(%arg0: i32) -> (i32, i32) {
    %c0_i32 = arith.constant 0 : i32
    %c0_i32_0 = arith.constant 0 : i32
    %c0_i32_1 = arith.constant 0 : i32
    return %c0_i32, %c0_i32_0 : i32, i32
  }
  func.func @transform_5(%arg0: i32) -> (i32, i32) {
    %c0_i32 = arith.constant 0 : i32
    %c0_i32_0 = arith.constant 0 : i32
    %c0_i32_1 = arith.constant 0 : i32
    return %c0_i32, %c0_i32_0 : i32, i32
  }
  func.func @transform_6(%arg0: i32) -> (i32, i32) {
    %c0_i32 = arith.constant 0 : i32
    %c0_i32_0 = arith.constant 0 : i32
    %c0_i32_1 = arith.constant 0 : i32
    return %c0_i32, %c0_i32_0 : i32, i32
  }
  func.func @transform_7(%arg0: i32) -> (i32, i32) {
    %c0_i32 = arith.constant 0 : i32
    %c0_i32_0 = arith.constant 0 : i32
    %c0_i32_1 = arith.constant 0 : i32
    return %c0_i32, %c0_i32_0 : i32, i32
  }
  func.func @transform_8(%arg0: i32) -> (i32, i32) {
    %c0_i32 = arith.constant 0 : i32
    %c0_i32_0 = arith.constant 0 : i32
    %c0_i32_1 = arith.constant 0 : i32
    return %c0_i32, %c0_i32_0 : i32, i32
  }
  func.func @transform_9(%arg0: i32) -> (i32, i32) {
    %c0_i32 = arith.constant 0 : i32
    %c0_i32_0 = arith.constant 0 : i32
    %c0_i32_1 = arith.constant 0 : i32
    return %c0_i32, %c0_i32_0 : i32, i32
  }
  func.func @transform_10(%arg0: i32) -> (i32, i32) {
    %c0_i32 = arith.constant 0 : i32
    %c0_i32_0 = arith.constant 0 : i32
    return %arg0, %c0_i32 : i32, i32
  }
  func.func @transform_11(%arg0: i32) -> (i32, i32) {
    %c0_i32 = arith.constant 0 : i32
    %c0_i32_0 = arith.constant 0 : i32
    return %arg0, %c0_i32 : i32, i32
  }
  func.func @transform_12(%arg0: i32) -> (i32, i32) {
    %c0_i32 = arith.constant 0 : i32
    %c0_i32_0 = arith.constant 0 : i32
    return %arg0, %c0_i32 : i32, i32
  }
}

</mosaic_0001>

<llo_original>
// kernel: _lambda_.1
$region0: #{_lambda_.1}
  #allocation0 [shape = 'u32[]', space=smem, size = 0x4, offset = 0x4, fixed_abs, tag = 'smem constant byte address 0x4 - core index']
  #allocation1 [shape = 'u32[72,128]{1,0:T(1,128)}', space=vmem, size = 0x9000, scoped, tag = 'internal scratch']
  %s0 = inlined_call_operand.vmem [shape: f32[8,896], index: 0, kind: input, shape index: {}]
  %s1 = inlined_call_operand.hbm [shape: f32[8,256], index: 1, kind: input, shape index: {}]
  %s2 = inlined_call_operand.hbm [shape: bf16[896,1024], index: 2, kind: input, shape index: {}]
  %s3 = inlined_call_operand.hbm [shape: f32[1,1024], index: 3, kind: input, shape index: {}]
  %s4 = inlined_call_operand.hbm [shape: bf16[1024,1024], index: 4, kind: input, shape index: {}]
  %s5 = inlined_call_operand.hbm [shape: f32[1,1024], index: 5, kind: input, shape index: {}]
  %s6 = inlined_call_operand.hbm [shape: bf16[1024,512], index: 6, kind: input, shape index: {}]
  %s7 = inlined_call_operand.hbm [shape: f32[1,512], index: 7, kind: input, shape index: {}]
  %s8 = inlined_call_operand.vmem [shape: bf16[256,128], index: 8, kind: input, shape index: {}]
  %s9 = inlined_call_operand.hbm [shape: f32[1,128], index: 9, kind: input, shape index: {}]
  %s10 = inlined_call_operand.hbm [shape: f32[8,128], index: 10, kind: output, shape index: {0}]
  %s11 = inlined_call_operand.hbm [shape: f32[8,256], index: 11, kind: output, shape index: {1}]
  %s12 = inlined_call_operand.hbm [shape: f32[8,256], index: 12, kind: output, shape index: {2}]
  %13 = xla_tuple %s10, %s11, %s12
  %s14 = sld [smem:[#allocation0]]
  $region98: #{_lambda_.1} parent=0
    _
  %s16 = ssub.s32 1, %s14
  %s17 = scalar_select 0, %s16, %s14
  $region1: #{_lambda_.1} parent=0
    #allocation2 [shape = 'u8[8192]{0}', space=vmem, size = 0x2000, scoped, tag = 'input window, operand 1, single buffered']
    #allocation3 [shape = 's32[1]{0}', space=sflag, size = 0x4, scoped, tag = 'scoped memory for _lambda_.1']
    #allocation4 [shape = 's32[1]{0}', space=sflag, size = 0x4, scoped, tag = 'scoped memory for _lambda_.1']
    #allocation5 [shape = 'u8[1835008]{0}', space=vmem, size = 0x1c0000, scoped, tag = 'input window, operand 2, single buffered']
    #allocation6 [shape = 's32[1]{0}', space=sflag, size = 0x4, scoped, tag = 'scoped memory for _lambda_.1']
    #allocation7 [shape = 'u8[4096]{0}', space=vmem, size = 0x1000, scoped, tag = 'input window, operand 3, single buffered']
    #allocation8 [shape = 'u8[2097152]{0}', space=vmem, size = 0x200000, scoped, tag = 'input window, operand 4, single buffered']
    #allocation9 [shape = 's32[1]{0}', space=sflag, size = 0x4, scoped, tag = 'scoped memory for _lambda_.1']
    #allocation10 [shape = 'u8[4096]{0}', space=vmem, size = 0x1000, scoped, tag = 'input window, operand 5, single buffered']
    #allocation11 [shape = 'u8[1048576]{0}', space=vmem, size = 0x100000, scoped, tag = 'input window, operand 6, single buffered']
    #allocation12 [shape = 's32[1]{0}', space=sflag, size = 0x4, scoped, tag = 'scoped memory for _lambda_.1']
    #allocation13 [shape = 'u8[2048]{0}', space=vmem, size = 0x800, scoped, tag = 'input window, operand 7, single buffered']
    #allocation14 [shape = 'u8[512]{0}', space=vmem, size = 0x400, scoped, tag = 'input window, operand 9, single buffered']
    #allocation15 [shape = 's32[1]{0}', space=sflag, size = 0x4, scoped, tag = 'scoped memory for _lambda_.1']
    #allocation16 [shape = 'u8[4096]{0}', space=vmem, size = 0x1000, scoped, tag = 'output window, operand 0, single buffered']
    #allocation17 [shape = 'u8[8192]{0}', space=vmem, size = 0x2000, scoped, tag = 'output window, operand 1, single buffered']
    #allocation18 [shape = 's32[1]{0}', space=sflag, size = 0x4, scoped, tag = 'scoped memory for _lambda_.1']
    #allocation19 [shape = 'u8[8192]{0}', space=vmem, size = 0x2000, scoped, tag = 'output window, operand 2, single buffered']
    %18 = vsyncpa [#allocation3], 0
    %19 = vsyncpa [#allocation6], 0
    %20 = vsyncpa [#allocation9], 0
    %21 = vsyncpa [#allocation12], 0
    %22 = vsyncpa [#allocation15], 0
    %23 = vsyncpa [#allocation4], 0
    %24 = vsyncpa [#allocation18], 0
    // Predicated region
    $region2: #{_lambda_.1} parent=1 // pred_check
      _
    $region3: #{_lambda_.1} parent=1 // pred_check_branch
      %26 = sbr.rel (0) target = $region5
    $region4: #{_lambda_.1} parent=1 // pred_region
      _
    $region5: #{_lambda_.1} parent=1 // pred_fallthru
      _
    // Predicated region
    $region6: #{_lambda_.1} parent=1 // pred_check
      _
    $region7: #{_lambda_.1} parent=1 // pred_check_branch
      %28 = sbr.rel (0) target = $region9
    $region8: #{_lambda_.1} parent=1 // pred_region
      %30 = vsyncadd [#allocation3], 0
      %s32 = sshll.u32 %s1, 4
      %s33 = int_to_ptr.hbm [resolvable:$true] %s32
      %s34 = sshll.u32 [#allocation2], 4
      %s35 = int_to_ptr.vmem [resolvable:$true] %s34
      %37 = dma.hbm_to_vmem [thread:$0]  %s33, 256, %s35, [#allocation3]
    $region9: #{_lambda_.1} parent=1 // pred_fallthru
      _
    // Predicated region
    $region10: #{_lambda_.1} parent=1 // pred_check
      _
    $region11: #{_lambda_.1} parent=1 // pred_check_branch
      %39 = sbr.rel (0) target = $region13
    $region12: #{_lambda_.1} parent=1 // pred_region
      %41 = vsyncadd [#allocation6], 0
      %s42 = sshll.u32 %s2, 4
      %s43 = int_to_ptr.hbm [resolvable:$true] %s42
      %s44 = sshll.u32 [#allocation5], 4
      %s45 = int_to_ptr.vmem [resolvable:$true] %s44
      %50 = dma.hbm_to_vmem [thread:$0]  %s43, 57344, %s45, [#allocation6], 512, 512, 32
    $region13: #{_lambda_.1} parent=1 // pred_fallthru
      _
    // Predicated region
    $region14: #{_lambda_.1} parent=1 // pred_check
      _
    $region15: #{_lambda_.1} parent=1 // pred_check_branch
      %52 = sbr.rel (0) target = $region17
    $region16: #{_lambda_.1} parent=1 // pred_region
      %54 = vsyncadd [#allocation6], 0
      %s56 = sshll.u32 %s3, 4
      %s57 = int_to_ptr.hbm [resolvable:$true] %s56
      %s58 = sshll.u32 [#allocation7], 4
      %s59 = int_to_ptr.vmem [resolvable:$true] %s58
      %61 = dma.hbm_to_vmem [thread:$0]  %s57, 128, %s59, [#allocation6]
    $region17: #{_lambda_.1} parent=1 // pred_fallthru
      _
    // Predicated region
    $region18: #{_lambda_.1} parent=1 // pred_check
      _
    $region19: #{_lambda_.1} parent=1 // pred_check_branch
      %63 = sbr.rel (0) target = $region21
    $region20: #{_lambda_.1} parent=1 // pred_region
      %65 = vsyncadd [#allocation9], 0
      %s66 = sshll.u32 %s4, 4
      %s67 = int_to_ptr.hbm [resolvable:$true] %s66
      %s68 = sshll.u32 [#allocation8], 4
      %s69 = int_to_ptr.vmem [resolvable:$true] %s68
      %74 = dma.hbm_to_vmem [thread:$0]  %s67, 65536, %s69, [#allocation9], 512, 512, 32
    $region21: #{_lambda_.1} parent=1 // pred_fallthru
      _
    // Predicated region
    $region22: #{_lambda_.1} parent=1 // pred_check
      _
    $region23: #{_lambda_.1} parent=1 // pred_check_branch
      %76 = sbr.rel (0) target = $region25
    $region24: #{_lambda_.1} parent=1 // pred_region
      %78 = vsyncadd [#allocation9], 0
      %s80 = sshll.u32 %s5, 4
      %s81 = int_to_ptr.hbm [resolvable:$true] %s80
      %s82 = sshll.u32 [#allocation10], 4
      %s83 = int_to_ptr.vmem [resolvable:$true] %s82
      %85 = dma.hbm_to_vmem [thread:$0]  %s81, 128, %s83, [#allocation9]
    $region25: #{_lambda_.1} parent=1 // pred_fallthru
      _
    // Predicated region
    $region26: #{_lambda_.1} parent=1 // pred_check
      _
    $region27: #{_lambda_.1} parent=1 // pred_check_branch
      %87 = sbr.rel (0) target = $region29
    $region28: #{_lambda_.1} parent=1 // pred_region
      %89 = vsyncadd [#allocation12], 0
      %s90 = sshll.u32 %s6, 4
      %s91 = int_to_ptr.hbm [resolvable:$true] %s90
      %s92 = sshll.u32 [#allocation11], 4
      %s93 = int_to_ptr.vmem [resolvable:$true] %s92
      %98 = dma.hbm_to_vmem [thread:$0]  %s91, 32768, %s93, [#allocation12], 256, 256, 16
    $region29: #{_lambda_.1} parent=1 // pred_fallthru
      _
    // Predicated region
    $region30: #{_lambda_.1} parent=1 // pred_check
      _
    $region31: #{_lambda_.1} parent=1 // pred_check_branch
      %100 = sbr.rel (0) target = $region33
    $region32: #{_lambda_.1} parent=1 // pred_region
      %102 = vsyncadd [#allocation12], 0
      %s104 = sshll.u32 %s7, 4
      %s105 = int_to_ptr.hbm [resolvable:$true] %s104
      %s106 = sshll.u32 [#allocation13], 4
      %s107 = int_to_ptr.vmem [resolvable:$true] %s106
      %109 = dma.hbm_to_vmem [thread:$0]  %s105, 64, %s107, [#allocation12]
    $region33: #{_lambda_.1} parent=1 // pred_fallthru
      _
    // Predicated region
    $region34: #{_lambda_.1} parent=1 // pred_check
      _
    $region35: #{_lambda_.1} parent=1 // pred_check_branch
      %111 = sbr.rel (0) target = $region37
    $region36: #{_lambda_.1} parent=1 // pred_region
      _
    $region37: #{_lambda_.1} parent=1 // pred_fallthru
      _
    // Predicated region
    $region38: #{_lambda_.1} parent=1 // pred_check
      _
    $region39: #{_lambda_.1} parent=1 // pred_check_branch
      %113 = sbr.rel (0) target = $region41
    $region40: #{_lambda_.1} parent=1 // pred_region
      %115 = vsyncadd [#allocation15], 0
      %s117 = sshll.u32 %s9, 4
      %s118 = int_to_ptr.hbm [resolvable:$true] %s117
      %s119 = sshll.u32 [#allocation14], 4
      %s120 = int_to_ptr.vmem [resolvable:$true] %s119
      %122 = dma.hbm_to_vmem [thread:$0]  %s118, 16, %s120, [#allocation15]
    $region41: #{_lambda_.1} parent=1 // pred_fallthru
      _
    // Predicated region
    $region42: #{_lambda_.1} parent=1 // pred_check
      _
    $region43: #{_lambda_.1} parent=1 // pred_check_branch
      %124 = sbr.rel (0) target = $region45
    $region44: #{_lambda_.1} parent=1 // pred_region
      %126 = dma.done [#allocation3], 256
    $region45: #{_lambda_.1} parent=1 // pred_fallthru
      _
    // Predicated region
    $region46: #{_lambda_.1} parent=1 // pred_check
      _
    $region47: #{_lambda_.1} parent=1 // pred_check_branch
      %128 = sbr.rel (0) target = $region49
    $region48: #{_lambda_.1} parent=1 // pred_region
      %130 = dma.done [#allocation6], 57344
    $region49: #{_lambda_.1} parent=1 // pred_fallthru
      _
    // Predicated region
    $region50: #{_lambda_.1} parent=1 // pred_check
      _
    $region51: #{_lambda_.1} parent=1 // pred_check_branch
      %132 = sbr.rel (0) target = $region53
    $region52: #{_lambda_.1} parent=1 // pred_region
      %134 = dma.done [#allocation6], 128
    $region53: #{_lambda_.1} parent=1 // pred_fallthru
      _
    // Predicated region
    $region54: #{_lambda_.1} parent=1 // pred_check
      _
    $region55: #{_lambda_.1} parent=1 // pred_check_branch
      %136 = sbr.rel (0) target = $region57
    $region56: #{_lambda_.1} parent=1 // pred_region
      %138 = dma.done [#allocation9], 65536
    $region57: #{_lambda_.1} parent=1 // pred_fallthru
      _
    // Predicated region
    $region58: #{_lambda_.1} parent=1 // pred_check
      _
    $region59: #{_lambda_.1} parent=1 // pred_check_branch
      %140 = sbr.rel (0) target = $region61
    $region60: #{_lambda_.1} parent=1 // pred_region
      %142 = dma.done [#allocation9], 128
    $region61: #{_lambda_.1} parent=1 // pred_fallthru
      _
    // Predicated region
    $region62: #{_lambda_.1} parent=1 // pred_check
      _
    $region63: #{_lambda_.1} parent=1 // pred_check_branch
      %144 = sbr.rel (0) target = $region65
    $region64: #{_lambda_.1} parent=1 // pred_region
      %146 = dma.done [#allocation12], 32768
    $region65: #{_lambda_.1} parent=1 // pred_fallthru
      _
    // Predicated region
    $region66: #{_lambda_.1} parent=1 // pred_check
      _
    $region67: #{_lambda_.1} parent=1 // pred_check_branch
      %148 = sbr.rel (0) target = $region69
    $region68: #{_lambda_.1} parent=1 // pred_region
      %150 = dma.done [#allocation12], 64
    $region69: #{_lambda_.1} parent=1 // pred_fallthru
      _
    // Predicated region
    $region70: #{_lambda_.1} parent=1 // pred_check
      _
    $region71: #{_lambda_.1} parent=1 // pred_check_branch
      %152 = sbr.rel (0) target = $region73
    $region72: #{_lambda_.1} parent=1 // pred_region
      %154 = dma.done [#allocation15], 16
    $region73: #{_lambda_.1} parent=1 // pred_fallthru
      _
    %v155 = vld [vmem:[%s0] sm:$0xff]
    %v156 = vld [vmem:[%s0 + $0x8] sm:$0xff]
    %v157 = vld [vmem:[%s0 + $0x10] sm:$0xff]
    %v158 = vld [vmem:[%s0 + $0x18] sm:$0xff]
    %v159 = vld [vmem:[%s0 + $0x20] sm:$0xff]
    %v160 = vld [vmem:[%s0 + $0x28] sm:$0xff]
    %v161 = vld [vmem:[%s0 + $0x30] sm:$0xff]
    %v162 = vpack.c.bf16 %v155, %v155
    %v163 = vpack.c.bf16 %v156, %v156
    %v164 = vpack.c.bf16 %v157, %v157
    %v165 = vpack.c.bf16 %v158, %v158
    %v166 = vpack.c.bf16 %v159, %v159
    %v167 = vpack.c.bf16 %v160, %v160
    %v168 = vpack.c.bf16 %v161, %v161
    %v169 = vld [vmem:[#allocation5] sm:$0xff]
    %v170 = vld [vmem:[#allocation5 + $0x8] sm:$0xff]
    %v171 = vld [vmem:[#allocation5 + $0x10] sm:$0xff]
    %v172 = vld [vmem:[#allocation5 + $0x18] sm:$0xff]
    %v173 = vld [vmem:[#allocation5 + $0x20] sm:$0xff]
    %v174 = vld [vmem:[#allocation5 + $0x28] sm:$0xff]
    %v175 = vld [vmem:[#allocation5 + $0x30] sm:$0xff]
    %v176 = vld [vmem:[#allocation5 + $0x38] sm:$0xff]
    %v177 = vld [vmem:[#allocation5 + $0x40] sm:$0xff]
    %v178 = vld [vmem:[#allocation5 + $0x48] sm:$0xff]
    %v179 = vld [vmem:[#allocation5 + $0x50] sm:$0xff]
    %v180 = vld [vmem:[#allocation5 + $0x58] sm:$0xff]
    %v181 = vld [vmem:[#allocation5 + $0x60] sm:$0xff]
    %v182 = vld [vmem:[#allocation5 + $0x68] sm:$0xff]
    %v183 = vld [vmem:[#allocation5 + $0x70] sm:$0xff]
    %v184 = vld [vmem:[#allocation5 + $0x78] sm:$0xff]
    %v185 = vld [vmem:[#allocation5 + $0x80] sm:$0xff]
    %v186 = vld [vmem:[#allocation5 + $0x88] sm:$0xff]
    %v187 = vld [vmem:[#allocation5 + $0x90] sm:$0xff]
    %v188 = vld [vmem:[#allocation5 + $0x98] sm:$0xff]
    %v189 = vld [vmem:[#allocation5 + $0xa0] sm:$0xff]
    %v190 = vld [vmem:[#allocation5 + $0xa8] sm:$0xff]
    %v191 = vld [vmem:[#allocation5 + $0xb0] sm:$0xff]
    %v192 = vld [vmem:[#allocation5 + $0xb8] sm:$0xff]
    %v193 = vld [vmem:[#allocation5 + $0xc0] sm:$0xff]
    %v194 = vld [vmem:[#allocation5 + $0xc8] sm:$0xff]
    %v195 = vld [vmem:[#allocation5 + $0xd0] sm:$0xff]
    %v196 = vld [vmem:[#allocation5 + $0xd8] sm:$0xff]
    %v197 = vld [vmem:[#allocation5 + $0xe0] sm:$0xff]
    %v198 = vld [vmem:[#allocation5 + $0xe8] sm:$0xff]
    %v199 = vld [vmem:[#allocation5 + $0xf0] sm:$0xff]
    %v200 = vld [vmem:[#allocation5 + $0xf8] sm:$0xff]
    %v201 = vld [vmem:[#allocation5 + $0x100] sm:$0xff]
    %v202 = vld [vmem:[#allocation5 + $0x108] sm:$0xff]
    %v203 = vld [vmem:[#allocation5 + $0x110] sm:$0xff]
    %v204 = vld [vmem:[#allocation5 + $0x118] sm:$0xff]
    %v205 = vld [vmem:[#allocation5 + $0x120] sm:$0xff]
    %v206 = vld [vmem:[#allocation5 + $0x128] sm:$0xff]
    %v207 = vld [vmem:[#allocation5 + $0x130] sm:$0xff]
    %v208 = vld [vmem:[#allocation5 + $0x138] sm:$0xff]
    %v209 = vld [vmem:[#allocation5 + $0x140] sm:$0xff]
    %v210 = vld [vmem:[#allocation5 + $0x148] sm:$0xff]
    %v211 = vld [vmem:[#allocation5 + $0x150] sm:$0xff]
    %v212 = vld [vmem:[#allocation5 + $0x158] sm:$0xff]
    %v213 = vld [vmem:[#allocation5 + $0x160] sm:$0xff]
    %v214 = vld [vmem:[#allocation5 + $0x168] sm:$0xff]
    %v215 = vld [vmem:[#allocation5 + $0x170] sm:$0xff]
    %v216 = vld [vmem:[#allocation5 + $0x178] sm:$0xff]
    %v217 = vld [vmem:[#allocation5 + $0x180] sm:$0xff]
    %v218 = vld [vmem:[#allocation5 + $0x188] sm:$0xff]
    %v219 = vld [vmem:[#allocation5 + $0x190] sm:$0xff]
    %v220 = vld [vmem:[#allocation5 + $0x198] sm:$0xff]
    %v221 = vld [vmem:[#allocation5 + $0x1a0] sm:$0xff]
    %v222 = vld [vmem:[#allocation5 + $0x1a8] sm:$0xff]
    %v223 = vld [vmem:[#allocation5 + $0x1b0] sm:$0xff]
    %v224 = vld [vmem:[#allocation5 + $0x1b8] sm:$0xff]
    %v225 = vld [vmem:[#allocation5 + $0x1c0] sm:$0xff]
    %v226 = vld [vmem:[#allocation5 + $0x1c8] sm:$0xff]
    %v227 = vld [vmem:[#allocation5 + $0x1d0] sm:$0xff]
    %v228 = vld [vmem:[#allocation5 + $0x1d8] sm:$0xff]
    %v229 = vld [vmem:[#allocation5 + $0x1e0] sm:$0xff]
    %v230 = vld [vmem:[#allocation5 + $0x1e8] sm:$0xff]
    %v231 = vld [vmem:[#allocation5 + $0x1f0] sm:$0xff]
    %v232 = vld [vmem:[#allocation5 + $0x1f8] sm:$0xff]
    %v233 = vld [vmem:[#allocation5 + $0x200] sm:$0xff]
    %v234 = vld [vmem:[#allocation5 + $0x208] sm:$0xff]
    %v235 = vld [vmem:[#allocation5 + $0x210] sm:$0xff]
    %v236 = vld [vmem:[#allocation5 + $0x218] sm:$0xff]
    %v237 = vld [vmem:[#allocation5 + $0x220] sm:$0xff]
    %v238 = vld [vmem:[#allocation5 + $0x228] sm:$0xff]
    %v239 = vld [vmem:[#allocation5 + $0x230] sm:$0xff]
    %v240 = vld [vmem:[#allocation5 + $0x238] sm:$0xff]
    %v241 = vld [vmem:[#allocation5 + $0x240] sm:$0xff]
    %v242 = vld [vmem:[#allocation5 + $0x248] sm:$0xff]
    %v243 = vld [vmem:[#allocation5 + $0x250] sm:$0xff]
    %v244 = vld [vmem:[#allocation5 + $0x258] sm:$0xff]
    %v245 = vld [vmem:[#allocation5 + $0x260] sm:$0xff]
    %v246 = vld [vmem:[#allocation5 + $0x268] sm:$0xff]
    %v247 = vld [vmem:[#allocation5 + $0x270] sm:$0xff]
    %v248 = vld [vmem:[#allocation5 + $0x278] sm:$0xff]
    %v249 = vld [vmem:[#allocation5 + $0x280] sm:$0xff]
    %v250 = vld [vmem:[#allocation5 + $0x288] sm:$0xff]
    %v251 = vld [vmem:[#allocation5 + $0x290] sm:$0xff]
    %v252 = vld [vmem:[#allocation5 + $0x298] sm:$0xff]
    %v253 = vld [vmem:[#allocation5 + $0x2a0] sm:$0xff]
    %v254 = vld [vmem:[#allocation5 + $0x2a8] sm:$0xff]
    %v255 = vld [vmem:[#allocation5 + $0x2b0] sm:$0xff]
    %v256 = vld [vmem:[#allocation5 + $0x2b8] sm:$0xff]
    %v257 = vld [vmem:[#allocation5 + $0x2c0] sm:$0xff]
    %v258 = vld [vmem:[#allocation5 + $0x2c8] sm:$0xff]
    %v259 = vld [vmem:[#allocation5 + $0x2d0] sm:$0xff]
    %v260 = vld [vmem:[#allocation5 + $0x2d8] sm:$0xff]
    %v261 = vld [vmem:[#allocation5 + $0x2e0] sm:$0xff]
    %v262 = vld [vmem:[#allocation5 + $0x2e8] sm:$0xff]
    %v263 = vld [vmem:[#allocation5 + $0x2f0] sm:$0xff]
    %v264 = vld [vmem:[#allocation5 + $0x2f8] sm:$0xff]
    %v265 = vld [vmem:[#allocation5 + $0x300] sm:$0xff]
    %v266 = vld [vmem:[#allocation5 + $0x308] sm:$0xff]
    %v267 = vld [vmem:[#allocation5 + $0x310] sm:$0xff]
    %v268 = vld [vmem:[#allocation5 + $0x318] sm:$0xff]
    %v269 = vld [vmem:[#allocation5 + $0x320] sm:$0xff]
    %v270 = vld [vmem:[#allocation5 + $0x328] sm:$0xff]
    %v271 = vld [vmem:[#allocation5 + $0x330] sm:$0xff]
    %v272 = vld [vmem:[#allocation5 + $0x338] sm:$0xff]
    %v273 = vld [vmem:[#allocation5 + $0x340] sm:$0xff]
    %v274 = vld [vmem:[#allocation5 + $0x348] sm:$0xff]
    %v275 = vld [vmem:[#allocation5 + $0x350] sm:$0xff]
    %v276 = vld [vmem:[#allocation5 + $0x358] sm:$0xff]
    %v277 = vld [vmem:[#allocation5 + $0x360] sm:$0xff]
    %v278 = vld [vmem:[#allocation5 + $0x368] sm:$0xff]
    %v279 = vld [vmem:[#allocation5 + $0x370] sm:$0xff]
    %v280 = vld [vmem:[#allocation5 + $0x378] sm:$0xff]
    %v281 = vld [vmem:[#allocation5 + $0x380] sm:$0xff]
    %v282 = vld [vmem:[#allocation5 + $0x388] sm:$0xff]
    %v283 = vld [vmem:[#allocation5 + $0x390] sm:$0xff]
    %v284 = vld [vmem:[#allocation5 + $0x398] sm:$0xff]
    %v285 = vld [vmem:[#allocation5 + $0x3a0] sm:$0xff]
    %v286 = vld [vmem:[#allocation5 + $0x3a8] sm:$0xff]
    %v287 = vld [vmem:[#allocation5 + $0x3b0] sm:$0xff]
    %v288 = vld [vmem:[#allocation5 + $0x3b8] sm:$0xff]
    %v289 = vld [vmem:[#allocation5 + $0x3c0] sm:$0xff]
    %v290 = vld [vmem:[#allocation5 + $0x3c8] sm:$0xff]
    %v291 = vld [vmem:[#allocation5 + $0x3d0] sm:$0xff]
    %v292 = vld [vmem:[#allocation5 + $0x3d8] sm:$0xff]
    %v293 = vld [vmem:[#allocation5 + $0x3e0] sm:$0xff]
    %v294 = vld [vmem:[#allocation5 + $0x3e8] sm:$0xff]
    %v295 = vld [vmem:[#allocation5 + $0x3f0] sm:$0xff]
    %v296 = vld [vmem:[#allocation5 + $0x3f8] sm:$0xff]
    %v297 = vld [vmem:[#allocation5 + $0x400] sm:$0xff]
    %v298 = vld [vmem:[#allocation5 + $0x408] sm:$0xff]
    %v299 = vld [vmem:[#allocation5 + $0x410] sm:$0xff]
    %v300 = vld [vmem:[#allocation5 + $0x418] sm:$0xff]
    %v301 = vld [vmem:[#allocation5 + $0x420] sm:$0xff]
    %v302 = vld [vmem:[#allocation5 + $0x428] sm:$0xff]
    %v303 = vld [vmem:[#allocation5 + $0x430] sm:$0xff]
    %v304 = vld [vmem:[#allocation5 + $0x438] sm:$0xff]
    %v305 = vld [vmem:[#allocation5 + $0x440] sm:$0xff]
    %v306 = vld [vmem:[#allocation5 + $0x448] sm:$0xff]
    %v307 = vld [vmem:[#allocation5 + $0x450] sm:$0xff]
    %v308 = vld [vmem:[#allocation5 + $0x458] sm:$0xff]
    %v309 = vld [vmem:[#allocation5 + $0x460] sm:$0xff]
    %v310 = vld [vmem:[#allocation5 + $0x468] sm:$0xff]
    %v311 = vld [vmem:[#allocation5 + $0x470] sm:$0xff]
    %v312 = vld [vmem:[#allocation5 + $0x478] sm:$0xff]
    %v313 = vld [vmem:[#allocation5 + $0x480] sm:$0xff]
    %v314 = vld [vmem:[#allocation5 + $0x488] sm:$0xff]
    %v315 = vld [vmem:[#allocation5 + $0x490] sm:$0xff]
    %v316 = vld [vmem:[#allocation5 + $0x498] sm:$0xff]
    %v317 = vld [vmem:[#allocation5 + $0x4a0] sm:$0xff]
    %v318 = vld [vmem:[#allocation5 + $0x4a8] sm:$0xff]
    %v319 = vld [vmem:[#allocation5 + $0x4b0] sm:$0xff]
    %v320 = vld [vmem:[#allocation5 + $0x4b8] sm:$0xff]
    %v321 = vld [vmem:[#allocation5 + $0x4c0] sm:$0xff]
    %v322 = vld [vmem:[#allocation5 + $0x4c8] sm:$0xff]
    %v323 = vld [vmem:[#allocation5 + $0x4d0] sm:$0xff]
    %v324 = vld [vmem:[#allocation5 + $0x4d8] sm:$0xff]
    %v325 = vld [vmem:[#allocation5 + $0x4e0] sm:$0xff]
    %v326 = vld [vmem:[#allocation5 + $0x4e8] sm:$0xff]
    %v327 = vld [vmem:[#allocation5 + $0x4f0] sm:$0xff]
    %v328 = vld [vmem:[#allocation5 + $0x4f8] sm:$0xff]
    %v329 = vld [vmem:[#allocation5 + $0x500] sm:$0xff]
    %v330 = vld [vmem:[#allocation5 + $0x508] sm:$0xff]
    %v331 = vld [vmem:[#allocation5 + $0x510] sm:$0xff]
    %v332 = vld [vmem:[#allocation5 + $0x518] sm:$0xff]
    %v333 = vld [vmem:[#allocation5 + $0x520] sm:$0xff]
    %v334 = vld [vmem:[#allocation5 + $0x528] sm:$0xff]
    %v335 = vld [vmem:[#allocation5 + $0x530] sm:$0xff]
    %v336 = vld [vmem:[#allocation5 + $0x538] sm:$0xff]
    %v337 = vld [vmem:[#allocation5 + $0x540] sm:$0xff]
    %v338 = vld [vmem:[#allocation5 + $0x548] sm:$0xff]
    %v339 = vld [vmem:[#allocation5 + $0x550] sm:$0xff]
    %v340 = vld [vmem:[#allocation5 + $0x558] sm:$0xff]
    %v341 = vld [vmem:[#allocation5 + $0x560] sm:$0xff]
    %v342 = vld [vmem:[#allocation5 + $0x568] sm:$0xff]
    %v343 = vld [vmem:[#allocation5 + $0x570] sm:$0xff]
    %v344 = vld [vmem:[#allocation5 + $0x578] sm:$0xff]
    %v345 = vld [vmem:[#allocation5 + $0x580] sm:$0xff]
    %v346 = vld [vmem:[#allocation5 + $0x588] sm:$0xff]
    %v347 = vld [vmem:[#allocation5 + $0x590] sm:$0xff]
    %v348 = vld [vmem:[#allocation5 + $0x598] sm:$0xff]
    %v349 = vld [vmem:[#allocation5 + $0x5a0] sm:$0xff]
    %v350 = vld [vmem:[#allocation5 + $0x5a8] sm:$0xff]
    %v351 = vld [vmem:[#allocation5 + $0x5b0] sm:$0xff]
    %v352 = vld [vmem:[#allocation5 + $0x5b8] sm:$0xff]
    %v353 = vld [vmem:[#allocation5 + $0x5c0] sm:$0xff]
    %v354 = vld [vmem:[#allocation5 + $0x5c8] sm:$0xff]
    %v355 = vld [vmem:[#allocation5 + $0x5d0] sm:$0xff]
    %v356 = vld [vmem:[#allocation5 + $0x5d8] sm:$0xff]
    %v357 = vld [vmem:[#allocation5 + $0x5e0] sm:$0xff]
    %v358 = vld [vmem:[#allocation5 + $0x5e8] sm:$0xff]
    %v359 = vld [vmem:[#allocation5 + $0x5f0] sm:$0xff]
    %v360 = vld [vmem:[#allocation5 + $0x5f8] sm:$0xff]
    %v361 = vld [vmem:[#allocation5 + $0x600] sm:$0xff]
    %v362 = vld [vmem:[#allocation5 + $0x608] sm:$0xff]
    %v363 = vld [vmem:[#allocation5 + $0x610] sm:$0xff]
    %v364 = vld [vmem:[#allocation5 + $0x618] sm:$0xff]
    %v365 = vld [vmem:[#allocation5 + $0x620] sm:$0xff]
    %v366 = vld [vmem:[#allocation5 + $0x628] sm:$0xff]
    %v367 = vld [vmem:[#allocation5 + $0x630] sm:$0xff]
    %v368 = vld [vmem:[#allocation5 + $0x638] sm:$0xff]
    %v369 = vld [vmem:[#allocation5 + $0x640] sm:$0xff]
    %v370 = vld [vmem:[#allocation5 + $0x648] sm:$0xff]
    %v371 = vld [vmem:[#allocation5 + $0x650] sm:$0xff]
    %v372 = vld [vmem:[#allocation5 + $0x658] sm:$0xff]
    %v373 = vld [vmem:[#allocation5 + $0x660] sm:$0xff]
    %v374 = vld [vmem:[#allocation5 + $0x668] sm:$0xff]
    %v375 = vld [vmem:[#allocation5 + $0x670] sm:$0xff]
    %v376 = vld [vmem:[#allocation5 + $0x678] sm:$0xff]
    %v377 = vld [vmem:[#allocation5 + $0x680] sm:$0xff]
    %v378 = vld [vmem:[#allocation5 + $0x688] sm:$0xff]
    %v379 = vld [vmem:[#allocation5 + $0x690] sm:$0xff]
    %v380 = vld [vmem:[#allocation5 + $0x698] sm:$0xff]
    %v381 = vld [vmem:[#allocation5 + $0x6a0] sm:$0xff]
    %v382 = vld [vmem:[#allocation5 + $0x6a8] sm:$0xff]
    %v383 = vld [vmem:[#allocation5 + $0x6b0] sm:$0xff]
    %v384 = vld [vmem:[#allocation5 + $0x6b8] sm:$0xff]
    %v385 = vld [vmem:[#allocation5 + $0x6c0] sm:$0xff]
    %v386 = vld [vmem:[#allocation5 + $0x6c8] sm:$0xff]
    %v387 = vld [vmem:[#allocation5 + $0x6d0] sm:$0xff]
    %v388 = vld [vmem:[#allocation5 + $0x6d8] sm:$0xff]
    %v389 = vld [vmem:[#allocation5 + $0x6e0] sm:$0xff]
    %v390 = vld [vmem:[#allocation5 + $0x6e8] sm:$0xff]
    %v391 = vld [vmem:[#allocation5 + $0x6f0] sm:$0xff]
    %v392 = vld [vmem:[#allocation5 + $0x6f8] sm:$0xff]
    %v393 = vld [vmem:[#allocation5 + $0x700] sm:$0xff]
    %v394 = vld [vmem:[#allocation5 + $0x708] sm:$0xff]
    %v395 = vld [vmem:[#allocation5 + $0x710] sm:$0xff]
    %v396 = vld [vmem:[#allocation5 + $0x718] sm:$0xff]
    %v397 = vld [vmem:[#allocation5 + $0x720] sm:$0xff]
    %v398 = vld [vmem:[#allocation5 + $0x728] sm:$0xff]
    %v399 = vld [vmem:[#allocation5 + $0x730] sm:$0xff]
    %v400 = vld [vmem:[#allocation5 + $0x738] sm:$0xff]
    %v401 = vld [vmem:[#allocation5 + $0x740] sm:$0xff]
    %v402 = vld [vmem:[#allocation5 + $0x748] sm:$0xff]
    %v403 = vld [vmem:[#allocation5 + $0x750] sm:$0xff]
    %v404 = vld [vmem:[#allocation5 + $0x758] sm:$0xff]
    %v405 = vld [vmem:[#allocation5 + $0x760] sm:$0xff]
    %v406 = vld [vmem:[#allocation5 + $0x768] sm:$0xff]
    %v407 = vld [vmem:[#allocation5 + $0x770] sm:$0xff]
    %v408 = vld [vmem:[#allocation5 + $0x778] sm:$0xff]
    %v409 = vld [vmem:[#allocation5 + $0x780] sm:$0xff]
    %v410 = vld [vmem:[#allocation5 + $0x788] sm:$0xff]
    %v411 = vld [vmem:[#allocation5 + $0x790] sm:$0xff]
    %v412 = vld [vmem:[#allocation5 + $0x798] sm:$0xff]
    %v413 = vld [vmem:[#allocation5 + $0x7a0] sm:$0xff]
    %v414 = vld [vmem:[#allocation5 + $0x7a8] sm:$0xff]
    %v415 = vld [vmem:[#allocation5 + $0x7b0] sm:$0xff]
    %v416 = vld [vmem:[#allocation5 + $0x7b8] sm:$0xff]
    %v417 = vld [vmem:[#allocation5 + $0x7c0] sm:$0xff]
    %v418 = vld [vmem:[#allocation5 + $0x7c8] sm:$0xff]
    %v419 = vld [vmem:[#allocation5 + $0x7d0] sm:$0xff]
    %v420 = vld [vmem:[#allocation5 + $0x7d8] sm:$0xff]
    %v421 = vld [vmem:[#allocation5 + $0x7e0] sm:$0xff]
    %v422 = vld [vmem:[#allocation5 + $0x7e8] sm:$0xff]
    %v423 = vld [vmem:[#allocation5 + $0x7f0] sm:$0xff]
    %v424 = vld [vmem:[#allocation5 + $0x7f8] sm:$0xff]
    %v425 = vld [vmem:[#allocation5 + $0x800] sm:$0xff]
    %v426 = vld [vmem:[#allocation5 + $0x808] sm:$0xff]
    %v427 = vld [vmem:[#allocation5 + $0x810] sm:$0xff]
    %v428 = vld [vmem:[#allocation5 + $0x818] sm:$0xff]
    %v429 = vld [vmem:[#allocation5 + $0x820] sm:$0xff]
    %v430 = vld [vmem:[#allocation5 + $0x828] sm:$0xff]
    %v431 = vld [vmem:[#allocation5 + $0x830] sm:$0xff]
    %v432 = vld [vmem:[#allocation5 + $0x838] sm:$0xff]
    %v433 = vld [vmem:[#allocation5 + $0x840] sm:$0xff]
    %v434 = vld [vmem:[#allocation5 + $0x848] sm:$0xff]
    %v435 = vld [vmem:[#allocation5 + $0x850] sm:$0xff]
    %v436 = vld [vmem:[#allocation5 + $0x858] sm:$0xff]
    %v437 = vld [vmem:[#allocation5 + $0x860] sm:$0xff]
    %v438 = vld [vmem:[#allocation5 + $0x868] sm:$0xff]
    %v439 = vld [vmem:[#allocation5 + $0x870] sm:$0xff]
    %v440 = vld [vmem:[#allocation5 + $0x878] sm:$0xff]
    %v441 = vld [vmem:[#allocation5 + $0x880] sm:$0xff]
    %v442 = vld [vmem:[#allocation5 + $0x888] sm:$0xff]
    %v443 = vld [vmem:[#allocation5 + $0x890] sm:$0xff]
    %v444 = vld [vmem:[#allocation5 + $0x898] sm:$0xff]
    %v445 = vld [vmem:[#allocation5 + $0x8a0] sm:$0xff]
    %v446 = vld [vmem:[#allocation5 + $0x8a8] sm:$0xff]
    %v447 = vld [vmem:[#allocation5 + $0x8b0] sm:$0xff]
    %v448 = vld [vmem:[#allocation5 + $0x8b8] sm:$0xff]
    %v449 = vld [vmem:[#allocation5 + $0x8c0] sm:$0xff]
    %v450 = vld [vmem:[#allocation5 + $0x8c8] sm:$0xff]
    %v451 = vld [vmem:[#allocation5 + $0x8d0] sm:$0xff]
    %v452 = vld [vmem:[#allocation5 + $0x8d8] sm:$0xff]
    %v453 = vld [vmem:[#allocation5 + $0x8e0] sm:$0xff]
    %v454 = vld [vmem:[#allocation5 + $0x8e8] sm:$0xff]
    %v455 = vld [vmem:[#allocation5 + $0x8f0] sm:$0xff]
    %v456 = vld [vmem:[#allocation5 + $0x8f8] sm:$0xff]
    %v457 = vld [vmem:[#allocation5 + $0x900] sm:$0xff]
    %v458 = vld [vmem:[#allocation5 + $0x908] sm:$0xff]
    %v459 = vld [vmem:[#allocation5 + $0x910] sm:$0xff]
    %v460 = vld [vmem:[#allocation5 + $0x918] sm:$0xff]
    %v461 = vld [vmem:[#allocation5 + $0x920] sm:$0xff]
    %v462 = vld [vmem:[#allocation5 + $0x928] sm:$0xff]
    %v463 = vld [vmem:[#allocation5 + $0x930] sm:$0xff]
    %v464 = vld [vmem:[#allocation5 + $0x938] sm:$0xff]
    %v465 = vld [vmem:[#allocation5 + $0x940] sm:$0xff]
    %v466 = vld [vmem:[#allocation5 + $0x948] sm:$0xff]
    %v467 = vld [vmem:[#allocation5 + $0x950] sm:$0xff]
    %v468 = vld [vmem:[#allocation5 + $0x958] sm:$0xff]
    %v469 = vld [vmem:[#allocation5 + $0x960] sm:$0xff]
    %v470 = vld [vmem:[#allocation5 + $0x968] sm:$0xff]
    %v471 = vld [vmem:[#allocation5 + $0x970] sm:$0xff]
    %v472 = vld [vmem:[#allocation5 + $0x978] sm:$0xff]
    %v473 = vld [vmem:[#allocation5 + $0x980] sm:$0xff]
    %v474 = vld [vmem:[#allocation5 + $0x988] sm:$0xff]
    %v475 = vld [vmem:[#allocation5 + $0x990] sm:$0xff]
    %v476 = vld [vmem:[#allocation5 + $0x998] sm:$0xff]
    %v477 = vld [vmem:[#allocation5 + $0x9a0] sm:$0xff]
    %v478 = vld [vmem:[#allocation5 + $0x9a8] sm:$0xff]
    %v479 = vld [vmem:[#allocation5 + $0x9b0] sm:$0xff]
    %v480 = vld [vmem:[#allocation5 + $0x9b8] sm:$0xff]
    %v481 = vld [vmem:[#allocation5 + $0x9c0] sm:$0xff]
    %v482 = vld [vmem:[#allocation5 + $0x9c8] sm:$0xff]
    %v483 = vld [vmem:[#allocation5 + $0x9d0] sm:$0xff]
    %v484 = vld [vmem:[#allocation5 + $0x9d8] sm:$0xff]
    %v485 = vld [vmem:[#allocation5 + $0x9e0] sm:$0xff]
    %v486 = vld [vmem:[#allocation5 + $0x9e8] sm:$0xff]
    %v487 = vld [vmem:[#allocation5 + $0x9f0] sm:$0xff]
    %v488 = vld [vmem:[#allocation5 + $0x9f8] sm:$0xff]
    %v489 = vld [vmem:[#allocation5 + $0xa00] sm:$0xff]
    %v490 = vld [vmem:[#allocation5 + $0xa08] sm:$0xff]
    %v491 = vld [vmem:[#allocation5 + $0xa10] sm:$0xff]
    %v492 = vld [vmem:[#allocation5 + $0xa18] sm:$0xff]
    %v493 = vld [vmem:[#allocation5 + $0xa20] sm:$0xff]
    %v494 = vld [vmem:[#allocation5 + $0xa28] sm:$0xff]
    %v495 = vld [vmem:[#allocation5 + $0xa30] sm:$0xff]
    %v496 = vld [vmem:[#allocation5 + $0xa38] sm:$0xff]
    %v497 = vld [vmem:[#allocation5 + $0xa40] sm:$0xff]
    %v498 = vld [vmem:[#allocation5 + $0xa48] sm:$0xff]
    %v499 = vld [vmem:[#allocation5 + $0xa50] sm:$0xff]
    %v500 = vld [vmem:[#allocation5 + $0xa58] sm:$0xff]
    %v501 = vld [vmem:[#allocation5 + $0xa60] sm:$0xff]
    %v502 = vld [vmem:[#allocation5 + $0xa68] sm:$0xff]
    %v503 = vld [vmem:[#allocation5 + $0xa70] sm:$0xff]
    %v504 = vld [vmem:[#allocation5 + $0xa78] sm:$0xff]
    %v505 = vld [vmem:[#allocation5 + $0xa80] sm:$0xff]
    %v506 = vld [vmem:[#allocation5 + $0xa88] sm:$0xff]
    %v507 = vld [vmem:[#allocation5 + $0xa90] sm:$0xff]
    %v508 = vld [vmem:[#allocation5 + $0xa98] sm:$0xff]
    %v509 = vld [vmem:[#allocation5 + $0xaa0] sm:$0xff]
    %v510 = vld [vmem:[#allocation5 + $0xaa8] sm:$0xff]
    %v511 = vld [vmem:[#allocation5 + $0xab0] sm:$0xff]
    %v512 = vld [vmem:[#allocation5 + $0xab8] sm:$0xff]
    %v513 = vld [vmem:[#allocation5 + $0xac0] sm:$0xff]
    %v514 = vld [vmem:[#allocation5 + $0xac8] sm:$0xff]
    %v515 = vld [vmem:[#allocation5 + $0xad0] sm:$0xff]
    %v516 = vld [vmem:[#allocation5 + $0xad8] sm:$0xff]
    %v517 = vld [vmem:[#allocation5 + $0xae0] sm:$0xff]
    %v518 = vld [vmem:[#allocation5 + $0xae8] sm:$0xff]
    %v519 = vld [vmem:[#allocation5 + $0xaf0] sm:$0xff]
    %v520 = vld [vmem:[#allocation5 + $0xaf8] sm:$0xff]
    %v521 = vld [vmem:[#allocation5 + $0xb00] sm:$0xff]
    %v522 = vld [vmem:[#allocation5 + $0xb08] sm:$0xff]
    %v523 = vld [vmem:[#allocation5 + $0xb10] sm:$0xff]
    %v524 = vld [vmem:[#allocation5 + $0xb18] sm:$0xff]
    %v525 = vld [vmem:[#allocation5 + $0xb20] sm:$0xff]
    %v526 = vld [vmem:[#allocation5 + $0xb28] sm:$0xff]
    %v527 = vld [vmem:[#allocation5 + $0xb30] sm:$0xff]
    %v528 = vld [vmem:[#allocation5 + $0xb38] sm:$0xff]
    %v529 = vld [vmem:[#allocation5 + $0xb40] sm:$0xff]
    %v530 = vld [vmem:[#allocation5 + $0xb48] sm:$0xff]
    %v531 = vld [vmem:[#allocation5 + $0xb50] sm:$0xff]
    %v532 = vld [vmem:[#allocation5 + $0xb58] sm:$0xff]
    %v533 = vld [vmem:[#allocation5 + $0xb60] sm:$0xff]
    %v534 = vld [vmem:[#allocation5 + $0xb68] sm:$0xff]
    %v535 = vld [vmem:[#allocation5 + $0xb70] sm:$0xff]
    %v536 = vld [vmem:[#allocation5 + $0xb78] sm:$0xff]
    %v537 = vld [vmem:[#allocation5 + $0xb80] sm:$0xff]
    %v538 = vld [vmem:[#allocation5 + $0xb88] sm:$0xff]
    %v539 = vld [vmem:[#allocation5 + $0xb90] sm:$0xff]
    %v540 = vld [vmem:[#allocation5 + $0xb98] sm:$0xff]
    %v541 = vld [vmem:[#allocation5 + $0xba0] sm:$0xff]
    %v542 = vld [vmem:[#allocation5 + $0xba8] sm:$0xff]
    %v543 = vld [vmem:[#allocation5 + $0xbb0] sm:$0xff]
    %v544 = vld [vmem:[#allocation5 + $0xbb8] sm:$0xff]
    %v545 = vld [vmem:[#allocation5 + $0xbc0] sm:$0xff]
    %v546 = vld [vmem:[#allocation5 + $0xbc8] sm:$0xff]
    %v547 = vld [vmem:[#allocation5 + $0xbd0] sm:$0xff]
    %v548 = vld [vmem:[#allocation5 + $0xbd8] sm:$0xff]
    %v549 = vld [vmem:[#allocation5 + $0xbe0] sm:$0xff]
    %v550 = vld [vmem:[#allocation5 + $0xbe8] sm:$0xff]
    %v551 = vld [vmem:[#allocation5 + $0xbf0] sm:$0xff]
    %v552 = vld [vmem:[#allocation5 + $0xbf8] sm:$0xff]
    %v553 = vld [vmem:[#allocation5 + $0xc00] sm:$0xff]
    %v554 = vld [vmem:[#allocation5 + $0xc08] sm:$0xff]
    %v555 = vld [vmem:[#allocation5 + $0xc10] sm:$0xff]
    %v556 = vld [vmem:[#allocation5 + $0xc18] sm:$0xff]
    %v557 = vld [vmem:[#allocation5 + $0xc20] sm:$0xff]
    %v558 = vld [vmem:[#allocation5 + $0xc28] sm:$0xff]
    %v559 = vld [vmem:[#allocation5 + $0xc30] sm:$0xff]
    %v560 = vld [vmem:[#allocation5 + $0xc38] sm:$0xff]
    %v561 = vld [vmem:[#allocation5 + $0xc40] sm:$0xff]
    %v562 = vld [vmem:[#allocation5 + $0xc48] sm:$0xff]
    %v563 = vld [vmem:[#allocation5 + $0xc50] sm:$0xff]
    %v564 = vld [vmem:[#allocation5 + $0xc58] sm:$0xff]
    %v565 = vld [vmem:[#allocation5 + $0xc60] sm:$0xff]
    %v566 = vld [vmem:[#allocation5 + $0xc68] sm:$0xff]
    %v567 = vld [vmem:[#allocation5 + $0xc70] sm:$0xff]
    %v568 = vld [vmem:[#allocation5 + $0xc78] sm:$0xff]
    %v569 = vld [vmem:[#allocation5 + $0xc80] sm:$0xff]
    %v570 = vld [vmem:[#allocation5 + $0xc88] sm:$0xff]
    %v571 = vld [vmem:[#allocation5 + $0xc90] sm:$0xff]
    %v572 = vld [vmem:[#allocation5 + $0xc98] sm:$0xff]
    %v573 = vld [vmem:[#allocation5 + $0xca0] sm:$0xff]
    %v574 = vld [vmem:[#allocation5 + $0xca8] sm:$0xff]
    %v575 = vld [vmem:[#allocation5 + $0xcb0] sm:$0xff]
    %v576 = vld [vmem:[#allocation5 + $0xcb8] sm:$0xff]
    %v577 = vld [vmem:[#allocation5 + $0xcc0] sm:$0xff]
    %v578 = vld [vmem:[#allocation5 + $0xcc8] sm:$0xff]
    %v579 = vld [vmem:[#allocation5 + $0xcd0] sm:$0xff]
    %v580 = vld [vmem:[#allocation5 + $0xcd8] sm:$0xff]
    %v581 = vld [vmem:[#allocation5 + $0xce0] sm:$0xff]
    %v582 = vld [vmem:[#allocation5 + $0xce8] sm:$0xff]
    %v583 = vld [vmem:[#allocation5 + $0xcf0] sm:$0xff]
    %v584 = vld [vmem:[#allocation5 + $0xcf8] sm:$0xff]
    %v585 = vld [vmem:[#allocation5 + $0xd00] sm:$0xff]
    %v586 = vld [vmem:[#allocation5 + $0xd08] sm:$0xff]
    %v587 = vld [vmem:[#allocation5 + $0xd10] sm:$0xff]
    %v588 = vld [vmem:[#allocation5 + $0xd18] sm:$0xff]
    %v589 = vld [vmem:[#allocation5 + $0xd20] sm:$0xff]
    %v590 = vld [vmem:[#allocation5 + $0xd28] sm:$0xff]
    %v591 = vld [vmem:[#allocation5 + $0xd30] sm:$0xff]
    %v592 = vld [vmem:[#allocation5 + $0xd38] sm:$0xff]
    %v593 = vld [vmem:[#allocation5 + $0xd40] sm:$0xff]
    %v594 = vld [vmem:[#allocation5 + $0xd48] sm:$0xff]
    %v595 = vld [vmem:[#allocation5 + $0xd50] sm:$0xff]
    %v596 = vld [vmem:[#allocation5 + $0xd58] sm:$0xff]
    %v597 = vld [vmem:[#allocation5 + $0xd60] sm:$0xff]
    %v598 = vld [vmem:[#allocation5 + $0xd68] sm:$0xff]
    %v599 = vld [vmem:[#allocation5 + $0xd70] sm:$0xff]
    %v600 = vld [vmem:[#allocation5 + $0xd78] sm:$0xff]
    %v601 = vld [vmem:[#allocation5 + $0xd80] sm:$0xff]
    %v602 = vld [vmem:[#allocation5 + $0xd88] sm:$0xff]
    %v603 = vld [vmem:[#allocation5 + $0xd90] sm:$0xff]
    %v604 = vld [vmem:[#allocation5 + $0xd98] sm:$0xff]
    %v605 = vld [vmem:[#allocation5 + $0xda0] sm:$0xff]
    %v606 = vld [vmem:[#allocation5 + $0xda8] sm:$0xff]
    %v607 = vld [vmem:[#allocation5 + $0xdb0] sm:$0xff]
    %v608 = vld [vmem:[#allocation5 + $0xdb8] sm:$0xff]
    %v609 = vld [vmem:[#allocation5 + $0xdc0] sm:$0xff]
    %v610 = vld [vmem:[#allocation5 + $0xdc8] sm:$0xff]
    %v611 = vld [vmem:[#allocation5 + $0xdd0] sm:$0xff]
    %v612 = vld [vmem:[#allocation5 + $0xdd8] sm:$0xff]
    %v613 = vld [vmem:[#allocation5 + $0xde0] sm:$0xff]
    %v614 = vld [vmem:[#allocation5 + $0xde8] sm:$0xff]
    %v615 = vld [vmem:[#allocation5 + $0xdf0] sm:$0xff]
    %v616 = vld [vmem:[#allocation5 + $0xdf8] sm:$0xff]
    %v617 = vld [vmem:[#allocation7] sm:$0xff]
    %v619 = vperm.slane %v617, 0
    %v620 = vperm.slane %v617, 1
    %v621 = vperm.slane %v617, 2
    %v622 = vperm.slane %v617, 3
    %v623 = vperm.slane %v617, 4
    %v624 = vperm.slane %v617, 5
    %v625 = vperm.slane %v617, 6
    %v626 = vperm.slane %v617, 7
    %v1083 = vunpack.c.l.b16 %v169
    %v1084 = vunpack.c.h.b16 %v169
    %v1085 = vunpack.c.l.b16 %v170
    %v1086 = vunpack.c.h.b16 %v170
    %v1087 = vunpack.c.l.b16 %v171
    %v1088 = vunpack.c.h.b16 %v171
    %v1089 = vunpack.c.l.b16 %v172
    %v1090 = vunpack.c.h.b16 %v172
    %v1091 = vunpack.c.l.b16 %v173
    %v1092 = vunpack.c.h.b16 %v173
    %v1093 = vunpack.c.l.b16 %v174
    %v1094 = vunpack.c.h.b16 %v174
    %v1095 = vunpack.c.l.b16 %v175
    %v1096 = vunpack.c.h.b16 %v175
    %v1097 = vunpack.c.l.b16 %v176
    %v1098 = vunpack.c.h.b16 %v176
    %v1099 = vunpack.c.l.b16 %v177
    %v1100 = vunpack.c.h.b16 %v177
    %v1101 = vunpack.c.l.b16 %v178
    %v1102 = vunpack.c.h.b16 %v178
    %v1103 = vunpack.c.l.b16 %v179
    %v1104 = vunpack.c.h.b16 %v179
    %v1105 = vunpack.c.l.b16 %v180
    %v1106 = vunpack.c.h.b16 %v180
    %v1107 = vunpack.c.l.b16 %v181
    %v1108 = vunpack.c.h.b16 %v181
    %v1109 = vunpack.c.l.b16 %v182
    %v1110 = vunpack.c.h.b16 %v182
    %v1111 = vunpack.c.l.b16 %v183
    %v1112 = vunpack.c.h.b16 %v183
    %v1113 = vunpack.c.l.b16 %v184
    %v1114 = vunpack.c.h.b16 %v184
    %v1115 = vunpack.c.l.b16 %v185
    %v1116 = vunpack.c.h.b16 %v185
    %v1117 = vunpack.c.l.b16 %v186
    %v1118 = vunpack.c.h.b16 %v186
    %v1119 = vunpack.c.l.b16 %v187
    %v1120 = vunpack.c.h.b16 %v187
    %v1121 = vunpack.c.l.b16 %v188
    %v1122 = vunpack.c.h.b16 %v188
    %v1123 = vunpack.c.l.b16 %v189
    %v1124 = vunpack.c.h.b16 %v189
    %v1125 = vunpack.c.l.b16 %v190
    %v1126 = vunpack.c.h.b16 %v190
    %v1127 = vunpack.c.l.b16 %v191
    %v1128 = vunpack.c.h.b16 %v191
    %v1129 = vunpack.c.l.b16 %v192
    %v1130 = vunpack.c.h.b16 %v192
    %v1131 = vunpack.c.l.b16 %v193
    %v1132 = vunpack.c.h.b16 %v193
    %v1133 = vunpack.c.l.b16 %v194
    %v1134 = vunpack.c.h.b16 %v194
    %v1135 = vunpack.c.l.b16 %v195
    %v1136 = vunpack.c.h.b16 %v195
    %v1137 = vunpack.c.l.b16 %v196
    %v1138 = vunpack.c.h.b16 %v196
    %v1139 = vunpack.c.l.b16 %v197
    %v1140 = vunpack.c.h.b16 %v197
    %v1141 = vunpack.c.l.b16 %v198
    %v1142 = vunpack.c.h.b16 %v198
    %v1143 = vunpack.c.l.b16 %v199
    %v1144 = vunpack.c.h.b16 %v199
    %v1145 = vunpack.c.l.b16 %v200
    %v1146 = vunpack.c.h.b16 %v200
    %v1147 = vunpack.c.l.b16 %v201
    %v1148 = vunpack.c.h.b16 %v201
    %v1149 = vunpack.c.l.b16 %v202
    %v1150 = vunpack.c.h.b16 %v202
    %v1151 = vunpack.c.l.b16 %v203
    %v1152 = vunpack.c.h.b16 %v203
    %v1153 = vunpack.c.l.b16 %v204
    %v1154 = vunpack.c.h.b16 %v204
    %v1155 = vunpack.c.l.b16 %v205
    %v1156 = vunpack.c.h.b16 %v205
    %v1157 = vunpack.c.l.b16 %v206
    %v1158 = vunpack.c.h.b16 %v206
    %v1159 = vunpack.c.l.b16 %v207
    %v1160 = vunpack.c.h.b16 %v207
    %v1161 = vunpack.c.l.b16 %v208
    %v1162 = vunpack.c.h.b16 %v208
    %v1163 = vunpack.c.l.b16 %v209
    %v1164 = vunpack.c.h.b16 %v209
    %v1165 = vunpack.c.l.b16 %v210
    %v1166 = vunpack.c.h.b16 %v210
    %v1167 = vunpack.c.l.b16 %v211
    %v1168 = vunpack.c.h.b16 %v211
    %v1169 = vunpack.c.l.b16 %v212
    %v1170 = vunpack.c.h.b16 %v212
    %v1171 = vunpack.c.l.b16 %v213
    %v1172 = vunpack.c.h.b16 %v213
    %v1173 = vunpack.c.l.b16 %v214
    %v1174 = vunpack.c.h.b16 %v214
    %v1175 = vunpack.c.l.b16 %v215
    %v1176 = vunpack.c.h.b16 %v215
    %v1177 = vunpack.c.l.b16 %v216
    %v1178 = vunpack.c.h.b16 %v216
    %v1179 = vunpack.c.l.b16 %v217
    %v1180 = vunpack.c.h.b16 %v217
    %v1181 = vunpack.c.l.b16 %v218
    %v1182 = vunpack.c.h.b16 %v218
    %v1183 = vunpack.c.l.b16 %v219
    %v1184 = vunpack.c.h.b16 %v219
    %v1185 = vunpack.c.l.b16 %v220
    %v1186 = vunpack.c.h.b16 %v220
    %v1187 = vunpack.c.l.b16 %v221
    %v1188 = vunpack.c.h.b16 %v221
    %v1189 = vunpack.c.l.b16 %v222
    %v1190 = vunpack.c.h.b16 %v222
    %v1191 = vunpack.c.l.b16 %v223
    %v1192 = vunpack.c.h.b16 %v223
    %v1193 = vunpack.c.l.b16 %v224
    %v1194 = vunpack.c.h.b16 %v224
    %v1195 = vunpack.c.l.b16 %v225
    %v1196 = vunpack.c.h.b16 %v225
    %v1197 = vunpack.c.l.b16 %v226
    %v1198 = vunpack.c.h.b16 %v226
    %v1199 = vunpack.c.l.b16 %v227
    %v1200 = vunpack.c.h.b16 %v227
    %v1201 = vunpack.c.l.b16 %v228
    %v1202 = vunpack.c.h.b16 %v228
    %v1203 = vunpack.c.l.b16 %v229
    %v1204 = vunpack.c.h.b16 %v229
    %v1205 = vunpack.c.l.b16 %v230
    %v1206 = vunpack.c.h.b16 %v230
    %v1207 = vunpack.c.l.b16 %v231
    %v1208 = vunpack.c.h.b16 %v231
    %v1209 = vunpack.c.l.b16 %v232
    %v1210 = vunpack.c.h.b16 %v232
    %v1211 = vunpack.c.l.b16 %v233
    %v1212 = vunpack.c.h.b16 %v233
    %v1213 = vunpack.c.l.b16 %v234
    %v1214 = vunpack.c.h.b16 %v234
    %v1215 = vunpack.c.l.b16 %v235
    %v1216 = vunpack.c.h.b16 %v235
    %v1217 = vunpack.c.l.b16 %v236
    %v1218 = vunpack.c.h.b16 %v236
    %v1219 = vunpack.c.l.b16 %v237
    %v1220 = vunpack.c.h.b16 %v237
    %v1221 = vunpack.c.l.b16 %v238
    %v1222 = vunpack.c.h.b16 %v238
    %v1223 = vunpack.c.l.b16 %v239
    %v1224 = vunpack.c.h.b16 %v239
    %v1225 = vunpack.c.l.b16 %v240
    %v1226 = vunpack.c.h.b16 %v240
    %v1227 = vunpack.c.l.b16 %v241
    %v1228 = vunpack.c.h.b16 %v241
    %v1229 = vunpack.c.l.b16 %v242
    %v1230 = vunpack.c.h.b16 %v242
    %v1231 = vunpack.c.l.b16 %v243
    %v1232 = vunpack.c.h.b16 %v243
    %v1233 = vunpack.c.l.b16 %v244
    %v1234 = vunpack.c.h.b16 %v244
    %v1235 = vunpack.c.l.b16 %v245
    %v1236 = vunpack.c.h.b16 %v245
    %v1237 = vunpack.c.l.b16 %v246
    %v1238 = vunpack.c.h.b16 %v246
    %v1239 = vunpack.c.l.b16 %v247
    %v1240 = vunpack.c.h.b16 %v247
    %v1241 = vunpack.c.l.b16 %v248
    %v1242 = vunpack.c.h.b16 %v248
    %v1243 = vunpack.c.l.b16 %v249
    %v1244 = vunpack.c.h.b16 %v249
    %v1245 = vunpack.c.l.b16 %v250
    %v1246 = vunpack.c.h.b16 %v250
    %v1247 = vunpack.c.l.b16 %v251
    %v1248 = vunpack.c.h.b16 %v251
    %v1249 = vunpack.c.l.b16 %v252
    %v1250 = vunpack.c.h.b16 %v252
    %v1251 = vunpack.c.l.b16 %v253
    %v1252 = vunpack.c.h.b16 %v253
    %v1253 = vunpack.c.l.b16 %v254
    %v1254 = vunpack.c.h.b16 %v254
    %v1255 = vunpack.c.l.b16 %v255
    %v1256 = vunpack.c.h.b16 %v255
    %v1257 = vunpack.c.l.b16 %v256
    %v1258 = vunpack.c.h.b16 %v256
    %v1259 = vunpack.c.l.b16 %v257
    %v1260 = vunpack.c.h.b16 %v257
    %v1261 = vunpack.c.l.b16 %v258
    %v1262 = vunpack.c.h.b16 %v258
    %v1263 = vunpack.c.l.b16 %v259
    %v1264 = vunpack.c.h.b16 %v259
    %v1265 = vunpack.c.l.b16 %v260
    %v1266 = vunpack.c.h.b16 %v260
    %v1267 = vunpack.c.l.b16 %v261
    %v1268 = vunpack.c.h.b16 %v261
    %v1269 = vunpack.c.l.b16 %v262
    %v1270 = vunpack.c.h.b16 %v262
    %v1271 = vunpack.c.l.b16 %v263
    %v1272 = vunpack.c.h.b16 %v263
    %v1273 = vunpack.c.l.b16 %v264
    %v1274 = vunpack.c.h.b16 %v264
    %v1275 = vunpack.c.l.b16 %v265
    %v1276 = vunpack.c.h.b16 %v265
    %v1277 = vunpack.c.l.b16 %v266
    %v1278 = vunpack.c.h.b16 %v266
    %v1279 = vunpack.c.l.b16 %v267
    %v1280 = vunpack.c.h.b16 %v267
    %v1281 = vunpack.c.l.b16 %v268
    %v1282 = vunpack.c.h.b16 %v268
    %v1283 = vunpack.c.l.b16 %v269
    %v1284 = vunpack.c.h.b16 %v269
    %v1285 = vunpack.c.l.b16 %v270
    %v1286 = vunpack.c.h.b16 %v270
    %v1287 = vunpack.c.l.b16 %v271
    %v1288 = vunpack.c.h.b16 %v271
    %v1289 = vunpack.c.l.b16 %v272
    %v1290 = vunpack.c.h.b16 %v272
    %v1291 = vunpack.c.l.b16 %v273
    %v1292 = vunpack.c.h.b16 %v273
    %v1293 = vunpack.c.l.b16 %v274
    %v1294 = vunpack.c.h.b16 %v274
    %v1295 = vunpack.c.l.b16 %v275
    %v1296 = vunpack.c.h.b16 %v275
    %v1297 = vunpack.c.l.b16 %v276
    %v1298 = vunpack.c.h.b16 %v276
    %v1299 = vunpack.c.l.b16 %v277
    %v1300 = vunpack.c.h.b16 %v277
    %v1301 = vunpack.c.l.b16 %v278
    %v1302 = vunpack.c.h.b16 %v278
    %v1303 = vunpack.c.l.b16 %v279
    %v1304 = vunpack.c.h.b16 %v279
    %v1305 = vunpack.c.l.b16 %v280
    %v1306 = vunpack.c.h.b16 %v280
    %v1307 = vunpack.c.l.b16 %v281
    %v1308 = vunpack.c.h.b16 %v281
    %v1309 = vunpack.c.l.b16 %v282
    %v1310 = vunpack.c.h.b16 %v282
    %v1311 = vunpack.c.l.b16 %v283
    %v1312 = vunpack.c.h.b16 %v283
    %v1313 = vunpack.c.l.b16 %v284
    %v1314 = vunpack.c.h.b16 %v284
    %v1315 = vunpack.c.l.b16 %v285
    %v1316 = vunpack.c.h.b16 %v285
    %v1317 = vunpack.c.l.b16 %v286
    %v1318 = vunpack.c.h.b16 %v286
    %v1319 = vunpack.c.l.b16 %v287
    %v1320 = vunpack.c.h.b16 %v287
    %v1321 = vunpack.c.l.b16 %v288
    %v1322 = vunpack.c.h.b16 %v288
    %v1323 = vunpack.c.l.b16 %v289
    %v1324 = vunpack.c.h.b16 %v289
    %v1325 = vunpack.c.l.b16 %v290
    %v1326 = vunpack.c.h.b16 %v290
    %v1327 = vunpack.c.l.b16 %v291
    %v1328 = vunpack.c.h.b16 %v291
    %v1329 = vunpack.c.l.b16 %v292
    %v1330 = vunpack.c.h.b16 %v292
    %v1331 = vunpack.c.l.b16 %v293
    %v1332 = vunpack.c.h.b16 %v293
    %v1333 = vunpack.c.l.b16 %v294
    %v1334 = vunpack.c.h.b16 %v294
    %v1335 = vunpack.c.l.b16 %v295
    %v1336 = vunpack.c.h.b16 %v295
    %v1337 = vunpack.c.l.b16 %v296
    %v1338 = vunpack.c.h.b16 %v296
    %v1339 = vunpack.c.l.b16 %v297
    %v1340 = vunpack.c.h.b16 %v297
    %v1341 = vunpack.c.l.b16 %v298
    %v1342 = vunpack.c.h.b16 %v298
    %v1343 = vunpack.c.l.b16 %v299
    %v1344 = vunpack.c.h.b16 %v299
    %v1345 = vunpack.c.l.b16 %v300
    %v1346 = vunpack.c.h.b16 %v300
    %v1347 = vunpack.c.l.b16 %v301
    %v1348 = vunpack.c.h.b16 %v301
    %v1349 = vunpack.c.l.b16 %v302
    %v1350 = vunpack.c.h.b16 %v302
    %v1351 = vunpack.c.l.b16 %v303
    %v1352 = vunpack.c.h.b16 %v303
    %v1353 = vunpack.c.l.b16 %v304
    %v1354 = vunpack.c.h.b16 %v304
    %v1355 = vunpack.c.l.b16 %v305
    %v1356 = vunpack.c.h.b16 %v305
    %v1357 = vunpack.c.l.b16 %v306
    %v1358 = vunpack.c.h.b16 %v306
    %v1359 = vunpack.c.l.b16 %v307
    %v1360 = vunpack.c.h.b16 %v307
    %v1361 = vunpack.c.l.b16 %v308
    %v1362 = vunpack.c.h.b16 %v308
    %v1363 = vunpack.c.l.b16 %v309
    %v1364 = vunpack.c.h.b16 %v309
    %v1365 = vunpack.c.l.b16 %v310
    %v1366 = vunpack.c.h.b16 %v310
    %v1367 = vunpack.c.l.b16 %v311
    %v1368 = vunpack.c.h.b16 %v311
    %v1369 = vunpack.c.l.b16 %v312
    %v1370 = vunpack.c.h.b16 %v312
    %v1371 = vunpack.c.l.b16 %v313
    %v1372 = vunpack.c.h.b16 %v313
    %v1373 = vunpack.c.l.b16 %v314
    %v1374 = vunpack.c.h.b16 %v314
    %v1375 = vunpack.c.l.b16 %v315
    %v1376 = vunpack.c.h.b16 %v315
    %v1377 = vunpack.c.l.b16 %v316
    %v1378 = vunpack.c.h.b16 %v316
    %v1379 = vunpack.c.l.b16 %v317
    %v1380 = vunpack.c.h.b16 %v317
    %v1381 = vunpack.c.l.b16 %v318
    %v1382 = vunpack.c.h.b16 %v318
    %v1383 = vunpack.c.l.b16 %v319
    %v1384 = vunpack.c.h.b16 %v319
    %v1385 = vunpack.c.l.b16 %v320
    %v1386 = vunpack.c.h.b16 %v320
    %v1387 = vunpack.c.l.b16 %v321
    %v1388 = vunpack.c.h.b16 %v321
    %v1389 = vunpack.c.l.b16 %v322
    %v1390 = vunpack.c.h.b16 %v322
    %v1391 = vunpack.c.l.b16 %v323
    %v1392 = vunpack.c.h.b16 %v323
    %v1393 = vunpack.c.l.b16 %v324
    %v1394 = vunpack.c.h.b16 %v324
    %v1395 = vunpack.c.l.b16 %v325
    %v1396 = vunpack.c.h.b16 %v325
    %v1397 = vunpack.c.l.b16 %v326
    %v1398 = vunpack.c.h.b16 %v326
    %v1399 = vunpack.c.l.b16 %v327
    %v1400 = vunpack.c.h.b16 %v327
    %v1401 = vunpack.c.l.b16 %v328
    %v1402 = vunpack.c.h.b16 %v328
    %v1403 = vunpack.c.l.b16 %v329
    %v1404 = vunpack.c.h.b16 %v329
    %v1405 = vunpack.c.l.b16 %v330
    %v1406 = vunpack.c.h.b16 %v330
    %v1407 = vunpack.c.l.b16 %v331
    %v1408 = vunpack.c.h.b16 %v331
    %v1409 = vunpack.c.l.b16 %v332
    %v1410 = vunpack.c.h.b16 %v332
    %v1411 = vunpack.c.l.b16 %v333
    %v1412 = vunpack.c.h.b16 %v333
    %v1413 = vunpack.c.l.b16 %v334
    %v1414 = vunpack.c.h.b16 %v334
    %v1415 = vunpack.c.l.b16 %v335
    %v1416 = vunpack.c.h.b16 %v335
    %v1417 = vunpack.c.l.b16 %v336
    %v1418 = vunpack.c.h.b16 %v336
    %v1419 = vunpack.c.l.b16 %v337
    %v1420 = vunpack.c.h.b16 %v337
    %v1421 = vunpack.c.l.b16 %v338
    %v1422 = vunpack.c.h.b16 %v338
    %v1423 = vunpack.c.l.b16 %v339
    %v1424 = vunpack.c.h.b16 %v339
    %v1425 = vunpack.c.l.b16 %v340
    %v1426 = vunpack.c.h.b16 %v340
    %v1427 = vunpack.c.l.b16 %v341
    %v1428 = vunpack.c.h.b16 %v341
    %v1429 = vunpack.c.l.b16 %v342
    %v1430 = vunpack.c.h.b16 %v342
    %v1431 = vunpack.c.l.b16 %v343
    %v1432 = vunpack.c.h.b16 %v343
    %v1433 = vunpack.c.l.b16 %v344
    %v1434 = vunpack.c.h.b16 %v344
    %v1435 = vunpack.c.l.b16 %v345
    %v1436 = vunpack.c.h.b16 %v345
    %v1437 = vunpack.c.l.b16 %v346
    %v1438 = vunpack.c.h.b16 %v346
    %v1439 = vunpack.c.l.b16 %v347
    %v1440 = vunpack.c.h.b16 %v347
    %v1441 = vunpack.c.l.b16 %v348
    %v1442 = vunpack.c.h.b16 %v348
    %v1443 = vunpack.c.l.b16 %v349
    %v1444 = vunpack.c.h.b16 %v349
    %v1445 = vunpack.c.l.b16 %v350
    %v1446 = vunpack.c.h.b16 %v350
    %v1447 = vunpack.c.l.b16 %v351
    %v1448 = vunpack.c.h.b16 %v351
    %v1449 = vunpack.c.l.b16 %v352
    %v1450 = vunpack.c.h.b16 %v352
    %v1451 = vunpack.c.l.b16 %v353
    %v1452 = vunpack.c.h.b16 %v353
    %v1453 = vunpack.c.l.b16 %v354
    %v1454 = vunpack.c.h.b16 %v354
    %v1455 = vunpack.c.l.b16 %v355
    %v1456 = vunpack.c.h.b16 %v355
    %v1457 = vunpack.c.l.b16 %v356
    %v1458 = vunpack.c.h.b16 %v356
    %v1459 = vunpack.c.l.b16 %v357
    %v1460 = vunpack.c.h.b16 %v357
    %v1461 = vunpack.c.l.b16 %v358
    %v1462 = vunpack.c.h.b16 %v358
    %v1463 = vunpack.c.l.b16 %v359
    %v1464 = vunpack.c.h.b16 %v359
    %v1465 = vunpack.c.l.b16 %v360
    %v1466 = vunpack.c.h.b16 %v360
    %v1467 = vunpack.c.l.b16 %v361
    %v1468 = vunpack.c.h.b16 %v361
    %v1469 = vunpack.c.l.b16 %v362
    %v1470 = vunpack.c.h.b16 %v362
    %v1471 = vunpack.c.l.b16 %v363
    %v1472 = vunpack.c.h.b16 %v363
    %v1473 = vunpack.c.l.b16 %v364
    %v1474 = vunpack.c.h.b16 %v364
    %v1475 = vunpack.c.l.b16 %v365
    %v1476 = vunpack.c.h.b16 %v365
    %v1477 = vunpack.c.l.b16 %v366
    %v1478 = vunpack.c.h.b16 %v366
    %v1479 = vunpack.c.l.b16 %v367
    %v1480 = vunpack.c.h.b16 %v367
    %v1481 = vunpack.c.l.b16 %v368
    %v1482 = vunpack.c.h.b16 %v368
    %v1483 = vunpack.c.l.b16 %v369
    %v1484 = vunpack.c.h.b16 %v369
    %v1485 = vunpack.c.l.b16 %v370
    %v1486 = vunpack.c.h.b16 %v370
    %v1487 = vunpack.c.l.b16 %v371
    %v1488 = vunpack.c.h.b16 %v371
    %v1489 = vunpack.c.l.b16 %v372
    %v1490 = vunpack.c.h.b16 %v372
    %v1491 = vunpack.c.l.b16 %v373
    %v1492 = vunpack.c.h.b16 %v373
    %v1493 = vunpack.c.l.b16 %v374
    %v1494 = vunpack.c.h.b16 %v374
    %v1495 = vunpack.c.l.b16 %v375
    %v1496 = vunpack.c.h.b16 %v375
    %v1497 = vunpack.c.l.b16 %v376
    %v1498 = vunpack.c.h.b16 %v376
    %v1499 = vunpack.c.l.b16 %v377
    %v1500 = vunpack.c.h.b16 %v377
    %v1501 = vunpack.c.l.b16 %v378
    %v1502 = vunpack.c.h.b16 %v378
    %v1503 = vunpack.c.l.b16 %v379
    %v1504 = vunpack.c.h.b16 %v379
    %v1505 = vunpack.c.l.b16 %v380
    %v1506 = vunpack.c.h.b16 %v380
    %v1507 = vunpack.c.l.b16 %v381
    %v1508 = vunpack.c.h.b16 %v381
    %v1509 = vunpack.c.l.b16 %v382
    %v1510 = vunpack.c.h.b16 %v382
    %v1511 = vunpack.c.l.b16 %v383
    %v1512 = vunpack.c.h.b16 %v383
    %v1513 = vunpack.c.l.b16 %v384
    %v1514 = vunpack.c.h.b16 %v384
    %v1515 = vunpack.c.l.b16 %v385
    %v1516 = vunpack.c.h.b16 %v385
    %v1517 = vunpack.c.l.b16 %v386
    %v1518 = vunpack.c.h.b16 %v386
    %v1519 = vunpack.c.l.b16 %v387
    %v1520 = vunpack.c.h.b16 %v387
    %v1521 = vunpack.c.l.b16 %v388
    %v1522 = vunpack.c.h.b16 %v388
    %v1523 = vunpack.c.l.b16 %v389
    %v1524 = vunpack.c.h.b16 %v389
    %v1525 = vunpack.c.l.b16 %v390
    %v1526 = vunpack.c.h.b16 %v390
    %v1527 = vunpack.c.l.b16 %v391
    %v1528 = vunpack.c.h.b16 %v391
    %v1529 = vunpack.c.l.b16 %v392
    %v1530 = vunpack.c.h.b16 %v392
    %v1531 = vunpack.c.l.b16 %v393
    %v1532 = vunpack.c.h.b16 %v393
    %v1533 = vunpack.c.l.b16 %v394
    %v1534 = vunpack.c.h.b16 %v394
    %v1535 = vunpack.c.l.b16 %v395
    %v1536 = vunpack.c.h.b16 %v395
    %v1537 = vunpack.c.l.b16 %v396
    %v1538 = vunpack.c.h.b16 %v396
    %v1539 = vunpack.c.l.b16 %v397
    %v1540 = vunpack.c.h.b16 %v397
    %v1541 = vunpack.c.l.b16 %v398
    %v1542 = vunpack.c.h.b16 %v398
    %v1543 = vunpack.c.l.b16 %v399
    %v1544 = vunpack.c.h.b16 %v399
    %v1545 = vunpack.c.l.b16 %v400
    %v1546 = vunpack.c.h.b16 %v400
    %v1547 = vunpack.c.l.b16 %v401
    %v1548 = vunpack.c.h.b16 %v401
    %v1549 = vunpack.c.l.b16 %v402
    %v1550 = vunpack.c.h.b16 %v402
    %v1551 = vunpack.c.l.b16 %v403
    %v1552 = vunpack.c.h.b16 %v403
    %v1553 = vunpack.c.l.b16 %v404
    %v1554 = vunpack.c.h.b16 %v404
    %v1555 = vunpack.c.l.b16 %v405
    %v1556 = vunpack.c.h.b16 %v405
    %v1557 = vunpack.c.l.b16 %v406
    %v1558 = vunpack.c.h.b16 %v406
    %v1559 = vunpack.c.l.b16 %v407
    %v1560 = vunpack.c.h.b16 %v407
    %v1561 = vunpack.c.l.b16 %v408
    %v1562 = vunpack.c.h.b16 %v408
    %v1563 = vunpack.c.l.b16 %v409
    %v1564 = vunpack.c.h.b16 %v409
    %v1565 = vunpack.c.l.b16 %v410
    %v1566 = vunpack.c.h.b16 %v410
    %v1567 = vunpack.c.l.b16 %v411
    %v1568 = vunpack.c.h.b16 %v411
    %v1569 = vunpack.c.l.b16 %v412
    %v1570 = vunpack.c.h.b16 %v412
    %v1571 = vunpack.c.l.b16 %v413
    %v1572 = vunpack.c.h.b16 %v413
    %v1573 = vunpack.c.l.b16 %v414
    %v1574 = vunpack.c.h.b16 %v414
    %v1575 = vunpack.c.l.b16 %v415
    %v1576 = vunpack.c.h.b16 %v415
    %v1577 = vunpack.c.l.b16 %v416
    %v1578 = vunpack.c.h.b16 %v416
    %v1579 = vunpack.c.l.b16 %v417
    %v1580 = vunpack.c.h.b16 %v417
    %v1581 = vunpack.c.l.b16 %v418
    %v1582 = vunpack.c.h.b16 %v418
    %v1583 = vunpack.c.l.b16 %v419
    %v1584 = vunpack.c.h.b16 %v419
    %v1585 = vunpack.c.l.b16 %v420
    %v1586 = vunpack.c.h.b16 %v420
    %v1587 = vunpack.c.l.b16 %v421
    %v1588 = vunpack.c.h.b16 %v421
    %v1589 = vunpack.c.l.b16 %v422
    %v1590 = vunpack.c.h.b16 %v422
    %v1591 = vunpack.c.l.b16 %v423
    %v1592 = vunpack.c.h.b16 %v423
    %v1593 = vunpack.c.l.b16 %v424
    %v1594 = vunpack.c.h.b16 %v424
    %v1595 = vunpack.c.l.b16 %v425
    %v1596 = vunpack.c.h.b16 %v425
    %v1597 = vunpack.c.l.b16 %v426
    %v1598 = vunpack.c.h.b16 %v426
    %v1599 = vunpack.c.l.b16 %v427
    %v1600 = vunpack.c.h.b16 %v427
    %v1601 = vunpack.c.l.b16 %v428
    %v1602 = vunpack.c.h.b16 %v428
    %v1603 = vunpack.c.l.b16 %v429
    %v1604 = vunpack.c.h.b16 %v429
    %v1605 = vunpack.c.l.b16 %v430
    %v1606 = vunpack.c.h.b16 %v430
    %v1607 = vunpack.c.l.b16 %v431
    %v1608 = vunpack.c.h.b16 %v431
    %v1609 = vunpack.c.l.b16 %v432
    %v1610 = vunpack.c.h.b16 %v432
    %v1611 = vunpack.c.l.b16 %v433
    %v1612 = vunpack.c.h.b16 %v433
    %v1613 = vunpack.c.l.b16 %v434
    %v1614 = vunpack.c.h.b16 %v434
    %v1615 = vunpack.c.l.b16 %v435
    %v1616 = vunpack.c.h.b16 %v435
    %v1617 = vunpack.c.l.b16 %v436
    %v1618 = vunpack.c.h.b16 %v436
    %v1619 = vunpack.c.l.b16 %v437
    %v1620 = vunpack.c.h.b16 %v437
    %v1621 = vunpack.c.l.b16 %v438
    %v1622 = vunpack.c.h.b16 %v438
    %v1623 = vunpack.c.l.b16 %v439
    %v1624 = vunpack.c.h.b16 %v439
    %v1625 = vunpack.c.l.b16 %v440
    %v1626 = vunpack.c.h.b16 %v440
    %v1627 = vunpack.c.l.b16 %v441
    %v1628 = vunpack.c.h.b16 %v441
    %v1629 = vunpack.c.l.b16 %v442
    %v1630 = vunpack.c.h.b16 %v442
    %v1631 = vunpack.c.l.b16 %v443
    %v1632 = vunpack.c.h.b16 %v443
    %v1633 = vunpack.c.l.b16 %v444
    %v1634 = vunpack.c.h.b16 %v444
    %v1635 = vunpack.c.l.b16 %v445
    %v1636 = vunpack.c.h.b16 %v445
    %v1637 = vunpack.c.l.b16 %v446
    %v1638 = vunpack.c.h.b16 %v446
    %v1639 = vunpack.c.l.b16 %v447
    %v1640 = vunpack.c.h.b16 %v447
    %v1641 = vunpack.c.l.b16 %v448
    %v1642 = vunpack.c.h.b16 %v448
    %v1643 = vunpack.c.l.b16 %v449
    %v1644 = vunpack.c.h.b16 %v449
    %v1645 = vunpack.c.l.b16 %v450
    %v1646 = vunpack.c.h.b16 %v450
    %v1647 = vunpack.c.l.b16 %v451
    %v1648 = vunpack.c.h.b16 %v451
    %v1649 = vunpack.c.l.b16 %v452
    %v1650 = vunpack.c.h.b16 %v452
    %v1651 = vunpack.c.l.b16 %v453
    %v1652 = vunpack.c.h.b16 %v453
    %v1653 = vunpack.c.l.b16 %v454
    %v1654 = vunpack.c.h.b16 %v454
    %v1655 = vunpack.c.l.b16 %v455
    %v1656 = vunpack.c.h.b16 %v455
    %v1657 = vunpack.c.l.b16 %v456
    %v1658 = vunpack.c.h.b16 %v456
    %v1659 = vunpack.c.l.b16 %v457
    %v1660 = vunpack.c.h.b16 %v457
    %v1661 = vunpack.c.l.b16 %v458
    %v1662 = vunpack.c.h.b16 %v458
    %v1663 = vunpack.c.l.b16 %v459
    %v1664 = vunpack.c.h.b16 %v459
    %v1665 = vunpack.c.l.b16 %v460
    %v1666 = vunpack.c.h.b16 %v460
    %v1667 = vunpack.c.l.b16 %v461
    %v1668 = vunpack.c.h.b16 %v461
    %v1669 = vunpack.c.l.b16 %v462
    %v1670 = vunpack.c.h.b16 %v462
    %v1671 = vunpack.c.l.b16 %v463
    %v1672 = vunpack.c.h.b16 %v463
    %v1673 = vunpack.c.l.b16 %v464
    %v1674 = vunpack.c.h.b16 %v464
    %v1675 = vunpack.c.l.b16 %v465
    %v1676 = vunpack.c.h.b16 %v465
    %v1677 = vunpack.c.l.b16 %v466
    %v1678 = vunpack.c.h.b16 %v466
    %v1679 = vunpack.c.l.b16 %v467
    %v1680 = vunpack.c.h.b16 %v467
    %v1681 = vunpack.c.l.b16 %v468
    %v1682 = vunpack.c.h.b16 %v468
    %v1683 = vunpack.c.l.b16 %v469
    %v1684 = vunpack.c.h.b16 %v469
    %v1685 = vunpack.c.l.b16 %v470
    %v1686 = vunpack.c.h.b16 %v470
    %v1687 = vunpack.c.l.b16 %v471
    %v1688 = vunpack.c.h.b16 %v471
    %v1689 = vunpack.c.l.b16 %v472
    %v1690 = vunpack.c.h.b16 %v472
    %v1691 = vunpack.c.l.b16 %v473
    %v1692 = vunpack.c.h.b16 %v473
    %v1693 = vunpack.c.l.b16 %v474
    %v1694 = vunpack.c.h.b16 %v474
    %v1695 = vunpack.c.l.b16 %v475
    %v1696 = vunpack.c.h.b16 %v475
    %v1697 = vunpack.c.l.b16 %v476
    %v1698 = vunpack.c.h.b16 %v476
    %v1699 = vunpack.c.l.b16 %v477
    %v1700 = vunpack.c.h.b16 %v477
    %v1701 = vunpack.c.l.b16 %v478
    %v1702 = vunpack.c.h.b16 %v478
    %v1703 = vunpack.c.l.b16 %v479
    %v1704 = vunpack.c.h.b16 %v479
    %v1705 = vunpack.c.l.b16 %v480
    %v1706 = vunpack.c.h.b16 %v480
    %v1707 = vunpack.c.l.b16 %v481
    %v1708 = vunpack.c.h.b16 %v481
    %v1709 = vunpack.c.l.b16 %v482
    %v1710 = vunpack.c.h.b16 %v482
    %v1711 = vunpack.c.l.b16 %v483
    %v1712 = vunpack.c.h.b16 %v483
    %v1713 = vunpack.c.l.b16 %v484
    %v1714 = vunpack.c.h.b16 %v484
    %v1715 = vunpack.c.l.b16 %v485
    %v1716 = vunpack.c.h.b16 %v485
    %v1717 = vunpack.c.l.b16 %v486
    %v1718 = vunpack.c.h.b16 %v486
    %v1719 = vunpack.c.l.b16 %v487
    %v1720 = vunpack.c.h.b16 %v487
    %v1721 = vunpack.c.l.b16 %v488
    %v1722 = vunpack.c.h.b16 %v488
    %v1723 = vunpack.c.l.b16 %v489
    %v1724 = vunpack.c.h.b16 %v489
    %v1725 = vunpack.c.l.b16 %v490
    %v1726 = vunpack.c.h.b16 %v490
    %v1727 = vunpack.c.l.b16 %v491
    %v1728 = vunpack.c.h.b16 %v491
    %v1729 = vunpack.c.l.b16 %v492
    %v1730 = vunpack.c.h.b16 %v492
    %v1731 = vunpack.c.l.b16 %v493
    %v1732 = vunpack.c.h.b16 %v493
    %v1733 = vunpack.c.l.b16 %v494
    %v1734 = vunpack.c.h.b16 %v494
    %v1735 = vunpack.c.l.b16 %v495
    %v1736 = vunpack.c.h.b16 %v495
    %v1737 = vunpack.c.l.b16 %v496
    %v1738 = vunpack.c.h.b16 %v496
    %v1739 = vunpack.c.l.b16 %v497
    %v1740 = vunpack.c.h.b16 %v497
    %v1741 = vunpack.c.l.b16 %v498
    %v1742 = vunpack.c.h.b16 %v498
    %v1743 = vunpack.c.l.b16 %v499
    %v1744 = vunpack.c.h.b16 %v499
    %v1745 = vunpack.c.l.b16 %v500
    %v1746 = vunpack.c.h.b16 %v500
    %v1747 = vunpack.c.l.b16 %v501
    %v1748 = vunpack.c.h.b16 %v501
    %v1749 = vunpack.c.l.b16 %v502
    %v1750 = vunpack.c.h.b16 %v502
    %v1751 = vunpack.c.l.b16 %v503
    %v1752 = vunpack.c.h.b16 %v503
    %v1753 = vunpack.c.l.b16 %v504
    %v1754 = vunpack.c.h.b16 %v504
    %v1755 = vunpack.c.l.b16 %v505
    %v1756 = vunpack.c.h.b16 %v505
    %v1757 = vunpack.c.l.b16 %v506
    %v1758 = vunpack.c.h.b16 %v506
    %v1759 = vunpack.c.l.b16 %v507
    %v1760 = vunpack.c.h.b16 %v507
    %v1761 = vunpack.c.l.b16 %v508
    %v1762 = vunpack.c.h.b16 %v508
    %v1763 = vunpack.c.l.b16 %v509
    %v1764 = vunpack.c.h.b16 %v509
    %v1765 = vunpack.c.l.b16 %v510
    %v1766 = vunpack.c.h.b16 %v510
    %v1767 = vunpack.c.l.b16 %v511
    %v1768 = vunpack.c.h.b16 %v511
    %v1769 = vunpack.c.l.b16 %v512
    %v1770 = vunpack.c.h.b16 %v512
    %v1771 = vunpack.c.l.b16 %v513
    %v1772 = vunpack.c.h.b16 %v513
    %v1773 = vunpack.c.l.b16 %v514
    %v1774 = vunpack.c.h.b16 %v514
    %v1775 = vunpack.c.l.b16 %v515
    %v1776 = vunpack.c.h.b16 %v515
    %v1777 = vunpack.c.l.b16 %v516
    %v1778 = vunpack.c.h.b16 %v516
    %v1779 = vunpack.c.l.b16 %v517
    %v1780 = vunpack.c.h.b16 %v517
    %v1781 = vunpack.c.l.b16 %v518
    %v1782 = vunpack.c.h.b16 %v518
    %v1783 = vunpack.c.l.b16 %v519
    %v1784 = vunpack.c.h.b16 %v519
    %v1785 = vunpack.c.l.b16 %v520
    %v1786 = vunpack.c.h.b16 %v520
    %v1787 = vunpack.c.l.b16 %v521
    %v1788 = vunpack.c.h.b16 %v521
    %v1789 = vunpack.c.l.b16 %v522
    %v1790 = vunpack.c.h.b16 %v522
    %v1791 = vunpack.c.l.b16 %v523
    %v1792 = vunpack.c.h.b16 %v523
    %v1793 = vunpack.c.l.b16 %v524
    %v1794 = vunpack.c.h.b16 %v524
    %v1795 = vunpack.c.l.b16 %v525
    %v1796 = vunpack.c.h.b16 %v525
    %v1797 = vunpack.c.l.b16 %v526
    %v1798 = vunpack.c.h.b16 %v526
    %v1799 = vunpack.c.l.b16 %v527
    %v1800 = vunpack.c.h.b16 %v527
    %v1801 = vunpack.c.l.b16 %v528
    %v1802 = vunpack.c.h.b16 %v528
    %v1803 = vunpack.c.l.b16 %v529
    %v1804 = vunpack.c.h.b16 %v529
    %v1805 = vunpack.c.l.b16 %v530
    %v1806 = vunpack.c.h.b16 %v530
    %v1807 = vunpack.c.l.b16 %v531
    %v1808 = vunpack.c.h.b16 %v531
    %v1809 = vunpack.c.l.b16 %v532
    %v1810 = vunpack.c.h.b16 %v532
    %v1811 = vunpack.c.l.b16 %v533
    %v1812 = vunpack.c.h.b16 %v533
    %v1813 = vunpack.c.l.b16 %v534
    %v1814 = vunpack.c.h.b16 %v534
    %v1815 = vunpack.c.l.b16 %v535
    %v1816 = vunpack.c.h.b16 %v535
    %v1817 = vunpack.c.l.b16 %v536
    %v1818 = vunpack.c.h.b16 %v536
    %v1819 = vunpack.c.l.b16 %v537
    %v1820 = vunpack.c.h.b16 %v537
    %v1821 = vunpack.c.l.b16 %v538
    %v1822 = vunpack.c.h.b16 %v538
    %v1823 = vunpack.c.l.b16 %v539
    %v1824 = vunpack.c.h.b16 %v539
    %v1825 = vunpack.c.l.b16 %v540
    %v1826 = vunpack.c.h.b16 %v540
    %v1827 = vunpack.c.l.b16 %v541
    %v1828 = vunpack.c.h.b16 %v541
    %v1829 = vunpack.c.l.b16 %v542
    %v1830 = vunpack.c.h.b16 %v542
    %v1831 = vunpack.c.l.b16 %v543
    %v1832 = vunpack.c.h.b16 %v543
    %v1833 = vunpack.c.l.b16 %v544
    %v1834 = vunpack.c.h.b16 %v544
    %v1835 = vunpack.c.l.b16 %v545
    %v1836 = vunpack.c.h.b16 %v545
    %v1837 = vunpack.c.l.b16 %v546
    %v1838 = vunpack.c.h.b16 %v546
    %v1839 = vunpack.c.l.b16 %v547
    %v1840 = vunpack.c.h.b16 %v547
    %v1841 = vunpack.c.l.b16 %v548
    %v1842 = vunpack.c.h.b16 %v548
    %v1843 = vunpack.c.l.b16 %v549
    %v1844 = vunpack.c.h.b16 %v549
    %v1845 = vunpack.c.l.b16 %v550
    %v1846 = vunpack.c.h.b16 %v550
    %v1847 = vunpack.c.l.b16 %v551
    %v1848 = vunpack.c.h.b16 %v551
    %v1849 = vunpack.c.l.b16 %v552
    %v1850 = vunpack.c.h.b16 %v552
    %v1851 = vunpack.c.l.b16 %v553
    %v1852 = vunpack.c.h.b16 %v553
    %v1853 = vunpack.c.l.b16 %v554
    %v1854 = vunpack.c.h.b16 %v554
    %v1855 = vunpack.c.l.b16 %v555
    %v1856 = vunpack.c.h.b16 %v555
    %v1857 = vunpack.c.l.b16 %v556
    %v1858 = vunpack.c.h.b16 %v556
    %v1859 = vunpack.c.l.b16 %v557
    %v1860 = vunpack.c.h.b16 %v557
    %v1861 = vunpack.c.l.b16 %v558
    %v1862 = vunpack.c.h.b16 %v558
    %v1863 = vunpack.c.l.b16 %v559
    %v1864 = vunpack.c.h.b16 %v559
    %v1865 = vunpack.c.l.b16 %v560
    %v1866 = vunpack.c.h.b16 %v560
    %v1867 = vunpack.c.l.b16 %v561
    %v1868 = vunpack.c.h.b16 %v561
    %v1869 = vunpack.c.l.b16 %v562
    %v1870 = vunpack.c.h.b16 %v562
    %v1871 = vunpack.c.l.b16 %v563
    %v1872 = vunpack.c.h.b16 %v563
    %v1873 = vunpack.c.l.b16 %v564
    %v1874 = vunpack.c.h.b16 %v564
    %v1875 = vunpack.c.l.b16 %v565
    %v1876 = vunpack.c.h.b16 %v565
    %v1877 = vunpack.c.l.b16 %v566
    %v1878 = vunpack.c.h.b16 %v566
    %v1879 = vunpack.c.l.b16 %v567
    %v1880 = vunpack.c.h.b16 %v567
    %v1881 = vunpack.c.l.b16 %v568
    %v1882 = vunpack.c.h.b16 %v568
    %v1883 = vunpack.c.l.b16 %v569
    %v1884 = vunpack.c.h.b16 %v569
    %v1885 = vunpack.c.l.b16 %v570
    %v1886 = vunpack.c.h.b16 %v570
    %v1887 = vunpack.c.l.b16 %v571
    %v1888 = vunpack.c.h.b16 %v571
    %v1889 = vunpack.c.l.b16 %v572
    %v1890 = vunpack.c.h.b16 %v572
    %v1891 = vunpack.c.l.b16 %v573
    %v1892 = vunpack.c.h.b16 %v573
    %v1893 = vunpack.c.l.b16 %v574
    %v1894 = vunpack.c.h.b16 %v574
    %v1895 = vunpack.c.l.b16 %v575
    %v1896 = vunpack.c.h.b16 %v575
    %v1897 = vunpack.c.l.b16 %v576
    %v1898 = vunpack.c.h.b16 %v576
    %v1899 = vunpack.c.l.b16 %v577
    %v1900 = vunpack.c.h.b16 %v577
    %v1901 = vunpack.c.l.b16 %v578
    %v1902 = vunpack.c.h.b16 %v578
    %v1903 = vunpack.c.l.b16 %v579
    %v1904 = vunpack.c.h.b16 %v579
    %v1905 = vunpack.c.l.b16 %v580
    %v1906 = vunpack.c.h.b16 %v580
    %v1907 = vunpack.c.l.b16 %v581
    %v1908 = vunpack.c.h.b16 %v581
    %v1909 = vunpack.c.l.b16 %v582
    %v1910 = vunpack.c.h.b16 %v582
    %v1911 = vunpack.c.l.b16 %v583
    %v1912 = vunpack.c.h.b16 %v583
    %v1913 = vunpack.c.l.b16 %v584
    %v1914 = vunpack.c.h.b16 %v584
    %v1915 = vunpack.c.l.b16 %v585
    %v1916 = vunpack.c.h.b16 %v585
    %v1917 = vunpack.c.l.b16 %v586
    %v1918 = vunpack.c.h.b16 %v586
    %v1919 = vunpack.c.l.b16 %v587
    %v1920 = vunpack.c.h.b16 %v587
    %v1921 = vunpack.c.l.b16 %v588
    %v1922 = vunpack.c.h.b16 %v588
    %v1923 = vunpack.c.l.b16 %v589
    %v1924 = vunpack.c.h.b16 %v589
    %v1925 = vunpack.c.l.b16 %v590
    %v1926 = vunpack.c.h.b16 %v590
    %v1927 = vunpack.c.l.b16 %v591
    %v1928 = vunpack.c.h.b16 %v591
    %v1929 = vunpack.c.l.b16 %v592
    %v1930 = vunpack.c.h.b16 %v592
    %v1931 = vunpack.c.l.b16 %v593
    %v1932 = vunpack.c.h.b16 %v593
    %v1933 = vunpack.c.l.b16 %v594
    %v1934 = vunpack.c.h.b16 %v594
    %v1935 = vunpack.c.l.b16 %v595
    %v1936 = vunpack.c.h.b16 %v595
    %v1937 = vunpack.c.l.b16 %v596
    %v1938 = vunpack.c.h.b16 %v596
    %v1939 = vunpack.c.l.b16 %v597
    %v1940 = vunpack.c.h.b16 %v597
    %v1941 = vunpack.c.l.b16 %v598
    %v1942 = vunpack.c.h.b16 %v598
    %v1943 = vunpack.c.l.b16 %v599
    %v1944 = vunpack.c.h.b16 %v599
    %v1945 = vunpack.c.l.b16 %v600
    %v1946 = vunpack.c.h.b16 %v600
    %v1947 = vunpack.c.l.b16 %v601
    %v1948 = vunpack.c.h.b16 %v601
    %v1949 = vunpack.c.l.b16 %v602
    %v1950 = vunpack.c.h.b16 %v602
    %v1951 = vunpack.c.l.b16 %v603
    %v1952 = vunpack.c.h.b16 %v603
    %v1953 = vunpack.c.l.b16 %v604
    %v1954 = vunpack.c.h.b16 %v604
    %v1955 = vunpack.c.l.b16 %v605
    %v1956 = vunpack.c.h.b16 %v605
    %v1957 = vunpack.c.l.b16 %v606
    %v1958 = vunpack.c.h.b16 %v606
    %v1959 = vunpack.c.l.b16 %v607
    %v1960 = vunpack.c.h.b16 %v607
    %v1961 = vunpack.c.l.b16 %v608
    %v1962 = vunpack.c.h.b16 %v608
    %v1963 = vunpack.c.l.b16 %v609
    %v1964 = vunpack.c.h.b16 %v609
    %v1965 = vunpack.c.l.b16 %v610
    %v1966 = vunpack.c.h.b16 %v610
    %v1967 = vunpack.c.l.b16 %v611
    %v1968 = vunpack.c.h.b16 %v611
    %v1969 = vunpack.c.l.b16 %v612
    %v1970 = vunpack.c.h.b16 %v612
    %v1971 = vunpack.c.l.b16 %v613
    %v1972 = vunpack.c.h.b16 %v613
    %v1973 = vunpack.c.l.b16 %v614
    %v1974 = vunpack.c.h.b16 %v614
    %v1975 = vunpack.c.l.b16 %v615
    %v1976 = vunpack.c.h.b16 %v615
    %v1977 = vunpack.c.l.b16 %v616
    %v1978 = vunpack.c.h.b16 %v616
    %v1979 = vpack.c.b16 %v1091, %v1083
    %v1980 = vpack.c.b16 %v1092, %v1084
    %v1981 = vpack.c.b16 %v1093, %v1085
    %v1982 = vpack.c.b16 %v1094, %v1086
    %v1983 = vpack.c.b16 %v1095, %v1087
    %v1984 = vpack.c.b16 %v1096, %v1088
    %v1985 = vpack.c.b16 %v1097, %v1089
    %v1986 = vpack.c.b16 %v1098, %v1090
    %v1987 = vpack.c.b16 %v1107, %v1099
    %v1988 = vpack.c.b16 %v1108, %v1100
    %v1989 = vpack.c.b16 %v1109, %v1101
    %v1990 = vpack.c.b16 %v1110, %v1102
    %v1991 = vpack.c.b16 %v1111, %v1103
    %v1992 = vpack.c.b16 %v1112, %v1104
    %v1993 = vpack.c.b16 %v1113, %v1105
    %v1994 = vpack.c.b16 %v1114, %v1106
    %v1995 = vpack.c.b16 %v1123, %v1115
    %v1996 = vpack.c.b16 %v1124, %v1116
    %v1997 = vpack.c.b16 %v1125, %v1117
    %v1998 = vpack.c.b16 %v1126, %v1118
    %v1999 = vpack.c.b16 %v1127, %v1119
    %v2000 = vpack.c.b16 %v1128, %v1120
    %v2001 = vpack.c.b16 %v1129, %v1121
    %v2002 = vpack.c.b16 %v1130, %v1122
    %v2003 = vpack.c.b16 %v1139, %v1131
    %v2004 = vpack.c.b16 %v1140, %v1132
    %v2005 = vpack.c.b16 %v1141, %v1133
    %v2006 = vpack.c.b16 %v1142, %v1134
    %v2007 = vpack.c.b16 %v1143, %v1135
    %v2008 = vpack.c.b16 %v1144, %v1136
    %v2009 = vpack.c.b16 %v1145, %v1137
    %v2010 = vpack.c.b16 %v1146, %v1138
    %v2011 = vpack.c.b16 %v1155, %v1147
    %v2012 = vpack.c.b16 %v1156, %v1148
    %v2013 = vpack.c.b16 %v1157, %v1149
    %v2014 = vpack.c.b16 %v1158, %v1150
    %v2015 = vpack.c.b16 %v1159, %v1151
    %v2016 = vpack.c.b16 %v1160, %v1152
    %v2017 = vpack.c.b16 %v1161, %v1153
    %v2018 = vpack.c.b16 %v1162, %v1154
    %v2019 = vpack.c.b16 %v1171, %v1163
    %v2020 = vpack.c.b16 %v1172, %v1164
    %v2021 = vpack.c.b16 %v1173, %v1165
    %v2022 = vpack.c.b16 %v1174, %v1166
    %v2023 = vpack.c.b16 %v1175, %v1167
    %v2024 = vpack.c.b16 %v1176, %v1168
    %v2025 = vpack.c.b16 %v1177, %v1169
    %v2026 = vpack.c.b16 %v1178, %v1170
    %v2027 = vpack.c.b16 %v1187, %v1179
    %v2028 = vpack.c.b16 %v1188, %v1180
    %v2029 = vpack.c.b16 %v1189, %v1181
    %v2030 = vpack.c.b16 %v1190, %v1182
    %v2031 = vpack.c.b16 %v1191, %v1183
    %v2032 = vpack.c.b16 %v1192, %v1184
    %v2033 = vpack.c.b16 %v1193, %v1185
    %v2034 = vpack.c.b16 %v1194, %v1186
    %v2035 = vpack.c.b16 %v1203, %v1195
    %v2036 = vpack.c.b16 %v1204, %v1196
    %v2037 = vpack.c.b16 %v1205, %v1197
    %v2038 = vpack.c.b16 %v1206, %v1198
    %v2039 = vpack.c.b16 %v1207, %v1199
    %v2040 = vpack.c.b16 %v1208, %v1200
    %v2041 = vpack.c.b16 %v1209, %v1201
    %v2042 = vpack.c.b16 %v1210, %v1202
    %v2043 = vpack.c.b16 %v1219, %v1211
    %v2044 = vpack.c.b16 %v1220, %v1212
    %v2045 = vpack.c.b16 %v1221, %v1213
    %v2046 = vpack.c.b16 %v1222, %v1214
    %v2047 = vpack.c.b16 %v1223, %v1215
    %v2048 = vpack.c.b16 %v1224, %v1216
    %v2049 = vpack.c.b16 %v1225, %v1217
    %v2050 = vpack.c.b16 %v1226, %v1218
    %v2051 = vpack.c.b16 %v1235, %v1227
    %v2052 = vpack.c.b16 %v1236, %v1228
    %v2053 = vpack.c.b16 %v1237, %v1229
    %v2054 = vpack.c.b16 %v1238, %v1230
    %v2055 = vpack.c.b16 %v1239, %v1231
    %v2056 = vpack.c.b16 %v1240, %v1232
    %v2057 = vpack.c.b16 %v1241, %v1233
    %v2058 = vpack.c.b16 %v1242, %v1234
    %v2059 = vpack.c.b16 %v1251, %v1243
    %v2060 = vpack.c.b16 %v1252, %v1244
    %v2061 = vpack.c.b16 %v1253, %v1245
    %v2062 = vpack.c.b16 %v1254, %v1246
    %v2063 = vpack.c.b16 %v1255, %v1247
    %v2064 = vpack.c.b16 %v1256, %v1248
    %v2065 = vpack.c.b16 %v1257, %v1249
    %v2066 = vpack.c.b16 %v1258, %v1250
    %v2067 = vpack.c.b16 %v1267, %v1259
    %v2068 = vpack.c.b16 %v1268, %v1260
    %v2069 = vpack.c.b16 %v1269, %v1261
    %v2070 = vpack.c.b16 %v1270, %v1262
    %v2071 = vpack.c.b16 %v1271, %v1263
    %v2072 = vpack.c.b16 %v1272, %v1264
    %v2073 = vpack.c.b16 %v1273, %v1265
    %v2074 = vpack.c.b16 %v1274, %v1266
    %v2075 = vpack.c.b16 %v1283, %v1275
    %v2076 = vpack.c.b16 %v1284, %v1276
    %v2077 = vpack.c.b16 %v1285, %v1277
    %v2078 = vpack.c.b16 %v1286, %v1278
    %v2079 = vpack.c.b16 %v1287, %v1279
    %v2080 = vpack.c.b16 %v1288, %v1280
    %v2081 = vpack.c.b16 %v1289, %v1281
    %v2082 = vpack.c.b16 %v1290, %v1282
    %v2083 = vpack.c.b16 %v1299, %v1291
    %v2084 = vpack.c.b16 %v1300, %v1292
    %v2085 = vpack.c.b16 %v1301, %v1293
    %v2086 = vpack.c.b16 %v1302, %v1294
    %v2087 = vpack.c.b16 %v1303, %v1295
    %v2088 = vpack.c.b16 %v1304, %v1296
    %v2089 = vpack.c.b16 %v1305, %v1297
    %v2090 = vpack.c.b16 %v1306, %v1298
    %v2091 = vpack.c.b16 %v1315, %v1307
    %v2092 = vpack.c.b16 %v1316, %v1308
    %v2093 = vpack.c.b16 %v1317, %v1309
    %v2094 = vpack.c.b16 %v1318, %v1310
    %v2095 = vpack.c.b16 %v1319, %v1311
    %v2096 = vpack.c.b16 %v1320, %v1312
    %v2097 = vpack.c.b16 %v1321, %v1313
    %v2098 = vpack.c.b16 %v1322, %v1314
    %v2099 = vpack.c.b16 %v1331, %v1323
    %v2100 = vpack.c.b16 %v1332, %v1324
    %v2101 = vpack.c.b16 %v1333, %v1325
    %v2102 = vpack.c.b16 %v1334, %v1326
    %v2103 = vpack.c.b16 %v1335, %v1327
    %v2104 = vpack.c.b16 %v1336, %v1328
    %v2105 = vpack.c.b16 %v1337, %v1329
    %v2106 = vpack.c.b16 %v1338, %v1330
    %v2107 = vpack.c.b16 %v1347, %v1339
    %v2108 = vpack.c.b16 %v1348, %v1340
    %v2109 = vpack.c.b16 %v1349, %v1341
    %v2110 = vpack.c.b16 %v1350, %v1342
    %v2111 = vpack.c.b16 %v1351, %v1343
    %v2112 = vpack.c.b16 %v1352, %v1344
    %v2113 = vpack.c.b16 %v1353, %v1345
    %v2114 = vpack.c.b16 %v1354, %v1346
    %v2115 = vpack.c.b16 %v1363, %v1355
    %v2116 = vpack.c.b16 %v1364, %v1356
    %v2117 = vpack.c.b16 %v1365, %v1357
    %v2118 = vpack.c.b16 %v1366, %v1358
    %v2119 = vpack.c.b16 %v1367, %v1359
    %v2120 = vpack.c.b16 %v1368, %v1360
    %v2121 = vpack.c.b16 %v1369, %v1361
    %v2122 = vpack.c.b16 %v1370, %v1362
    %v2123 = vpack.c.b16 %v1379, %v1371
    %v2124 = vpack.c.b16 %v1380, %v1372
    %v2125 = vpack.c.b16 %v1381, %v1373
    %v2126 = vpack.c.b16 %v1382, %v1374
    %v2127 = vpack.c.b16 %v1383, %v1375
    %v2128 = vpack.c.b16 %v1384, %v1376
    %v2129 = vpack.c.b16 %v1385, %v1377
    %v2130 = vpack.c.b16 %v1386, %v1378
    %v2131 = vpack.c.b16 %v1395, %v1387
    %v2132 = vpack.c.b16 %v1396, %v1388
    %v2133 = vpack.c.b16 %v1397, %v1389
    %v2134 = vpack.c.b16 %v1398, %v1390
    %v2135 = vpack.c.b16 %v1399, %v1391
    %v2136 = vpack.c.b16 %v1400, %v1392
    %v2137 = vpack.c.b16 %v1401, %v1393
    %v2138 = vpack.c.b16 %v1402, %v1394
    %v2139 = vpack.c.b16 %v1411, %v1403
    %v2140 = vpack.c.b16 %v1412, %v1404
    %v2141 = vpack.c.b16 %v1413, %v1405
    %v2142 = vpack.c.b16 %v1414, %v1406
    %v2143 = vpack.c.b16 %v1415, %v1407
    %v2144 = vpack.c.b16 %v1416, %v1408
    %v2145 = vpack.c.b16 %v1417, %v1409
    %v2146 = vpack.c.b16 %v1418, %v1410
    %v2147 = vpack.c.b16 %v1427, %v1419
    %v2148 = vpack.c.b16 %v1428, %v1420
    %v2149 = vpack.c.b16 %v1429, %v1421
    %v2150 = vpack.c.b16 %v1430, %v1422
    %v2151 = vpack.c.b16 %v1431, %v1423
    %v2152 = vpack.c.b16 %v1432, %v1424
    %v2153 = vpack.c.b16 %v1433, %v1425
    %v2154 = vpack.c.b16 %v1434, %v1426
    %v2155 = vpack.c.b16 %v1443, %v1435
    %v2156 = vpack.c.b16 %v1444, %v1436
    %v2157 = vpack.c.b16 %v1445, %v1437
    %v2158 = vpack.c.b16 %v1446, %v1438
    %v2159 = vpack.c.b16 %v1447, %v1439
    %v2160 = vpack.c.b16 %v1448, %v1440
    %v2161 = vpack.c.b16 %v1449, %v1441
    %v2162 = vpack.c.b16 %v1450, %v1442
    %v2163 = vpack.c.b16 %v1459, %v1451
    %v2164 = vpack.c.b16 %v1460, %v1452
    %v2165 = vpack.c.b16 %v1461, %v1453
    %v2166 = vpack.c.b16 %v1462, %v1454
    %v2167 = vpack.c.b16 %v1463, %v1455
    %v2168 = vpack.c.b16 %v1464, %v1456
    %v2169 = vpack.c.b16 %v1465, %v1457
    %v2170 = vpack.c.b16 %v1466, %v1458
    %v2171 = vpack.c.b16 %v1475, %v1467
    %v2172 = vpack.c.b16 %v1476, %v1468
    %v2173 = vpack.c.b16 %v1477, %v1469
    %v2174 = vpack.c.b16 %v1478, %v1470
    %v2175 = vpack.c.b16 %v1479, %v1471
    %v2176 = vpack.c.b16 %v1480, %v1472
    %v2177 = vpack.c.b16 %v1481, %v1473
    %v2178 = vpack.c.b16 %v1482, %v1474
    %v2179 = vpack.c.b16 %v1491, %v1483
    %v2180 = vpack.c.b16 %v1492, %v1484
    %v2181 = vpack.c.b16 %v1493, %v1485
    %v2182 = vpack.c.b16 %v1494, %v1486
    %v2183 = vpack.c.b16 %v1495, %v1487
    %v2184 = vpack.c.b16 %v1496, %v1488
    %v2185 = vpack.c.b16 %v1497, %v1489
    %v2186 = vpack.c.b16 %v1498, %v1490
    %v2187 = vpack.c.b16 %v1507, %v1499
    %v2188 = vpack.c.b16 %v1508, %v1500
    %v2189 = vpack.c.b16 %v1509, %v1501
    %v2190 = vpack.c.b16 %v1510, %v1502
    %v2191 = vpack.c.b16 %v1511, %v1503
    %v2192 = vpack.c.b16 %v1512, %v1504
    %v2193 = vpack.c.b16 %v1513, %v1505
    %v2194 = vpack.c.b16 %v1514, %v1506
    %v2195 = vpack.c.b16 %v1523, %v1515
    %v2196 = vpack.c.b16 %v1524, %v1516
    %v2197 = vpack.c.b16 %v1525, %v1517
    %v2198 = vpack.c.b16 %v1526, %v1518
    %v2199 = vpack.c.b16 %v1527, %v1519
    %v2200 = vpack.c.b16 %v1528, %v1520
    %v2201 = vpack.c.b16 %v1529, %v1521
    %v2202 = vpack.c.b16 %v1530, %v1522
    %v2203 = vpack.c.b16 %v1539, %v1531
    %v2204 = vpack.c.b16 %v1540, %v1532
    %v2205 = vpack.c.b16 %v1541, %v1533
    %v2206 = vpack.c.b16 %v1542, %v1534
    %v2207 = vpack.c.b16 %v1543, %v1535
    %v2208 = vpack.c.b16 %v1544, %v1536
    %v2209 = vpack.c.b16 %v1545, %v1537
    %v2210 = vpack.c.b16 %v1546, %v1538
    %v2211 = vpack.c.b16 %v1555, %v1547
    %v2212 = vpack.c.b16 %v1556, %v1548
    %v2213 = vpack.c.b16 %v1557, %v1549
    %v2214 = vpack.c.b16 %v1558, %v1550
    %v2215 = vpack.c.b16 %v1559, %v1551
    %v2216 = vpack.c.b16 %v1560, %v1552
    %v2217 = vpack.c.b16 %v1561, %v1553
    %v2218 = vpack.c.b16 %v1562, %v1554
    %v2219 = vpack.c.b16 %v1571, %v1563
    %v2220 = vpack.c.b16 %v1572, %v1564
    %v2221 = vpack.c.b16 %v1573, %v1565
    %v2222 = vpack.c.b16 %v1574, %v1566
    %v2223 = vpack.c.b16 %v1575, %v1567
    %v2224 = vpack.c.b16 %v1576, %v1568
    %v2225 = vpack.c.b16 %v1577, %v1569
    %v2226 = vpack.c.b16 %v1578, %v1570
    %v2227 = vpack.c.b16 %v1587, %v1579
    %v2228 = vpack.c.b16 %v1588, %v1580
    %v2229 = vpack.c.b16 %v1589, %v1581
    %v2230 = vpack.c.b16 %v1590, %v1582
    %v2231 = vpack.c.b16 %v1591, %v1583
    %v2232 = vpack.c.b16 %v1592, %v1584
    %v2233 = vpack.c.b16 %v1593, %v1585
    %v2234 = vpack.c.b16 %v1594, %v1586
    %v2235 = vpack.c.b16 %v1603, %v1595
    %v2236 = vpack.c.b16 %v1604, %v1596
    %v2237 = vpack.c.b16 %v1605, %v1597
    %v2238 = vpack.c.b16 %v1606, %v1598
    %v2239 = vpack.c.b16 %v1607, %v1599
    %v2240 = vpack.c.b16 %v1608, %v1600
    %v2241 = vpack.c.b16 %v1609, %v1601
    %v2242 = vpack.c.b16 %v1610, %v1602
    %v2243 = vpack.c.b16 %v1619, %v1611
    %v2244 = vpack.c.b16 %v1620, %v1612
    %v2245 = vpack.c.b16 %v1621, %v1613
    %v2246 = vpack.c.b16 %v1622, %v1614
    %v2247 = vpack.c.b16 %v1623, %v1615
    %v2248 = vpack.c.b16 %v1624, %v1616
    %v2249 = vpack.c.b16 %v1625, %v1617
    %v2250 = vpack.c.b16 %v1626, %v1618
    %v2251 = vpack.c.b16 %v1635, %v1627
    %v2252 = vpack.c.b16 %v1636, %v1628
    %v2253 = vpack.c.b16 %v1637, %v1629
    %v2254 = vpack.c.b16 %v1638, %v1630
    %v2255 = vpack.c.b16 %v1639, %v1631
    %v2256 = vpack.c.b16 %v1640, %v1632
    %v2257 = vpack.c.b16 %v1641, %v1633
    %v2258 = vpack.c.b16 %v1642, %v1634
    %v2259 = vpack.c.b16 %v1651, %v1643
    %v2260 = vpack.c.b16 %v1652, %v1644
    %v2261 = vpack.c.b16 %v1653, %v1645
    %v2262 = vpack.c.b16 %v1654, %v1646
    %v2263 = vpack.c.b16 %v1655, %v1647
    %v2264 = vpack.c.b16 %v1656, %v1648
    %v2265 = vpack.c.b16 %v1657, %v1649
    %v2266 = vpack.c.b16 %v1658, %v1650
    %v2267 = vpack.c.b16 %v1667, %v1659
    %v2268 = vpack.c.b16 %v1668, %v1660
    %v2269 = vpack.c.b16 %v1669, %v1661
    %v2270 = vpack.c.b16 %v1670, %v1662
    %v2271 = vpack.c.b16 %v1671, %v1663
    %v2272 = vpack.c.b16 %v1672, %v1664
    %v2273 = vpack.c.b16 %v1673, %v1665
    %v2274 = vpack.c.b16 %v1674, %v1666
    %v2275 = vpack.c.b16 %v1683, %v1675
    %v2276 = vpack.c.b16 %v1684, %v1676
    %v2277 = vpack.c.b16 %v1685, %v1677
    %v2278 = vpack.c.b16 %v1686, %v1678
    %v2279 = vpack.c.b16 %v1687, %v1679
    %v2280 = vpack.c.b16 %v1688, %v1680
    %v2281 = vpack.c.b16 %v1689, %v1681
    %v2282 = vpack.c.b16 %v1690, %v1682
    %v2283 = vpack.c.b16 %v1699, %v1691
    %v2284 = vpack.c.b16 %v1700, %v1692
    %v2285 = vpack.c.b16 %v1701, %v1693
    %v2286 = vpack.c.b16 %v1702, %v1694
    %v2287 = vpack.c.b16 %v1703, %v1695
    %v2288 = vpack.c.b16 %v1704, %v1696
    %v2289 = vpack.c.b16 %v1705, %v1697
    %v2290 = vpack.c.b16 %v1706, %v1698
    %v2291 = vpack.c.b16 %v1715, %v1707
    %v2292 = vpack.c.b16 %v1716, %v1708
    %v2293 = vpack.c.b16 %v1717, %v1709
    %v2294 = vpack.c.b16 %v1718, %v1710
    %v2295 = vpack.c.b16 %v1719, %v1711
    %v2296 = vpack.c.b16 %v1720, %v1712
    %v2297 = vpack.c.b16 %v1721, %v1713
    %v2298 = vpack.c.b16 %v1722, %v1714
    %v2299 = vpack.c.b16 %v1731, %v1723
    %v2300 = vpack.c.b16 %v1732, %v1724
    %v2301 = vpack.c.b16 %v1733, %v1725
    %v2302 = vpack.c.b16 %v1734, %v1726
    %v2303 = vpack.c.b16 %v1735, %v1727
    %v2304 = vpack.c.b16 %v1736, %v1728
    %v2305 = vpack.c.b16 %v1737, %v1729
    %v2306 = vpack.c.b16 %v1738, %v1730
    %v2307 = vpack.c.b16 %v1747, %v1739
    %v2308 = vpack.c.b16 %v1748, %v1740
    %v2309 = vpack.c.b16 %v1749, %v1741
    %v2310 = vpack.c.b16 %v1750, %v1742
    %v2311 = vpack.c.b16 %v1751, %v1743
    %v2312 = vpack.c.b16 %v1752, %v1744
    %v2313 = vpack.c.b16 %v1753, %v1745
    %v2314 = vpack.c.b16 %v1754, %v1746
    %v2315 = vpack.c.b16 %v1763, %v1755
    %v2316 = vpack.c.b16 %v1764, %v1756
    %v2317 = vpack.c.b16 %v1765, %v1757
    %v2318 = vpack.c.b16 %v1766, %v1758
    %v2319 = vpack.c.b16 %v1767, %v1759
    %v2320 = vpack.c.b16 %v1768, %v1760
    %v2321 = vpack.c.b16 %v1769, %v1761
    %v2322 = vpack.c.b16 %v1770, %v1762
    %v2323 = vpack.c.b16 %v1779, %v1771
    %v2324 = vpack.c.b16 %v1780, %v1772
    %v2325 = vpack.c.b16 %v1781, %v1773
    %v2326 = vpack.c.b16 %v1782, %v1774
    %v2327 = vpack.c.b16 %v1783, %v1775
    %v2328 = vpack.c.b16 %v1784, %v1776
    %v2329 = vpack.c.b16 %v1785, %v1777
    %v2330 = vpack.c.b16 %v1786, %v1778
    %v2331 = vpack.c.b16 %v1795, %v1787
    %v2332 = vpack.c.b16 %v1796, %v1788
    %v2333 = vpack.c.b16 %v1797, %v1789
    %v2334 = vpack.c.b16 %v1798, %v1790
    %v2335 = vpack.c.b16 %v1799, %v1791
    %v2336 = vpack.c.b16 %v1800, %v1792
    %v2337 = vpack.c.b16 %v1801, %v1793
    %v2338 = vpack.c.b16 %v1802, %v1794
    %v2339 = vpack.c.b16 %v1811, %v1803
    %v2340 = vpack.c.b16 %v1812, %v1804
    %v2341 = vpack.c.b16 %v1813, %v1805
    %v2342 = vpack.c.b16 %v1814, %v1806
    %v2343 = vpack.c.b16 %v1815, %v1807
    %v2344 = vpack.c.b16 %v1816, %v1808
    %v2345 = vpack.c.b16 %v1817, %v1809
    %v2346 = vpack.c.b16 %v1818, %v1810
    %v2347 = vpack.c.b16 %v1827, %v1819
    %v2348 = vpack.c.b16 %v1828, %v1820
    %v2349 = vpack.c.b16 %v1829, %v1821
    %v2350 = vpack.c.b16 %v1830, %v1822
    %v2351 = vpack.c.b16 %v1831, %v1823
    %v2352 = vpack.c.b16 %v1832, %v1824
    %v2353 = vpack.c.b16 %v1833, %v1825
    %v2354 = vpack.c.b16 %v1834, %v1826
    %v2355 = vpack.c.b16 %v1843, %v1835
    %v2356 = vpack.c.b16 %v1844, %v1836
    %v2357 = vpack.c.b16 %v1845, %v1837
    %v2358 = vpack.c.b16 %v1846, %v1838
    %v2359 = vpack.c.b16 %v1847, %v1839
    %v2360 = vpack.c.b16 %v1848, %v1840
    %v2361 = vpack.c.b16 %v1849, %v1841
    %v2362 = vpack.c.b16 %v1850, %v1842
    %v2363 = vpack.c.b16 %v1859, %v1851
    %v2364 = vpack.c.b16 %v1860, %v1852
    %v2365 = vpack.c.b16 %v1861, %v1853
    %v2366 = vpack.c.b16 %v1862, %v1854
    %v2367 = vpack.c.b16 %v1863, %v1855
    %v2368 = vpack.c.b16 %v1864, %v1856
    %v2369 = vpack.c.b16 %v1865, %v1857
    %v2370 = vpack.c.b16 %v1866, %v1858
    %v2371 = vpack.c.b16 %v1875, %v1867
    %v2372 = vpack.c.b16 %v1876, %v1868
    %v2373 = vpack.c.b16 %v1877, %v1869
    %v2374 = vpack.c.b16 %v1878, %v1870
    %v2375 = vpack.c.b16 %v1879, %v1871
    %v2376 = vpack.c.b16 %v1880, %v1872
    %v2377 = vpack.c.b16 %v1881, %v1873
    %v2378 = vpack.c.b16 %v1882, %v1874
    %v2379 = vpack.c.b16 %v1891, %v1883
    %v2380 = vpack.c.b16 %v1892, %v1884
    %v2381 = vpack.c.b16 %v1893, %v1885
    %v2382 = vpack.c.b16 %v1894, %v1886
    %v2383 = vpack.c.b16 %v1895, %v1887
    %v2384 = vpack.c.b16 %v1896, %v1888
    %v2385 = vpack.c.b16 %v1897, %v1889
    %v2386 = vpack.c.b16 %v1898, %v1890
    %v2387 = vpack.c.b16 %v1907, %v1899
    %v2388 = vpack.c.b16 %v1908, %v1900
    %v2389 = vpack.c.b16 %v1909, %v1901
    %v2390 = vpack.c.b16 %v1910, %v1902
    %v2391 = vpack.c.b16 %v1911, %v1903
    %v2392 = vpack.c.b16 %v1912, %v1904
    %v2393 = vpack.c.b16 %v1913, %v1905
    %v2394 = vpack.c.b16 %v1914, %v1906
    %v2395 = vpack.c.b16 %v1923, %v1915
    %v2396 = vpack.c.b16 %v1924, %v1916
    %v2397 = vpack.c.b16 %v1925, %v1917
    %v2398 = vpack.c.b16 %v1926, %v1918
    %v2399 = vpack.c.b16 %v1927, %v1919
    %v2400 = vpack.c.b16 %v1928, %v1920
    %v2401 = vpack.c.b16 %v1929, %v1921
    %v2402 = vpack.c.b16 %v1930, %v1922
    %v2403 = vpack.c.b16 %v1939, %v1931
    %v2404 = vpack.c.b16 %v1940, %v1932
    %v2405 = vpack.c.b16 %v1941, %v1933
    %v2406 = vpack.c.b16 %v1942, %v1934
    %v2407 = vpack.c.b16 %v1943, %v1935
    %v2408 = vpack.c.b16 %v1944, %v1936
    %v2409 = vpack.c.b16 %v1945, %v1937
    %v2410 = vpack.c.b16 %v1946, %v1938
    %v2411 = vpack.c.b16 %v1955, %v1947
    %v2412 = vpack.c.b16 %v1956, %v1948
    %v2413 = vpack.c.b16 %v1957, %v1949
    %v2414 = vpack.c.b16 %v1958, %v1950
    %v2415 = vpack.c.b16 %v1959, %v1951
    %v2416 = vpack.c.b16 %v1960, %v1952
    %v2417 = vpack.c.b16 %v1961, %v1953
    %v2418 = vpack.c.b16 %v1962, %v1954
    %v2419 = vpack.c.b16 %v1971, %v1963
    %v2420 = vpack.c.b16 %v1972, %v1964
    %v2421 = vpack.c.b16 %v1973, %v1965
    %v2422 = vpack.c.b16 %v1974, %v1966
    %v2423 = vpack.c.b16 %v1975, %v1967
    %v2424 = vpack.c.b16 %v1976, %v1968
    %v2425 = vpack.c.b16 %v1977, %v1969
    %v2426 = vpack.c.b16 %v1978, %v1970
    %2875 = vmatpush.bf16.msra.mxu0 %v2035
    %2876 = vmatpush.bf16.msra.mxu0 %v2027
    %2877 = vmatpush.bf16.msra.mxu0 %v2019
    %2878 = vmatpush.bf16.msra.mxu0 %v2011
    %2879 = vmatpush.bf16.msra.mxu0 %v2003
    %2880 = vmatpush.bf16.msra.mxu0 %v1995
    %2881 = vmatpush.bf16.msra.mxu0 %v1987
    %2882 = vmatpush.bf16.msra.mxu0 %v1979
    %2883 = vmatmul.bf16.gmra.mxu0 %v162
    %v2884 = vpop.f32.mrf.mxu0
    %v2885 = vadd.f32 %v619, %v2884
    %v2886 = vpop.f32.mrf.mxu0
    %2887 = vdwg.mxu0
    %2888 = vmatpush.bf16.msra.mxu0 %v2099
    %2889 = vmatpush.bf16.msra.mxu0 %v2091
    %2890 = vmatpush.bf16.msra.mxu0 %v2083
    %2891 = vmatpush.bf16.msra.mxu0 %v2075
    %2892 = vmatpush.bf16.msra.mxu0 %v2067
    %2893 = vmatpush.bf16.msra.mxu0 %v2059
    %2894 = vmatpush.bf16.msra.mxu0 %v2051
    %2895 = vmatpush.bf16.msra.mxu0 %v2043
    %2896 = vmatmul.bf16.gmra.mxu0 %v163
    %v2897 = vpop.f32.mrf.mxu0
    %v2898 = vadd.f32 %v2885, %v2897
    %v2899 = vpop.f32.mrf.mxu0
    %2900 = vdwg.mxu0
    %2901 = vmatpush.bf16.msra.mxu0 %v2163
    %2902 = vmatpush.bf16.msra.mxu0 %v2155
    %2903 = vmatpush.bf16.msra.mxu0 %v2147
    %2904 = vmatpush.bf16.msra.mxu0 %v2139
    %2905 = vmatpush.bf16.msra.mxu0 %v2131
    %2906 = vmatpush.bf16.msra.mxu0 %v2123
    %2907 = vmatpush.bf16.msra.mxu0 %v2115
    %2908 = vmatpush.bf16.msra.mxu0 %v2107
    %2909 = vmatmul.bf16.gmra.mxu0 %v164
    %v2910 = vpop.f32.mrf.mxu0
    %v2911 = vadd.f32 %v2898, %v2910
    %v2912 = vpop.f32.mrf.mxu0
    %2913 = vdwg.mxu0
    %2914 = vmatpush.bf16.msra.mxu0 %v2227
    %2915 = vmatpush.bf16.msra.mxu0 %v2219
    %2916 = vmatpush.bf16.msra.mxu0 %v2211
    %2917 = vmatpush.bf16.msra.mxu0 %v2203
    %2918 = vmatpush.bf16.msra.mxu0 %v2195
    %2919 = vmatpush.bf16.msra.mxu0 %v2187
    %2920 = vmatpush.bf16.msra.mxu0 %v2179
    %2921 = vmatpush.bf16.msra.mxu0 %v2171
    %2922 = vmatmul.bf16.gmra.mxu0 %v165
    %v2923 = vpop.f32.mrf.mxu0
    %v2924 = vadd.f32 %v2911, %v2923
    %v2925 = vpop.f32.mrf.mxu0
    %2926 = vdwg.mxu0
    %2927 = vmatpush.bf16.msra.mxu0 %v2291
    %2928 = vmatpush.bf16.msra.mxu0 %v2283
    %2929 = vmatpush.bf16.msra.mxu0 %v2275
    %2930 = vmatpush.bf16.msra.mxu0 %v2267
    %2931 = vmatpush.bf16.msra.mxu0 %v2259
    %2932 = vmatpush.bf16.msra.mxu0 %v2251
    %2933 = vmatpush.bf16.msra.mxu0 %v2243
    %2934 = vmatpush.bf16.msra.mxu0 %v2235
    %2935 = vmatmul.bf16.gmra.mxu0 %v166
    %v2936 = vpop.f32.mrf.mxu0
    %v2937 = vadd.f32 %v2924, %v2936
    %v2938 = vpop.f32.mrf.mxu0
    %2939 = vdwg.mxu0
    %2940 = vmatpush.bf16.msra.mxu0 %v2355
    %2941 = vmatpush.bf16.msra.mxu0 %v2347
    %2942 = vmatpush.bf16.msra.mxu0 %v2339
    %2943 = vmatpush.bf16.msra.mxu0 %v2331
    %2944 = vmatpush.bf16.msra.mxu0 %v2323
    %2945 = vmatpush.bf16.msra.mxu0 %v2315
    %2946 = vmatpush.bf16.msra.mxu0 %v2307
    %2947 = vmatpush.bf16.msra.mxu0 %v2299
    %2948 = vmatmul.bf16.gmra.mxu0 %v167
    %v2949 = vpop.f32.mrf.mxu0
    %v2950 = vadd.f32 %v2937, %v2949
    %v2951 = vpop.f32.mrf.mxu0
    %2952 = vdwg.mxu0
    %2953 = vmatpush.bf16.msra.mxu0 %v2419
    %2954 = vmatpush.bf16.msra.mxu0 %v2411
    %2955 = vmatpush.bf16.msra.mxu0 %v2403
    %2956 = vmatpush.bf16.msra.mxu0 %v2395
    %2957 = vmatpush.bf16.msra.mxu0 %v2387
    %2958 = vmatpush.bf16.msra.mxu0 %v2379
    %2959 = vmatpush.bf16.msra.mxu0 %v2371
    %2960 = vmatpush.bf16.msra.mxu0 %v2363
    %2961 = vmatmul.bf16.gmra.mxu0 %v168
    %v2962 = vpop.f32.mrf.mxu0
    %v2963 = vadd.f32 %v2950, %v2962
    %v2964 = vpop.f32.mrf.mxu0
    %2965 = vdwg.mxu0
    %2966 = vmatpush.bf16.msra.mxu0 %v2036
    %2967 = vmatpush.bf16.msra.mxu0 %v2028
    %2968 = vmatpush.bf16.msra.mxu0 %v2020
    %2969 = vmatpush.bf16.msra.mxu0 %v2012
    %2970 = vmatpush.bf16.msra.mxu0 %v2004
    %2971 = vmatpush.bf16.msra.mxu0 %v1996
    %2972 = vmatpush.bf16.msra.mxu0 %v1988
    %2973 = vmatpush.bf16.msra.mxu0 %v1980
    %2974 = vmatmul.bf16.gmra.mxu0 %v162
    %v2975 = vpop.f32.mrf.mxu0
    %v2976 = vadd.f32 %v620, %v2975
    %v2977 = vpop.f32.mrf.mxu0
    %2978 = vdwg.mxu0
    %2979 = vmatpush.bf16.msra.mxu0 %v2100
    %2980 = vmatpush.bf16.msra.mxu0 %v2092
    %2981 = vmatpush.bf16.msra.mxu0 %v2084
    %2982 = vmatpush.bf16.msra.mxu0 %v2076
    %2983 = vmatpush.bf16.msra.mxu0 %v2068
    %2984 = vmatpush.bf16.msra.mxu0 %v2060
    %2985 = vmatpush.bf16.msra.mxu0 %v2052
    %2986 = vmatpush.bf16.msra.mxu0 %v2044
    %2987 = vmatmul.bf16.gmra.mxu0 %v163
    %v2988 = vpop.f32.mrf.mxu0
    %v2989 = vadd.f32 %v2976, %v2988
    %v2990 = vpop.f32.mrf.mxu0
    %2991 = vdwg.mxu0
    %2992 = vmatpush.bf16.msra.mxu0 %v2164
    %2993 = vmatpush.bf16.msra.mxu0 %v2156
    %2994 = vmatpush.bf16.msra.mxu0 %v2148
    %2995 = vmatpush.bf16.msra.mxu0 %v2140
    %2996 = vmatpush.bf16.msra.mxu0 %v2132
    %2997 = vmatpush.bf16.msra.mxu0 %v2124
    %2998 = vmatpush.bf16.msra.mxu0 %v2116
    %2999 = vmatpush.bf16.msra.mxu0 %v2108
    %3000 = vmatmul.bf16.gmra.mxu0 %v164
    %v3001 = vpop.f32.mrf.mxu0
    %v3002 = vadd.f32 %v2989, %v3001
    %v3003 = vpop.f32.mrf.mxu0
    %3004 = vdwg.mxu0
    %3005 = vmatpush.bf16.msra.mxu0 %v2228
    %3006 = vmatpush.bf16.msra.mxu0 %v2220
    %3007 = vmatpush.bf16.msra.mxu0 %v2212
    %3008 = vmatpush.bf16.msra.mxu0 %v2204
    %3009 = vmatpush.bf16.msra.mxu0 %v2196
    %3010 = vmatpush.bf16.msra.mxu0 %v2188
    %3011 = vmatpush.bf16.msra.mxu0 %v2180
    %3012 = vmatpush.bf16.msra.mxu0 %v2172
    %3013 = vmatmul.bf16.gmra.mxu0 %v165
    %v3014 = vpop.f32.mrf.mxu0
    %v3015 = vadd.f32 %v3002, %v3014
    %v3016 = vpop.f32.mrf.mxu0
    %3017 = vdwg.mxu0
    %3018 = vmatpush.bf16.msra.mxu0 %v2292
    %3019 = vmatpush.bf16.msra.mxu0 %v2284
    %3020 = vmatpush.bf16.msra.mxu0 %v2276
    %3021 = vmatpush.bf16.msra.mxu0 %v2268
    %3022 = vmatpush.bf16.msra.mxu0 %v2260
    %3023 = vmatpush.bf16.msra.mxu0 %v2252
    %3024 = vmatpush.bf16.msra.mxu0 %v2244
    %3025 = vmatpush.bf16.msra.mxu0 %v2236
    %3026 = vmatmul.bf16.gmra.mxu0 %v166
    %v3027 = vpop.f32.mrf.mxu0
    %v3028 = vadd.f32 %v3015, %v3027
    %v3029 = vpop.f32.mrf.mxu0
    %3030 = vdwg.mxu0
    %3031 = vmatpush.bf16.msra.mxu0 %v2356
    %3032 = vmatpush.bf16.msra.mxu0 %v2348
    %3033 = vmatpush.bf16.msra.mxu0 %v2340
    %3034 = vmatpush.bf16.msra.mxu0 %v2332
    %3035 = vmatpush.bf16.msra.mxu0 %v2324
    %3036 = vmatpush.bf16.msra.mxu0 %v2316
    %3037 = vmatpush.bf16.msra.mxu0 %v2308
    %3038 = vmatpush.bf16.msra.mxu0 %v2300
    %3039 = vmatmul.bf16.gmra.mxu0 %v167
    %v3040 = vpop.f32.mrf.mxu0
    %v3041 = vadd.f32 %v3028, %v3040
    %v3042 = vpop.f32.mrf.mxu0
    %3043 = vdwg.mxu0
    %3044 = vmatpush.bf16.msra.mxu0 %v2420
    %3045 = vmatpush.bf16.msra.mxu0 %v2412
    %3046 = vmatpush.bf16.msra.mxu0 %v2404
    %3047 = vmatpush.bf16.msra.mxu0 %v2396
    %3048 = vmatpush.bf16.msra.mxu0 %v2388
    %3049 = vmatpush.bf16.msra.mxu0 %v2380
    %3050 = vmatpush.bf16.msra.mxu0 %v2372
    %3051 = vmatpush.bf16.msra.mxu0 %v2364
    %3052 = vmatmul.bf16.gmra.mxu0 %v168
    %v3053 = vpop.f32.mrf.mxu0
    %v3054 = vadd.f32 %v3041, %v3053
    %v3055 = vpop.f32.mrf.mxu0
    %3056 = vdwg.mxu0
    %3057 = vmatpush.bf16.msra.mxu0 %v2037
    %3058 = vmatpush.bf16.msra.mxu0 %v2029
    %3059 = vmatpush.bf16.msra.mxu0 %v2021
    %3060 = vmatpush.bf16.msra.mxu0 %v2013
    %3061 = vmatpush.bf16.msra.mxu0 %v2005
    %3062 = vmatpush.bf16.msra.mxu0 %v1997
    %3063 = vmatpush.bf16.msra.mxu0 %v1989
    %3064 = vmatpush.bf16.msra.mxu0 %v1981
    %3065 = vmatmul.bf16.gmra.mxu0 %v162
    %v3066 = vpop.f32.mrf.mxu0
    %v3067 = vadd.f32 %v621, %v3066
    %v3068 = vpop.f32.mrf.mxu0
    %3069 = vdwg.mxu0
    %3070 = vmatpush.bf16.msra.mxu0 %v2101
    %3071 = vmatpush.bf16.msra.mxu0 %v2093
    %3072 = vmatpush.bf16.msra.mxu0 %v2085
    %3073 = vmatpush.bf16.msra.mxu0 %v2077
    %3074 = vmatpush.bf16.msra.mxu0 %v2069
    %3075 = vmatpush.bf16.msra.mxu0 %v2061
    %3076 = vmatpush.bf16.msra.mxu0 %v2053
    %3077 = vmatpush.bf16.msra.mxu0 %v2045
    %3078 = vmatmul.bf16.gmra.mxu0 %v163
    %v3079 = vpop.f32.mrf.mxu0
    %v3080 = vadd.f32 %v3067, %v3079
    %v3081 = vpop.f32.mrf.mxu0
    %3082 = vdwg.mxu0
    %3083 = vmatpush.bf16.msra.mxu0 %v2165
    %3084 = vmatpush.bf16.msra.mxu0 %v2157
    %3085 = vmatpush.bf16.msra.mxu0 %v2149
    %3086 = vmatpush.bf16.msra.mxu0 %v2141
    %3087 = vmatpush.bf16.msra.mxu0 %v2133
    %3088 = vmatpush.bf16.msra.mxu0 %v2125
    %3089 = vmatpush.bf16.msra.mxu0 %v2117
    %3090 = vmatpush.bf16.msra.mxu0 %v2109
    %3091 = vmatmul.bf16.gmra.mxu0 %v164
    %v3092 = vpop.f32.mrf.mxu0
    %v3093 = vadd.f32 %v3080, %v3092
    %v3094 = vpop.f32.mrf.mxu0
    %3095 = vdwg.mxu0
    %3096 = vmatpush.bf16.msra.mxu0 %v2229
    %3097 = vmatpush.bf16.msra.mxu0 %v2221
    %3098 = vmatpush.bf16.msra.mxu0 %v2213
    %3099 = vmatpush.bf16.msra.mxu0 %v2205
    %3100 = vmatpush.bf16.msra.mxu0 %v2197
    %3101 = vmatpush.bf16.msra.mxu0 %v2189
    %3102 = vmatpush.bf16.msra.mxu0 %v2181
    %3103 = vmatpush.bf16.msra.mxu0 %v2173
    %3104 = vmatmul.bf16.gmra.mxu0 %v165
    %v3105 = vpop.f32.mrf.mxu0
    %v3106 = vadd.f32 %v3093, %v3105
    %v3107 = vpop.f32.mrf.mxu0
    %3108 = vdwg.mxu0
    %3109 = vmatpush.bf16.msra.mxu0 %v2293
    %3110 = vmatpush.bf16.msra.mxu0 %v2285
    %3111 = vmatpush.bf16.msra.mxu0 %v2277
    %3112 = vmatpush.bf16.msra.mxu0 %v2269
    %3113 = vmatpush.bf16.msra.mxu0 %v2261
    %3114 = vmatpush.bf16.msra.mxu0 %v2253
    %3115 = vmatpush.bf16.msra.mxu0 %v2245
    %3116 = vmatpush.bf16.msra.mxu0 %v2237
    %3117 = vmatmul.bf16.gmra.mxu0 %v166
    %v3118 = vpop.f32.mrf.mxu0
    %v3119 = vadd.f32 %v3106, %v3118
    %v3120 = vpop.f32.mrf.mxu0
    %3121 = vdwg.mxu0
    %3122 = vmatpush.bf16.msra.mxu0 %v2357
    %3123 = vmatpush.bf16.msra.mxu0 %v2349
    %3124 = vmatpush.bf16.msra.mxu0 %v2341
    %3125 = vmatpush.bf16.msra.mxu0 %v2333
    %3126 = vmatpush.bf16.msra.mxu0 %v2325
    %3127 = vmatpush.bf16.msra.mxu0 %v2317
    %3128 = vmatpush.bf16.msra.mxu0 %v2309
    %3129 = vmatpush.bf16.msra.mxu0 %v2301
    %3130 = vmatmul.bf16.gmra.mxu0 %v167
    %v3131 = vpop.f32.mrf.mxu0
    %v3132 = vadd.f32 %v3119, %v3131
    %v3133 = vpop.f32.mrf.mxu0
    %3134 = vdwg.mxu0
    %3135 = vmatpush.bf16.msra.mxu0 %v2421
    %3136 = vmatpush.bf16.msra.mxu0 %v2413
    %3137 = vmatpush.bf16.msra.mxu0 %v2405
    %3138 = vmatpush.bf16.msra.mxu0 %v2397
    %3139 = vmatpush.bf16.msra.mxu0 %v2389
    %3140 = vmatpush.bf16.msra.mxu0 %v2381
    %3141 = vmatpush.bf16.msra.mxu0 %v2373
    %3142 = vmatpush.bf16.msra.mxu0 %v2365
    %3143 = vmatmul.bf16.gmra.mxu0 %v168
    %v3144 = vpop.f32.mrf.mxu0
    %v3145 = vadd.f32 %v3132, %v3144
    %v3146 = vpop.f32.mrf.mxu0
    %3147 = vdwg.mxu0
    %3148 = vmatpush.bf16.msra.mxu0 %v2038
    %3149 = vmatpush.bf16.msra.mxu0 %v2030
    %3150 = vmatpush.bf16.msra.mxu0 %v2022
    %3151 = vmatpush.bf16.msra.mxu0 %v2014
    %3152 = vmatpush.bf16.msra.mxu0 %v2006
    %3153 = vmatpush.bf16.msra.mxu0 %v1998
    %3154 = vmatpush.bf16.msra.mxu0 %v1990
    %3155 = vmatpush.bf16.msra.mxu0 %v1982
    %3156 = vmatmul.bf16.gmra.mxu0 %v162
    %v3157 = vpop.f32.mrf.mxu0
    %v3158 = vadd.f32 %v622, %v3157
    %v3159 = vpop.f32.mrf.mxu0
    %3160 = vdwg.mxu0
    %3161 = vmatpush.bf16.msra.mxu0 %v2102
    %3162 = vmatpush.bf16.msra.mxu0 %v2094
    %3163 = vmatpush.bf16.msra.mxu0 %v2086
    %3164 = vmatpush.bf16.msra.mxu0 %v2078
    %3165 = vmatpush.bf16.msra.mxu0 %v2070
    %3166 = vmatpush.bf16.msra.mxu0 %v2062
    %3167 = vmatpush.bf16.msra.mxu0 %v2054
    %3168 = vmatpush.bf16.msra.mxu0 %v2046
    %3169 = vmatmul.bf16.gmra.mxu0 %v163
    %v3170 = vpop.f32.mrf.mxu0
    %v3171 = vadd.f32 %v3158, %v3170
    %v3172 = vpop.f32.mrf.mxu0
    %3173 = vdwg.mxu0
    %3174 = vmatpush.bf16.msra.mxu0 %v2166
    %3175 = vmatpush.bf16.msra.mxu0 %v2158
    %3176 = vmatpush.bf16.msra.mxu0 %v2150
    %3177 = vmatpush.bf16.msra.mxu0 %v2142
    %3178 = vmatpush.bf16.msra.mxu0 %v2134
    %3179 = vmatpush.bf16.msra.mxu0 %v2126
    %3180 = vmatpush.bf16.msra.mxu0 %v2118
    %3181 = vmatpush.bf16.msra.mxu0 %v2110
    %3182 = vmatmul.bf16.gmra.mxu0 %v164
    %v3183 = vpop.f32.mrf.mxu0
    %v3184 = vadd.f32 %v3171, %v3183
    %v3185 = vpop.f32.mrf.mxu0
    %3186 = vdwg.mxu0
    %3187 = vmatpush.bf16.msra.mxu0 %v2230
    %3188 = vmatpush.bf16.msra.mxu0 %v2222
    %3189 = vmatpush.bf16.msra.mxu0 %v2214
    %3190 = vmatpush.bf16.msra.mxu0 %v2206
    %3191 = vmatpush.bf16.msra.mxu0 %v2198
    %3192 = vmatpush.bf16.msra.mxu0 %v2190
    %3193 = vmatpush.bf16.msra.mxu0 %v2182
    %3194 = vmatpush.bf16.msra.mxu0 %v2174
    %3195 = vmatmul.bf16.gmra.mxu0 %v165
    %v3196 = vpop.f32.mrf.mxu0
    %v3197 = vadd.f32 %v3184, %v3196
    %v3198 = vpop.f32.mrf.mxu0
    %3199 = vdwg.mxu0
    %3200 = vmatpush.bf16.msra.mxu0 %v2294
    %3201 = vmatpush.bf16.msra.mxu0 %v2286
    %3202 = vmatpush.bf16.msra.mxu0 %v2278
    %3203 = vmatpush.bf16.msra.mxu0 %v2270
    %3204 = vmatpush.bf16.msra.mxu0 %v2262
    %3205 = vmatpush.bf16.msra.mxu0 %v2254
    %3206 = vmatpush.bf16.msra.mxu0 %v2246
    %3207 = vmatpush.bf16.msra.mxu0 %v2238
    %3208 = vmatmul.bf16.gmra.mxu0 %v166
    %v3209 = vpop.f32.mrf.mxu0
    %v3210 = vadd.f32 %v3197, %v3209
    %v3211 = vpop.f32.mrf.mxu0
    %3212 = vdwg.mxu0
    %3213 = vmatpush.bf16.msra.mxu0 %v2358
    %3214 = vmatpush.bf16.msra.mxu0 %v2350
    %3215 = vmatpush.bf16.msra.mxu0 %v2342
    %3216 = vmatpush.bf16.msra.mxu0 %v2334
    %3217 = vmatpush.bf16.msra.mxu0 %v2326
    %3218 = vmatpush.bf16.msra.mxu0 %v2318
    %3219 = vmatpush.bf16.msra.mxu0 %v2310
    %3220 = vmatpush.bf16.msra.mxu0 %v2302
    %3221 = vmatmul.bf16.gmra.mxu0 %v167
    %v3222 = vpop.f32.mrf.mxu0
    %v3223 = vadd.f32 %v3210, %v3222
    %v3224 = vpop.f32.mrf.mxu0
    %3225 = vdwg.mxu0
    %3226 = vmatpush.bf16.msra.mxu0 %v2422
    %3227 = vmatpush.bf16.msra.mxu0 %v2414
    %3228 = vmatpush.bf16.msra.mxu0 %v2406
    %3229 = vmatpush.bf16.msra.mxu0 %v2398
    %3230 = vmatpush.bf16.msra.mxu0 %v2390
    %3231 = vmatpush.bf16.msra.mxu0 %v2382
    %3232 = vmatpush.bf16.msra.mxu0 %v2374
    %3233 = vmatpush.bf16.msra.mxu0 %v2366
    %3234 = vmatmul.bf16.gmra.mxu0 %v168
    %v3235 = vpop.f32.mrf.mxu0
    %v3236 = vadd.f32 %v3223, %v3235
    %v3237 = vpop.f32.mrf.mxu0
    %3238 = vdwg.mxu0
    %3239 = vmatpush.bf16.msra.mxu0 %v2039
    %3240 = vmatpush.bf16.msra.mxu0 %v2031
    %3241 = vmatpush.bf16.msra.mxu0 %v2023
    %3242 = vmatpush.bf16.msra.mxu0 %v2015
    %3243 = vmatpush.bf16.msra.mxu0 %v2007
    %3244 = vmatpush.bf16.msra.mxu0 %v1999
    %3245 = vmatpush.bf16.msra.mxu0 %v1991
    %3246 = vmatpush.bf16.msra.mxu0 %v1983
    %3247 = vmatmul.bf16.gmra.mxu0 %v162
    %v3248 = vpop.f32.mrf.mxu0
    %v3249 = vadd.f32 %v623, %v3248
    %v3250 = vpop.f32.mrf.mxu0
    %3251 = vdwg.mxu0
    %3252 = vmatpush.bf16.msra.mxu0 %v2103
    %3253 = vmatpush.bf16.msra.mxu0 %v2095
    %3254 = vmatpush.bf16.msra.mxu0 %v2087
    %3255 = vmatpush.bf16.msra.mxu0 %v2079
    %3256 = vmatpush.bf16.msra.mxu0 %v2071
    %3257 = vmatpush.bf16.msra.mxu0 %v2063
    %3258 = vmatpush.bf16.msra.mxu0 %v2055
    %3259 = vmatpush.bf16.msra.mxu0 %v2047
    %3260 = vmatmul.bf16.gmra.mxu0 %v163
    %v3261 = vpop.f32.mrf.mxu0
    %v3262 = vadd.f32 %v3249, %v3261
    %v3263 = vpop.f32.mrf.mxu0
    %3264 = vdwg.mxu0
    %3265 = vmatpush.bf16.msra.mxu0 %v2167
    %3266 = vmatpush.bf16.msra.mxu0 %v2159
    %3267 = vmatpush.bf16.msra.mxu0 %v2151
    %3268 = vmatpush.bf16.msra.mxu0 %v2143
    %3269 = vmatpush.bf16.msra.mxu0 %v2135
    %3270 = vmatpush.bf16.msra.mxu0 %v2127
    %3271 = vmatpush.bf16.msra.mxu0 %v2119
    %3272 = vmatpush.bf16.msra.mxu0 %v2111
    %3273 = vmatmul.bf16.gmra.mxu0 %v164
    %v3274 = vpop.f32.mrf.mxu0
    %v3275 = vadd.f32 %v3262, %v3274
    %v3276 = vpop.f32.mrf.mxu0
    %3277 = vdwg.mxu0
    %3278 = vmatpush.bf16.msra.mxu0 %v2231
    %3279 = vmatpush.bf16.msra.mxu0 %v2223
    %3280 = vmatpush.bf16.msra.mxu0 %v2215
    %3281 = vmatpush.bf16.msra.mxu0 %v2207
    %3282 = vmatpush.bf16.msra.mxu0 %v2199
    %3283 = vmatpush.bf16.msra.mxu0 %v2191
    %3284 = vmatpush.bf16.msra.mxu0 %v2183
    %3285 = vmatpush.bf16.msra.mxu0 %v2175
    %3286 = vmatmul.bf16.gmra.mxu0 %v165
    %v3287 = vpop.f32.mrf.mxu0
    %v3288 = vadd.f32 %v3275, %v3287
    %v3289 = vpop.f32.mrf.mxu0
    %3290 = vdwg.mxu0
    %3291 = vmatpush.bf16.msra.mxu0 %v2295
    %3292 = vmatpush.bf16.msra.mxu0 %v2287
    %3293 = vmatpush.bf16.msra.mxu0 %v2279
    %3294 = vmatpush.bf16.msra.mxu0 %v2271
    %3295 = vmatpush.bf16.msra.mxu0 %v2263
    %3296 = vmatpush.bf16.msra.mxu0 %v2255
    %3297 = vmatpush.bf16.msra.mxu0 %v2247
    %3298 = vmatpush.bf16.msra.mxu0 %v2239
    %3299 = vmatmul.bf16.gmra.mxu0 %v166
    %v3300 = vpop.f32.mrf.mxu0
    %v3301 = vadd.f32 %v3288, %v3300
    %v3302 = vpop.f32.mrf.mxu0
    %3303 = vdwg.mxu0
    %3304 = vmatpush.bf16.msra.mxu0 %v2359
    %3305 = vmatpush.bf16.msra.mxu0 %v2351
    %3306 = vmatpush.bf16.msra.mxu0 %v2343
    %3307 = vmatpush.bf16.msra.mxu0 %v2335
    %3308 = vmatpush.bf16.msra.mxu0 %v2327
    %3309 = vmatpush.bf16.msra.mxu0 %v2319
    %3310 = vmatpush.bf16.msra.mxu0 %v2311
    %3311 = vmatpush.bf16.msra.mxu0 %v2303
    %3312 = vmatmul.bf16.gmra.mxu0 %v167
    %v3313 = vpop.f32.mrf.mxu0
    %v3314 = vadd.f32 %v3301, %v3313
    %v3315 = vpop.f32.mrf.mxu0
    %3316 = vdwg.mxu0
    %3317 = vmatpush.bf16.msra.mxu0 %v2423
    %3318 = vmatpush.bf16.msra.mxu0 %v2415
    %3319 = vmatpush.bf16.msra.mxu0 %v2407
    %3320 = vmatpush.bf16.msra.mxu0 %v2399
    %3321 = vmatpush.bf16.msra.mxu0 %v2391
    %3322 = vmatpush.bf16.msra.mxu0 %v2383
    %3323 = vmatpush.bf16.msra.mxu0 %v2375
    %3324 = vmatpush.bf16.msra.mxu0 %v2367
    %3325 = vmatmul.bf16.gmra.mxu0 %v168
    %v3326 = vpop.f32.mrf.mxu0
    %v3327 = vadd.f32 %v3314, %v3326
    %v3328 = vpop.f32.mrf.mxu0
    %3329 = vdwg.mxu0
    %3330 = vmatpush.bf16.msra.mxu0 %v2040
    %3331 = vmatpush.bf16.msra.mxu0 %v2032
    %3332 = vmatpush.bf16.msra.mxu0 %v2024
    %3333 = vmatpush.bf16.msra.mxu0 %v2016
    %3334 = vmatpush.bf16.msra.mxu0 %v2008
    %3335 = vmatpush.bf16.msra.mxu0 %v2000
    %3336 = vmatpush.bf16.msra.mxu0 %v1992
    %3337 = vmatpush.bf16.msra.mxu0 %v1984
    %3338 = vmatmul.bf16.gmra.mxu0 %v162
    %v3339 = vpop.f32.mrf.mxu0
    %v3340 = vadd.f32 %v624, %v3339
    %v3341 = vpop.f32.mrf.mxu0
    %3342 = vdwg.mxu0
    %3343 = vmatpush.bf16.msra.mxu0 %v2104
    %3344 = vmatpush.bf16.msra.mxu0 %v2096
    %3345 = vmatpush.bf16.msra.mxu0 %v2088
    %3346 = vmatpush.bf16.msra.mxu0 %v2080
    %3347 = vmatpush.bf16.msra.mxu0 %v2072
    %3348 = vmatpush.bf16.msra.mxu0 %v2064
    %3349 = vmatpush.bf16.msra.mxu0 %v2056
    %3350 = vmatpush.bf16.msra.mxu0 %v2048
    %3351 = vmatmul.bf16.gmra.mxu0 %v163
    %v3352 = vpop.f32.mrf.mxu0
    %v3353 = vadd.f32 %v3340, %v3352
    %v3354 = vpop.f32.mrf.mxu0
    %3355 = vdwg.mxu0
    %3356 = vmatpush.bf16.msra.mxu0 %v2168
    %3357 = vmatpush.bf16.msra.mxu0 %v2160
    %3358 = vmatpush.bf16.msra.mxu0 %v2152
    %3359 = vmatpush.bf16.msra.mxu0 %v2144
    %3360 = vmatpush.bf16.msra.mxu0 %v2136
    %3361 = vmatpush.bf16.msra.mxu0 %v2128
    %3362 = vmatpush.bf16.msra.mxu0 %v2120
    %3363 = vmatpush.bf16.msra.mxu0 %v2112
    %3364 = vmatmul.bf16.gmra.mxu0 %v164
    %v3365 = vpop.f32.mrf.mxu0
    %v3366 = vadd.f32 %v3353, %v3365
    %v3367 = vpop.f32.mrf.mxu0
    %3368 = vdwg.mxu0
    %3369 = vmatpush.bf16.msra.mxu0 %v2232
    %3370 = vmatpush.bf16.msra.mxu0 %v2224
    %3371 = vmatpush.bf16.msra.mxu0 %v2216
    %3372 = vmatpush.bf16.msra.mxu0 %v2208
    %3373 = vmatpush.bf16.msra.mxu0 %v2200
    %3374 = vmatpush.bf16.msra.mxu0 %v2192
    %3375 = vmatpush.bf16.msra.mxu0 %v2184
    %3376 = vmatpush.bf16.msra.mxu0 %v2176
    %3377 = vmatmul.bf16.gmra.mxu0 %v165
    %v3378 = vpop.f32.mrf.mxu0
    %v3379 = vadd.f32 %v3366, %v3378
    %v3380 = vpop.f32.mrf.mxu0
    %3381 = vdwg.mxu0
    %3382 = vmatpush.bf16.msra.mxu0 %v2296
    %3383 = vmatpush.bf16.msra.mxu0 %v2288
    %3384 = vmatpush.bf16.msra.mxu0 %v2280
    %3385 = vmatpush.bf16.msra.mxu0 %v2272
    %3386 = vmatpush.bf16.msra.mxu0 %v2264
    %3387 = vmatpush.bf16.msra.mxu0 %v2256
    %3388 = vmatpush.bf16.msra.mxu0 %v2248
    %3389 = vmatpush.bf16.msra.mxu0 %v2240
    %3390 = vmatmul.bf16.gmra.mxu0 %v166
    %v3391 = vpop.f32.mrf.mxu0
    %v3392 = vadd.f32 %v3379, %v3391
    %v3393 = vpop.f32.mrf.mxu0
    %3394 = vdwg.mxu0
    %3395 = vmatpush.bf16.msra.mxu0 %v2360
    %3396 = vmatpush.bf16.msra.mxu0 %v2352
    %3397 = vmatpush.bf16.msra.mxu0 %v2344
    %3398 = vmatpush.bf16.msra.mxu0 %v2336
    %3399 = vmatpush.bf16.msra.mxu0 %v2328
    %3400 = vmatpush.bf16.msra.mxu0 %v2320
    %3401 = vmatpush.bf16.msra.mxu0 %v2312
    %3402 = vmatpush.bf16.msra.mxu0 %v2304
    %3403 = vmatmul.bf16.gmra.mxu0 %v167
    %v3404 = vpop.f32.mrf.mxu0
    %v3405 = vadd.f32 %v3392, %v3404
    %v3406 = vpop.f32.mrf.mxu0
    %3407 = vdwg.mxu0
    %3408 = vmatpush.bf16.msra.mxu0 %v2424
    %3409 = vmatpush.bf16.msra.mxu0 %v2416
    %3410 = vmatpush.bf16.msra.mxu0 %v2408
    %3411 = vmatpush.bf16.msra.mxu0 %v2400
    %3412 = vmatpush.bf16.msra.mxu0 %v2392
    %3413 = vmatpush.bf16.msra.mxu0 %v2384
    %3414 = vmatpush.bf16.msra.mxu0 %v2376
    %3415 = vmatpush.bf16.msra.mxu0 %v2368
    %3416 = vmatmul.bf16.gmra.mxu0 %v168
    %v3417 = vpop.f32.mrf.mxu0
    %v3418 = vadd.f32 %v3405, %v3417
    %v3419 = vpop.f32.mrf.mxu0
    %3420 = vdwg.mxu0
    %3421 = vmatpush.bf16.msra.mxu0 %v2041
    %3422 = vmatpush.bf16.msra.mxu0 %v2033
    %3423 = vmatpush.bf16.msra.mxu0 %v2025
    %3424 = vmatpush.bf16.msra.mxu0 %v2017
    %3425 = vmatpush.bf16.msra.mxu0 %v2009
    %3426 = vmatpush.bf16.msra.mxu0 %v2001
    %3427 = vmatpush.bf16.msra.mxu0 %v1993
    %3428 = vmatpush.bf16.msra.mxu0 %v1985
    %3429 = vmatmul.bf16.gmra.mxu0 %v162
    %v3430 = vpop.f32.mrf.mxu0
    %v3431 = vadd.f32 %v625, %v3430
    %v3432 = vpop.f32.mrf.mxu0
    %3433 = vdwg.mxu0
    %3434 = vmatpush.bf16.msra.mxu0 %v2105
    %3435 = vmatpush.bf16.msra.mxu0 %v2097
    %3436 = vmatpush.bf16.msra.mxu0 %v2089
    %3437 = vmatpush.bf16.msra.mxu0 %v2081
    %3438 = vmatpush.bf16.msra.mxu0 %v2073
    %3439 = vmatpush.bf16.msra.mxu0 %v2065
    %3440 = vmatpush.bf16.msra.mxu0 %v2057
    %3441 = vmatpush.bf16.msra.mxu0 %v2049
    %3442 = vmatmul.bf16.gmra.mxu0 %v163
    %v3443 = vpop.f32.mrf.mxu0
    %v3444 = vadd.f32 %v3431, %v3443
    %v3445 = vpop.f32.mrf.mxu0
    %3446 = vdwg.mxu0
    %3447 = vmatpush.bf16.msra.mxu0 %v2169
    %3448 = vmatpush.bf16.msra.mxu0 %v2161
    %3449 = vmatpush.bf16.msra.mxu0 %v2153
    %3450 = vmatpush.bf16.msra.mxu0 %v2145
    %3451 = vmatpush.bf16.msra.mxu0 %v2137
    %3452 = vmatpush.bf16.msra.mxu0 %v2129
    %3453 = vmatpush.bf16.msra.mxu0 %v2121
    %3454 = vmatpush.bf16.msra.mxu0 %v2113
    %3455 = vmatmul.bf16.gmra.mxu0 %v164
    %v3456 = vpop.f32.mrf.mxu0
    %v3457 = vadd.f32 %v3444, %v3456
    %v3458 = vpop.f32.mrf.mxu0
    %3459 = vdwg.mxu0
    %3460 = vmatpush.bf16.msra.mxu0 %v2233
    %3461 = vmatpush.bf16.msra.mxu0 %v2225
    %3462 = vmatpush.bf16.msra.mxu0 %v2217
    %3463 = vmatpush.bf16.msra.mxu0 %v2209
    %3464 = vmatpush.bf16.msra.mxu0 %v2201
    %3465 = vmatpush.bf16.msra.mxu0 %v2193
    %3466 = vmatpush.bf16.msra.mxu0 %v2185
    %3467 = vmatpush.bf16.msra.mxu0 %v2177
    %3468 = vmatmul.bf16.gmra.mxu0 %v165
    %v3469 = vpop.f32.mrf.mxu0
    %v3470 = vadd.f32 %v3457, %v3469
    %v3471 = vpop.f32.mrf.mxu0
    %3472 = vdwg.mxu0
    %3473 = vmatpush.bf16.msra.mxu0 %v2297
    %3474 = vmatpush.bf16.msra.mxu0 %v2289
    %3475 = vmatpush.bf16.msra.mxu0 %v2281
    %3476 = vmatpush.bf16.msra.mxu0 %v2273
    %3477 = vmatpush.bf16.msra.mxu0 %v2265
    %3478 = vmatpush.bf16.msra.mxu0 %v2257
    %3479 = vmatpush.bf16.msra.mxu0 %v2249
    %3480 = vmatpush.bf16.msra.mxu0 %v2241
    %3481 = vmatmul.bf16.gmra.mxu0 %v166
    %v3482 = vpop.f32.mrf.mxu0
    %v3483 = vadd.f32 %v3470, %v3482
    %v3484 = vpop.f32.mrf.mxu0
    %3485 = vdwg.mxu0
    %3486 = vmatpush.bf16.msra.mxu0 %v2361
    %3487 = vmatpush.bf16.msra.mxu0 %v2353
    %3488 = vmatpush.bf16.msra.mxu0 %v2345
    %3489 = vmatpush.bf16.msra.mxu0 %v2337
    %3490 = vmatpush.bf16.msra.mxu0 %v2329
    %3491 = vmatpush.bf16.msra.mxu0 %v2321
    %3492 = vmatpush.bf16.msra.mxu0 %v2313
    %3493 = vmatpush.bf16.msra.mxu0 %v2305
    %3494 = vmatmul.bf16.gmra.mxu0 %v167
    %v3495 = vpop.f32.mrf.mxu0
    %v3496 = vadd.f32 %v3483, %v3495
    %v3497 = vpop.f32.mrf.mxu0
    %3498 = vdwg.mxu0
    %3499 = vmatpush.bf16.msra.mxu0 %v2425
    %3500 = vmatpush.bf16.msra.mxu0 %v2417
    %3501 = vmatpush.bf16.msra.mxu0 %v2409
    %3502 = vmatpush.bf16.msra.mxu0 %v2401
    %3503 = vmatpush.bf16.msra.mxu0 %v2393
    %3504 = vmatpush.bf16.msra.mxu0 %v2385
    %3505 = vmatpush.bf16.msra.mxu0 %v2377
    %3506 = vmatpush.bf16.msra.mxu0 %v2369
    %3507 = vmatmul.bf16.gmra.mxu0 %v168
    %v3508 = vpop.f32.mrf.mxu0
    %v3509 = vadd.f32 %v3496, %v3508
    %v3510 = vpop.f32.mrf.mxu0
    %3511 = vdwg.mxu0
    %3512 = vmatpush.bf16.msra.mxu0 %v2042
    %3513 = vmatpush.bf16.msra.mxu0 %v2034
    %3514 = vmatpush.bf16.msra.mxu0 %v2026
    %3515 = vmatpush.bf16.msra.mxu0 %v2018
    %3516 = vmatpush.bf16.msra.mxu0 %v2010
    %3517 = vmatpush.bf16.msra.mxu0 %v2002
    %3518 = vmatpush.bf16.msra.mxu0 %v1994
    %3519 = vmatpush.bf16.msra.mxu0 %v1986
    %3520 = vmatmul.bf16.gmra.mxu0 %v162
    %v3521 = vpop.f32.mrf.mxu0
    %v3522 = vadd.f32 %v626, %v3521
    %v3523 = vpop.f32.mrf.mxu0
    %3524 = vdwg.mxu0
    %3525 = vmatpush.bf16.msra.mxu0 %v2106
    %3526 = vmatpush.bf16.msra.mxu0 %v2098
    %3527 = vmatpush.bf16.msra.mxu0 %v2090
    %3528 = vmatpush.bf16.msra.mxu0 %v2082
    %3529 = vmatpush.bf16.msra.mxu0 %v2074
    %3530 = vmatpush.bf16.msra.mxu0 %v2066
    %3531 = vmatpush.bf16.msra.mxu0 %v2058
    %3532 = vmatpush.bf16.msra.mxu0 %v2050
    %3533 = vmatmul.bf16.gmra.mxu0 %v163
    %v3534 = vpop.f32.mrf.mxu0
    %v3535 = vadd.f32 %v3522, %v3534
    %v3536 = vpop.f32.mrf.mxu0
    %3537 = vdwg.mxu0
    %3538 = vmatpush.bf16.msra.mxu0 %v2170
    %3539 = vmatpush.bf16.msra.mxu0 %v2162
    %3540 = vmatpush.bf16.msra.mxu0 %v2154
    %3541 = vmatpush.bf16.msra.mxu0 %v2146
    %3542 = vmatpush.bf16.msra.mxu0 %v2138
    %3543 = vmatpush.bf16.msra.mxu0 %v2130
    %3544 = vmatpush.bf16.msra.mxu0 %v2122
    %3545 = vmatpush.bf16.msra.mxu0 %v2114
    %3546 = vmatmul.bf16.gmra.mxu0 %v164
    %v3547 = vpop.f32.mrf.mxu0
    %v3548 = vadd.f32 %v3535, %v3547
    %v3549 = vpop.f32.mrf.mxu0
    %3550 = vdwg.mxu0
    %3551 = vmatpush.bf16.msra.mxu0 %v2234
    %3552 = vmatpush.bf16.msra.mxu0 %v2226
    %3553 = vmatpush.bf16.msra.mxu0 %v2218
    %3554 = vmatpush.bf16.msra.mxu0 %v2210
    %3555 = vmatpush.bf16.msra.mxu0 %v2202
    %3556 = vmatpush.bf16.msra.mxu0 %v2194
    %3557 = vmatpush.bf16.msra.mxu0 %v2186
    %3558 = vmatpush.bf16.msra.mxu0 %v2178
    %3559 = vmatmul.bf16.gmra.mxu0 %v165
    %v3560 = vpop.f32.mrf.mxu0
    %v3561 = vadd.f32 %v3548, %v3560
    %v3562 = vpop.f32.mrf.mxu0
    %3563 = vdwg.mxu0
    %3564 = vmatpush.bf16.msra.mxu0 %v2298
    %3565 = vmatpush.bf16.msra.mxu0 %v2290
    %3566 = vmatpush.bf16.msra.mxu0 %v2282
    %3567 = vmatpush.bf16.msra.mxu0 %v2274
    %3568 = vmatpush.bf16.msra.mxu0 %v2266
    %3569 = vmatpush.bf16.msra.mxu0 %v2258
    %3570 = vmatpush.bf16.msra.mxu0 %v2250
    %3571 = vmatpush.bf16.msra.mxu0 %v2242
    %3572 = vmatmul.bf16.gmra.mxu0 %v166
    %v3573 = vpop.f32.mrf.mxu0
    %v3574 = vadd.f32 %v3561, %v3573
    %v3575 = vpop.f32.mrf.mxu0
    %3576 = vdwg.mxu0
    %3577 = vmatpush.bf16.msra.mxu0 %v2362
    %3578 = vmatpush.bf16.msra.mxu0 %v2354
    %3579 = vmatpush.bf16.msra.mxu0 %v2346
    %3580 = vmatpush.bf16.msra.mxu0 %v2338
    %3581 = vmatpush.bf16.msra.mxu0 %v2330
    %3582 = vmatpush.bf16.msra.mxu0 %v2322
    %3583 = vmatpush.bf16.msra.mxu0 %v2314
    %3584 = vmatpush.bf16.msra.mxu0 %v2306
    %3585 = vmatmul.bf16.gmra.mxu0 %v167
    %v3586 = vpop.f32.mrf.mxu0
    %v3587 = vadd.f32 %v3574, %v3586
    %v3588 = vpop.f32.mrf.mxu0
    %3589 = vdwg.mxu0
    %3590 = vmatpush.bf16.msra.mxu0 %v2426
    %3591 = vmatpush.bf16.msra.mxu0 %v2418
    %3592 = vmatpush.bf16.msra.mxu0 %v2410
    %3593 = vmatpush.bf16.msra.mxu0 %v2402
    %3594 = vmatpush.bf16.msra.mxu0 %v2394
    %3595 = vmatpush.bf16.msra.mxu0 %v2386
    %3596 = vmatpush.bf16.msra.mxu0 %v2378
    %3597 = vmatpush.bf16.msra.mxu0 %v2370
    %3598 = vmatmul.bf16.gmra.mxu0 %v168
    %v3599 = vpop.f32.mrf.mxu0
    %v3600 = vadd.f32 %v3587, %v3599
    %v3601 = vpop.f32.mrf.mxu0
    %3602 = vdwg.mxu0
    %v3603 = vmax.f32 %v2963, 0.0
    %v3604 = vmax.f32 %v3054, 0.0
    %v3605 = vmax.f32 %v3145, 0.0
    %v3606 = vmax.f32 %v3236, 0.0
    %v3607 = vmax.f32 %v3327, 0.0
    %v3608 = vmax.f32 %v3418, 0.0
    %v3609 = vmax.f32 %v3509, 0.0
    %v3610 = vmax.f32 %v3600, 0.0
    %v3611 = vpack.c.bf16 %v3603, %v3603
    %v3612 = vpack.c.bf16 %v3604, %v3604
    %v3613 = vpack.c.bf16 %v3605, %v3605
    %v3614 = vpack.c.bf16 %v3606, %v3606
    %v3615 = vpack.c.bf16 %v3607, %v3607
    %v3616 = vpack.c.bf16 %v3608, %v3608
    %v3617 = vpack.c.bf16 %v3609, %v3609
    %v3618 = vpack.c.bf16 %v3610, %v3610
    %v3619 = vld [vmem:[#allocation8] sm:$0xff]
    %v3620 = vld [vmem:[#allocation8 + $0x8] sm:$0xff]
    %v3621 = vld [vmem:[#allocation8 + $0x10] sm:$0xff]
    %v3622 = vld [vmem:[#allocation8 + $0x18] sm:$0xff]
    %v3623 = vld [vmem:[#allocation8 + $0x20] sm:$0xff]
    %v3624 = vld [vmem:[#allocation8 + $0x28] sm:$0xff]
    %v3625 = vld [vmem:[#allocation8 + $0x30] sm:$0xff]
    %v3626 = vld [vmem:[#allocation8 + $0x38] sm:$0xff]
    %v3627 = vld [vmem:[#allocation8 + $0x40] sm:$0xff]
    %v3628 = vld [vmem:[#allocation8 + $0x48] sm:$0xff]
    %v3629 = vld [vmem:[#allocation8 + $0x50] sm:$0xff]
    %v3630 = vld [vmem:[#allocation8 + $0x58] sm:$0xff]
    %v3631 = vld [vmem:[#allocation8 + $0x60] sm:$0xff]
    %v3632 = vld [vmem:[#allocation8 + $0x68] sm:$0xff]
    %v3633 = vld [vmem:[#allocation8 + $0x70] sm:$0xff]
    %v3634 = vld [vmem:[#allocation8 + $0x78] sm:$0xff]
    %v3635 = vld [vmem:[#allocation8 + $0x80] sm:$0xff]
    %v3636 = vld [vmem:[#allocation8 + $0x88] sm:$0xff]
    %v3637 = vld [vmem:[#allocation8 + $0x90] sm:$0xff]
    %v3638 = vld [vmem:[#allocation8 + $0x98] sm:$0xff]
    %v3639 = vld [vmem:[#allocation8 + $0xa0] sm:$0xff]
    %v3640 = vld [vmem:[#allocation8 + $0xa8] sm:$0xff]
    %v3641 = vld [vmem:[#allocation8 + $0xb0] sm:$0xff]
    %v3642 = vld [vmem:[#allocation8 + $0xb8] sm:$0xff]
    %v3643 = vld [vmem:[#allocation8 + $0xc0] sm:$0xff]
    %v3644 = vld [vmem:[#allocation8 + $0xc8] sm:$0xff]
    %v3645 = vld [vmem:[#allocation8 + $0xd0] sm:$0xff]
    %v3646 = vld [vmem:[#allocation8 + $0xd8] sm:$0xff]
    %v3647 = vld [vmem:[#allocation8 + $0xe0] sm:$0xff]
    %v3648 = vld [vmem:[#allocation8 + $0xe8] sm:$0xff]
    %v3649 = vld [vmem:[#allocation8 + $0xf0] sm:$0xff]
    %v3650 = vld [vmem:[#allocation8 + $0xf8] sm:$0xff]
    %v3651 = vld [vmem:[#allocation8 + $0x100] sm:$0xff]
    %v3652 = vld [vmem:[#allocation8 + $0x108] sm:$0xff]
    %v3653 = vld [vmem:[#allocation8 + $0x110] sm:$0xff]
    %v3654 = vld [vmem:[#allocation8 + $0x118] sm:$0xff]
    %v3655 = vld [vmem:[#allocation8 + $0x120] sm:$0xff]
    %v3656 = vld [vmem:[#allocation8 + $0x128] sm:$0xff]
    %v3657 = vld [vmem:[#allocation8 + $0x130] sm:$0xff]
    %v3658 = vld [vmem:[#allocation8 + $0x138] sm:$0xff]
    %v3659 = vld [vmem:[#allocation8 + $0x140] sm:$0xff]
    %v3660 = vld [vmem:[#allocation8 + $0x148] sm:$0xff]
    %v3661 = vld [vmem:[#allocation8 + $0x150] sm:$0xff]
    %v3662 = vld [vmem:[#allocation8 + $0x158] sm:$0xff]
    %v3663 = vld [vmem:[#allocation8 + $0x160] sm:$0xff]
    %v3664 = vld [vmem:[#allocation8 + $0x168] sm:$0xff]
    %v3665 = vld [vmem:[#allocation8 + $0x170] sm:$0xff]
    %v3666 = vld [vmem:[#allocation8 + $0x178] sm:$0xff]
    %v3667 = vld [vmem:[#allocation8 + $0x180] sm:$0xff]
    %v3668 = vld [vmem:[#allocation8 + $0x188] sm:$0xff]
    %v3669 = vld [vmem:[#allocation8 + $0x190] sm:$0xff]
    %v3670 = vld [vmem:[#allocation8 + $0x198] sm:$0xff]
    %v3671 = vld [vmem:[#allocation8 + $0x1a0] sm:$0xff]
    %v3672 = vld [vmem:[#allocation8 + $0x1a8] sm:$0xff]
    %v3673 = vld [vmem:[#allocation8 + $0x1b0] sm:$0xff]
    %v3674 = vld [vmem:[#allocation8 + $0x1b8] sm:$0xff]
    %v3675 = vld [vmem:[#allocation8 + $0x1c0] sm:$0xff]
    %v3676 = vld [vmem:[#allocation8 + $0x1c8] sm:$0xff]
    %v3677 = vld [vmem:[#allocation8 + $0x1d0] sm:$0xff]
    %v3678 = vld [vmem:[#allocation8 + $0x1d8] sm:$0xff]
    %v3679 = vld [vmem:[#allocation8 + $0x1e0] sm:$0xff]
    %v3680 = vld [vmem:[#allocation8 + $0x1e8] sm:$0xff]
    %v3681 = vld [vmem:[#allocation8 + $0x1f0] sm:$0xff]
    %v3682 = vld [vmem:[#allocation8 + $0x1f8] sm:$0xff]
    %v3683 = vld [vmem:[#allocation8 + $0x200] sm:$0xff]
    %v3684 = vld [vmem:[#allocation8 + $0x208] sm:$0xff]
    %v3685 = vld [vmem:[#allocation8 + $0x210] sm:$0xff]
    %v3686 = vld [vmem:[#allocation8 + $0x218] sm:$0xff]
    %v3687 = vld [vmem:[#allocation8 + $0x220] sm:$0xff]
    %v3688 = vld [vmem:[#allocation8 + $0x228] sm:$0xff]
    %v3689 = vld [vmem:[#allocation8 + $0x230] sm:$0xff]
    %v3690 = vld [vmem:[#allocation8 + $0x238] sm:$0xff]
    %v3691 = vld [vmem:[#allocation8 + $0x240] sm:$0xff]
    %v3692 = vld [vmem:[#allocation8 + $0x248] sm:$0xff]
    %v3693 = vld [vmem:[#allocation8 + $0x250] sm:$0xff]
    %v3694 = vld [vmem:[#allocation8 + $0x258] sm:$0xff]
    %v3695 = vld [vmem:[#allocation8 + $0x260] sm:$0xff]
    %v3696 = vld [vmem:[#allocation8 + $0x268] sm:$0xff]
    %v3697 = vld [vmem:[#allocation8 + $0x270] sm:$0xff]
    %v3698 = vld [vmem:[#allocation8 + $0x278] sm:$0xff]
    %v3699 = vld [vmem:[#allocation8 + $0x280] sm:$0xff]
    %v3700 = vld [vmem:[#allocation8 + $0x288] sm:$0xff]
    %v3701 = vld [vmem:[#allocation8 + $0x290] sm:$0xff]
    %v3702 = vld [vmem:[#allocation8 + $0x298] sm:$0xff]
    %v3703 = vld [vmem:[#allocation8 + $0x2a0] sm:$0xff]
    %v3704 = vld [vmem:[#allocation8 + $0x2a8] sm:$0xff]
    %v3705 = vld [vmem:[#allocation8 + $0x2b0] sm:$0xff]
    %v3706 = vld [vmem:[#allocation8 + $0x2b8] sm:$0xff]
    %v3707 = vld [vmem:[#allocation8 + $0x2c0] sm:$0xff]
    %v3708 = vld [vmem:[#allocation8 + $0x2c8] sm:$0xff]
    %v3709 = vld [vmem:[#allocation8 + $0x2d0] sm:$0xff]
    %v3710 = vld [vmem:[#allocation8 + $0x2d8] sm:$0xff]
    %v3711 = vld [vmem:[#allocation8 + $0x2e0] sm:$0xff]
    %v3712 = vld [vmem:[#allocation8 + $0x2e8] sm:$0xff]
    %v3713 = vld [vmem:[#allocation8 + $0x2f0] sm:$0xff]
    %v3714 = vld [vmem:[#allocation8 + $0x2f8] sm:$0xff]
    %v3715 = vld [vmem:[#allocation8 + $0x300] sm:$0xff]
    %v3716 = vld [vmem:[#allocation8 + $0x308] sm:$0xff]
    %v3717 = vld [vmem:[#allocation8 + $0x310] sm:$0xff]
    %v3718 = vld [vmem:[#allocation8 + $0x318] sm:$0xff]
    %v3719 = vld [vmem:[#allocation8 + $0x320] sm:$0xff]
    %v3720 = vld [vmem:[#allocation8 + $0x328] sm:$0xff]
    %v3721 = vld [vmem:[#allocation8 + $0x330] sm:$0xff]
    %v3722 = vld [vmem:[#allocation8 + $0x338] sm:$0xff]
    %v3723 = vld [vmem:[#allocation8 + $0x340] sm:$0xff]
    %v3724 = vld [vmem:[#allocation8 + $0x348] sm:$0xff]
    %v3725 = vld [vmem:[#allocation8 + $0x350] sm:$0xff]
    %v3726 = vld [vmem:[#allocation8 + $0x358] sm:$0xff]
    %v3727 = vld [vmem:[#allocation8 + $0x360] sm:$0xff]
    %v3728 = vld [vmem:[#allocation8 + $0x368] sm:$0xff]
    %v3729 = vld [vmem:[#allocation8 + $0x370] sm:$0xff]
    %v3730 = vld [vmem:[#allocation8 + $0x378] sm:$0xff]
    %v3731 = vld [vmem:[#allocation8 + $0x380] sm:$0xff]
    %v3732 = vld [vmem:[#allocation8 + $0x388] sm:$0xff]
    %v3733 = vld [vmem:[#allocation8 + $0x390] sm:$0xff]
    %v3734 = vld [vmem:[#allocation8 + $0x398] sm:$0xff]
    %v3735 = vld [vmem:[#allocation8 + $0x3a0] sm:$0xff]
    %v3736 = vld [vmem:[#allocation8 + $0x3a8] sm:$0xff]
    %v3737 = vld [vmem:[#allocation8 + $0x3b0] sm:$0xff]
    %v3738 = vld [vmem:[#allocation8 + $0x3b8] sm:$0xff]
    %v3739 = vld [vmem:[#allocation8 + $0x3c0] sm:$0xff]
    %v3740 = vld [vmem:[#allocation8 + $0x3c8] sm:$0xff]
    %v3741 = vld [vmem:[#allocation8 + $0x3d0] sm:$0xff]
    %v3742 = vld [vmem:[#allocation8 + $0x3d8] sm:$0xff]
    %v3743 = vld [vmem:[#allocation8 + $0x3e0] sm:$0xff]
    %v3744 = vld [vmem:[#allocation8 + $0x3e8] sm:$0xff]
    %v3745 = vld [vmem:[#allocation8 + $0x3f0] sm:$0xff]
    %v3746 = vld [vmem:[#allocation8 + $0x3f8] sm:$0xff]
    %v3747 = vld [vmem:[#allocation8 + $0x400] sm:$0xff]
    %v3748 = vld [vmem:[#allocation8 + $0x408] sm:$0xff]
    %v3749 = vld [vmem:[#allocation8 + $0x410] sm:$0xff]
    %v3750 = vld [vmem:[#allocation8 + $0x418] sm:$0xff]
    %v3751 = vld [vmem:[#allocation8 + $0x420] sm:$0xff]
    %v3752 = vld [vmem:[#allocation8 + $0x428] sm:$0xff]
    %v3753 = vld [vmem:[#allocation8 + $0x430] sm:$0xff]
    %v3754 = vld [vmem:[#allocation8 + $0x438] sm:$0xff]
    %v3755 = vld [vmem:[#allocation8 + $0x440] sm:$0xff]
    %v3756 = vld [vmem:[#allocation8 + $0x448] sm:$0xff]
    %v3757 = vld [vmem:[#allocation8 + $0x450] sm:$0xff]
    %v3758 = vld [vmem:[#allocation8 + $0x458] sm:$0xff]
    %v3759 = vld [vmem:[#allocation8 + $0x460] sm:$0xff]
    %v3760 = vld [vmem:[#allocation8 + $0x468] sm:$0xff]
    %v3761 = vld [vmem:[#allocation8 + $0x470] sm:$0xff]
    %v3762 = vld [vmem:[#allocation8 + $0x478] sm:$0xff]
    %v3763 = vld [vmem:[#allocation8 + $0x480] sm:$0xff]
    %v3764 = vld [vmem:[#allocation8 + $0x488] sm:$0xff]
    %v3765 = vld [vmem:[#allocation8 + $0x490] sm:$0xff]
    %v3766 = vld [vmem:[#allocation8 + $0x498] sm:$0xff]
    %v3767 = vld [vmem:[#allocation8 + $0x4a0] sm:$0xff]
    %v3768 = vld [vmem:[#allocation8 + $0x4a8] sm:$0xff]
    %v3769 = vld [vmem:[#allocation8 + $0x4b0] sm:$0xff]
    %v3770 = vld [vmem:[#allocation8 + $0x4b8] sm:$0xff]
    %v3771 = vld [vmem:[#allocation8 + $0x4c0] sm:$0xff]
    %v3772 = vld [vmem:[#allocation8 + $0x4c8] sm:$0xff]
    %v3773 = vld [vmem:[#allocation8 + $0x4d0] sm:$0xff]
    %v3774 = vld [vmem:[#allocation8 + $0x4d8] sm:$0xff]
    %v3775 = vld [vmem:[#allocation8 + $0x4e0] sm:$0xff]
    %v3776 = vld [vmem:[#allocation8 + $0x4e8] sm:$0xff]
    %v3777 = vld [vmem:[#allocation8 + $0x4f0] sm:$0xff]
    %v3778 = vld [vmem:[#allocation8 + $0x4f8] sm:$0xff]
    %v3779 = vld [vmem:[#allocation8 + $0x500] sm:$0xff]
    %v3780 = vld [vmem:[#allocation8 + $0x508] sm:$0xff]
    %v3781 = vld [vmem:[#allocation8 + $0x510] sm:$0xff]
    %v3782 = vld [vmem:[#allocation8 + $0x518] sm:$0xff]
    %v3783 = vld [vmem:[#allocation8 + $0x520] sm:$0xff]
    %v3784 = vld [vmem:[#allocation8 + $0x528] sm:$0xff]
    %v3785 = vld [vmem:[#allocation8 + $0x530] sm:$0xff]
    %v3786 = vld [vmem:[#allocation8 + $0x538] sm:$0xff]
    %v3787 = vld [vmem:[#allocation8 + $0x540] sm:$0xff]
    %v3788 = vld [vmem:[#allocation8 + $0x548] sm:$0xff]
    %v3789 = vld [vmem:[#allocation8 + $0x550] sm:$0xff]
    %v3790 = vld [vmem:[#allocation8 + $0x558] sm:$0xff]
    %v3791 = vld [vmem:[#allocation8 + $0x560] sm:$0xff]
    %v3792 = vld [vmem:[#allocation8 + $0x568] sm:$0xff]
    %v3793 = vld [vmem:[#allocation8 + $0x570] sm:$0xff]
    %v3794 = vld [vmem:[#allocation8 + $0x578] sm:$0xff]
    %v3795 = vld [vmem:[#allocation8 + $0x580] sm:$0xff]
    %v3796 = vld [vmem:[#allocation8 + $0x588] sm:$0xff]
    %v3797 = vld [vmem:[#allocation8 + $0x590] sm:$0xff]
    %v3798 = vld [vmem:[#allocation8 + $0x598] sm:$0xff]
    %v3799 = vld [vmem:[#allocation8 + $0x5a0] sm:$0xff]
    %v3800 = vld [vmem:[#allocation8 + $0x5a8] sm:$0xff]
    %v3801 = vld [vmem:[#allocation8 + $0x5b0] sm:$0xff]
    %v3802 = vld [vmem:[#allocation8 + $0x5b8] sm:$0xff]
    %v3803 = vld [vmem:[#allocation8 + $0x5c0] sm:$0xff]
    %v3804 = vld [vmem:[#allocation8 + $0x5c8] sm:$0xff]
    %v3805 = vld [vmem:[#allocation8 + $0x5d0] sm:$0xff]
    %v3806 = vld [vmem:[#allocation8 + $0x5d8] sm:$0xff]
    %v3807 = vld [vmem:[#allocation8 + $0x5e0] sm:$0xff]
    %v3808 = vld [vmem:[#allocation8 + $0x5e8] sm:$0xff]
    %v3809 = vld [vmem:[#allocation8 + $0x5f0] sm:$0xff]
    %v3810 = vld [vmem:[#allocation8 + $0x5f8] sm:$0xff]
    %v3811 = vld [vmem:[#allocation8 + $0x600] sm:$0xff]
    %v3812 = vld [vmem:[#allocation8 + $0x608] sm:$0xff]
    %v3813 = vld [vmem:[#allocation8 + $0x610] sm:$0xff]
    %v3814 = vld [vmem:[#allocation8 + $0x618] sm:$0xff]
    %v3815 = vld [vmem:[#allocation8 + $0x620] sm:$0xff]
    %v3816 = vld [vmem:[#allocation8 + $0x628] sm:$0xff]
    %v3817 = vld [vmem:[#allocation8 + $0x630] sm:$0xff]
    %v3818 = vld [vmem:[#allocation8 + $0x638] sm:$0xff]
    %v3819 = vld [vmem:[#allocation8 + $0x640] sm:$0xff]
    %v3820 = vld [vmem:[#allocation8 + $0x648] sm:$0xff]
    %v3821 = vld [vmem:[#allocation8 + $0x650] sm:$0xff]
    %v3822 = vld [vmem:[#allocation8 + $0x658] sm:$0xff]
    %v3823 = vld [vmem:[#allocation8 + $0x660] sm:$0xff]
    %v3824 = vld [vmem:[#allocation8 + $0x668] sm:$0xff]
    %v3825 = vld [vmem:[#allocation8 + $0x670] sm:$0xff]
    %v3826 = vld [vmem:[#allocation8 + $0x678] sm:$0xff]
    %v3827 = vld [vmem:[#allocation8 + $0x680] sm:$0xff]
    %v3828 = vld [vmem:[#allocation8 + $0x688] sm:$0xff]
    %v3829 = vld [vmem:[#allocation8 + $0x690] sm:$0xff]
    %v3830 = vld [vmem:[#allocation8 + $0x698] sm:$0xff]
    %v3831 = vld [vmem:[#allocation8 + $0x6a0] sm:$0xff]
    %v3832 = vld [vmem:[#allocation8 + $0x6a8] sm:$0xff]
    %v3833 = vld [vmem:[#allocation8 + $0x6b0] sm:$0xff]
    %v3834 = vld [vmem:[#allocation8 + $0x6b8] sm:$0xff]
    %v3835 = vld [vmem:[#allocation8 + $0x6c0] sm:$0xff]
    %v3836 = vld [vmem:[#allocation8 + $0x6c8] sm:$0xff]
    %v3837 = vld [vmem:[#allocation8 + $0x6d0] sm:$0xff]
    %v3838 = vld [vmem:[#allocation8 + $0x6d8] sm:$0xff]
    %v3839 = vld [vmem:[#allocation8 + $0x6e0] sm:$0xff]
    %v3840 = vld [vmem:[#allocation8 + $0x6e8] sm:$0xff]
    %v3841 = vld [vmem:[#allocation8 + $0x6f0] sm:$0xff]
    %v3842 = vld [vmem:[#allocation8 + $0x6f8] sm:$0xff]
    %v3843 = vld [vmem:[#allocation8 + $0x700] sm:$0xff]
    %v3844 = vld [vmem:[#allocation8 + $0x708] sm:$0xff]
    %v3845 = vld [vmem:[#allocation8 + $0x710] sm:$0xff]
    %v3846 = vld [vmem:[#allocation8 + $0x718] sm:$0xff]
    %v3847 = vld [vmem:[#allocation8 + $0x720] sm:$0xff]
    %v3848 = vld [vmem:[#allocation8 + $0x728] sm:$0xff]
    %v3849 = vld [vmem:[#allocation8 + $0x730] sm:$0xff]
    %v3850 = vld [vmem:[#allocation8 + $0x738] sm:$0xff]
    %v3851 = vld [vmem:[#allocation8 + $0x740] sm:$0xff]
    %v3852 = vld [vmem:[#allocation8 + $0x748] sm:$0xff]
    %v3853 = vld [vmem:[#allocation8 + $0x750] sm:$0xff]
    %v3854 = vld [vmem:[#allocation8 + $0x758] sm:$0xff]
    %v3855 = vld [vmem:[#allocation8 + $0x760] sm:$0xff]
    %v3856 = vld [vmem:[#allocation8 + $0x768] sm:$0xff]
    %v3857 = vld [vmem:[#allocation8 + $0x770] sm:$0xff]
    %v3858 = vld [vmem:[#allocation8 + $0x778] sm:$0xff]
    %v3859 = vld [vmem:[#allocation8 + $0x780] sm:$0xff]
    %v3860 = vld [vmem:[#allocation8 + $0x788] sm:$0xff]
    %v3861 = vld [vmem:[#allocation8 + $0x790] sm:$0xff]
    %v3862 = vld [vmem:[#allocation8 + $0x798] sm:$0xff]
    %v3863 = vld [vmem:[#allocation8 + $0x7a0] sm:$0xff]
    %v3864 = vld [vmem:[#allocation8 + $0x7a8] sm:$0xff]
    %v3865 = vld [vmem:[#allocation8 + $0x7b0] sm:$0xff]
    %v3866 = vld [vmem:[#allocation8 + $0x7b8] sm:$0xff]
    %v3867 = vld [vmem:[#allocation8 + $0x7c0] sm:$0xff]
    %v3868 = vld [vmem:[#allocation8 + $0x7c8] sm:$0xff]
    %v3869 = vld [vmem:[#allocation8 + $0x7d0] sm:$0xff]
    %v3870 = vld [vmem:[#allocation8 + $0x7d8] sm:$0xff]
    %v3871 = vld [vmem:[#allocation8 + $0x7e0] sm:$0xff]
    %v3872 = vld [vmem:[#allocation8 + $0x7e8] sm:$0xff]
    %v3873 = vld [vmem:[#allocation8 + $0x7f0] sm:$0xff]
    %v3874 = vld [vmem:[#allocation8 + $0x7f8] sm:$0xff]
    %v3875 = vld [vmem:[#allocation8 + $0x800] sm:$0xff]
    %v3876 = vld [vmem:[#allocation8 + $0x808] sm:$0xff]
    %v3877 = vld [vmem:[#allocation8 + $0x810] sm:$0xff]
    %v3878 = vld [vmem:[#allocation8 + $0x818] sm:$0xff]
    %v3879 = vld [vmem:[#allocation8 + $0x820] sm:$0xff]
    %v3880 = vld [vmem:[#allocation8 + $0x828] sm:$0xff]
    %v3881 = vld [vmem:[#allocation8 + $0x830] sm:$0xff]
    %v3882 = vld [vmem:[#allocation8 + $0x838] sm:$0xff]
    %v3883 = vld [vmem:[#allocation8 + $0x840] sm:$0xff]
    %v3884 = vld [vmem:[#allocation8 + $0x848] sm:$0xff]
    %v3885 = vld [vmem:[#allocation8 + $0x850] sm:$0xff]
    %v3886 = vld [vmem:[#allocation8 + $0x858] sm:$0xff]
    %v3887 = vld [vmem:[#allocation8 + $0x860] sm:$0xff]
    %v3888 = vld [vmem:[#allocation8 + $0x868] sm:$0xff]
    %v3889 = vld [vmem:[#allocation8 + $0x870] sm:$0xff]
    %v3890 = vld [vmem:[#allocation8 + $0x878] sm:$0xff]
    %v3891 = vld [vmem:[#allocation8 + $0x880] sm:$0xff]
    %v3892 = vld [vmem:[#allocation8 + $0x888] sm:$0xff]
    %v3893 = vld [vmem:[#allocation8 + $0x890] sm:$0xff]
    %v3894 = vld [vmem:[#allocation8 + $0x898] sm:$0xff]
    %v3895 = vld [vmem:[#allocation8 + $0x8a0] sm:$0xff]
    %v3896 = vld [vmem:[#allocation8 + $0x8a8] sm:$0xff]
    %v3897 = vld [vmem:[#allocation8 + $0x8b0] sm:$0xff]
    %v3898 = vld [vmem:[#allocation8 + $0x8b8] sm:$0xff]
    %v3899 = vld [vmem:[#allocation8 + $0x8c0] sm:$0xff]
    %v3900 = vld [vmem:[#allocation8 + $0x8c8] sm:$0xff]
    %v3901 = vld [vmem:[#allocation8 + $0x8d0] sm:$0xff]
    %v3902 = vld [vmem:[#allocation8 + $0x8d8] sm:$0xff]
    %v3903 = vld [vmem:[#allocation8 + $0x8e0] sm:$0xff]
    %v3904 = vld [vmem:[#allocation8 + $0x8e8] sm:$0xff]
    %v3905 = vld [vmem:[#allocation8 + $0x8f0] sm:$0xff]
    %v3906 = vld [vmem:[#allocation8 + $0x8f8] sm:$0xff]
    %v3907 = vld [vmem:[#allocation8 + $0x900] sm:$0xff]
    %v3908 = vld [vmem:[#allocation8 + $0x908] sm:$0xff]
    %v3909 = vld [vmem:[#allocation8 + $0x910] sm:$0xff]
    %v3910 = vld [vmem:[#allocation8 + $0x918] sm:$0xff]
    %v3911 = vld [vmem:[#allocation8 + $0x920] sm:$0xff]
    %v3912 = vld [vmem:[#allocation8 + $0x928] sm:$0xff]
    %v3913 = vld [vmem:[#allocation8 + $0x930] sm:$0xff]
    %v3914 = vld [vmem:[#allocation8 + $0x938] sm:$0xff]
    %v3915 = vld [vmem:[#allocation8 + $0x940] sm:$0xff]
    %v3916 = vld [vmem:[#allocation8 + $0x948] sm:$0xff]
    %v3917 = vld [vmem:[#allocation8 + $0x950] sm:$0xff]
    %v3918 = vld [vmem:[#allocation8 + $0x958] sm:$0xff]
    %v3919 = vld [vmem:[#allocation8 + $0x960] sm:$0xff]
    %v3920 = vld [vmem:[#allocation8 + $0x968] sm:$0xff]
    %v3921 = vld [vmem:[#allocation8 + $0x970] sm:$0xff]
    %v3922 = vld [vmem:[#allocation8 + $0x978] sm:$0xff]
    %v3923 = vld [vmem:[#allocation8 + $0x980] sm:$0xff]
    %v3924 = vld [vmem:[#allocation8 + $0x988] sm:$0xff]
    %v3925 = vld [vmem:[#allocation8 + $0x990] sm:$0xff]
    %v3926 = vld [vmem:[#allocation8 + $0x998] sm:$0xff]
    %v3927 = vld [vmem:[#allocation8 + $0x9a0] sm:$0xff]
    %v3928 = vld [vmem:[#allocation8 + $0x9a8] sm:$0xff]
    %v3929 = vld [vmem:[#allocation8 + $0x9b0] sm:$0xff]
    %v3930 = vld [vmem:[#allocation8 + $0x9b8] sm:$0xff]
    %v3931 = vld [vmem:[#allocation8 + $0x9c0] sm:$0xff]
    %v3932 = vld [vmem:[#allocation8 + $0x9c8] sm:$0xff]
    %v3933 = vld [vmem:[#allocation8 + $0x9d0] sm:$0xff]
    %v3934 = vld [vmem:[#allocation8 + $0x9d8] sm:$0xff]
    %v3935 = vld [vmem:[#allocation8 + $0x9e0] sm:$0xff]
    %v3936 = vld [vmem:[#allocation8 + $0x9e8] sm:$0xff]
    %v3937 = vld [vmem:[#allocation8 + $0x9f0] sm:$0xff]
    %v3938 = vld [vmem:[#allocation8 + $0x9f8] sm:$0xff]
    %v3939 = vld [vmem:[#allocation8 + $0xa00] sm:$0xff]
    %v3940 = vld [vmem:[#allocation8 + $0xa08] sm:$0xff]
    %v3941 = vld [vmem:[#allocation8 + $0xa10] sm:$0xff]
    %v3942 = vld [vmem:[#allocation8 + $0xa18] sm:$0xff]
    %v3943 = vld [vmem:[#allocation8 + $0xa20] sm:$0xff]
    %v3944 = vld [vmem:[#allocation8 + $0xa28] sm:$0xff]
    %v3945 = vld [vmem:[#allocation8 + $0xa30] sm:$0xff]
    %v3946 = vld [vmem:[#allocation8 + $0xa38] sm:$0xff]
    %v3947 = vld [vmem:[#allocation8 + $0xa40] sm:$0xff]
    %v3948 = vld [vmem:[#allocation8 + $0xa48] sm:$0xff]
    %v3949 = vld [vmem:[#allocation8 + $0xa50] sm:$0xff]
    %v3950 = vld [vmem:[#allocation8 + $0xa58] sm:$0xff]
    %v3951 = vld [vmem:[#allocation8 + $0xa60] sm:$0xff]
    %v3952 = vld [vmem:[#allocation8 + $0xa68] sm:$0xff]
    %v3953 = vld [vmem:[#allocation8 + $0xa70] sm:$0xff]
    %v3954 = vld [vmem:[#allocation8 + $0xa78] sm:$0xff]
    %v3955 = vld [vmem:[#allocation8 + $0xa80] sm:$0xff]
    %v3956 = vld [vmem:[#allocation8 + $0xa88] sm:$0xff]
    %v3957 = vld [vmem:[#allocation8 + $0xa90] sm:$0xff]
    %v3958 = vld [vmem:[#allocation8 + $0xa98] sm:$0xff]
    %v3959 = vld [vmem:[#allocation8 + $0xaa0] sm:$0xff]
    %v3960 = vld [vmem:[#allocation8 + $0xaa8] sm:$0xff]
    %v3961 = vld [vmem:[#allocation8 + $0xab0] sm:$0xff]
    %v3962 = vld [vmem:[#allocation8 + $0xab8] sm:$0xff]
    %v3963 = vld [vmem:[#allocation8 + $0xac0] sm:$0xff]
    %v3964 = vld [vmem:[#allocation8 + $0xac8] sm:$0xff]
    %v3965 = vld [vmem:[#allocation8 + $0xad0] sm:$0xff]
    %v3966 = vld [vmem:[#allocation8 + $0xad8] sm:$0xff]
    %v3967 = vld [vmem:[#allocation8 + $0xae0] sm:$0xff]
    %v3968 = vld [vmem:[#allocation8 + $0xae8] sm:$0xff]
    %v3969 = vld [vmem:[#allocation8 + $0xaf0] sm:$0xff]
    %v3970 = vld [vmem:[#allocation8 + $0xaf8] sm:$0xff]
    %v3971 = vld [vmem:[#allocation8 + $0xb00] sm:$0xff]
    %v3972 = vld [vmem:[#allocation8 + $0xb08] sm:$0xff]
    %v3973 = vld [vmem:[#allocation8 + $0xb10] sm:$0xff]
    %v3974 = vld [vmem:[#allocation8 + $0xb18] sm:$0xff]
    %v3975 = vld [vmem:[#allocation8 + $0xb20] sm:$0xff]
    %v3976 = vld [vmem:[#allocation8 + $0xb28] sm:$0xff]
    %v3977 = vld [vmem:[#allocation8 + $0xb30] sm:$0xff]
    %v3978 = vld [vmem:[#allocation8 + $0xb38] sm:$0xff]
    %v3979 = vld [vmem:[#allocation8 + $0xb40] sm:$0xff]
    %v3980 = vld [vmem:[#allocation8 + $0xb48] sm:$0xff]
    %v3981 = vld [vmem:[#allocation8 + $0xb50] sm:$0xff]
    %v3982 = vld [vmem:[#allocation8 + $0xb58] sm:$0xff]
    %v3983 = vld [vmem:[#allocation8 + $0xb60] sm:$0xff]
    %v3984 = vld [vmem:[#allocation8 + $0xb68] sm:$0xff]
    %v3985 = vld [vmem:[#allocation8 + $0xb70] sm:$0xff]
    %v3986 = vld [vmem:[#allocation8 + $0xb78] sm:$0xff]
    %v3987 = vld [vmem:[#allocation8 + $0xb80] sm:$0xff]
    %v3988 = vld [vmem:[#allocation8 + $0xb88] sm:$0xff]
    %v3989 = vld [vmem:[#allocation8 + $0xb90] sm:$0xff]
    %v3990 = vld [vmem:[#allocation8 + $0xb98] sm:$0xff]
    %v3991 = vld [vmem:[#allocation8 + $0xba0] sm:$0xff]
    %v3992 = vld [vmem:[#allocation8 + $0xba8] sm:$0xff]
    %v3993 = vld [vmem:[#allocation8 + $0xbb0] sm:$0xff]
    %v3994 = vld [vmem:[#allocation8 + $0xbb8] sm:$0xff]
    %v3995 = vld [vmem:[#allocation8 + $0xbc0] sm:$0xff]
    %v3996 = vld [vmem:[#allocation8 + $0xbc8] sm:$0xff]
    %v3997 = vld [vmem:[#allocation8 + $0xbd0] sm:$0xff]
    %v3998 = vld [vmem:[#allocation8 + $0xbd8] sm:$0xff]
    %v3999 = vld [vmem:[#allocation8 + $0xbe0] sm:$0xff]
    %v4000 = vld [vmem:[#allocation8 + $0xbe8] sm:$0xff]
    %v4001 = vld [vmem:[#allocation8 + $0xbf0] sm:$0xff]
    %v4002 = vld [vmem:[#allocation8 + $0xbf8] sm:$0xff]
    %v4003 = vld [vmem:[#allocation8 + $0xc00] sm:$0xff]
    %v4004 = vld [vmem:[#allocation8 + $0xc08] sm:$0xff]
    %v4005 = vld [vmem:[#allocation8 + $0xc10] sm:$0xff]
    %v4006 = vld [vmem:[#allocation8 + $0xc18] sm:$0xff]
    %v4007 = vld [vmem:[#allocation8 + $0xc20] sm:$0xff]
    %v4008 = vld [vmem:[#allocation8 + $0xc28] sm:$0xff]
    %v4009 = vld [vmem:[#allocation8 + $0xc30] sm:$0xff]
    %v4010 = vld [vmem:[#allocation8 + $0xc38] sm:$0xff]
    %v4011 = vld [vmem:[#allocation8 + $0xc40] sm:$0xff]
    %v4012 = vld [vmem:[#allocation8 + $0xc48] sm:$0xff]
    %v4013 = vld [vmem:[#allocation8 + $0xc50] sm:$0xff]
    %v4014 = vld [vmem:[#allocation8 + $0xc58] sm:$0xff]
    %v4015 = vld [vmem:[#allocation8 + $0xc60] sm:$0xff]
    %v4016 = vld [vmem:[#allocation8 + $0xc68] sm:$0xff]
    %v4017 = vld [vmem:[#allocation8 + $0xc70] sm:$0xff]
    %v4018 = vld [vmem:[#allocation8 + $0xc78] sm:$0xff]
    %v4019 = vld [vmem:[#allocation8 + $0xc80] sm:$0xff]
    %v4020 = vld [vmem:[#allocation8 + $0xc88] sm:$0xff]
    %v4021 = vld [vmem:[#allocation8 + $0xc90] sm:$0xff]
    %v4022 = vld [vmem:[#allocation8 + $0xc98] sm:$0xff]
    %v4023 = vld [vmem:[#allocation8 + $0xca0] sm:$0xff]
    %v4024 = vld [vmem:[#allocation8 + $0xca8] sm:$0xff]
    %v4025 = vld [vmem:[#allocation8 + $0xcb0] sm:$0xff]
    %v4026 = vld [vmem:[#allocation8 + $0xcb8] sm:$0xff]
    %v4027 = vld [vmem:[#allocation8 + $0xcc0] sm:$0xff]
    %v4028 = vld [vmem:[#allocation8 + $0xcc8] sm:$0xff]
    %v4029 = vld [vmem:[#allocation8 + $0xcd0] sm:$0xff]
    %v4030 = vld [vmem:[#allocation8 + $0xcd8] sm:$0xff]
    %v4031 = vld [vmem:[#allocation8 + $0xce0] sm:$0xff]
    %v4032 = vld [vmem:[#allocation8 + $0xce8] sm:$0xff]
    %v4033 = vld [vmem:[#allocation8 + $0xcf0] sm:$0xff]
    %v4034 = vld [vmem:[#allocation8 + $0xcf8] sm:$0xff]
    %v4035 = vld [vmem:[#allocation8 + $0xd00] sm:$0xff]
    %v4036 = vld [vmem:[#allocation8 + $0xd08] sm:$0xff]
    %v4037 = vld [vmem:[#allocation8 + $0xd10] sm:$0xff]
    %v4038 = vld [vmem:[#allocation8 + $0xd18] sm:$0xff]
    %v4039 = vld [vmem:[#allocation8 + $0xd20] sm:$0xff]
    %v4040 = vld [vmem:[#allocation8 + $0xd28] sm:$0xff]
    %v4041 = vld [vmem:[#allocation8 + $0xd30] sm:$0xff]
    %v4042 = vld [vmem:[#allocation8 + $0xd38] sm:$0xff]
    %v4043 = vld [vmem:[#allocation8 + $0xd40] sm:$0xff]
    %v4044 = vld [vmem:[#allocation8 + $0xd48] sm:$0xff]
    %v4045 = vld [vmem:[#allocation8 + $0xd50] sm:$0xff]
    %v4046 = vld [vmem:[#allocation8 + $0xd58] sm:$0xff]
    %v4047 = vld [vmem:[#allocation8 + $0xd60] sm:$0xff]
    %v4048 = vld [vmem:[#allocation8 + $0xd68] sm:$0xff]
    %v4049 = vld [vmem:[#allocation8 + $0xd70] sm:$0xff]
    %v4050 = vld [vmem:[#allocation8 + $0xd78] sm:$0xff]
    %v4051 = vld [vmem:[#allocation8 + $0xd80] sm:$0xff]
    %v4052 = vld [vmem:[#allocation8 + $0xd88] sm:$0xff]
    %v4053 = vld [vmem:[#allocation8 + $0xd90] sm:$0xff]
    %v4054 = vld [vmem:[#allocation8 + $0xd98] sm:$0xff]
    %v4055 = vld [vmem:[#allocation8 + $0xda0] sm:$0xff]
    %v4056 = vld [vmem:[#allocation8 + $0xda8] sm:$0xff]
    %v4057 = vld [vmem:[#allocation8 + $0xdb0] sm:$0xff]
    %v4058 = vld [vmem:[#allocation8 + $0xdb8] sm:$0xff]
    %v4059 = vld [vmem:[#allocation8 + $0xdc0] sm:$0xff]
    %v4060 = vld [vmem:[#allocation8 + $0xdc8] sm:$0xff]
    %v4061 = vld [vmem:[#allocation8 + $0xdd0] sm:$0xff]
    %v4062 = vld [vmem:[#allocation8 + $0xdd8] sm:$0xff]
    %v4063 = vld [vmem:[#allocation8 + $0xde0] sm:$0xff]
    %v4064 = vld [vmem:[#allocation8 + $0xde8] sm:$0xff]
    %v4065 = vld [vmem:[#allocation8 + $0xdf0] sm:$0xff]
    %v4066 = vld [vmem:[#allocation8 + $0xdf8] sm:$0xff]
    %v4067 = vld [vmem:[#allocation8 + $0xe00] sm:$0xff]
    %v4068 = vld [vmem:[#allocation8 + $0xe08] sm:$0xff]
    %v4069 = vld [vmem:[#allocation8 + $0xe10] sm:$0xff]
    %v4070 = vld [vmem:[#allocation8 + $0xe18] sm:$0xff]
    %v4071 = vld [vmem:[#allocation8 + $0xe20] sm:$0xff]
    %v4072 = vld [vmem:[#allocation8 + $0xe28] sm:$0xff]
    %v4073 = vld [vmem:[#allocation8 + $0xe30] sm:$0xff]
    %v4074 = vld [vmem:[#allocation8 + $0xe38] sm:$0xff]
    %v4075 = vld [vmem:[#allocation8 + $0xe40] sm:$0xff]
    %v4076 = vld [vmem:[#allocation8 + $0xe48] sm:$0xff]
    %v4077 = vld [vmem:[#allocation8 + $0xe50] sm:$0xff]
    %v4078 = vld [vmem:[#allocation8 + $0xe58] sm:$0xff]
    %v4079 = vld [vmem:[#allocation8 + $0xe60] sm:$0xff]
    %v4080 = vld [vmem:[#allocation8 + $0xe68] sm:$0xff]
    %v4081 = vld [vmem:[#allocation8 + $0xe70] sm:$0xff]
    %v4082 = vld [vmem:[#allocation8 + $0xe78] sm:$0xff]
    %v4083 = vld [vmem:[#allocation8 + $0xe80] sm:$0xff]
    %v4084 = vld [vmem:[#allocation8 + $0xe88] sm:$0xff]
    %v4085 = vld [vmem:[#allocation8 + $0xe90] sm:$0xff]
    %v4086 = vld [vmem:[#allocation8 + $0xe98] sm:$0xff]
    %v4087 = vld [vmem:[#allocation8 + $0xea0] sm:$0xff]
    %v4088 = vld [vmem:[#allocation8 + $0xea8] sm:$0xff]
    %v4089 = vld [vmem:[#allocation8 + $0xeb0] sm:$0xff]
    %v4090 = vld [vmem:[#allocation8 + $0xeb8] sm:$0xff]
    %v4091 = vld [vmem:[#allocation8 + $0xec0] sm:$0xff]
    %v4092 = vld [vmem:[#allocation8 + $0xec8] sm:$0xff]
    %v4093 = vld [vmem:[#allocation8 + $0xed0] sm:$0xff]
    %v4094 = vld [vmem:[#allocation8 + $0xed8] sm:$0xff]
    %v4095 = vld [vmem:[#allocation8 + $0xee0] sm:$0xff]
    %v4096 = vld [vmem:[#allocation8 + $0xee8] sm:$0xff]
    %v4097 = vld [vmem:[#allocation8 + $0xef0] sm:$0xff]
    %v4098 = vld [vmem:[#allocation8 + $0xef8] sm:$0xff]
    %v4099 = vld [vmem:[#allocation8 + $0xf00] sm:$0xff]
    %v4100 = vld [vmem:[#allocation8 + $0xf08] sm:$0xff]
    %v4101 = vld [vmem:[#allocation8 + $0xf10] sm:$0xff]
    %v4102 = vld [vmem:[#allocation8 + $0xf18] sm:$0xff]
    %v4103 = vld [vmem:[#allocation8 + $0xf20] sm:$0xff]
    %v4104 = vld [vmem:[#allocation8 + $0xf28] sm:$0xff]
    %v4105 = vld [vmem:[#allocation8 + $0xf30] sm:$0xff]
    %v4106 = vld [vmem:[#allocation8 + $0xf38] sm:$0xff]
    %v4107 = vld [vmem:[#allocation8 + $0xf40] sm:$0xff]
    %v4108 = vld [vmem:[#allocation8 + $0xf48] sm:$0xff]
    %v4109 = vld [vmem:[#allocation8 + $0xf50] sm:$0xff]
    %v4110 = vld [vmem:[#allocation8 + $0xf58] sm:$0xff]
    %v4111 = vld [vmem:[#allocation8 + $0xf60] sm:$0xff]
    %v4112 = vld [vmem:[#allocation8 + $0xf68] sm:$0xff]
    %v4113 = vld [vmem:[#allocation8 + $0xf70] sm:$0xff]
    %v4114 = vld [vmem:[#allocation8 + $0xf78] sm:$0xff]
    %v4115 = vld [vmem:[#allocation8 + $0xf80] sm:$0xff]
    %v4116 = vld [vmem:[#allocation8 + $0xf88] sm:$0xff]
    %v4117 = vld [vmem:[#allocation8 + $0xf90] sm:$0xff]
    %v4118 = vld [vmem:[#allocation8 + $0xf98] sm:$0xff]
    %v4119 = vld [vmem:[#allocation8 + $0xfa0] sm:$0xff]
    %v4120 = vld [vmem:[#allocation8 + $0xfa8] sm:$0xff]
    %v4121 = vld [vmem:[#allocation8 + $0xfb0] sm:$0xff]
    %v4122 = vld [vmem:[#allocation8 + $0xfb8] sm:$0xff]
    %v4123 = vld [vmem:[#allocation8 + $0xfc0] sm:$0xff]
    %v4124 = vld [vmem:[#allocation8 + $0xfc8] sm:$0xff]
    %v4125 = vld [vmem:[#allocation8 + $0xfd0] sm:$0xff]
    %v4126 = vld [vmem:[#allocation8 + $0xfd8] sm:$0xff]
    %v4127 = vld [vmem:[#allocation8 + $0xfe0] sm:$0xff]
    %v4128 = vld [vmem:[#allocation8 + $0xfe8] sm:$0xff]
    %v4129 = vld [vmem:[#allocation8 + $0xff0] sm:$0xff]
    %v4130 = vld [vmem:[#allocation8 + $0xff8] sm:$0xff]
    %v4131 = vld [vmem:[#allocation10] sm:$0xff]
    %v4133 = vperm.slane %v4131, 0
    %v4134 = vperm.slane %v4131, 1
    %v4135 = vperm.slane %v4131, 2
    %v4136 = vperm.slane %v4131, 3
    %v4137 = vperm.slane %v4131, 4
    %v4138 = vperm.slane %v4131, 5
    %v4139 = vperm.slane %v4131, 6
    %v4140 = vperm.slane %v4131, 7
    %v4661 = vunpack.c.l.b16 %v3619
    %v4662 = vunpack.c.h.b16 %v3619
    %v4663 = vunpack.c.l.b16 %v3620
    %v4664 = vunpack.c.h.b16 %v3620
    %v4665 = vunpack.c.l.b16 %v3621
    %v4666 = vunpack.c.h.b16 %v3621
    %v4667 = vunpack.c.l.b16 %v3622
    %v4668 = vunpack.c.h.b16 %v3622
    %v4669 = vunpack.c.l.b16 %v3623
    %v4670 = vunpack.c.h.b16 %v3623
    %v4671 = vunpack.c.l.b16 %v3624
    %v4672 = vunpack.c.h.b16 %v3624
    %v4673 = vunpack.c.l.b16 %v3625
    %v4674 = vunpack.c.h.b16 %v3625
    %v4675 = vunpack.c.l.b16 %v3626
    %v4676 = vunpack.c.h.b16 %v3626
    %v4677 = vunpack.c.l.b16 %v3627
    %v4678 = vunpack.c.h.b16 %v3627
    %v4679 = vunpack.c.l.b16 %v3628
    %v4680 = vunpack.c.h.b16 %v3628
    %v4681 = vunpack.c.l.b16 %v3629
    %v4682 = vunpack.c.h.b16 %v3629
    %v4683 = vunpack.c.l.b16 %v3630
    %v4684 = vunpack.c.h.b16 %v3630
    %v4685 = vunpack.c.l.b16 %v3631
    %v4686 = vunpack.c.h.b16 %v3631
    %v4687 = vunpack.c.l.b16 %v3632
    %v4688 = vunpack.c.h.b16 %v3632
    %v4689 = vunpack.c.l.b16 %v3633
    %v4690 = vunpack.c.h.b16 %v3633
    %v4691 = vunpack.c.l.b16 %v3634
    %v4692 = vunpack.c.h.b16 %v3634
    %v4693 = vunpack.c.l.b16 %v3635
    %v4694 = vunpack.c.h.b16 %v3635
    %v4695 = vunpack.c.l.b16 %v3636
    %v4696 = vunpack.c.h.b16 %v3636
    %v4697 = vunpack.c.l.b16 %v3637
    %v4698 = vunpack.c.h.b16 %v3637
    %v4699 = vunpack.c.l.b16 %v3638
    %v4700 = vunpack.c.h.b16 %v3638
    %v4701 = vunpack.c.l.b16 %v3639
    %v4702 = vunpack.c.h.b16 %v3639
    %v4703 = vunpack.c.l.b16 %v3640
    %v4704 = vunpack.c.h.b16 %v3640
    %v4705 = vunpack.c.l.b16 %v3641
    %v4706 = vunpack.c.h.b16 %v3641
    %v4707 = vunpack.c.l.b16 %v3642
    %v4708 = vunpack.c.h.b16 %v3642
    %v4709 = vunpack.c.l.b16 %v3643
    %v4710 = vunpack.c.h.b16 %v3643
    %v4711 = vunpack.c.l.b16 %v3644
    %v4712 = vunpack.c.h.b16 %v3644
    %v4713 = vunpack.c.l.b16 %v3645
    %v4714 = vunpack.c.h.b16 %v3645
    %v4715 = vunpack.c.l.b16 %v3646
    %v4716 = vunpack.c.h.b16 %v3646
    %v4717 = vunpack.c.l.b16 %v3647
    %v4718 = vunpack.c.h.b16 %v3647
    %v4719 = vunpack.c.l.b16 %v3648
    %v4720 = vunpack.c.h.b16 %v3648
    %v4721 = vunpack.c.l.b16 %v3649
    %v4722 = vunpack.c.h.b16 %v3649
    %v4723 = vunpack.c.l.b16 %v3650
    %v4724 = vunpack.c.h.b16 %v3650
    %v4725 = vunpack.c.l.b16 %v3651
    %v4726 = vunpack.c.h.b16 %v3651
    %v4727 = vunpack.c.l.b16 %v3652
    %v4728 = vunpack.c.h.b16 %v3652
    %v4729 = vunpack.c.l.b16 %v3653
    %v4730 = vunpack.c.h.b16 %v3653
    %v4731 = vunpack.c.l.b16 %v3654
    %v4732 = vunpack.c.h.b16 %v3654
    %v4733 = vunpack.c.l.b16 %v3655
    %v4734 = vunpack.c.h.b16 %v3655
    %v4735 = vunpack.c.l.b16 %v3656
    %v4736 = vunpack.c.h.b16 %v3656
    %v4737 = vunpack.c.l.b16 %v3657
    %v4738 = vunpack.c.h.b16 %v3657
    %v4739 = vunpack.c.l.b16 %v3658
    %v4740 = vunpack.c.h.b16 %v3658
    %v4741 = vunpack.c.l.b16 %v3659
    %v4742 = vunpack.c.h.b16 %v3659
    %v4743 = vunpack.c.l.b16 %v3660
    %v4744 = vunpack.c.h.b16 %v3660
    %v4745 = vunpack.c.l.b16 %v3661
    %v4746 = vunpack.c.h.b16 %v3661
    %v4747 = vunpack.c.l.b16 %v3662
    %v4748 = vunpack.c.h.b16 %v3662
    %v4749 = vunpack.c.l.b16 %v3663
    %v4750 = vunpack.c.h.b16 %v3663
    %v4751 = vunpack.c.l.b16 %v3664
    %v4752 = vunpack.c.h.b16 %v3664
    %v4753 = vunpack.c.l.b16 %v3665
    %v4754 = vunpack.c.h.b16 %v3665
    %v4755 = vunpack.c.l.b16 %v3666
    %v4756 = vunpack.c.h.b16 %v3666
    %v4757 = vunpack.c.l.b16 %v3667
    %v4758 = vunpack.c.h.b16 %v3667
    %v4759 = vunpack.c.l.b16 %v3668
    %v4760 = vunpack.c.h.b16 %v3668
    %v4761 = vunpack.c.l.b16 %v3669
    %v4762 = vunpack.c.h.b16 %v3669
    %v4763 = vunpack.c.l.b16 %v3670
    %v4764 = vunpack.c.h.b16 %v3670
    %v4765 = vunpack.c.l.b16 %v3671
    %v4766 = vunpack.c.h.b16 %v3671
    %v4767 = vunpack.c.l.b16 %v3672
    %v4768 = vunpack.c.h.b16 %v3672
    %v4769 = vunpack.c.l.b16 %v3673
    %v4770 = vunpack.c.h.b16 %v3673
    %v4771 = vunpack.c.l.b16 %v3674
    %v4772 = vunpack.c.h.b16 %v3674
    %v4773 = vunpack.c.l.b16 %v3675
    %v4774 = vunpack.c.h.b16 %v3675
    %v4775 = vunpack.c.l.b16 %v3676
    %v4776 = vunpack.c.h.b16 %v3676
    %v4777 = vunpack.c.l.b16 %v3677
    %v4778 = vunpack.c.h.b16 %v3677
    %v4779 = vunpack.c.l.b16 %v3678
    %v4780 = vunpack.c.h.b16 %v3678
    %v4781 = vunpack.c.l.b16 %v3679
    %v4782 = vunpack.c.h.b16 %v3679
    %v4783 = vunpack.c.l.b16 %v3680
    %v4784 = vunpack.c.h.b16 %v3680
    %v4785 = vunpack.c.l.b16 %v3681
    %v4786 = vunpack.c.h.b16 %v3681
    %v4787 = vunpack.c.l.b16 %v3682
    %v4788 = vunpack.c.h.b16 %v3682
    %v4789 = vunpack.c.l.b16 %v3683
    %v4790 = vunpack.c.h.b16 %v3683
    %v4791 = vunpack.c.l.b16 %v3684
    %v4792 = vunpack.c.h.b16 %v3684
    %v4793 = vunpack.c.l.b16 %v3685
    %v4794 = vunpack.c.h.b16 %v3685
    %v4795 = vunpack.c.l.b16 %v3686
    %v4796 = vunpack.c.h.b16 %v3686
    %v4797 = vunpack.c.l.b16 %v3687
    %v4798 = vunpack.c.h.b16 %v3687
    %v4799 = vunpack.c.l.b16 %v3688
    %v4800 = vunpack.c.h.b16 %v3688
    %v4801 = vunpack.c.l.b16 %v3689
    %v4802 = vunpack.c.h.b16 %v3689
    %v4803 = vunpack.c.l.b16 %v3690
    %v4804 = vunpack.c.h.b16 %v3690
    %v4805 = vunpack.c.l.b16 %v3691
    %v4806 = vunpack.c.h.b16 %v3691
    %v4807 = vunpack.c.l.b16 %v3692
    %v4808 = vunpack.c.h.b16 %v3692
    %v4809 = vunpack.c.l.b16 %v3693
    %v4810 = vunpack.c.h.b16 %v3693
    %v4811 = vunpack.c.l.b16 %v3694
    %v4812 = vunpack.c.h.b16 %v3694
    %v4813 = vunpack.c.l.b16 %v3695
    %v4814 = vunpack.c.h.b16 %v3695
    %v4815 = vunpack.c.l.b16 %v3696
    %v4816 = vunpack.c.h.b16 %v3696
    %v4817 = vunpack.c.l.b16 %v3697
    %v4818 = vunpack.c.h.b16 %v3697
    %v4819 = vunpack.c.l.b16 %v3698
    %v4820 = vunpack.c.h.b16 %v3698
    %v4821 = vunpack.c.l.b16 %v3699
    %v4822 = vunpack.c.h.b16 %v3699
    %v4823 = vunpack.c.l.b16 %v3700
    %v4824 = vunpack.c.h.b16 %v3700
    %v4825 = vunpack.c.l.b16 %v3701
    %v4826 = vunpack.c.h.b16 %v3701
    %v4827 = vunpack.c.l.b16 %v3702
    %v4828 = vunpack.c.h.b16 %v3702
    %v4829 = vunpack.c.l.b16 %v3703
    %v4830 = vunpack.c.h.b16 %v3703
    %v4831 = vunpack.c.l.b16 %v3704
    %v4832 = vunpack.c.h.b16 %v3704
    %v4833 = vunpack.c.l.b16 %v3705
    %v4834 = vunpack.c.h.b16 %v3705
    %v4835 = vunpack.c.l.b16 %v3706
    %v4836 = vunpack.c.h.b16 %v3706
    %v4837 = vunpack.c.l.b16 %v3707
    %v4838 = vunpack.c.h.b16 %v3707
    %v4839 = vunpack.c.l.b16 %v3708
    %v4840 = vunpack.c.h.b16 %v3708
    %v4841 = vunpack.c.l.b16 %v3709
    %v4842 = vunpack.c.h.b16 %v3709
    %v4843 = vunpack.c.l.b16 %v3710
    %v4844 = vunpack.c.h.b16 %v3710
    %v4845 = vunpack.c.l.b16 %v3711
    %v4846 = vunpack.c.h.b16 %v3711
    %v4847 = vunpack.c.l.b16 %v3712
    %v4848 = vunpack.c.h.b16 %v3712
    %v4849 = vunpack.c.l.b16 %v3713
    %v4850 = vunpack.c.h.b16 %v3713
    %v4851 = vunpack.c.l.b16 %v3714
    %v4852 = vunpack.c.h.b16 %v3714
    %v4853 = vunpack.c.l.b16 %v3715
    %v4854 = vunpack.c.h.b16 %v3715
    %v4855 = vunpack.c.l.b16 %v3716
    %v4856 = vunpack.c.h.b16 %v3716
    %v4857 = vunpack.c.l.b16 %v3717
    %v4858 = vunpack.c.h.b16 %v3717
    %v4859 = vunpack.c.l.b16 %v3718
    %v4860 = vunpack.c.h.b16 %v3718
    %v4861 = vunpack.c.l.b16 %v3719
    %v4862 = vunpack.c.h.b16 %v3719
    %v4863 = vunpack.c.l.b16 %v3720
    %v4864 = vunpack.c.h.b16 %v3720
    %v4865 = vunpack.c.l.b16 %v3721
    %v4866 = vunpack.c.h.b16 %v3721
    %v4867 = vunpack.c.l.b16 %v3722
    %v4868 = vunpack.c.h.b16 %v3722
    %v4869 = vunpack.c.l.b16 %v3723
    %v4870 = vunpack.c.h.b16 %v3723
    %v4871 = vunpack.c.l.b16 %v3724
    %v4872 = vunpack.c.h.b16 %v3724
    %v4873 = vunpack.c.l.b16 %v3725
    %v4874 = vunpack.c.h.b16 %v3725
    %v4875 = vunpack.c.l.b16 %v3726
    %v4876 = vunpack.c.h.b16 %v3726
    %v4877 = vunpack.c.l.b16 %v3727
    %v4878 = vunpack.c.h.b16 %v3727
    %v4879 = vunpack.c.l.b16 %v3728
    %v4880 = vunpack.c.h.b16 %v3728
    %v4881 = vunpack.c.l.b16 %v3729
    %v4882 = vunpack.c.h.b16 %v3729
    %v4883 = vunpack.c.l.b16 %v3730
    %v4884 = vunpack.c.h.b16 %v3730
    %v4885 = vunpack.c.l.b16 %v3731
    %v4886 = vunpack.c.h.b16 %v3731
    %v4887 = vunpack.c.l.b16 %v3732
    %v4888 = vunpack.c.h.b16 %v3732
    %v4889 = vunpack.c.l.b16 %v3733
    %v4890 = vunpack.c.h.b16 %v3733
    %v4891 = vunpack.c.l.b16 %v3734
    %v4892 = vunpack.c.h.b16 %v3734
    %v4893 = vunpack.c.l.b16 %v3735
    %v4894 = vunpack.c.h.b16 %v3735
    %v4895 = vunpack.c.l.b16 %v3736
    %v4896 = vunpack.c.h.b16 %v3736
    %v4897 = vunpack.c.l.b16 %v3737
    %v4898 = vunpack.c.h.b16 %v3737
    %v4899 = vunpack.c.l.b16 %v3738
    %v4900 = vunpack.c.h.b16 %v3738
    %v4901 = vunpack.c.l.b16 %v3739
    %v4902 = vunpack.c.h.b16 %v3739
    %v4903 = vunpack.c.l.b16 %v3740
    %v4904 = vunpack.c.h.b16 %v3740
    %v4905 = vunpack.c.l.b16 %v3741
    %v4906 = vunpack.c.h.b16 %v3741
    %v4907 = vunpack.c.l.b16 %v3742
    %v4908 = vunpack.c.h.b16 %v3742
    %v4909 = vunpack.c.l.b16 %v3743
    %v4910 = vunpack.c.h.b16 %v3743
    %v4911 = vunpack.c.l.b16 %v3744
    %v4912 = vunpack.c.h.b16 %v3744
    %v4913 = vunpack.c.l.b16 %v3745
    %v4914 = vunpack.c.h.b16 %v3745
    %v4915 = vunpack.c.l.b16 %v3746
    %v4916 = vunpack.c.h.b16 %v3746
    %v4917 = vunpack.c.l.b16 %v3747
    %v4918 = vunpack.c.h.b16 %v3747
    %v4919 = vunpack.c.l.b16 %v3748
    %v4920 = vunpack.c.h.b16 %v3748
    %v4921 = vunpack.c.l.b16 %v3749
    %v4922 = vunpack.c.h.b16 %v3749
    %v4923 = vunpack.c.l.b16 %v3750
    %v4924 = vunpack.c.h.b16 %v3750
    %v4925 = vunpack.c.l.b16 %v3751
    %v4926 = vunpack.c.h.b16 %v3751
    %v4927 = vunpack.c.l.b16 %v3752
    %v4928 = vunpack.c.h.b16 %v3752
    %v4929 = vunpack.c.l.b16 %v3753
    %v4930 = vunpack.c.h.b16 %v3753
    %v4931 = vunpack.c.l.b16 %v3754
    %v4932 = vunpack.c.h.b16 %v3754
    %v4933 = vunpack.c.l.b16 %v3755
    %v4934 = vunpack.c.h.b16 %v3755
    %v4935 = vunpack.c.l.b16 %v3756
    %v4936 = vunpack.c.h.b16 %v3756
    %v4937 = vunpack.c.l.b16 %v3757
    %v4938 = vunpack.c.h.b16 %v3757
    %v4939 = vunpack.c.l.b16 %v3758
    %v4940 = vunpack.c.h.b16 %v3758
    %v4941 = vunpack.c.l.b16 %v3759
    %v4942 = vunpack.c.h.b16 %v3759
    %v4943 = vunpack.c.l.b16 %v3760
    %v4944 = vunpack.c.h.b16 %v3760
    %v4945 = vunpack.c.l.b16 %v3761
    %v4946 = vunpack.c.h.b16 %v3761
    %v4947 = vunpack.c.l.b16 %v3762
    %v4948 = vunpack.c.h.b16 %v3762
    %v4949 = vunpack.c.l.b16 %v3763
    %v4950 = vunpack.c.h.b16 %v3763
    %v4951 = vunpack.c.l.b16 %v3764
    %v4952 = vunpack.c.h.b16 %v3764
    %v4953 = vunpack.c.l.b16 %v3765
    %v4954 = vunpack.c.h.b16 %v3765
    %v4955 = vunpack.c.l.b16 %v3766
    %v4956 = vunpack.c.h.b16 %v3766
    %v4957 = vunpack.c.l.b16 %v3767
    %v4958 = vunpack.c.h.b16 %v3767
    %v4959 = vunpack.c.l.b16 %v3768
    %v4960 = vunpack.c.h.b16 %v3768
    %v4961 = vunpack.c.l.b16 %v3769
    %v4962 = vunpack.c.h.b16 %v3769
    %v4963 = vunpack.c.l.b16 %v3770
    %v4964 = vunpack.c.h.b16 %v3770
    %v4965 = vunpack.c.l.b16 %v3771
    %v4966 = vunpack.c.h.b16 %v3771
    %v4967 = vunpack.c.l.b16 %v3772
    %v4968 = vunpack.c.h.b16 %v3772
    %v4969 = vunpack.c.l.b16 %v3773
    %v4970 = vunpack.c.h.b16 %v3773
    %v4971 = vunpack.c.l.b16 %v3774
    %v4972 = vunpack.c.h.b16 %v3774
    %v4973 = vunpack.c.l.b16 %v3775
    %v4974 = vunpack.c.h.b16 %v3775
    %v4975 = vunpack.c.l.b16 %v3776
    %v4976 = vunpack.c.h.b16 %v3776
    %v4977 = vunpack.c.l.b16 %v3777
    %v4978 = vunpack.c.h.b16 %v3777
    %v4979 = vunpack.c.l.b16 %v3778
    %v4980 = vunpack.c.h.b16 %v3778
    %v4981 = vunpack.c.l.b16 %v3779
    %v4982 = vunpack.c.h.b16 %v3779
    %v4983 = vunpack.c.l.b16 %v3780
    %v4984 = vunpack.c.h.b16 %v3780
    %v4985 = vunpack.c.l.b16 %v3781
    %v4986 = vunpack.c.h.b16 %v3781
    %v4987 = vunpack.c.l.b16 %v3782
    %v4988 = vunpack.c.h.b16 %v3782
    %v4989 = vunpack.c.l.b16 %v3783
    %v4990 = vunpack.c.h.b16 %v3783
    %v4991 = vunpack.c.l.b16 %v3784
    %v4992 = vunpack.c.h.b16 %v3784
    %v4993 = vunpack.c.l.b16 %v3785
    %v4994 = vunpack.c.h.b16 %v3785
    %v4995 = vunpack.c.l.b16 %v3786
    %v4996 = vunpack.c.h.b16 %v3786
    %v4997 = vunpack.c.l.b16 %v3787
    %v4998 = vunpack.c.h.b16 %v3787
    %v4999 = vunpack.c.l.b16 %v3788
    %v5000 = vunpack.c.h.b16 %v3788
    %v5001 = vunpack.c.l.b16 %v3789
    %v5002 = vunpack.c.h.b16 %v3789
    %v5003 = vunpack.c.l.b16 %v3790
    %v5004 = vunpack.c.h.b16 %v3790
    %v5005 = vunpack.c.l.b16 %v3791
    %v5006 = vunpack.c.h.b16 %v3791
    %v5007 = vunpack.c.l.b16 %v3792
    %v5008 = vunpack.c.h.b16 %v3792
    %v5009 = vunpack.c.l.b16 %v3793
    %v5010 = vunpack.c.h.b16 %v3793
    %v5011 = vunpack.c.l.b16 %v3794
    %v5012 = vunpack.c.h.b16 %v3794
    %v5013 = vunpack.c.l.b16 %v3795
    %v5014 = vunpack.c.h.b16 %v3795
    %v5015 = vunpack.c.l.b16 %v3796
    %v5016 = vunpack.c.h.b16 %v3796
    %v5017 = vunpack.c.l.b16 %v3797
    %v5018 = vunpack.c.h.b16 %v3797
    %v5019 = vunpack.c.l.b16 %v3798
    %v5020 = vunpack.c.h.b16 %v3798
    %v5021 = vunpack.c.l.b16 %v3799
    %v5022 = vunpack.c.h.b16 %v3799
    %v5023 = vunpack.c.l.b16 %v3800
    %v5024 = vunpack.c.h.b16 %v3800
    %v5025 = vunpack.c.l.b16 %v3801
    %v5026 = vunpack.c.h.b16 %v3801
    %v5027 = vunpack.c.l.b16 %v3802
    %v5028 = vunpack.c.h.b16 %v3802
    %v5029 = vunpack.c.l.b16 %v3803
    %v5030 = vunpack.c.h.b16 %v3803
    %v5031 = vunpack.c.l.b16 %v3804
    %v5032 = vunpack.c.h.b16 %v3804
    %v5033 = vunpack.c.l.b16 %v3805
    %v5034 = vunpack.c.h.b16 %v3805
    %v5035 = vunpack.c.l.b16 %v3806
    %v5036 = vunpack.c.h.b16 %v3806
    %v5037 = vunpack.c.l.b16 %v3807
    %v5038 = vunpack.c.h.b16 %v3807
    %v5039 = vunpack.c.l.b16 %v3808
    %v5040 = vunpack.c.h.b16 %v3808
    %v5041 = vunpack.c.l.b16 %v3809
    %v5042 = vunpack.c.h.b16 %v3809
    %v5043 = vunpack.c.l.b16 %v3810
    %v5044 = vunpack.c.h.b16 %v3810
    %v5045 = vunpack.c.l.b16 %v3811
    %v5046 = vunpack.c.h.b16 %v3811
    %v5047 = vunpack.c.l.b16 %v3812
    %v5048 = vunpack.c.h.b16 %v3812
    %v5049 = vunpack.c.l.b16 %v3813
    %v5050 = vunpack.c.h.b16 %v3813
    %v5051 = vunpack.c.l.b16 %v3814
    %v5052 = vunpack.c.h.b16 %v3814
    %v5053 = vunpack.c.l.b16 %v3815
    %v5054 = vunpack.c.h.b16 %v3815
    %v5055 = vunpack.c.l.b16 %v3816
    %v5056 = vunpack.c.h.b16 %v3816
    %v5057 = vunpack.c.l.b16 %v3817
    %v5058 = vunpack.c.h.b16 %v3817
    %v5059 = vunpack.c.l.b16 %v3818
    %v5060 = vunpack.c.h.b16 %v3818
    %v5061 = vunpack.c.l.b16 %v3819
    %v5062 = vunpack.c.h.b16 %v3819
    %v5063 = vunpack.c.l.b16 %v3820
    %v5064 = vunpack.c.h.b16 %v3820
    %v5065 = vunpack.c.l.b16 %v3821
    %v5066 = vunpack.c.h.b16 %v3821
    %v5067 = vunpack.c.l.b16 %v3822
    %v5068 = vunpack.c.h.b16 %v3822
    %v5069 = vunpack.c.l.b16 %v3823
    %v5070 = vunpack.c.h.b16 %v3823
    %v5071 = vunpack.c.l.b16 %v3824
    %v5072 = vunpack.c.h.b16 %v3824
    %v5073 = vunpack.c.l.b16 %v3825
    %v5074 = vunpack.c.h.b16 %v3825
    %v5075 = vunpack.c.l.b16 %v3826
    %v5076 = vunpack.c.h.b16 %v3826
    %v5077 = vunpack.c.l.b16 %v3827
    %v5078 = vunpack.c.h.b16 %v3827
    %v5079 = vunpack.c.l.b16 %v3828
    %v5080 = vunpack.c.h.b16 %v3828
    %v5081 = vunpack.c.l.b16 %v3829
    %v5082 = vunpack.c.h.b16 %v3829
    %v5083 = vunpack.c.l.b16 %v3830
    %v5084 = vunpack.c.h.b16 %v3830
    %v5085 = vunpack.c.l.b16 %v3831
    %v5086 = vunpack.c.h.b16 %v3831
    %v5087 = vunpack.c.l.b16 %v3832
    %v5088 = vunpack.c.h.b16 %v3832
    %v5089 = vunpack.c.l.b16 %v3833
    %v5090 = vunpack.c.h.b16 %v3833
    %v5091 = vunpack.c.l.b16 %v3834
    %v5092 = vunpack.c.h.b16 %v3834
    %v5093 = vunpack.c.l.b16 %v3835
    %v5094 = vunpack.c.h.b16 %v3835
    %v5095 = vunpack.c.l.b16 %v3836
    %v5096 = vunpack.c.h.b16 %v3836
    %v5097 = vunpack.c.l.b16 %v3837
    %v5098 = vunpack.c.h.b16 %v3837
    %v5099 = vunpack.c.l.b16 %v3838
    %v5100 = vunpack.c.h.b16 %v3838
    %v5101 = vunpack.c.l.b16 %v3839
    %v5102 = vunpack.c.h.b16 %v3839
    %v5103 = vunpack.c.l.b16 %v3840
    %v5104 = vunpack.c.h.b16 %v3840
    %v5105 = vunpack.c.l.b16 %v3841
    %v5106 = vunpack.c.h.b16 %v3841
    %v5107 = vunpack.c.l.b16 %v3842
    %v5108 = vunpack.c.h.b16 %v3842
    %v5109 = vunpack.c.l.b16 %v3843
    %v5110 = vunpack.c.h.b16 %v3843
    %v5111 = vunpack.c.l.b16 %v3844
    %v5112 = vunpack.c.h.b16 %v3844
    %v5113 = vunpack.c.l.b16 %v3845
    %v5114 = vunpack.c.h.b16 %v3845
    %v5115 = vunpack.c.l.b16 %v3846
    %v5116 = vunpack.c.h.b16 %v3846
    %v5117 = vunpack.c.l.b16 %v3847
    %v5118 = vunpack.c.h.b16 %v3847
    %v5119 = vunpack.c.l.b16 %v3848
    %v5120 = vunpack.c.h.b16 %v3848
    %v5121 = vunpack.c.l.b16 %v3849
    %v5122 = vunpack.c.h.b16 %v3849
    %v5123 = vunpack.c.l.b16 %v3850
    %v5124 = vunpack.c.h.b16 %v3850
    %v5125 = vunpack.c.l.b16 %v3851
    %v5126 = vunpack.c.h.b16 %v3851
    %v5127 = vunpack.c.l.b16 %v3852
    %v5128 = vunpack.c.h.b16 %v3852
    %v5129 = vunpack.c.l.b16 %v3853
    %v5130 = vunpack.c.h.b16 %v3853
    %v5131 = vunpack.c.l.b16 %v3854
    %v5132 = vunpack.c.h.b16 %v3854
    %v5133 = vunpack.c.l.b16 %v3855
    %v5134 = vunpack.c.h.b16 %v3855
    %v5135 = vunpack.c.l.b16 %v3856
    %v5136 = vunpack.c.h.b16 %v3856
    %v5137 = vunpack.c.l.b16 %v3857
    %v5138 = vunpack.c.h.b16 %v3857
    %v5139 = vunpack.c.l.b16 %v3858
    %v5140 = vunpack.c.h.b16 %v3858
    %v5141 = vunpack.c.l.b16 %v3859
    %v5142 = vunpack.c.h.b16 %v3859
    %v5143 = vunpack.c.l.b16 %v3860
    %v5144 = vunpack.c.h.b16 %v3860
    %v5145 = vunpack.c.l.b16 %v3861
    %v5146 = vunpack.c.h.b16 %v3861
    %v5147 = vunpack.c.l.b16 %v3862
    %v5148 = vunpack.c.h.b16 %v3862
    %v5149 = vunpack.c.l.b16 %v3863
    %v5150 = vunpack.c.h.b16 %v3863
    %v5151 = vunpack.c.l.b16 %v3864
    %v5152 = vunpack.c.h.b16 %v3864
    %v5153 = vunpack.c.l.b16 %v3865
    %v5154 = vunpack.c.h.b16 %v3865
    %v5155 = vunpack.c.l.b16 %v3866
    %v5156 = vunpack.c.h.b16 %v3866
    %v5157 = vunpack.c.l.b16 %v3867
    %v5158 = vunpack.c.h.b16 %v3867
    %v5159 = vunpack.c.l.b16 %v3868
    %v5160 = vunpack.c.h.b16 %v3868
    %v5161 = vunpack.c.l.b16 %v3869
    %v5162 = vunpack.c.h.b16 %v3869
    %v5163 = vunpack.c.l.b16 %v3870
    %v5164 = vunpack.c.h.b16 %v3870
    %v5165 = vunpack.c.l.b16 %v3871
    %v5166 = vunpack.c.h.b16 %v3871
    %v5167 = vunpack.c.l.b16 %v3872
    %v5168 = vunpack.c.h.b16 %v3872
    %v5169 = vunpack.c.l.b16 %v3873
    %v5170 = vunpack.c.h.b16 %v3873
    %v5171 = vunpack.c.l.b16 %v3874
    %v5172 = vunpack.c.h.b16 %v3874
    %v5173 = vunpack.c.l.b16 %v3875
    %v5174 = vunpack.c.h.b16 %v3875
    %v5175 = vunpack.c.l.b16 %v3876
    %v5176 = vunpack.c.h.b16 %v3876
    %v5177 = vunpack.c.l.b16 %v3877
    %v5178 = vunpack.c.h.b16 %v3877
    %v5179 = vunpack.c.l.b16 %v3878
    %v5180 = vunpack.c.h.b16 %v3878
    %v5181 = vunpack.c.l.b16 %v3879
    %v5182 = vunpack.c.h.b16 %v3879
    %v5183 = vunpack.c.l.b16 %v3880
    %v5184 = vunpack.c.h.b16 %v3880
    %v5185 = vunpack.c.l.b16 %v3881
    %v5186 = vunpack.c.h.b16 %v3881
    %v5187 = vunpack.c.l.b16 %v3882
    %v5188 = vunpack.c.h.b16 %v3882
    %v5189 = vunpack.c.l.b16 %v3883
    %v5190 = vunpack.c.h.b16 %v3883
    %v5191 = vunpack.c.l.b16 %v3884
    %v5192 = vunpack.c.h.b16 %v3884
    %v5193 = vunpack.c.l.b16 %v3885
    %v5194 = vunpack.c.h.b16 %v3885
    %v5195 = vunpack.c.l.b16 %v3886
    %v5196 = vunpack.c.h.b16 %v3886
    %v5197 = vunpack.c.l.b16 %v3887
    %v5198 = vunpack.c.h.b16 %v3887
    %v5199 = vunpack.c.l.b16 %v3888
    %v5200 = vunpack.c.h.b16 %v3888
    %v5201 = vunpack.c.l.b16 %v3889
    %v5202 = vunpack.c.h.b16 %v3889
    %v5203 = vunpack.c.l.b16 %v3890
    %v5204 = vunpack.c.h.b16 %v3890
    %v5205 = vunpack.c.l.b16 %v3891
    %v5206 = vunpack.c.h.b16 %v3891
    %v5207 = vunpack.c.l.b16 %v3892
    %v5208 = vunpack.c.h.b16 %v3892
    %v5209 = vunpack.c.l.b16 %v3893
    %v5210 = vunpack.c.h.b16 %v3893
    %v5211 = vunpack.c.l.b16 %v3894
    %v5212 = vunpack.c.h.b16 %v3894
    %v5213 = vunpack.c.l.b16 %v3895
    %v5214 = vunpack.c.h.b16 %v3895
    %v5215 = vunpack.c.l.b16 %v3896
    %v5216 = vunpack.c.h.b16 %v3896
    %v5217 = vunpack.c.l.b16 %v3897
    %v5218 = vunpack.c.h.b16 %v3897
    %v5219 = vunpack.c.l.b16 %v3898
    %v5220 = vunpack.c.h.b16 %v3898
    %v5221 = vunpack.c.l.b16 %v3899
    %v5222 = vunpack.c.h.b16 %v3899
    %v5223 = vunpack.c.l.b16 %v3900
    %v5224 = vunpack.c.h.b16 %v3900
    %v5225 = vunpack.c.l.b16 %v3901
    %v5226 = vunpack.c.h.b16 %v3901
    %v5227 = vunpack.c.l.b16 %v3902
    %v5228 = vunpack.c.h.b16 %v3902
    %v5229 = vunpack.c.l.b16 %v3903
    %v5230 = vunpack.c.h.b16 %v3903
    %v5231 = vunpack.c.l.b16 %v3904
    %v5232 = vunpack.c.h.b16 %v3904
    %v5233 = vunpack.c.l.b16 %v3905
    %v5234 = vunpack.c.h.b16 %v3905
    %v5235 = vunpack.c.l.b16 %v3906
    %v5236 = vunpack.c.h.b16 %v3906
    %v5237 = vunpack.c.l.b16 %v3907
    %v5238 = vunpack.c.h.b16 %v3907
    %v5239 = vunpack.c.l.b16 %v3908
    %v5240 = vunpack.c.h.b16 %v3908
    %v5241 = vunpack.c.l.b16 %v3909
    %v5242 = vunpack.c.h.b16 %v3909
    %v5243 = vunpack.c.l.b16 %v3910
    %v5244 = vunpack.c.h.b16 %v3910
    %v5245 = vunpack.c.l.b16 %v3911
    %v5246 = vunpack.c.h.b16 %v3911
    %v5247 = vunpack.c.l.b16 %v3912
    %v5248 = vunpack.c.h.b16 %v3912
    %v5249 = vunpack.c.l.b16 %v3913
    %v5250 = vunpack.c.h.b16 %v3913
    %v5251 = vunpack.c.l.b16 %v3914
    %v5252 = vunpack.c.h.b16 %v3914
    %v5253 = vunpack.c.l.b16 %v3915
    %v5254 = vunpack.c.h.b16 %v3915
    %v5255 = vunpack.c.l.b16 %v3916
    %v5256 = vunpack.c.h.b16 %v3916
    %v5257 = vunpack.c.l.b16 %v3917
    %v5258 = vunpack.c.h.b16 %v3917
    %v5259 = vunpack.c.l.b16 %v3918
    %v5260 = vunpack.c.h.b16 %v3918
    %v5261 = vunpack.c.l.b16 %v3919
    %v5262 = vunpack.c.h.b16 %v3919
    %v5263 = vunpack.c.l.b16 %v3920
    %v5264 = vunpack.c.h.b16 %v3920
    %v5265 = vunpack.c.l.b16 %v3921
    %v5266 = vunpack.c.h.b16 %v3921
    %v5267 = vunpack.c.l.b16 %v3922
    %v5268 = vunpack.c.h.b16 %v3922
    %v5269 = vunpack.c.l.b16 %v3923
    %v5270 = vunpack.c.h.b16 %v3923
    %v5271 = vunpack.c.l.b16 %v3924
    %v5272 = vunpack.c.h.b16 %v3924
    %v5273 = vunpack.c.l.b16 %v3925
    %v5274 = vunpack.c.h.b16 %v3925
    %v5275 = vunpack.c.l.b16 %v3926
    %v5276 = vunpack.c.h.b16 %v3926
    %v5277 = vunpack.c.l.b16 %v3927
    %v5278 = vunpack.c.h.b16 %v3927
    %v5279 = vunpack.c.l.b16 %v3928
    %v5280 = vunpack.c.h.b16 %v3928
    %v5281 = vunpack.c.l.b16 %v3929
    %v5282 = vunpack.c.h.b16 %v3929
    %v5283 = vunpack.c.l.b16 %v3930
    %v5284 = vunpack.c.h.b16 %v3930
    %v5285 = vunpack.c.l.b16 %v3931
    %v5286 = vunpack.c.h.b16 %v3931
    %v5287 = vunpack.c.l.b16 %v3932
    %v5288 = vunpack.c.h.b16 %v3932
    %v5289 = vunpack.c.l.b16 %v3933
    %v5290 = vunpack.c.h.b16 %v3933
    %v5291 = vunpack.c.l.b16 %v3934
    %v5292 = vunpack.c.h.b16 %v3934
    %v5293 = vunpack.c.l.b16 %v3935
    %v5294 = vunpack.c.h.b16 %v3935
    %v5295 = vunpack.c.l.b16 %v3936
    %v5296 = vunpack.c.h.b16 %v3936
    %v5297 = vunpack.c.l.b16 %v3937
    %v5298 = vunpack.c.h.b16 %v3937
    %v5299 = vunpack.c.l.b16 %v3938
    %v5300 = vunpack.c.h.b16 %v3938
    %v5301 = vunpack.c.l.b16 %v3939
    %v5302 = vunpack.c.h.b16 %v3939
    %v5303 = vunpack.c.l.b16 %v3940
    %v5304 = vunpack.c.h.b16 %v3940
    %v5305 = vunpack.c.l.b16 %v3941
    %v5306 = vunpack.c.h.b16 %v3941
    %v5307 = vunpack.c.l.b16 %v3942
    %v5308 = vunpack.c.h.b16 %v3942
    %v5309 = vunpack.c.l.b16 %v3943
    %v5310 = vunpack.c.h.b16 %v3943
    %v5311 = vunpack.c.l.b16 %v3944
    %v5312 = vunpack.c.h.b16 %v3944
    %v5313 = vunpack.c.l.b16 %v3945
    %v5314 = vunpack.c.h.b16 %v3945
    %v5315 = vunpack.c.l.b16 %v3946
    %v5316 = vunpack.c.h.b16 %v3946
    %v5317 = vunpack.c.l.b16 %v3947
    %v5318 = vunpack.c.h.b16 %v3947
    %v5319 = vunpack.c.l.b16 %v3948
    %v5320 = vunpack.c.h.b16 %v3948
    %v5321 = vunpack.c.l.b16 %v3949
    %v5322 = vunpack.c.h.b16 %v3949
    %v5323 = vunpack.c.l.b16 %v3950
    %v5324 = vunpack.c.h.b16 %v3950
    %v5325 = vunpack.c.l.b16 %v3951
    %v5326 = vunpack.c.h.b16 %v3951
    %v5327 = vunpack.c.l.b16 %v3952
    %v5328 = vunpack.c.h.b16 %v3952
    %v5329 = vunpack.c.l.b16 %v3953
    %v5330 = vunpack.c.h.b16 %v3953
    %v5331 = vunpack.c.l.b16 %v3954
    %v5332 = vunpack.c.h.b16 %v3954
    %v5333 = vunpack.c.l.b16 %v3955
    %v5334 = vunpack.c.h.b16 %v3955
    %v5335 = vunpack.c.l.b16 %v3956
    %v5336 = vunpack.c.h.b16 %v3956
    %v5337 = vunpack.c.l.b16 %v3957
    %v5338 = vunpack.c.h.b16 %v3957
    %v5339 = vunpack.c.l.b16 %v3958
    %v5340 = vunpack.c.h.b16 %v3958
    %v5341 = vunpack.c.l.b16 %v3959
    %v5342 = vunpack.c.h.b16 %v3959
    %v5343 = vunpack.c.l.b16 %v3960
    %v5344 = vunpack.c.h.b16 %v3960
    %v5345 = vunpack.c.l.b16 %v3961
    %v5346 = vunpack.c.h.b16 %v3961
    %v5347 = vunpack.c.l.b16 %v3962
    %v5348 = vunpack.c.h.b16 %v3962
    %v5349 = vunpack.c.l.b16 %v3963
    %v5350 = vunpack.c.h.b16 %v3963
    %v5351 = vunpack.c.l.b16 %v3964
    %v5352 = vunpack.c.h.b16 %v3964
    %v5353 = vunpack.c.l.b16 %v3965
    %v5354 = vunpack.c.h.b16 %v3965
    %v5355 = vunpack.c.l.b16 %v3966
    %v5356 = vunpack.c.h.b16 %v3966
    %v5357 = vunpack.c.l.b16 %v3967
    %v5358 = vunpack.c.h.b16 %v3967
    %v5359 = vunpack.c.l.b16 %v3968
    %v5360 = vunpack.c.h.b16 %v3968
    %v5361 = vunpack.c.l.b16 %v3969
    %v5362 = vunpack.c.h.b16 %v3969
    %v5363 = vunpack.c.l.b16 %v3970
    %v5364 = vunpack.c.h.b16 %v3970
    %v5365 = vunpack.c.l.b16 %v3971
    %v5366 = vunpack.c.h.b16 %v3971
    %v5367 = vunpack.c.l.b16 %v3972
    %v5368 = vunpack.c.h.b16 %v3972
    %v5369 = vunpack.c.l.b16 %v3973
    %v5370 = vunpack.c.h.b16 %v3973
    %v5371 = vunpack.c.l.b16 %v3974
    %v5372 = vunpack.c.h.b16 %v3974
    %v5373 = vunpack.c.l.b16 %v3975
    %v5374 = vunpack.c.h.b16 %v3975
    %v5375 = vunpack.c.l.b16 %v3976
    %v5376 = vunpack.c.h.b16 %v3976
    %v5377 = vunpack.c.l.b16 %v3977
    %v5378 = vunpack.c.h.b16 %v3977
    %v5379 = vunpack.c.l.b16 %v3978
    %v5380 = vunpack.c.h.b16 %v3978
    %v5381 = vunpack.c.l.b16 %v3979
    %v5382 = vunpack.c.h.b16 %v3979
    %v5383 = vunpack.c.l.b16 %v3980
    %v5384 = vunpack.c.h.b16 %v3980
    %v5385 = vunpack.c.l.b16 %v3981
    %v5386 = vunpack.c.h.b16 %v3981
    %v5387 = vunpack.c.l.b16 %v3982
    %v5388 = vunpack.c.h.b16 %v3982
    %v5389 = vunpack.c.l.b16 %v3983
    %v5390 = vunpack.c.h.b16 %v3983
    %v5391 = vunpack.c.l.b16 %v3984
    %v5392 = vunpack.c.h.b16 %v3984
    %v5393 = vunpack.c.l.b16 %v3985
    %v5394 = vunpack.c.h.b16 %v3985
    %v5395 = vunpack.c.l.b16 %v3986
    %v5396 = vunpack.c.h.b16 %v3986
    %v5397 = vunpack.c.l.b16 %v3987
    %v5398 = vunpack.c.h.b16 %v3987
    %v5399 = vunpack.c.l.b16 %v3988
    %v5400 = vunpack.c.h.b16 %v3988
    %v5401 = vunpack.c.l.b16 %v3989
    %v5402 = vunpack.c.h.b16 %v3989
    %v5403 = vunpack.c.l.b16 %v3990
    %v5404 = vunpack.c.h.b16 %v3990
    %v5405 = vunpack.c.l.b16 %v3991
    %v5406 = vunpack.c.h.b16 %v3991
    %v5407 = vunpack.c.l.b16 %v3992
    %v5408 = vunpack.c.h.b16 %v3992
    %v5409 = vunpack.c.l.b16 %v3993
    %v5410 = vunpack.c.h.b16 %v3993
    %v5411 = vunpack.c.l.b16 %v3994
    %v5412 = vunpack.c.h.b16 %v3994
    %v5413 = vunpack.c.l.b16 %v3995
    %v5414 = vunpack.c.h.b16 %v3995
    %v5415 = vunpack.c.l.b16 %v3996
    %v5416 = vunpack.c.h.b16 %v3996
    %v5417 = vunpack.c.l.b16 %v3997
    %v5418 = vunpack.c.h.b16 %v3997
    %v5419 = vunpack.c.l.b16 %v3998
    %v5420 = vunpack.c.h.b16 %v3998
    %v5421 = vunpack.c.l.b16 %v3999
    %v5422 = vunpack.c.h.b16 %v3999
    %v5423 = vunpack.c.l.b16 %v4000
    %v5424 = vunpack.c.h.b16 %v4000
    %v5425 = vunpack.c.l.b16 %v4001
    %v5426 = vunpack.c.h.b16 %v4001
    %v5427 = vunpack.c.l.b16 %v4002
    %v5428 = vunpack.c.h.b16 %v4002
    %v5429 = vunpack.c.l.b16 %v4003
    %v5430 = vunpack.c.h.b16 %v4003
    %v5431 = vunpack.c.l.b16 %v4004
    %v5432 = vunpack.c.h.b16 %v4004
    %v5433 = vunpack.c.l.b16 %v4005
    %v5434 = vunpack.c.h.b16 %v4005
    %v5435 = vunpack.c.l.b16 %v4006
    %v5436 = vunpack.c.h.b16 %v4006
    %v5437 = vunpack.c.l.b16 %v4007
    %v5438 = vunpack.c.h.b16 %v4007
    %v5439 = vunpack.c.l.b16 %v4008
    %v5440 = vunpack.c.h.b16 %v4008
    %v5441 = vunpack.c.l.b16 %v4009
    %v5442 = vunpack.c.h.b16 %v4009
    %v5443 = vunpack.c.l.b16 %v4010
    %v5444 = vunpack.c.h.b16 %v4010
    %v5445 = vunpack.c.l.b16 %v4011
    %v5446 = vunpack.c.h.b16 %v4011
    %v5447 = vunpack.c.l.b16 %v4012
    %v5448 = vunpack.c.h.b16 %v4012
    %v5449 = vunpack.c.l.b16 %v4013
    %v5450 = vunpack.c.h.b16 %v4013
    %v5451 = vunpack.c.l.b16 %v4014
    %v5452 = vunpack.c.h.b16 %v4014
    %v5453 = vunpack.c.l.b16 %v4015
    %v5454 = vunpack.c.h.b16 %v4015
    %v5455 = vunpack.c.l.b16 %v4016
    %v5456 = vunpack.c.h.b16 %v4016
    %v5457 = vunpack.c.l.b16 %v4017
    %v5458 = vunpack.c.h.b16 %v4017
    %v5459 = vunpack.c.l.b16 %v4018
    %v5460 = vunpack.c.h.b16 %v4018
    %v5461 = vunpack.c.l.b16 %v4019
    %v5462 = vunpack.c.h.b16 %v4019
    %v5463 = vunpack.c.l.b16 %v4020
    %v5464 = vunpack.c.h.b16 %v4020
    %v5465 = vunpack.c.l.b16 %v4021
    %v5466 = vunpack.c.h.b16 %v4021
    %v5467 = vunpack.c.l.b16 %v4022
    %v5468 = vunpack.c.h.b16 %v4022
    %v5469 = vunpack.c.l.b16 %v4023
    %v5470 = vunpack.c.h.b16 %v4023
    %v5471 = vunpack.c.l.b16 %v4024
    %v5472 = vunpack.c.h.b16 %v4024
    %v5473 = vunpack.c.l.b16 %v4025
    %v5474 = vunpack.c.h.b16 %v4025
    %v5475 = vunpack.c.l.b16 %v4026
    %v5476 = vunpack.c.h.b16 %v4026
    %v5477 = vunpack.c.l.b16 %v4027
    %v5478 = vunpack.c.h.b16 %v4027
    %v5479 = vunpack.c.l.b16 %v4028
    %v5480 = vunpack.c.h.b16 %v4028
    %v5481 = vunpack.c.l.b16 %v4029
    %v5482 = vunpack.c.h.b16 %v4029
    %v5483 = vunpack.c.l.b16 %v4030
    %v5484 = vunpack.c.h.b16 %v4030
    %v5485 = vunpack.c.l.b16 %v4031
    %v5486 = vunpack.c.h.b16 %v4031
    %v5487 = vunpack.c.l.b16 %v4032
    %v5488 = vunpack.c.h.b16 %v4032
    %v5489 = vunpack.c.l.b16 %v4033
    %v5490 = vunpack.c.h.b16 %v4033
    %v5491 = vunpack.c.l.b16 %v4034
    %v5492 = vunpack.c.h.b16 %v4034
    %v5493 = vunpack.c.l.b16 %v4035
    %v5494 = vunpack.c.h.b16 %v4035
    %v5495 = vunpack.c.l.b16 %v4036
    %v5496 = vunpack.c.h.b16 %v4036
    %v5497 = vunpack.c.l.b16 %v4037
    %v5498 = vunpack.c.h.b16 %v4037
    %v5499 = vunpack.c.l.b16 %v4038
    %v5500 = vunpack.c.h.b16 %v4038
    %v5501 = vunpack.c.l.b16 %v4039
    %v5502 = vunpack.c.h.b16 %v4039
    %v5503 = vunpack.c.l.b16 %v4040
    %v5504 = vunpack.c.h.b16 %v4040
    %v5505 = vunpack.c.l.b16 %v4041
    %v5506 = vunpack.c.h.b16 %v4041
    %v5507 = vunpack.c.l.b16 %v4042
    %v5508 = vunpack.c.h.b16 %v4042
    %v5509 = vunpack.c.l.b16 %v4043
    %v5510 = vunpack.c.h.b16 %v4043
    %v5511 = vunpack.c.l.b16 %v4044
    %v5512 = vunpack.c.h.b16 %v4044
    %v5513 = vunpack.c.l.b16 %v4045
    %v5514 = vunpack.c.h.b16 %v4045
    %v5515 = vunpack.c.l.b16 %v4046
    %v5516 = vunpack.c.h.b16 %v4046
    %v5517 = vunpack.c.l.b16 %v4047
    %v5518 = vunpack.c.h.b16 %v4047
    %v5519 = vunpack.c.l.b16 %v4048
    %v5520 = vunpack.c.h.b16 %v4048
    %v5521 = vunpack.c.l.b16 %v4049
    %v5522 = vunpack.c.h.b16 %v4049
    %v5523 = vunpack.c.l.b16 %v4050
    %v5524 = vunpack.c.h.b16 %v4050
    %v5525 = vunpack.c.l.b16 %v4051
    %v5526 = vunpack.c.h.b16 %v4051
    %v5527 = vunpack.c.l.b16 %v4052
    %v5528 = vunpack.c.h.b16 %v4052
    %v5529 = vunpack.c.l.b16 %v4053
    %v5530 = vunpack.c.h.b16 %v4053
    %v5531 = vunpack.c.l.b16 %v4054
    %v5532 = vunpack.c.h.b16 %v4054
    %v5533 = vunpack.c.l.b16 %v4055
    %v5534 = vunpack.c.h.b16 %v4055
    %v5535 = vunpack.c.l.b16 %v4056
    %v5536 = vunpack.c.h.b16 %v4056
    %v5537 = vunpack.c.l.b16 %v4057
    %v5538 = vunpack.c.h.b16 %v4057
    %v5539 = vunpack.c.l.b16 %v4058
    %v5540 = vunpack.c.h.b16 %v4058
    %v5541 = vunpack.c.l.b16 %v4059
    %v5542 = vunpack.c.h.b16 %v4059
    %v5543 = vunpack.c.l.b16 %v4060
    %v5544 = vunpack.c.h.b16 %v4060
    %v5545 = vunpack.c.l.b16 %v4061
    %v5546 = vunpack.c.h.b16 %v4061
    %v5547 = vunpack.c.l.b16 %v4062
    %v5548 = vunpack.c.h.b16 %v4062
    %v5549 = vunpack.c.l.b16 %v4063
    %v5550 = vunpack.c.h.b16 %v4063
    %v5551 = vunpack.c.l.b16 %v4064
    %v5552 = vunpack.c.h.b16 %v4064
    %v5553 = vunpack.c.l.b16 %v4065
    %v5554 = vunpack.c.h.b16 %v4065
    %v5555 = vunpack.c.l.b16 %v4066
    %v5556 = vunpack.c.h.b16 %v4066
    %v5557 = vunpack.c.l.b16 %v4067
    %v5558 = vunpack.c.h.b16 %v4067
    %v5559 = vunpack.c.l.b16 %v4068
    %v5560 = vunpack.c.h.b16 %v4068
    %v5561 = vunpack.c.l.b16 %v4069
    %v5562 = vunpack.c.h.b16 %v4069
    %v5563 = vunpack.c.l.b16 %v4070
    %v5564 = vunpack.c.h.b16 %v4070
    %v5565 = vunpack.c.l.b16 %v4071
    %v5566 = vunpack.c.h.b16 %v4071
    %v5567 = vunpack.c.l.b16 %v4072
    %v5568 = vunpack.c.h.b16 %v4072
    %v5569 = vunpack.c.l.b16 %v4073
    %v5570 = vunpack.c.h.b16 %v4073
    %v5571 = vunpack.c.l.b16 %v4074
    %v5572 = vunpack.c.h.b16 %v4074
    %v5573 = vunpack.c.l.b16 %v4075
    %v5574 = vunpack.c.h.b16 %v4075
    %v5575 = vunpack.c.l.b16 %v4076
    %v5576 = vunpack.c.h.b16 %v4076
    %v5577 = vunpack.c.l.b16 %v4077
    %v5578 = vunpack.c.h.b16 %v4077
    %v5579 = vunpack.c.l.b16 %v4078
    %v5580 = vunpack.c.h.b16 %v4078
    %v5581 = vunpack.c.l.b16 %v4079
    %v5582 = vunpack.c.h.b16 %v4079
    %v5583 = vunpack.c.l.b16 %v4080
    %v5584 = vunpack.c.h.b16 %v4080
    %v5585 = vunpack.c.l.b16 %v4081
    %v5586 = vunpack.c.h.b16 %v4081
    %v5587 = vunpack.c.l.b16 %v4082
    %v5588 = vunpack.c.h.b16 %v4082
    %v5589 = vunpack.c.l.b16 %v4083
    %v5590 = vunpack.c.h.b16 %v4083
    %v5591 = vunpack.c.l.b16 %v4084
    %v5592 = vunpack.c.h.b16 %v4084
    %v5593 = vunpack.c.l.b16 %v4085
    %v5594 = vunpack.c.h.b16 %v4085
    %v5595 = vunpack.c.l.b16 %v4086
    %v5596 = vunpack.c.h.b16 %v4086
    %v5597 = vunpack.c.l.b16 %v4087
    %v5598 = vunpack.c.h.b16 %v4087
    %v5599 = vunpack.c.l.b16 %v4088
    %v5600 = vunpack.c.h.b16 %v4088
    %v5601 = vunpack.c.l.b16 %v4089
    %v5602 = vunpack.c.h.b16 %v4089
    %v5603 = vunpack.c.l.b16 %v4090
    %v5604 = vunpack.c.h.b16 %v4090
    %v5605 = vunpack.c.l.b16 %v4091
    %v5606 = vunpack.c.h.b16 %v4091
    %v5607 = vunpack.c.l.b16 %v4092
    %v5608 = vunpack.c.h.b16 %v4092
    %v5609 = vunpack.c.l.b16 %v4093
    %v5610 = vunpack.c.h.b16 %v4093
    %v5611 = vunpack.c.l.b16 %v4094
    %v5612 = vunpack.c.h.b16 %v4094
    %v5613 = vunpack.c.l.b16 %v4095
    %v5614 = vunpack.c.h.b16 %v4095
    %v5615 = vunpack.c.l.b16 %v4096
    %v5616 = vunpack.c.h.b16 %v4096
    %v5617 = vunpack.c.l.b16 %v4097
    %v5618 = vunpack.c.h.b16 %v4097
    %v5619 = vunpack.c.l.b16 %v4098
    %v5620 = vunpack.c.h.b16 %v4098
    %v5621 = vunpack.c.l.b16 %v4099
    %v5622 = vunpack.c.h.b16 %v4099
    %v5623 = vunpack.c.l.b16 %v4100
    %v5624 = vunpack.c.h.b16 %v4100
    %v5625 = vunpack.c.l.b16 %v4101
    %v5626 = vunpack.c.h.b16 %v4101
    %v5627 = vunpack.c.l.b16 %v4102
    %v5628 = vunpack.c.h.b16 %v4102
    %v5629 = vunpack.c.l.b16 %v4103
    %v5630 = vunpack.c.h.b16 %v4103
    %v5631 = vunpack.c.l.b16 %v4104
    %v5632 = vunpack.c.h.b16 %v4104
    %v5633 = vunpack.c.l.b16 %v4105
    %v5634 = vunpack.c.h.b16 %v4105
    %v5635 = vunpack.c.l.b16 %v4106
    %v5636 = vunpack.c.h.b16 %v4106
    %v5637 = vunpack.c.l.b16 %v4107
    %v5638 = vunpack.c.h.b16 %v4107
    %v5639 = vunpack.c.l.b16 %v4108
    %v5640 = vunpack.c.h.b16 %v4108
    %v5641 = vunpack.c.l.b16 %v4109
    %v5642 = vunpack.c.h.b16 %v4109
    %v5643 = vunpack.c.l.b16 %v4110
    %v5644 = vunpack.c.h.b16 %v4110
    %v5645 = vunpack.c.l.b16 %v4111
    %v5646 = vunpack.c.h.b16 %v4111
    %v5647 = vunpack.c.l.b16 %v4112
    %v5648 = vunpack.c.h.b16 %v4112
    %v5649 = vunpack.c.l.b16 %v4113
    %v5650 = vunpack.c.h.b16 %v4113
    %v5651 = vunpack.c.l.b16 %v4114
    %v5652 = vunpack.c.h.b16 %v4114
    %v5653 = vunpack.c.l.b16 %v4115
    %v5654 = vunpack.c.h.b16 %v4115
    %v5655 = vunpack.c.l.b16 %v4116
    %v5656 = vunpack.c.h.b16 %v4116
    %v5657 = vunpack.c.l.b16 %v4117
    %v5658 = vunpack.c.h.b16 %v4117
    %v5659 = vunpack.c.l.b16 %v4118
    %v5660 = vunpack.c.h.b16 %v4118
    %v5661 = vunpack.c.l.b16 %v4119
    %v5662 = vunpack.c.h.b16 %v4119
    %v5663 = vunpack.c.l.b16 %v4120
    %v5664 = vunpack.c.h.b16 %v4120
    %v5665 = vunpack.c.l.b16 %v4121
    %v5666 = vunpack.c.h.b16 %v4121
    %v5667 = vunpack.c.l.b16 %v4122
    %v5668 = vunpack.c.h.b16 %v4122
    %v5669 = vunpack.c.l.b16 %v4123
    %v5670 = vunpack.c.h.b16 %v4123
    %v5671 = vunpack.c.l.b16 %v4124
    %v5672 = vunpack.c.h.b16 %v4124
    %v5673 = vunpack.c.l.b16 %v4125
    %v5674 = vunpack.c.h.b16 %v4125
    %v5675 = vunpack.c.l.b16 %v4126
    %v5676 = vunpack.c.h.b16 %v4126
    %v5677 = vunpack.c.l.b16 %v4127
    %v5678 = vunpack.c.h.b16 %v4127
    %v5679 = vunpack.c.l.b16 %v4128
    %v5680 = vunpack.c.h.b16 %v4128
    %v5681 = vunpack.c.l.b16 %v4129
    %v5682 = vunpack.c.h.b16 %v4129
    %v5683 = vunpack.c.l.b16 %v4130
    %v5684 = vunpack.c.h.b16 %v4130
    %v5685 = vpack.c.b16 %v4669, %v4661
    %v5686 = vpack.c.b16 %v4670, %v4662
    %v5687 = vpack.c.b16 %v4671, %v4663
    %v5688 = vpack.c.b16 %v4672, %v4664
    %v5689 = vpack.c.b16 %v4673, %v4665
    %v5690 = vpack.c.b16 %v4674, %v4666
    %v5691 = vpack.c.b16 %v4675, %v4667
    %v5692 = vpack.c.b16 %v4676, %v4668
    %v5693 = vpack.c.b16 %v4685, %v4677
    %v5694 = vpack.c.b16 %v4686, %v4678
    %v5695 = vpack.c.b16 %v4687, %v4679
    %v5696 = vpack.c.b16 %v4688, %v4680
    %v5697 = vpack.c.b16 %v4689, %v4681
    %v5698 = vpack.c.b16 %v4690, %v4682
    %v5699 = vpack.c.b16 %v4691, %v4683
    %v5700 = vpack.c.b16 %v4692, %v4684
    %v5701 = vpack.c.b16 %v4701, %v4693
    %v5702 = vpack.c.b16 %v4702, %v4694
    %v5703 = vpack.c.b16 %v4703, %v4695
    %v5704 = vpack.c.b16 %v4704, %v4696
    %v5705 = vpack.c.b16 %v4705, %v4697
    %v5706 = vpack.c.b16 %v4706, %v4698
    %v5707 = vpack.c.b16 %v4707, %v4699
    %v5708 = vpack.c.b16 %v4708, %v4700
    %v5709 = vpack.c.b16 %v4717, %v4709
    %v5710 = vpack.c.b16 %v4718, %v4710
    %v5711 = vpack.c.b16 %v4719, %v4711
    %v5712 = vpack.c.b16 %v4720, %v4712
    %v5713 = vpack.c.b16 %v4721, %v4713
    %v5714 = vpack.c.b16 %v4722, %v4714
    %v5715 = vpack.c.b16 %v4723, %v4715
    %v5716 = vpack.c.b16 %v4724, %v4716
    %v5717 = vpack.c.b16 %v4733, %v4725
    %v5718 = vpack.c.b16 %v4734, %v4726
    %v5719 = vpack.c.b16 %v4735, %v4727
    %v5720 = vpack.c.b16 %v4736, %v4728
    %v5721 = vpack.c.b16 %v4737, %v4729
    %v5722 = vpack.c.b16 %v4738, %v4730
    %v5723 = vpack.c.b16 %v4739, %v4731
    %v5724 = vpack.c.b16 %v4740, %v4732
    %v5725 = vpack.c.b16 %v4749, %v4741
    %v5726 = vpack.c.b16 %v4750, %v4742
    %v5727 = vpack.c.b16 %v4751, %v4743
    %v5728 = vpack.c.b16 %v4752, %v4744
    %v5729 = vpack.c.b16 %v4753, %v4745
    %v5730 = vpack.c.b16 %v4754, %v4746
    %v5731 = vpack.c.b16 %v4755, %v4747
    %v5732 = vpack.c.b16 %v4756, %v4748
    %v5733 = vpack.c.b16 %v4765, %v4757
    %v5734 = vpack.c.b16 %v4766, %v4758
    %v5735 = vpack.c.b16 %v4767, %v4759
    %v5736 = vpack.c.b16 %v4768, %v4760
    %v5737 = vpack.c.b16 %v4769, %v4761
    %v5738 = vpack.c.b16 %v4770, %v4762
    %v5739 = vpack.c.b16 %v4771, %v4763
    %v5740 = vpack.c.b16 %v4772, %v4764
    %v5741 = vpack.c.b16 %v4781, %v4773
    %v5742 = vpack.c.b16 %v4782, %v4774
    %v5743 = vpack.c.b16 %v4783, %v4775
    %v5744 = vpack.c.b16 %v4784, %v4776
    %v5745 = vpack.c.b16 %v4785, %v4777
    %v5746 = vpack.c.b16 %v4786, %v4778
    %v5747 = vpack.c.b16 %v4787, %v4779
    %v5748 = vpack.c.b16 %v4788, %v4780
    %v5749 = vpack.c.b16 %v4797, %v4789
    %v5750 = vpack.c.b16 %v4798, %v4790
    %v5751 = vpack.c.b16 %v4799, %v4791
    %v5752 = vpack.c.b16 %v4800, %v4792
    %v5753 = vpack.c.b16 %v4801, %v4793
    %v5754 = vpack.c.b16 %v4802, %v4794
    %v5755 = vpack.c.b16 %v4803, %v4795
    %v5756 = vpack.c.b16 %v4804, %v4796
    %v5757 = vpack.c.b16 %v4813, %v4805
    %v5758 = vpack.c.b16 %v4814, %v4806
    %v5759 = vpack.c.b16 %v4815, %v4807
    %v5760 = vpack.c.b16 %v4816, %v4808
    %v5761 = vpack.c.b16 %v4817, %v4809
    %v5762 = vpack.c.b16 %v4818, %v4810
    %v5763 = vpack.c.b16 %v4819, %v4811
    %v5764 = vpack.c.b16 %v4820, %v4812
    %v5765 = vpack.c.b16 %v4829, %v4821
    %v5766 = vpack.c.b16 %v4830, %v4822
    %v5767 = vpack.c.b16 %v4831, %v4823
    %v5768 = vpack.c.b16 %v4832, %v4824
    %v5769 = vpack.c.b16 %v4833, %v4825
    %v5770 = vpack.c.b16 %v4834, %v4826
    %v5771 = vpack.c.b16 %v4835, %v4827
    %v5772 = vpack.c.b16 %v4836, %v4828
    %v5773 = vpack.c.b16 %v4845, %v4837
    %v5774 = vpack.c.b16 %v4846, %v4838
    %v5775 = vpack.c.b16 %v4847, %v4839
    %v5776 = vpack.c.b16 %v4848, %v4840
    %v5777 = vpack.c.b16 %v4849, %v4841
    %v5778 = vpack.c.b16 %v4850, %v4842
    %v5779 = vpack.c.b16 %v4851, %v4843
    %v5780 = vpack.c.b16 %v4852, %v4844
    %v5781 = vpack.c.b16 %v4861, %v4853
    %v5782 = vpack.c.b16 %v4862, %v4854
    %v5783 = vpack.c.b16 %v4863, %v4855
    %v5784 = vpack.c.b16 %v4864, %v4856
    %v5785 = vpack.c.b16 %v4865, %v4857
    %v5786 = vpack.c.b16 %v4866, %v4858
    %v5787 = vpack.c.b16 %v4867, %v4859
    %v5788 = vpack.c.b16 %v4868, %v4860
    %v5789 = vpack.c.b16 %v4877, %v4869
    %v5790 = vpack.c.b16 %v4878, %v4870
    %v5791 = vpack.c.b16 %v4879, %v4871
    %v5792 = vpack.c.b16 %v4880, %v4872
    %v5793 = vpack.c.b16 %v4881, %v4873
    %v5794 = vpack.c.b16 %v4882, %v4874
    %v5795 = vpack.c.b16 %v4883, %v4875
    %v5796 = vpack.c.b16 %v4884, %v4876
    %v5797 = vpack.c.b16 %v4893, %v4885
    %v5798 = vpack.c.b16 %v4894, %v4886
    %v5799 = vpack.c.b16 %v4895, %v4887
    %v5800 = vpack.c.b16 %v4896, %v4888
    %v5801 = vpack.c.b16 %v4897, %v4889
    %v5802 = vpack.c.b16 %v4898, %v4890
    %v5803 = vpack.c.b16 %v4899, %v4891
    %v5804 = vpack.c.b16 %v4900, %v4892
    %v5805 = vpack.c.b16 %v4909, %v4901
    %v5806 = vpack.c.b16 %v4910, %v4902
    %v5807 = vpack.c.b16 %v4911, %v4903
    %v5808 = vpack.c.b16 %v4912, %v4904
    %v5809 = vpack.c.b16 %v4913, %v4905
    %v5810 = vpack.c.b16 %v4914, %v4906
    %v5811 = vpack.c.b16 %v4915, %v4907
    %v5812 = vpack.c.b16 %v4916, %v4908
    %v5813 = vpack.c.b16 %v4925, %v4917
    %v5814 = vpack.c.b16 %v4926, %v4918
    %v5815 = vpack.c.b16 %v4927, %v4919
    %v5816 = vpack.c.b16 %v4928, %v4920
    %v5817 = vpack.c.b16 %v4929, %v4921
    %v5818 = vpack.c.b16 %v4930, %v4922
    %v5819 = vpack.c.b16 %v4931, %v4923
    %v5820 = vpack.c.b16 %v4932, %v4924
    %v5821 = vpack.c.b16 %v4941, %v4933
    %v5822 = vpack.c.b16 %v4942, %v4934
    %v5823 = vpack.c.b16 %v4943, %v4935
    %v5824 = vpack.c.b16 %v4944, %v4936
    %v5825 = vpack.c.b16 %v4945, %v4937
    %v5826 = vpack.c.b16 %v4946, %v4938
    %v5827 = vpack.c.b16 %v4947, %v4939
    %v5828 = vpack.c.b16 %v4948, %v4940
    %v5829 = vpack.c.b16 %v4957, %v4949
    %v5830 = vpack.c.b16 %v4958, %v4950
    %v5831 = vpack.c.b16 %v4959, %v4951
    %v5832 = vpack.c.b16 %v4960, %v4952
    %v5833 = vpack.c.b16 %v4961, %v4953
    %v5834 = vpack.c.b16 %v4962, %v4954
    %v5835 = vpack.c.b16 %v4963, %v4955
    %v5836 = vpack.c.b16 %v4964, %v4956
    %v5837 = vpack.c.b16 %v4973, %v4965
    %v5838 = vpack.c.b16 %v4974, %v4966
    %v5839 = vpack.c.b16 %v4975, %v4967
    %v5840 = vpack.c.b16 %v4976, %v4968
    %v5841 = vpack.c.b16 %v4977, %v4969
    %v5842 = vpack.c.b16 %v4978, %v4970
    %v5843 = vpack.c.b16 %v4979, %v4971
    %v5844 = vpack.c.b16 %v4980, %v4972
    %v5845 = vpack.c.b16 %v4989, %v4981
    %v5846 = vpack.c.b16 %v4990, %v4982
    %v5847 = vpack.c.b16 %v4991, %v4983
    %v5848 = vpack.c.b16 %v4992, %v4984
    %v5849 = vpack.c.b16 %v4993, %v4985
    %v5850 = vpack.c.b16 %v4994, %v4986
    %v5851 = vpack.c.b16 %v4995, %v4987
    %v5852 = vpack.c.b16 %v4996, %v4988
    %v5853 = vpack.c.b16 %v5005, %v4997
    %v5854 = vpack.c.b16 %v5006, %v4998
    %v5855 = vpack.c.b16 %v5007, %v4999
    %v5856 = vpack.c.b16 %v5008, %v5000
    %v5857 = vpack.c.b16 %v5009, %v5001
    %v5858 = vpack.c.b16 %v5010, %v5002
    %v5859 = vpack.c.b16 %v5011, %v5003
    %v5860 = vpack.c.b16 %v5012, %v5004
    %v5861 = vpack.c.b16 %v5021, %v5013
    %v5862 = vpack.c.b16 %v5022, %v5014
    %v5863 = vpack.c.b16 %v5023, %v5015
    %v5864 = vpack.c.b16 %v5024, %v5016
    %v5865 = vpack.c.b16 %v5025, %v5017
    %v5866 = vpack.c.b16 %v5026, %v5018
    %v5867 = vpack.c.b16 %v5027, %v5019
    %v5868 = vpack.c.b16 %v5028, %v5020
    %v5869 = vpack.c.b16 %v5037, %v5029
    %v5870 = vpack.c.b16 %v5038, %v5030
    %v5871 = vpack.c.b16 %v5039, %v5031
    %v5872 = vpack.c.b16 %v5040, %v5032
    %v5873 = vpack.c.b16 %v5041, %v5033
    %v5874 = vpack.c.b16 %v5042, %v5034
    %v5875 = vpack.c.b16 %v5043, %v5035
    %v5876 = vpack.c.b16 %v5044, %v5036
    %v5877 = vpack.c.b16 %v5053, %v5045
    %v5878 = vpack.c.b16 %v5054, %v5046
    %v5879 = vpack.c.b16 %v5055, %v5047
    %v5880 = vpack.c.b16 %v5056, %v5048
    %v5881 = vpack.c.b16 %v5057, %v5049
    %v5882 = vpack.c.b16 %v5058, %v5050
    %v5883 = vpack.c.b16 %v5059, %v5051
    %v5884 = vpack.c.b16 %v5060, %v5052
    %v5885 = vpack.c.b16 %v5069, %v5061
    %v5886 = vpack.c.b16 %v5070, %v5062
    %v5887 = vpack.c.b16 %v5071, %v5063
    %v5888 = vpack.c.b16 %v5072, %v5064
    %v5889 = vpack.c.b16 %v5073, %v5065
    %v5890 = vpack.c.b16 %v5074, %v5066
    %v5891 = vpack.c.b16 %v5075, %v5067
    %v5892 = vpack.c.b16 %v5076, %v5068
    %v5893 = vpack.c.b16 %v5085, %v5077
    %v5894 = vpack.c.b16 %v5086, %v5078
    %v5895 = vpack.c.b16 %v5087, %v5079
    %v5896 = vpack.c.b16 %v5088, %v5080
    %v5897 = vpack.c.b16 %v5089, %v5081
    %v5898 = vpack.c.b16 %v5090, %v5082
    %v5899 = vpack.c.b16 %v5091, %v5083
    %v5900 = vpack.c.b16 %v5092, %v5084
    %v5901 = vpack.c.b16 %v5101, %v5093
    %v5902 = vpack.c.b16 %v5102, %v5094
    %v5903 = vpack.c.b16 %v5103, %v5095
    %v5904 = vpack.c.b16 %v5104, %v5096
    %v5905 = vpack.c.b16 %v5105, %v5097
    %v5906 = vpack.c.b16 %v5106, %v5098
    %v5907 = vpack.c.b16 %v5107, %v5099
    %v5908 = vpack.c.b16 %v5108, %v5100
    %v5909 = vpack.c.b16 %v5117, %v5109
    %v5910 = vpack.c.b16 %v5118, %v5110
    %v5911 = vpack.c.b16 %v5119, %v5111
    %v5912 = vpack.c.b16 %v5120, %v5112
    %v5913 = vpack.c.b16 %v5121, %v5113
    %v5914 = vpack.c.b16 %v5122, %v5114
    %v5915 = vpack.c.b16 %v5123, %v5115
    %v5916 = vpack.c.b16 %v5124, %v5116
    %v5917 = vpack.c.b16 %v5133, %v5125
    %v5918 = vpack.c.b16 %v5134, %v5126
    %v5919 = vpack.c.b16 %v5135, %v5127
    %v5920 = vpack.c.b16 %v5136, %v5128
    %v5921 = vpack.c.b16 %v5137, %v5129
    %v5922 = vpack.c.b16 %v5138, %v5130
    %v5923 = vpack.c.b16 %v5139, %v5131
    %v5924 = vpack.c.b16 %v5140, %v5132
    %v5925 = vpack.c.b16 %v5149, %v5141
    %v5926 = vpack.c.b16 %v5150, %v5142
    %v5927 = vpack.c.b16 %v5151, %v5143
    %v5928 = vpack.c.b16 %v5152, %v5144
    %v5929 = vpack.c.b16 %v5153, %v5145
    %v5930 = vpack.c.b16 %v5154, %v5146
    %v5931 = vpack.c.b16 %v5155, %v5147
    %v5932 = vpack.c.b16 %v5156, %v5148
    %v5933 = vpack.c.b16 %v5165, %v5157
    %v5934 = vpack.c.b16 %v5166, %v5158
    %v5935 = vpack.c.b16 %v5167, %v5159
    %v5936 = vpack.c.b16 %v5168, %v5160
    %v5937 = vpack.c.b16 %v5169, %v5161
    %v5938 = vpack.c.b16 %v5170, %v5162
    %v5939 = vpack.c.b16 %v5171, %v5163
    %v5940 = vpack.c.b16 %v5172, %v5164
    %v5941 = vpack.c.b16 %v5181, %v5173
    %v5942 = vpack.c.b16 %v5182, %v5174
    %v5943 = vpack.c.b16 %v5183, %v5175
    %v5944 = vpack.c.b16 %v5184, %v5176
    %v5945 = vpack.c.b16 %v5185, %v5177
    %v5946 = vpack.c.b16 %v5186, %v5178
    %v5947 = vpack.c.b16 %v5187, %v5179
    %v5948 = vpack.c.b16 %v5188, %v5180
    %v5949 = vpack.c.b16 %v5197, %v5189
    %v5950 = vpack.c.b16 %v5198, %v5190
    %v5951 = vpack.c.b16 %v5199, %v5191
    %v5952 = vpack.c.b16 %v5200, %v5192
    %v5953 = vpack.c.b16 %v5201, %v5193
    %v5954 = vpack.c.b16 %v5202, %v5194
    %v5955 = vpack.c.b16 %v5203, %v5195
    %v5956 = vpack.c.b16 %v5204, %v5196
    %v5957 = vpack.c.b16 %v5213, %v5205
    %v5958 = vpack.c.b16 %v5214, %v5206
    %v5959 = vpack.c.b16 %v5215, %v5207
    %v5960 = vpack.c.b16 %v5216, %v5208
    %v5961 = vpack.c.b16 %v5217, %v5209
    %v5962 = vpack.c.b16 %v5218, %v5210
    %v5963 = vpack.c.b16 %v5219, %v5211
    %v5964 = vpack.c.b16 %v5220, %v5212
    %v5965 = vpack.c.b16 %v5229, %v5221
    %v5966 = vpack.c.b16 %v5230, %v5222
    %v5967 = vpack.c.b16 %v5231, %v5223
    %v5968 = vpack.c.b16 %v5232, %v5224
    %v5969 = vpack.c.b16 %v5233, %v5225
    %v5970 = vpack.c.b16 %v5234, %v5226
    %v5971 = vpack.c.b16 %v5235, %v5227
    %v5972 = vpack.c.b16 %v5236, %v5228
    %v5973 = vpack.c.b16 %v5245, %v5237
    %v5974 = vpack.c.b16 %v5246, %v5238
    %v5975 = vpack.c.b16 %v5247, %v5239
    %v5976 = vpack.c.b16 %v5248, %v5240
    %v5977 = vpack.c.b16 %v5249, %v5241
    %v5978 = vpack.c.b16 %v5250, %v5242
    %v5979 = vpack.c.b16 %v5251, %v5243
    %v5980 = vpack.c.b16 %v5252, %v5244
    %v5981 = vpack.c.b16 %v5261, %v5253
    %v5982 = vpack.c.b16 %v5262, %v5254
    %v5983 = vpack.c.b16 %v5263, %v5255
    %v5984 = vpack.c.b16 %v5264, %v5256
    %v5985 = vpack.c.b16 %v5265, %v5257
    %v5986 = vpack.c.b16 %v5266, %v5258
    %v5987 = vpack.c.b16 %v5267, %v5259
    %v5988 = vpack.c.b16 %v5268, %v5260
    %v5989 = vpack.c.b16 %v5277, %v5269
    %v5990 = vpack.c.b16 %v5278, %v5270
    %v5991 = vpack.c.b16 %v5279, %v5271
    %v5992 = vpack.c.b16 %v5280, %v5272
    %v5993 = vpack.c.b16 %v5281, %v5273
    %v5994 = vpack.c.b16 %v5282, %v5274
    %v5995 = vpack.c.b16 %v5283, %v5275
    %v5996 = vpack.c.b16 %v5284, %v5276
    %v5997 = vpack.c.b16 %v5293, %v5285
    %v5998 = vpack.c.b16 %v5294, %v5286
    %v5999 = vpack.c.b16 %v5295, %v5287
    %v6000 = vpack.c.b16 %v5296, %v5288
    %v6001 = vpack.c.b16 %v5297, %v5289
    %v6002 = vpack.c.b16 %v5298, %v5290
    %v6003 = vpack.c.b16 %v5299, %v5291
    %v6004 = vpack.c.b16 %v5300, %v5292
    %v6005 = vpack.c.b16 %v5309, %v5301
    %v6006 = vpack.c.b16 %v5310, %v5302
    %v6007 = vpack.c.b16 %v5311, %v5303
    %v6008 = vpack.c.b16 %v5312, %v5304
    %v6009 = vpack.c.b16 %v5313, %v5305
    %v6010 = vpack.c.b16 %v5314, %v5306
    %v6011 = vpack.c.b16 %v5315, %v5307
    %v6012 = vpack.c.b16 %v5316, %v5308
    %v6013 = vpack.c.b16 %v5325, %v5317
    %v6014 = vpack.c.b16 %v5326, %v5318
    %v6015 = vpack.c.b16 %v5327, %v5319
    %v6016 = vpack.c.b16 %v5328, %v5320
    %v6017 = vpack.c.b16 %v5329, %v5321
    %v6018 = vpack.c.b16 %v5330, %v5322
    %v6019 = vpack.c.b16 %v5331, %v5323
    %v6020 = vpack.c.b16 %v5332, %v5324
    %v6021 = vpack.c.b16 %v5341, %v5333
    %v6022 = vpack.c.b16 %v5342, %v5334
    %v6023 = vpack.c.b16 %v5343, %v5335
    %v6024 = vpack.c.b16 %v5344, %v5336
    %v6025 = vpack.c.b16 %v5345, %v5337
    %v6026 = vpack.c.b16 %v5346, %v5338
    %v6027 = vpack.c.b16 %v5347, %v5339
    %v6028 = vpack.c.b16 %v5348, %v5340
    %v6029 = vpack.c.b16 %v5357, %v5349
    %v6030 = vpack.c.b16 %v5358, %v5350
    %v6031 = vpack.c.b16 %v5359, %v5351
    %v6032 = vpack.c.b16 %v5360, %v5352
    %v6033 = vpack.c.b16 %v5361, %v5353
    %v6034 = vpack.c.b16 %v5362, %v5354
    %v6035 = vpack.c.b16 %v5363, %v5355
    %v6036 = vpack.c.b16 %v5364, %v5356
    %v6037 = vpack.c.b16 %v5373, %v5365
    %v6038 = vpack.c.b16 %v5374, %v5366
    %v6039 = vpack.c.b16 %v5375, %v5367
    %v6040 = vpack.c.b16 %v5376, %v5368
    %v6041 = vpack.c.b16 %v5377, %v5369
    %v6042 = vpack.c.b16 %v5378, %v5370
    %v6043 = vpack.c.b16 %v5379, %v5371
    %v6044 = vpack.c.b16 %v5380, %v5372
    %v6045 = vpack.c.b16 %v5389, %v5381
    %v6046 = vpack.c.b16 %v5390, %v5382
    %v6047 = vpack.c.b16 %v5391, %v5383
    %v6048 = vpack.c.b16 %v5392, %v5384
    %v6049 = vpack.c.b16 %v5393, %v5385
    %v6050 = vpack.c.b16 %v5394, %v5386
    %v6051 = vpack.c.b16 %v5395, %v5387
    %v6052 = vpack.c.b16 %v5396, %v5388
    %v6053 = vpack.c.b16 %v5405, %v5397
    %v6054 = vpack.c.b16 %v5406, %v5398
    %v6055 = vpack.c.b16 %v5407, %v5399
    %v6056 = vpack.c.b16 %v5408, %v5400
    %v6057 = vpack.c.b16 %v5409, %v5401
    %v6058 = vpack.c.b16 %v5410, %v5402
    %v6059 = vpack.c.b16 %v5411, %v5403
    %v6060 = vpack.c.b16 %v5412, %v5404
    %v6061 = vpack.c.b16 %v5421, %v5413
    %v6062 = vpack.c.b16 %v5422, %v5414
    %v6063 = vpack.c.b16 %v5423, %v5415
    %v6064 = vpack.c.b16 %v5424, %v5416
    %v6065 = vpack.c.b16 %v5425, %v5417
    %v6066 = vpack.c.b16 %v5426, %v5418
    %v6067 = vpack.c.b16 %v5427, %v5419
    %v6068 = vpack.c.b16 %v5428, %v5420
    %v6069 = vpack.c.b16 %v5437, %v5429
    %v6070 = vpack.c.b16 %v5438, %v5430
    %v6071 = vpack.c.b16 %v5439, %v5431
    %v6072 = vpack.c.b16 %v5440, %v5432
    %v6073 = vpack.c.b16 %v5441, %v5433
    %v6074 = vpack.c.b16 %v5442, %v5434
    %v6075 = vpack.c.b16 %v5443, %v5435
    %v6076 = vpack.c.b16 %v5444, %v5436
    %v6077 = vpack.c.b16 %v5453, %v5445
    %v6078 = vpack.c.b16 %v5454, %v5446
    %v6079 = vpack.c.b16 %v5455, %v5447
    %v6080 = vpack.c.b16 %v5456, %v5448
    %v6081 = vpack.c.b16 %v5457, %v5449
    %v6082 = vpack.c.b16 %v5458, %v5450
    %v6083 = vpack.c.b16 %v5459, %v5451
    %v6084 = vpack.c.b16 %v5460, %v5452
    %v6085 = vpack.c.b16 %v5469, %v5461
    %v6086 = vpack.c.b16 %v5470, %v5462
    %v6087 = vpack.c.b16 %v5471, %v5463
    %v6088 = vpack.c.b16 %v5472, %v5464
    %v6089 = vpack.c.b16 %v5473, %v5465
    %v6090 = vpack.c.b16 %v5474, %v5466
    %v6091 = vpack.c.b16 %v5475, %v5467
    %v6092 = vpack.c.b16 %v5476, %v5468
    %v6093 = vpack.c.b16 %v5485, %v5477
    %v6094 = vpack.c.b16 %v5486, %v5478
    %v6095 = vpack.c.b16 %v5487, %v5479
    %v6096 = vpack.c.b16 %v5488, %v5480
    %v6097 = vpack.c.b16 %v5489, %v5481
    %v6098 = vpack.c.b16 %v5490, %v5482
    %v6099 = vpack.c.b16 %v5491, %v5483
    %v6100 = vpack.c.b16 %v5492, %v5484
    %v6101 = vpack.c.b16 %v5501, %v5493
    %v6102 = vpack.c.b16 %v5502, %v5494
    %v6103 = vpack.c.b16 %v5503, %v5495
    %v6104 = vpack.c.b16 %v5504, %v5496
    %v6105 = vpack.c.b16 %v5505, %v5497
    %v6106 = vpack.c.b16 %v5506, %v5498
    %v6107 = vpack.c.b16 %v5507, %v5499
    %v6108 = vpack.c.b16 %v5508, %v5500
    %v6109 = vpack.c.b16 %v5517, %v5509
    %v6110 = vpack.c.b16 %v5518, %v5510
    %v6111 = vpack.c.b16 %v5519, %v5511
    %v6112 = vpack.c.b16 %v5520, %v5512
    %v6113 = vpack.c.b16 %v5521, %v5513
    %v6114 = vpack.c.b16 %v5522, %v5514
    %v6115 = vpack.c.b16 %v5523, %v5515
    %v6116 = vpack.c.b16 %v5524, %v5516
    %v6117 = vpack.c.b16 %v5533, %v5525
    %v6118 = vpack.c.b16 %v5534, %v5526
    %v6119 = vpack.c.b16 %v5535, %v5527
    %v6120 = vpack.c.b16 %v5536, %v5528
    %v6121 = vpack.c.b16 %v5537, %v5529
    %v6122 = vpack.c.b16 %v5538, %v5530
    %v6123 = vpack.c.b16 %v5539, %v5531
    %v6124 = vpack.c.b16 %v5540, %v5532
    %v6125 = vpack.c.b16 %v5549, %v5541
    %v6126 = vpack.c.b16 %v5550, %v5542
    %v6127 = vpack.c.b16 %v5551, %v5543
    %v6128 = vpack.c.b16 %v5552, %v5544
    %v6129 = vpack.c.b16 %v5553, %v5545
    %v6130 = vpack.c.b16 %v5554, %v5546
    %v6131 = vpack.c.b16 %v5555, %v5547
    %v6132 = vpack.c.b16 %v5556, %v5548
    %v6133 = vpack.c.b16 %v5565, %v5557
    %v6134 = vpack.c.b16 %v5566, %v5558
    %v6135 = vpack.c.b16 %v5567, %v5559
    %v6136 = vpack.c.b16 %v5568, %v5560
    %v6137 = vpack.c.b16 %v5569, %v5561
    %v6138 = vpack.c.b16 %v5570, %v5562
    %v6139 = vpack.c.b16 %v5571, %v5563
    %v6140 = vpack.c.b16 %v5572, %v5564
    %v6141 = vpack.c.b16 %v5581, %v5573
    %v6142 = vpack.c.b16 %v5582, %v5574
    %v6143 = vpack.c.b16 %v5583, %v5575
    %v6144 = vpack.c.b16 %v5584, %v5576
    %v6145 = vpack.c.b16 %v5585, %v5577
    %v6146 = vpack.c.b16 %v5586, %v5578
    %v6147 = vpack.c.b16 %v5587, %v5579
    %v6148 = vpack.c.b16 %v5588, %v5580
    %v6149 = vpack.c.b16 %v5597, %v5589
    %v6150 = vpack.c.b16 %v5598, %v5590
    %v6151 = vpack.c.b16 %v5599, %v5591
    %v6152 = vpack.c.b16 %v5600, %v5592
    %v6153 = vpack.c.b16 %v5601, %v5593
    %v6154 = vpack.c.b16 %v5602, %v5594
    %v6155 = vpack.c.b16 %v5603, %v5595
    %v6156 = vpack.c.b16 %v5604, %v5596
    %v6157 = vpack.c.b16 %v5613, %v5605
    %v6158 = vpack.c.b16 %v5614, %v5606
    %v6159 = vpack.c.b16 %v5615, %v5607
    %v6160 = vpack.c.b16 %v5616, %v5608
    %v6161 = vpack.c.b16 %v5617, %v5609
    %v6162 = vpack.c.b16 %v5618, %v5610
    %v6163 = vpack.c.b16 %v5619, %v5611
    %v6164 = vpack.c.b16 %v5620, %v5612
    %v6165 = vpack.c.b16 %v5629, %v5621
    %v6166 = vpack.c.b16 %v5630, %v5622
    %v6167 = vpack.c.b16 %v5631, %v5623
    %v6168 = vpack.c.b16 %v5632, %v5624
    %v6169 = vpack.c.b16 %v5633, %v5625
    %v6170 = vpack.c.b16 %v5634, %v5626
    %v6171 = vpack.c.b16 %v5635, %v5627
    %v6172 = vpack.c.b16 %v5636, %v5628
    %v6173 = vpack.c.b16 %v5645, %v5637
    %v6174 = vpack.c.b16 %v5646, %v5638
    %v6175 = vpack.c.b16 %v5647, %v5639
    %v6176 = vpack.c.b16 %v5648, %v5640
    %v6177 = vpack.c.b16 %v5649, %v5641
    %v6178 = vpack.c.b16 %v5650, %v5642
    %v6179 = vpack.c.b16 %v5651, %v5643
    %v6180 = vpack.c.b16 %v5652, %v5644
    %v6181 = vpack.c.b16 %v5661, %v5653
    %v6182 = vpack.c.b16 %v5662, %v5654
    %v6183 = vpack.c.b16 %v5663, %v5655
    %v6184 = vpack.c.b16 %v5664, %v5656
    %v6185 = vpack.c.b16 %v5665, %v5657
    %v6186 = vpack.c.b16 %v5666, %v5658
    %v6187 = vpack.c.b16 %v5667, %v5659
    %v6188 = vpack.c.b16 %v5668, %v5660
    %v6189 = vpack.c.b16 %v5677, %v5669
    %v6190 = vpack.c.b16 %v5678, %v5670
    %v6191 = vpack.c.b16 %v5679, %v5671
    %v6192 = vpack.c.b16 %v5680, %v5672
    %v6193 = vpack.c.b16 %v5681, %v5673
    %v6194 = vpack.c.b16 %v5682, %v5674
    %v6195 = vpack.c.b16 %v5683, %v5675
    %v6196 = vpack.c.b16 %v5684, %v5676
    %6709 = vmatpush.bf16.msra.mxu0 %v5741
    %6710 = vmatpush.bf16.msra.mxu0 %v5733
    %6711 = vmatpush.bf16.msra.mxu0 %v5725
    %6712 = vmatpush.bf16.msra.mxu0 %v5717
    %6713 = vmatpush.bf16.msra.mxu0 %v5709
    %6714 = vmatpush.bf16.msra.mxu0 %v5701
    %6715 = vmatpush.bf16.msra.mxu0 %v5693
    %6716 = vmatpush.bf16.msra.mxu0 %v5685
    %6717 = vmatmul.bf16.gmra.mxu0 %v3611
    %v6718 = vpop.f32.mrf.mxu0
    %v6719 = vadd.f32 %v4133, %v6718
    %v6720 = vpop.f32.mrf.mxu0
    %6721 = vdwg.mxu0
    %6722 = vmatpush.bf16.msra.mxu0 %v5805
    %6723 = vmatpush.bf16.msra.mxu0 %v5797
    %6724 = vmatpush.bf16.msra.mxu0 %v5789
    %6725 = vmatpush.bf16.msra.mxu0 %v5781
    %6726 = vmatpush.bf16.msra.mxu0 %v5773
    %6727 = vmatpush.bf16.msra.mxu0 %v5765
    %6728 = vmatpush.bf16.msra.mxu0 %v5757
    %6729 = vmatpush.bf16.msra.mxu0 %v5749
    %6730 = vmatmul.bf16.gmra.mxu0 %v3612
    %v6731 = vpop.f32.mrf.mxu0
    %v6732 = vadd.f32 %v6719, %v6731
    %v6733 = vpop.f32.mrf.mxu0
    %6734 = vdwg.mxu0
    %6735 = vmatpush.bf16.msra.mxu0 %v5869
    %6736 = vmatpush.bf16.msra.mxu0 %v5861
    %6737 = vmatpush.bf16.msra.mxu0 %v5853
    %6738 = vmatpush.bf16.msra.mxu0 %v5845
    %6739 = vmatpush.bf16.msra.mxu0 %v5837
    %6740 = vmatpush.bf16.msra.mxu0 %v5829
    %6741 = vmatpush.bf16.msra.mxu0 %v5821
    %6742 = vmatpush.bf16.msra.mxu0 %v5813
    %6743 = vmatmul.bf16.gmra.mxu0 %v3613
    %v6744 = vpop.f32.mrf.mxu0
    %v6745 = vadd.f32 %v6732, %v6744
    %v6746 = vpop.f32.mrf.mxu0
    %6747 = vdwg.mxu0
    %6748 = vmatpush.bf16.msra.mxu0 %v5933
    %6749 = vmatpush.bf16.msra.mxu0 %v5925
    %6750 = vmatpush.bf16.msra.mxu0 %v5917
    %6751 = vmatpush.bf16.msra.mxu0 %v5909
    %6752 = vmatpush.bf16.msra.mxu0 %v5901
    %6753 = vmatpush.bf16.msra.mxu0 %v5893
    %6754 = vmatpush.bf16.msra.mxu0 %v5885
    %6755 = vmatpush.bf16.msra.mxu0 %v5877
    %6756 = vmatmul.bf16.gmra.mxu0 %v3614
    %v6757 = vpop.f32.mrf.mxu0
    %v6758 = vadd.f32 %v6745, %v6757
    %v6759 = vpop.f32.mrf.mxu0
    %6760 = vdwg.mxu0
    %6761 = vmatpush.bf16.msra.mxu0 %v5997
    %6762 = vmatpush.bf16.msra.mxu0 %v5989
    %6763 = vmatpush.bf16.msra.mxu0 %v5981
    %6764 = vmatpush.bf16.msra.mxu0 %v5973
    %6765 = vmatpush.bf16.msra.mxu0 %v5965
    %6766 = vmatpush.bf16.msra.mxu0 %v5957
    %6767 = vmatpush.bf16.msra.mxu0 %v5949
    %6768 = vmatpush.bf16.msra.mxu0 %v5941
    %6769 = vmatmul.bf16.gmra.mxu0 %v3615
    %v6770 = vpop.f32.mrf.mxu0
    %v6771 = vadd.f32 %v6758, %v6770
    %v6772 = vpop.f32.mrf.mxu0
    %6773 = vdwg.mxu0
    %6774 = vmatpush.bf16.msra.mxu0 %v6061
    %6775 = vmatpush.bf16.msra.mxu0 %v6053
    %6776 = vmatpush.bf16.msra.mxu0 %v6045
    %6777 = vmatpush.bf16.msra.mxu0 %v6037
    %6778 = vmatpush.bf16.msra.mxu0 %v6029
    %6779 = vmatpush.bf16.msra.mxu0 %v6021
    %6780 = vmatpush.bf16.msra.mxu0 %v6013
    %6781 = vmatpush.bf16.msra.mxu0 %v6005
    %6782 = vmatmul.bf16.gmra.mxu0 %v3616
    %v6783 = vpop.f32.mrf.mxu0
    %v6784 = vadd.f32 %v6771, %v6783
    %v6785 = vpop.f32.mrf.mxu0
    %6786 = vdwg.mxu0
    %6787 = vmatpush.bf16.msra.mxu0 %v6125
    %6788 = vmatpush.bf16.msra.mxu0 %v6117
    %6789 = vmatpush.bf16.msra.mxu0 %v6109
    %6790 = vmatpush.bf16.msra.mxu0 %v6101
    %6791 = vmatpush.bf16.msra.mxu0 %v6093
    %6792 = vmatpush.bf16.msra.mxu0 %v6085
    %6793 = vmatpush.bf16.msra.mxu0 %v6077
    %6794 = vmatpush.bf16.msra.mxu0 %v6069
    %6795 = vmatmul.bf16.gmra.mxu0 %v3617
    %v6796 = vpop.f32.mrf.mxu0
    %v6797 = vadd.f32 %v6784, %v6796
    %v6798 = vpop.f32.mrf.mxu0
    %6799 = vdwg.mxu0
    %6800 = vmatpush.bf16.msra.mxu0 %v6189
    %6801 = vmatpush.bf16.msra.mxu0 %v6181
    %6802 = vmatpush.bf16.msra.mxu0 %v6173
    %6803 = vmatpush.bf16.msra.mxu0 %v6165
    %6804 = vmatpush.bf16.msra.mxu0 %v6157
    %6805 = vmatpush.bf16.msra.mxu0 %v6149
    %6806 = vmatpush.bf16.msra.mxu0 %v6141
    %6807 = vmatpush.bf16.msra.mxu0 %v6133
    %6808 = vmatmul.bf16.gmra.mxu0 %v3618
    %v6809 = vpop.f32.mrf.mxu0
    %v6810 = vadd.f32 %v6797, %v6809
    %v6811 = vpop.f32.mrf.mxu0
    %6812 = vdwg.mxu0
    %6813 = vmatpush.bf16.msra.mxu0 %v5742
    %6814 = vmatpush.bf16.msra.mxu0 %v5734
    %6815 = vmatpush.bf16.msra.mxu0 %v5726
    %6816 = vmatpush.bf16.msra.mxu0 %v5718
    %6817 = vmatpush.bf16.msra.mxu0 %v5710
    %6818 = vmatpush.bf16.msra.mxu0 %v5702
    %6819 = vmatpush.bf16.msra.mxu0 %v5694
    %6820 = vmatpush.bf16.msra.mxu0 %v5686
    %6821 = vmatmul.bf16.gmra.mxu0 %v3611
    %v6822 = vpop.f32.mrf.mxu0
    %v6823 = vadd.f32 %v4134, %v6822
    %v6824 = vpop.f32.mrf.mxu0
    %6825 = vdwg.mxu0
    %6826 = vmatpush.bf16.msra.mxu0 %v5806
    %6827 = vmatpush.bf16.msra.mxu0 %v5798
    %6828 = vmatpush.bf16.msra.mxu0 %v5790
    %6829 = vmatpush.bf16.msra.mxu0 %v5782
    %6830 = vmatpush.bf16.msra.mxu0 %v5774
    %6831 = vmatpush.bf16.msra.mxu0 %v5766
    %6832 = vmatpush.bf16.msra.mxu0 %v5758
    %6833 = vmatpush.bf16.msra.mxu0 %v5750
    %6834 = vmatmul.bf16.gmra.mxu0 %v3612
    %v6835 = vpop.f32.mrf.mxu0
    %v6836 = vadd.f32 %v6823, %v6835
    %v6837 = vpop.f32.mrf.mxu0
    %6838 = vdwg.mxu0
    %6839 = vmatpush.bf16.msra.mxu0 %v5870
    %6840 = vmatpush.bf16.msra.mxu0 %v5862
    %6841 = vmatpush.bf16.msra.mxu0 %v5854
    %6842 = vmatpush.bf16.msra.mxu0 %v5846
    %6843 = vmatpush.bf16.msra.mxu0 %v5838
    %6844 = vmatpush.bf16.msra.mxu0 %v5830
    %6845 = vmatpush.bf16.msra.mxu0 %v5822
    %6846 = vmatpush.bf16.msra.mxu0 %v5814
    %6847 = vmatmul.bf16.gmra.mxu0 %v3613
    %v6848 = vpop.f32.mrf.mxu0
    %v6849 = vadd.f32 %v6836, %v6848
    %v6850 = vpop.f32.mrf.mxu0
    %6851 = vdwg.mxu0
    %6852 = vmatpush.bf16.msra.mxu0 %v5934
    %6853 = vmatpush.bf16.msra.mxu0 %v5926
    %6854 = vmatpush.bf16.msra.mxu0 %v5918
    %6855 = vmatpush.bf16.msra.mxu0 %v5910
    %6856 = vmatpush.bf16.msra.mxu0 %v5902
    %6857 = vmatpush.bf16.msra.mxu0 %v5894
    %6858 = vmatpush.bf16.msra.mxu0 %v5886
    %6859 = vmatpush.bf16.msra.mxu0 %v5878
    %6860 = vmatmul.bf16.gmra.mxu0 %v3614
    %v6861 = vpop.f32.mrf.mxu0
    %v6862 = vadd.f32 %v6849, %v6861
    %v6863 = vpop.f32.mrf.mxu0
    %6864 = vdwg.mxu0
    %6865 = vmatpush.bf16.msra.mxu0 %v5998
    %6866 = vmatpush.bf16.msra.mxu0 %v5990
    %6867 = vmatpush.bf16.msra.mxu0 %v5982
    %6868 = vmatpush.bf16.msra.mxu0 %v5974
    %6869 = vmatpush.bf16.msra.mxu0 %v5966
    %6870 = vmatpush.bf16.msra.mxu0 %v5958
    %6871 = vmatpush.bf16.msra.mxu0 %v5950
    %6872 = vmatpush.bf16.msra.mxu0 %v5942
    %6873 = vmatmul.bf16.gmra.mxu0 %v3615
    %v6874 = vpop.f32.mrf.mxu0
    %v6875 = vadd.f32 %v6862, %v6874
    %v6876 = vpop.f32.mrf.mxu0
    %6877 = vdwg.mxu0
    %6878 = vmatpush.bf16.msra.mxu0 %v6062
    %6879 = vmatpush.bf16.msra.mxu0 %v6054
    %6880 = vmatpush.bf16.msra.mxu0 %v6046
    %6881 = vmatpush.bf16.msra.mxu0 %v6038
    %6882 = vmatpush.bf16.msra.mxu0 %v6030
    %6883 = vmatpush.bf16.msra.mxu0 %v6022
    %6884 = vmatpush.bf16.msra.mxu0 %v6014
    %6885 = vmatpush.bf16.msra.mxu0 %v6006
    %6886 = vmatmul.bf16.gmra.mxu0 %v3616
    %v6887 = vpop.f32.mrf.mxu0
    %v6888 = vadd.f32 %v6875, %v6887
    %v6889 = vpop.f32.mrf.mxu0
    %6890 = vdwg.mxu0
    %6891 = vmatpush.bf16.msra.mxu0 %v6126
    %6892 = vmatpush.bf16.msra.mxu0 %v6118
    %6893 = vmatpush.bf16.msra.mxu0 %v6110
    %6894 = vmatpush.bf16.msra.mxu0 %v6102
    %6895 = vmatpush.bf16.msra.mxu0 %v6094
    %6896 = vmatpush.bf16.msra.mxu0 %v6086
    %6897 = vmatpush.bf16.msra.mxu0 %v6078
    %6898 = vmatpush.bf16.msra.mxu0 %v6070
    %6899 = vmatmul.bf16.gmra.mxu0 %v3617
    %v6900 = vpop.f32.mrf.mxu0
    %v6901 = vadd.f32 %v6888, %v6900
    %v6902 = vpop.f32.mrf.mxu0
    %6903 = vdwg.mxu0
    %6904 = vmatpush.bf16.msra.mxu0 %v6190
    %6905 = vmatpush.bf16.msra.mxu0 %v6182
    %6906 = vmatpush.bf16.msra.mxu0 %v6174
    %6907 = vmatpush.bf16.msra.mxu0 %v6166
    %6908 = vmatpush.bf16.msra.mxu0 %v6158
    %6909 = vmatpush.bf16.msra.mxu0 %v6150
    %6910 = vmatpush.bf16.msra.mxu0 %v6142
    %6911 = vmatpush.bf16.msra.mxu0 %v6134
    %6912 = vmatmul.bf16.gmra.mxu0 %v3618
    %v6913 = vpop.f32.mrf.mxu0
    %v6914 = vadd.f32 %v6901, %v6913
    %v6915 = vpop.f32.mrf.mxu0
    %6916 = vdwg.mxu0
    %6917 = vmatpush.bf16.msra.mxu0 %v5743
    %6918 = vmatpush.bf16.msra.mxu0 %v5735
    %6919 = vmatpush.bf16.msra.mxu0 %v5727
    %6920 = vmatpush.bf16.msra.mxu0 %v5719
    %6921 = vmatpush.bf16.msra.mxu0 %v5711
    %6922 = vmatpush.bf16.msra.mxu0 %v5703
    %6923 = vmatpush.bf16.msra.mxu0 %v5695
    %6924 = vmatpush.bf16.msra.mxu0 %v5687
    %6925 = vmatmul.bf16.gmra.mxu0 %v3611
    %v6926 = vpop.f32.mrf.mxu0
    %v6927 = vadd.f32 %v4135, %v6926
    %v6928 = vpop.f32.mrf.mxu0
    %6929 = vdwg.mxu0
    %6930 = vmatpush.bf16.msra.mxu0 %v5807
    %6931 = vmatpush.bf16.msra.mxu0 %v5799
    %6932 = vmatpush.bf16.msra.mxu0 %v5791
    %6933 = vmatpush.bf16.msra.mxu0 %v5783
    %6934 = vmatpush.bf16.msra.mxu0 %v5775
    %6935 = vmatpush.bf16.msra.mxu0 %v5767
    %6936 = vmatpush.bf16.msra.mxu0 %v5759
    %6937 = vmatpush.bf16.msra.mxu0 %v5751
    %6938 = vmatmul.bf16.gmra.mxu0 %v3612
    %v6939 = vpop.f32.mrf.mxu0
    %v6940 = vadd.f32 %v6927, %v6939
    %v6941 = vpop.f32.mrf.mxu0
    %6942 = vdwg.mxu0
    %6943 = vmatpush.bf16.msra.mxu0 %v5871
    %6944 = vmatpush.bf16.msra.mxu0 %v5863
    %6945 = vmatpush.bf16.msra.mxu0 %v5855
    %6946 = vmatpush.bf16.msra.mxu0 %v5847
    %6947 = vmatpush.bf16.msra.mxu0 %v5839
    %6948 = vmatpush.bf16.msra.mxu0 %v5831
    %6949 = vmatpush.bf16.msra.mxu0 %v5823
    %6950 = vmatpush.bf16.msra.mxu0 %v5815
    %6951 = vmatmul.bf16.gmra.mxu0 %v3613
    %v6952 = vpop.f32.mrf.mxu0
    %v6953 = vadd.f32 %v6940, %v6952
    %v6954 = vpop.f32.mrf.mxu0
    %6955 = vdwg.mxu0
    %6956 = vmatpush.bf16.msra.mxu0 %v5935
    %6957 = vmatpush.bf16.msra.mxu0 %v5927
    %6958 = vmatpush.bf16.msra.mxu0 %v5919
    %6959 = vmatpush.bf16.msra.mxu0 %v5911
    %6960 = vmatpush.bf16.msra.mxu0 %v5903
    %6961 = vmatpush.bf16.msra.mxu0 %v5895
    %6962 = vmatpush.bf16.msra.mxu0 %v5887
    %6963 = vmatpush.bf16.msra.mxu0 %v5879
    %6964 = vmatmul.bf16.gmra.mxu0 %v3614
    %v6965 = vpop.f32.mrf.mxu0
    %v6966 = vadd.f32 %v6953, %v6965
    %v6967 = vpop.f32.mrf.mxu0
    %6968 = vdwg.mxu0
    %6969 = vmatpush.bf16.msra.mxu0 %v5999
    %6970 = vmatpush.bf16.msra.mxu0 %v5991
    %6971 = vmatpush.bf16.msra.mxu0 %v5983
    %6972 = vmatpush.bf16.msra.mxu0 %v5975
    %6973 = vmatpush.bf16.msra.mxu0 %v5967
    %6974 = vmatpush.bf16.msra.mxu0 %v5959
    %6975 = vmatpush.bf16.msra.mxu0 %v5951
    %6976 = vmatpush.bf16.msra.mxu0 %v5943
    %6977 = vmatmul.bf16.gmra.mxu0 %v3615
    %v6978 = vpop.f32.mrf.mxu0
    %v6979 = vadd.f32 %v6966, %v6978
    %v6980 = vpop.f32.mrf.mxu0
    %6981 = vdwg.mxu0
    %6982 = vmatpush.bf16.msra.mxu0 %v6063
    %6983 = vmatpush.bf16.msra.mxu0 %v6055
    %6984 = vmatpush.bf16.msra.mxu0 %v6047
    %6985 = vmatpush.bf16.msra.mxu0 %v6039
    %6986 = vmatpush.bf16.msra.mxu0 %v6031
    %6987 = vmatpush.bf16.msra.mxu0 %v6023
    %6988 = vmatpush.bf16.msra.mxu0 %v6015
    %6989 = vmatpush.bf16.msra.mxu0 %v6007
    %6990 = vmatmul.bf16.gmra.mxu0 %v3616
    %v6991 = vpop.f32.mrf.mxu0
    %v6992 = vadd.f32 %v6979, %v6991
    %v6993 = vpop.f32.mrf.mxu0
    %6994 = vdwg.mxu0
    %6995 = vmatpush.bf16.msra.mxu0 %v6127
    %6996 = vmatpush.bf16.msra.mxu0 %v6119
    %6997 = vmatpush.bf16.msra.mxu0 %v6111
    %6998 = vmatpush.bf16.msra.mxu0 %v6103
    %6999 = vmatpush.bf16.msra.mxu0 %v6095
    %7000 = vmatpush.bf16.msra.mxu0 %v6087
    %7001 = vmatpush.bf16.msra.mxu0 %v6079
    %7002 = vmatpush.bf16.msra.mxu0 %v6071
    %7003 = vmatmul.bf16.gmra.mxu0 %v3617
    %v7004 = vpop.f32.mrf.mxu0
    %v7005 = vadd.f32 %v6992, %v7004
    %v7006 = vpop.f32.mrf.mxu0
    %7007 = vdwg.mxu0
    %7008 = vmatpush.bf16.msra.mxu0 %v6191
    %7009 = vmatpush.bf16.msra.mxu0 %v6183
    %7010 = vmatpush.bf16.msra.mxu0 %v6175
    %7011 = vmatpush.bf16.msra.mxu0 %v6167
    %7012 = vmatpush.bf16.msra.mxu0 %v6159
    %7013 = vmatpush.bf16.msra.mxu0 %v6151
    %7014 = vmatpush.bf16.msra.mxu0 %v6143
    %7015 = vmatpush.bf16.msra.mxu0 %v6135
    %7016 = vmatmul.bf16.gmra.mxu0 %v3618
    %v7017 = vpop.f32.mrf.mxu0
    %v7018 = vadd.f32 %v7005, %v7017
    %v7019 = vpop.f32.mrf.mxu0
    %7020 = vdwg.mxu0
    %7021 = vmatpush.bf16.msra.mxu0 %v5744
    %7022 = vmatpush.bf16.msra.mxu0 %v5736
    %7023 = vmatpush.bf16.msra.mxu0 %v5728
    %7024 = vmatpush.bf16.msra.mxu0 %v5720
    %7025 = vmatpush.bf16.msra.mxu0 %v5712
    %7026 = vmatpush.bf16.msra.mxu0 %v5704
    %7027 = vmatpush.bf16.msra.mxu0 %v5696
    %7028 = vmatpush.bf16.msra.mxu0 %v5688
    %7029 = vmatmul.bf16.gmra.mxu0 %v3611
    %v7030 = vpop.f32.mrf.mxu0
    %v7031 = vadd.f32 %v4136, %v7030
    %v7032 = vpop.f32.mrf.mxu0
    %7033 = vdwg.mxu0
    %7034 = vmatpush.bf16.msra.mxu0 %v5808
    %7035 = vmatpush.bf16.msra.mxu0 %v5800
    %7036 = vmatpush.bf16.msra.mxu0 %v5792
    %7037 = vmatpush.bf16.msra.mxu0 %v5784
    %7038 = vmatpush.bf16.msra.mxu0 %v5776
    %7039 = vmatpush.bf16.msra.mxu0 %v5768
    %7040 = vmatpush.bf16.msra.mxu0 %v5760
    %7041 = vmatpush.bf16.msra.mxu0 %v5752
    %7042 = vmatmul.bf16.gmra.mxu0 %v3612
    %v7043 = vpop.f32.mrf.mxu0
    %v7044 = vadd.f32 %v7031, %v7043
    %v7045 = vpop.f32.mrf.mxu0
    %7046 = vdwg.mxu0
    %7047 = vmatpush.bf16.msra.mxu0 %v5872
    %7048 = vmatpush.bf16.msra.mxu0 %v5864
    %7049 = vmatpush.bf16.msra.mxu0 %v5856
    %7050 = vmatpush.bf16.msra.mxu0 %v5848
    %7051 = vmatpush.bf16.msra.mxu0 %v5840
    %7052 = vmatpush.bf16.msra.mxu0 %v5832
    %7053 = vmatpush.bf16.msra.mxu0 %v5824
    %7054 = vmatpush.bf16.msra.mxu0 %v5816
    %7055 = vmatmul.bf16.gmra.mxu0 %v3613
    %v7056 = vpop.f32.mrf.mxu0
    %v7057 = vadd.f32 %v7044, %v7056
    %v7058 = vpop.f32.mrf.mxu0
    %7059 = vdwg.mxu0
    %7060 = vmatpush.bf16.msra.mxu0 %v5936
    %7061 = vmatpush.bf16.msra.mxu0 %v5928
    %7062 = vmatpush.bf16.msra.mxu0 %v5920
    %7063 = vmatpush.bf16.msra.mxu0 %v5912
    %7064 = vmatpush.bf16.msra.mxu0 %v5904
    %7065 = vmatpush.bf16.msra.mxu0 %v5896
    %7066 = vmatpush.bf16.msra.mxu0 %v5888
    %7067 = vmatpush.bf16.msra.mxu0 %v5880
    %7068 = vmatmul.bf16.gmra.mxu0 %v3614
    %v7069 = vpop.f32.mrf.mxu0
    %v7070 = vadd.f32 %v7057, %v7069
    %v7071 = vpop.f32.mrf.mxu0
    %7072 = vdwg.mxu0
    %7073 = vmatpush.bf16.msra.mxu0 %v6000
    %7074 = vmatpush.bf16.msra.mxu0 %v5992
    %7075 = vmatpush.bf16.msra.mxu0 %v5984
    %7076 = vmatpush.bf16.msra.mxu0 %v5976
    %7077 = vmatpush.bf16.msra.mxu0 %v5968
    %7078 = vmatpush.bf16.msra.mxu0 %v5960
    %7079 = vmatpush.bf16.msra.mxu0 %v5952
    %7080 = vmatpush.bf16.msra.mxu0 %v5944
    %7081 = vmatmul.bf16.gmra.mxu0 %v3615
    %v7082 = vpop.f32.mrf.mxu0
    %v7083 = vadd.f32 %v7070, %v7082
    %v7084 = vpop.f32.mrf.mxu0
    %7085 = vdwg.mxu0
    %7086 = vmatpush.bf16.msra.mxu0 %v6064
    %7087 = vmatpush.bf16.msra.mxu0 %v6056
    %7088 = vmatpush.bf16.msra.mxu0 %v6048
    %7089 = vmatpush.bf16.msra.mxu0 %v6040
    %7090 = vmatpush.bf16.msra.mxu0 %v6032
    %7091 = vmatpush.bf16.msra.mxu0 %v6024
    %7092 = vmatpush.bf16.msra.mxu0 %v6016
    %7093 = vmatpush.bf16.msra.mxu0 %v6008
    %7094 = vmatmul.bf16.gmra.mxu0 %v3616
    %v7095 = vpop.f32.mrf.mxu0
    %v7096 = vadd.f32 %v7083, %v7095
    %v7097 = vpop.f32.mrf.mxu0
    %7098 = vdwg.mxu0
    %7099 = vmatpush.bf16.msra.mxu0 %v6128
    %7100 = vmatpush.bf16.msra.mxu0 %v6120
    %7101 = vmatpush.bf16.msra.mxu0 %v6112
    %7102 = vmatpush.bf16.msra.mxu0 %v6104
    %7103 = vmatpush.bf16.msra.mxu0 %v6096
    %7104 = vmatpush.bf16.msra.mxu0 %v6088
    %7105 = vmatpush.bf16.msra.mxu0 %v6080
    %7106 = vmatpush.bf16.msra.mxu0 %v6072
    %7107 = vmatmul.bf16.gmra.mxu0 %v3617
    %v7108 = vpop.f32.mrf.mxu0
    %v7109 = vadd.f32 %v7096, %v7108
    %v7110 = vpop.f32.mrf.mxu0
    %7111 = vdwg.mxu0
    %7112 = vmatpush.bf16.msra.mxu0 %v6192
    %7113 = vmatpush.bf16.msra.mxu0 %v6184
    %7114 = vmatpush.bf16.msra.mxu0 %v6176
    %7115 = vmatpush.bf16.msra.mxu0 %v6168
    %7116 = vmatpush.bf16.msra.mxu0 %v6160
    %7117 = vmatpush.bf16.msra.mxu0 %v6152
    %7118 = vmatpush.bf16.msra.mxu0 %v6144
    %7119 = vmatpush.bf16.msra.mxu0 %v6136
    %7120 = vmatmul.bf16.gmra.mxu0 %v3618
    %v7121 = vpop.f32.mrf.mxu0
    %v7122 = vadd.f32 %v7109, %v7121
    %v7123 = vpop.f32.mrf.mxu0
    %7124 = vdwg.mxu0
    %7125 = vmatpush.bf16.msra.mxu0 %v5745
    %7126 = vmatpush.bf16.msra.mxu0 %v5737
    %7127 = vmatpush.bf16.msra.mxu0 %v5729
    %7128 = vmatpush.bf16.msra.mxu0 %v5721
    %7129 = vmatpush.bf16.msra.mxu0 %v5713
    %7130 = vmatpush.bf16.msra.mxu0 %v5705
    %7131 = vmatpush.bf16.msra.mxu0 %v5697
    %7132 = vmatpush.bf16.msra.mxu0 %v5689
    %7133 = vmatmul.bf16.gmra.mxu0 %v3611
    %v7134 = vpop.f32.mrf.mxu0
    %v7135 = vadd.f32 %v4137, %v7134
    %v7136 = vpop.f32.mrf.mxu0
    %7137 = vdwg.mxu0
    %7138 = vmatpush.bf16.msra.mxu0 %v5809
    %7139 = vmatpush.bf16.msra.mxu0 %v5801
    %7140 = vmatpush.bf16.msra.mxu0 %v5793
    %7141 = vmatpush.bf16.msra.mxu0 %v5785
    %7142 = vmatpush.bf16.msra.mxu0 %v5777
    %7143 = vmatpush.bf16.msra.mxu0 %v5769
    %7144 = vmatpush.bf16.msra.mxu0 %v5761
    %7145 = vmatpush.bf16.msra.mxu0 %v5753
    %7146 = vmatmul.bf16.gmra.mxu0 %v3612
    %v7147 = vpop.f32.mrf.mxu0
    %v7148 = vadd.f32 %v7135, %v7147
    %v7149 = vpop.f32.mrf.mxu0
    %7150 = vdwg.mxu0
    %7151 = vmatpush.bf16.msra.mxu0 %v5873
    %7152 = vmatpush.bf16.msra.mxu0 %v5865
    %7153 = vmatpush.bf16.msra.mxu0 %v5857
    %7154 = vmatpush.bf16.msra.mxu0 %v5849
    %7155 = vmatpush.bf16.msra.mxu0 %v5841
    %7156 = vmatpush.bf16.msra.mxu0 %v5833
    %7157 = vmatpush.bf16.msra.mxu0 %v5825
    %7158 = vmatpush.bf16.msra.mxu0 %v5817
    %7159 = vmatmul.bf16.gmra.mxu0 %v3613
    %v7160 = vpop.f32.mrf.mxu0
    %v7161 = vadd.f32 %v7148, %v7160
    %v7162 = vpop.f32.mrf.mxu0
    %7163 = vdwg.mxu0
    %7164 = vmatpush.bf16.msra.mxu0 %v5937
    %7165 = vmatpush.bf16.msra.mxu0 %v5929
    %7166 = vmatpush.bf16.msra.mxu0 %v5921
    %7167 = vmatpush.bf16.msra.mxu0 %v5913
    %7168 = vmatpush.bf16.msra.mxu0 %v5905
    %7169 = vmatpush.bf16.msra.mxu0 %v5897
    %7170 = vmatpush.bf16.msra.mxu0 %v5889
    %7171 = vmatpush.bf16.msra.mxu0 %v5881
    %7172 = vmatmul.bf16.gmra.mxu0 %v3614
    %v7173 = vpop.f32.mrf.mxu0
    %v7174 = vadd.f32 %v7161, %v7173
    %v7175 = vpop.f32.mrf.mxu0
    %7176 = vdwg.mxu0
    %7177 = vmatpush.bf16.msra.mxu0 %v6001
    %7178 = vmatpush.bf16.msra.mxu0 %v5993
    %7179 = vmatpush.bf16.msra.mxu0 %v5985
    %7180 = vmatpush.bf16.msra.mxu0 %v5977
    %7181 = vmatpush.bf16.msra.mxu0 %v5969
    %7182 = vmatpush.bf16.msra.mxu0 %v5961
    %7183 = vmatpush.bf16.msra.mxu0 %v5953
    %7184 = vmatpush.bf16.msra.mxu0 %v5945
    %7185 = vmatmul.bf16.gmra.mxu0 %v3615
    %v7186 = vpop.f32.mrf.mxu0
    %v7187 = vadd.f32 %v7174, %v7186
    %v7188 = vpop.f32.mrf.mxu0
    %7189 = vdwg.mxu0
    %7190 = vmatpush.bf16.msra.mxu0 %v6065
    %7191 = vmatpush.bf16.msra.mxu0 %v6057
    %7192 = vmatpush.bf16.msra.mxu0 %v6049
    %7193 = vmatpush.bf16.msra.mxu0 %v6041
    %7194 = vmatpush.bf16.msra.mxu0 %v6033
    %7195 = vmatpush.bf16.msra.mxu0 %v6025
    %7196 = vmatpush.bf16.msra.mxu0 %v6017
    %7197 = vmatpush.bf16.msra.mxu0 %v6009
    %7198 = vmatmul.bf16.gmra.mxu0 %v3616
    %v7199 = vpop.f32.mrf.mxu0
    %v7200 = vadd.f32 %v7187, %v7199
    %v7201 = vpop.f32.mrf.mxu0
    %7202 = vdwg.mxu0
    %7203 = vmatpush.bf16.msra.mxu0 %v6129
    %7204 = vmatpush.bf16.msra.mxu0 %v6121
    %7205 = vmatpush.bf16.msra.mxu0 %v6113
    %7206 = vmatpush.bf16.msra.mxu0 %v6105
    %7207 = vmatpush.bf16.msra.mxu0 %v6097
    %7208 = vmatpush.bf16.msra.mxu0 %v6089
    %7209 = vmatpush.bf16.msra.mxu0 %v6081
    %7210 = vmatpush.bf16.msra.mxu0 %v6073
    %7211 = vmatmul.bf16.gmra.mxu0 %v3617
    %v7212 = vpop.f32.mrf.mxu0
    %v7213 = vadd.f32 %v7200, %v7212
    %v7214 = vpop.f32.mrf.mxu0
    %7215 = vdwg.mxu0
    %7216 = vmatpush.bf16.msra.mxu0 %v6193
    %7217 = vmatpush.bf16.msra.mxu0 %v6185
    %7218 = vmatpush.bf16.msra.mxu0 %v6177
    %7219 = vmatpush.bf16.msra.mxu0 %v6169
    %7220 = vmatpush.bf16.msra.mxu0 %v6161
    %7221 = vmatpush.bf16.msra.mxu0 %v6153
    %7222 = vmatpush.bf16.msra.mxu0 %v6145
    %7223 = vmatpush.bf16.msra.mxu0 %v6137
    %7224 = vmatmul.bf16.gmra.mxu0 %v3618
    %v7225 = vpop.f32.mrf.mxu0
    %v7226 = vadd.f32 %v7213, %v7225
    %v7227 = vpop.f32.mrf.mxu0
    %7228 = vdwg.mxu0
    %7229 = vmatpush.bf16.msra.mxu0 %v5746
    %7230 = vmatpush.bf16.msra.mxu0 %v5738
    %7231 = vmatpush.bf16.msra.mxu0 %v5730
    %7232 = vmatpush.bf16.msra.mxu0 %v5722
    %7233 = vmatpush.bf16.msra.mxu0 %v5714
    %7234 = vmatpush.bf16.msra.mxu0 %v5706
    %7235 = vmatpush.bf16.msra.mxu0 %v5698
    %7236 = vmatpush.bf16.msra.mxu0 %v5690
    %7237 = vmatmul.bf16.gmra.mxu0 %v3611
    %v7238 = vpop.f32.mrf.mxu0
    %v7239 = vadd.f32 %v4138, %v7238
    %v7240 = vpop.f32.mrf.mxu0
    %7241 = vdwg.mxu0
    %7242 = vmatpush.bf16.msra.mxu0 %v5810
    %7243 = vmatpush.bf16.msra.mxu0 %v5802
    %7244 = vmatpush.bf16.msra.mxu0 %v5794
    %7245 = vmatpush.bf16.msra.mxu0 %v5786
    %7246 = vmatpush.bf16.msra.mxu0 %v5778
    %7247 = vmatpush.bf16.msra.mxu0 %v5770
    %7248 = vmatpush.bf16.msra.mxu0 %v5762
    %7249 = vmatpush.bf16.msra.mxu0 %v5754
    %7250 = vmatmul.bf16.gmra.mxu0 %v3612
    %v7251 = vpop.f32.mrf.mxu0
    %v7252 = vadd.f32 %v7239, %v7251
    %v7253 = vpop.f32.mrf.mxu0
    %7254 = vdwg.mxu0
    %7255 = vmatpush.bf16.msra.mxu0 %v5874
    %7256 = vmatpush.bf16.msra.mxu0 %v5866
    %7257 = vmatpush.bf16.msra.mxu0 %v5858
    %7258 = vmatpush.bf16.msra.mxu0 %v5850
    %7259 = vmatpush.bf16.msra.mxu0 %v5842
    %7260 = vmatpush.bf16.msra.mxu0 %v5834
    %7261 = vmatpush.bf16.msra.mxu0 %v5826
    %7262 = vmatpush.bf16.msra.mxu0 %v5818
    %7263 = vmatmul.bf16.gmra.mxu0 %v3613
    %v7264 = vpop.f32.mrf.mxu0
    %v7265 = vadd.f32 %v7252, %v7264
    %v7266 = vpop.f32.mrf.mxu0
    %7267 = vdwg.mxu0
    %7268 = vmatpush.bf16.msra.mxu0 %v5938
    %7269 = vmatpush.bf16.msra.mxu0 %v5930
    %7270 = vmatpush.bf16.msra.mxu0 %v5922
    %7271 = vmatpush.bf16.msra.mxu0 %v5914
    %7272 = vmatpush.bf16.msra.mxu0 %v5906
    %7273 = vmatpush.bf16.msra.mxu0 %v5898
    %7274 = vmatpush.bf16.msra.mxu0 %v5890
    %7275 = vmatpush.bf16.msra.mxu0 %v5882
    %7276 = vmatmul.bf16.gmra.mxu0 %v3614
    %v7277 = vpop.f32.mrf.mxu0
    %v7278 = vadd.f32 %v7265, %v7277
    %v7279 = vpop.f32.mrf.mxu0
    %7280 = vdwg.mxu0
    %7281 = vmatpush.bf16.msra.mxu0 %v6002
    %7282 = vmatpush.bf16.msra.mxu0 %v5994
    %7283 = vmatpush.bf16.msra.mxu0 %v5986
    %7284 = vmatpush.bf16.msra.mxu0 %v5978
    %7285 = vmatpush.bf16.msra.mxu0 %v5970
    %7286 = vmatpush.bf16.msra.mxu0 %v5962
    %7287 = vmatpush.bf16.msra.mxu0 %v5954
    %7288 = vmatpush.bf16.msra.mxu0 %v5946
    %7289 = vmatmul.bf16.gmra.mxu0 %v3615
    %v7290 = vpop.f32.mrf.mxu0
    %v7291 = vadd.f32 %v7278, %v7290
    %v7292 = vpop.f32.mrf.mxu0
    %7293 = vdwg.mxu0
    %7294 = vmatpush.bf16.msra.mxu0 %v6066
    %7295 = vmatpush.bf16.msra.mxu0 %v6058
    %7296 = vmatpush.bf16.msra.mxu0 %v6050
    %7297 = vmatpush.bf16.msra.mxu0 %v6042
    %7298 = vmatpush.bf16.msra.mxu0 %v6034
    %7299 = vmatpush.bf16.msra.mxu0 %v6026
    %7300 = vmatpush.bf16.msra.mxu0 %v6018
    %7301 = vmatpush.bf16.msra.mxu0 %v6010
    %7302 = vmatmul.bf16.gmra.mxu0 %v3616
    %v7303 = vpop.f32.mrf.mxu0
    %v7304 = vadd.f32 %v7291, %v7303
    %v7305 = vpop.f32.mrf.mxu0
    %7306 = vdwg.mxu0
    %7307 = vmatpush.bf16.msra.mxu0 %v6130
    %7308 = vmatpush.bf16.msra.mxu0 %v6122
    %7309 = vmatpush.bf16.msra.mxu0 %v6114
    %7310 = vmatpush.bf16.msra.mxu0 %v6106
    %7311 = vmatpush.bf16.msra.mxu0 %v6098
    %7312 = vmatpush.bf16.msra.mxu0 %v6090
    %7313 = vmatpush.bf16.msra.mxu0 %v6082
    %7314 = vmatpush.bf16.msra.mxu0 %v6074
    %7315 = vmatmul.bf16.gmra.mxu0 %v3617
    %v7316 = vpop.f32.mrf.mxu0
    %v7317 = vadd.f32 %v7304, %v7316
    %v7318 = vpop.f32.mrf.mxu0
    %7319 = vdwg.mxu0
    %7320 = vmatpush.bf16.msra.mxu0 %v6194
    %7321 = vmatpush.bf16.msra.mxu0 %v6186
    %7322 = vmatpush.bf16.msra.mxu0 %v6178
    %7323 = vmatpush.bf16.msra.mxu0 %v6170
    %7324 = vmatpush.bf16.msra.mxu0 %v6162
    %7325 = vmatpush.bf16.msra.mxu0 %v6154
    %7326 = vmatpush.bf16.msra.mxu0 %v6146
    %7327 = vmatpush.bf16.msra.mxu0 %v6138
    %7328 = vmatmul.bf16.gmra.mxu0 %v3618
    %v7329 = vpop.f32.mrf.mxu0
    %v7330 = vadd.f32 %v7317, %v7329
    %v7331 = vpop.f32.mrf.mxu0
    %7332 = vdwg.mxu0
    %7333 = vmatpush.bf16.msra.mxu0 %v5747
    %7334 = vmatpush.bf16.msra.mxu0 %v5739
    %7335 = vmatpush.bf16.msra.mxu0 %v5731
    %7336 = vmatpush.bf16.msra.mxu0 %v5723
    %7337 = vmatpush.bf16.msra.mxu0 %v5715
    %7338 = vmatpush.bf16.msra.mxu0 %v5707
    %7339 = vmatpush.bf16.msra.mxu0 %v5699
    %7340 = vmatpush.bf16.msra.mxu0 %v5691
    %7341 = vmatmul.bf16.gmra.mxu0 %v3611
    %v7342 = vpop.f32.mrf.mxu0
    %v7343 = vadd.f32 %v4139, %v7342
    %v7344 = vpop.f32.mrf.mxu0
    %7345 = vdwg.mxu0
    %7346 = vmatpush.bf16.msra.mxu0 %v5811
    %7347 = vmatpush.bf16.msra.mxu0 %v5803
    %7348 = vmatpush.bf16.msra.mxu0 %v5795
    %7349 = vmatpush.bf16.msra.mxu0 %v5787
    %7350 = vmatpush.bf16.msra.mxu0 %v5779
    %7351 = vmatpush.bf16.msra.mxu0 %v5771
    %7352 = vmatpush.bf16.msra.mxu0 %v5763
    %7353 = vmatpush.bf16.msra.mxu0 %v5755
    %7354 = vmatmul.bf16.gmra.mxu0 %v3612
    %v7355 = vpop.f32.mrf.mxu0
    %v7356 = vadd.f32 %v7343, %v7355
    %v7357 = vpop.f32.mrf.mxu0
    %7358 = vdwg.mxu0
    %7359 = vmatpush.bf16.msra.mxu0 %v5875
    %7360 = vmatpush.bf16.msra.mxu0 %v5867
    %7361 = vmatpush.bf16.msra.mxu0 %v5859
    %7362 = vmatpush.bf16.msra.mxu0 %v5851
    %7363 = vmatpush.bf16.msra.mxu0 %v5843
    %7364 = vmatpush.bf16.msra.mxu0 %v5835
    %7365 = vmatpush.bf16.msra.mxu0 %v5827
    %7366 = vmatpush.bf16.msra.mxu0 %v5819
    %7367 = vmatmul.bf16.gmra.mxu0 %v3613
    %v7368 = vpop.f32.mrf.mxu0
    %v7369 = vadd.f32 %v7356, %v7368
    %v7370 = vpop.f32.mrf.mxu0
    %7371 = vdwg.mxu0
    %7372 = vmatpush.bf16.msra.mxu0 %v5939
    %7373 = vmatpush.bf16.msra.mxu0 %v5931
    %7374 = vmatpush.bf16.msra.mxu0 %v5923
    %7375 = vmatpush.bf16.msra.mxu0 %v5915
    %7376 = vmatpush.bf16.msra.mxu0 %v5907
    %7377 = vmatpush.bf16.msra.mxu0 %v5899
    %7378 = vmatpush.bf16.msra.mxu0 %v5891
    %7379 = vmatpush.bf16.msra.mxu0 %v5883
    %7380 = vmatmul.bf16.gmra.mxu0 %v3614
    %v7381 = vpop.f32.mrf.mxu0
    %v7382 = vadd.f32 %v7369, %v7381
    %v7383 = vpop.f32.mrf.mxu0
    %7384 = vdwg.mxu0
    %7385 = vmatpush.bf16.msra.mxu0 %v6003
    %7386 = vmatpush.bf16.msra.mxu0 %v5995
    %7387 = vmatpush.bf16.msra.mxu0 %v5987
    %7388 = vmatpush.bf16.msra.mxu0 %v5979
    %7389 = vmatpush.bf16.msra.mxu0 %v5971
    %7390 = vmatpush.bf16.msra.mxu0 %v5963
    %7391 = vmatpush.bf16.msra.mxu0 %v5955
    %7392 = vmatpush.bf16.msra.mxu0 %v5947
    %7393 = vmatmul.bf16.gmra.mxu0 %v3615
    %v7394 = vpop.f32.mrf.mxu0
    %v7395 = vadd.f32 %v7382, %v7394
    %v7396 = vpop.f32.mrf.mxu0
    %7397 = vdwg.mxu0
    %7398 = vmatpush.bf16.msra.mxu0 %v6067
    %7399 = vmatpush.bf16.msra.mxu0 %v6059
    %7400 = vmatpush.bf16.msra.mxu0 %v6051
    %7401 = vmatpush.bf16.msra.mxu0 %v6043
    %7402 = vmatpush.bf16.msra.mxu0 %v6035
    %7403 = vmatpush.bf16.msra.mxu0 %v6027
    %7404 = vmatpush.bf16.msra.mxu0 %v6019
    %7405 = vmatpush.bf16.msra.mxu0 %v6011
    %7406 = vmatmul.bf16.gmra.mxu0 %v3616
    %v7407 = vpop.f32.mrf.mxu0
    %v7408 = vadd.f32 %v7395, %v7407
    %v7409 = vpop.f32.mrf.mxu0
    %7410 = vdwg.mxu0
    %7411 = vmatpush.bf16.msra.mxu0 %v6131
    %7412 = vmatpush.bf16.msra.mxu0 %v6123
    %7413 = vmatpush.bf16.msra.mxu0 %v6115
    %7414 = vmatpush.bf16.msra.mxu0 %v6107
    %7415 = vmatpush.bf16.msra.mxu0 %v6099
    %7416 = vmatpush.bf16.msra.mxu0 %v6091
    %7417 = vmatpush.bf16.msra.mxu0 %v6083
    %7418 = vmatpush.bf16.msra.mxu0 %v6075
    %7419 = vmatmul.bf16.gmra.mxu0 %v3617
    %v7420 = vpop.f32.mrf.mxu0
    %v7421 = vadd.f32 %v7408, %v7420
    %v7422 = vpop.f32.mrf.mxu0
    %7423 = vdwg.mxu0
    %7424 = vmatpush.bf16.msra.mxu0 %v6195
    %7425 = vmatpush.bf16.msra.mxu0 %v6187
    %7426 = vmatpush.bf16.msra.mxu0 %v6179
    %7427 = vmatpush.bf16.msra.mxu0 %v6171
    %7428 = vmatpush.bf16.msra.mxu0 %v6163
    %7429 = vmatpush.bf16.msra.mxu0 %v6155
    %7430 = vmatpush.bf16.msra.mxu0 %v6147
    %7431 = vmatpush.bf16.msra.mxu0 %v6139
    %7432 = vmatmul.bf16.gmra.mxu0 %v3618
    %v7433 = vpop.f32.mrf.mxu0
    %v7434 = vadd.f32 %v7421, %v7433
    %v7435 = vpop.f32.mrf.mxu0
    %7436 = vdwg.mxu0
    %7437 = vmatpush.bf16.msra.mxu0 %v5748
    %7438 = vmatpush.bf16.msra.mxu0 %v5740
    %7439 = vmatpush.bf16.msra.mxu0 %v5732
    %7440 = vmatpush.bf16.msra.mxu0 %v5724
    %7441 = vmatpush.bf16.msra.mxu0 %v5716
    %7442 = vmatpush.bf16.msra.mxu0 %v5708
    %7443 = vmatpush.bf16.msra.mxu0 %v5700
    %7444 = vmatpush.bf16.msra.mxu0 %v5692
    %7445 = vmatmul.bf16.gmra.mxu0 %v3611
    %v7446 = vpop.f32.mrf.mxu0
    %v7447 = vadd.f32 %v4140, %v7446
    %v7448 = vpop.f32.mrf.mxu0
    %7449 = vdwg.mxu0
    %7450 = vmatpush.bf16.msra.mxu0 %v5812
    %7451 = vmatpush.bf16.msra.mxu0 %v5804
    %7452 = vmatpush.bf16.msra.mxu0 %v5796
    %7453 = vmatpush.bf16.msra.mxu0 %v5788
    %7454 = vmatpush.bf16.msra.mxu0 %v5780
    %7455 = vmatpush.bf16.msra.mxu0 %v5772
    %7456 = vmatpush.bf16.msra.mxu0 %v5764
    %7457 = vmatpush.bf16.msra.mxu0 %v5756
    %7458 = vmatmul.bf16.gmra.mxu0 %v3612
    %v7459 = vpop.f32.mrf.mxu0
    %v7460 = vadd.f32 %v7447, %v7459
    %v7461 = vpop.f32.mrf.mxu0
    %7462 = vdwg.mxu0
    %7463 = vmatpush.bf16.msra.mxu0 %v5876
    %7464 = vmatpush.bf16.msra.mxu0 %v5868
    %7465 = vmatpush.bf16.msra.mxu0 %v5860
    %7466 = vmatpush.bf16.msra.mxu0 %v5852
    %7467 = vmatpush.bf16.msra.mxu0 %v5844
    %7468 = vmatpush.bf16.msra.mxu0 %v5836
    %7469 = vmatpush.bf16.msra.mxu0 %v5828
    %7470 = vmatpush.bf16.msra.mxu0 %v5820
    %7471 = vmatmul.bf16.gmra.mxu0 %v3613
    %v7472 = vpop.f32.mrf.mxu0
    %v7473 = vadd.f32 %v7460, %v7472
    %v7474 = vpop.f32.mrf.mxu0
    %7475 = vdwg.mxu0
    %7476 = vmatpush.bf16.msra.mxu0 %v5940
    %7477 = vmatpush.bf16.msra.mxu0 %v5932
    %7478 = vmatpush.bf16.msra.mxu0 %v5924
    %7479 = vmatpush.bf16.msra.mxu0 %v5916
    %7480 = vmatpush.bf16.msra.mxu0 %v5908
    %7481 = vmatpush.bf16.msra.mxu0 %v5900
    %7482 = vmatpush.bf16.msra.mxu0 %v5892
    %7483 = vmatpush.bf16.msra.mxu0 %v5884
    %7484 = vmatmul.bf16.gmra.mxu0 %v3614
    %v7485 = vpop.f32.mrf.mxu0
    %v7486 = vadd.f32 %v7473, %v7485
    %v7487 = vpop.f32.mrf.mxu0
    %7488 = vdwg.mxu0
    %7489 = vmatpush.bf16.msra.mxu0 %v6004
    %7490 = vmatpush.bf16.msra.mxu0 %v5996
    %7491 = vmatpush.bf16.msra.mxu0 %v5988
    %7492 = vmatpush.bf16.msra.mxu0 %v5980
    %7493 = vmatpush.bf16.msra.mxu0 %v5972
    %7494 = vmatpush.bf16.msra.mxu0 %v5964
    %7495 = vmatpush.bf16.msra.mxu0 %v5956
    %7496 = vmatpush.bf16.msra.mxu0 %v5948
    %7497 = vmatmul.bf16.gmra.mxu0 %v3615
    %v7498 = vpop.f32.mrf.mxu0
    %v7499 = vadd.f32 %v7486, %v7498
    %v7500 = vpop.f32.mrf.mxu0
    %7501 = vdwg.mxu0
    %7502 = vmatpush.bf16.msra.mxu0 %v6068
    %7503 = vmatpush.bf16.msra.mxu0 %v6060
    %7504 = vmatpush.bf16.msra.mxu0 %v6052
    %7505 = vmatpush.bf16.msra.mxu0 %v6044
    %7506 = vmatpush.bf16.msra.mxu0 %v6036
    %7507 = vmatpush.bf16.msra.mxu0 %v6028
    %7508 = vmatpush.bf16.msra.mxu0 %v6020
    %7509 = vmatpush.bf16.msra.mxu0 %v6012
    %7510 = vmatmul.bf16.gmra.mxu0 %v3616
    %v7511 = vpop.f32.mrf.mxu0
    %v7512 = vadd.f32 %v7499, %v7511
    %v7513 = vpop.f32.mrf.mxu0
    %7514 = vdwg.mxu0
    %7515 = vmatpush.bf16.msra.mxu0 %v6132
    %7516 = vmatpush.bf16.msra.mxu0 %v6124
    %7517 = vmatpush.bf16.msra.mxu0 %v6116
    %7518 = vmatpush.bf16.msra.mxu0 %v6108
    %7519 = vmatpush.bf16.msra.mxu0 %v6100
    %7520 = vmatpush.bf16.msra.mxu0 %v6092
    %7521 = vmatpush.bf16.msra.mxu0 %v6084
    %7522 = vmatpush.bf16.msra.mxu0 %v6076
    %7523 = vmatmul.bf16.gmra.mxu0 %v3617
    %v7524 = vpop.f32.mrf.mxu0
    %v7525 = vadd.f32 %v7512, %v7524
    %v7526 = vpop.f32.mrf.mxu0
    %7527 = vdwg.mxu0
    %7528 = vmatpush.bf16.msra.mxu0 %v6196
    %7529 = vmatpush.bf16.msra.mxu0 %v6188
    %7530 = vmatpush.bf16.msra.mxu0 %v6180
    %7531 = vmatpush.bf16.msra.mxu0 %v6172
    %7532 = vmatpush.bf16.msra.mxu0 %v6164
    %7533 = vmatpush.bf16.msra.mxu0 %v6156
    %7534 = vmatpush.bf16.msra.mxu0 %v6148
    %7535 = vmatpush.bf16.msra.mxu0 %v6140
    %7536 = vmatmul.bf16.gmra.mxu0 %v3618
    %v7537 = vpop.f32.mrf.mxu0
    %v7538 = vadd.f32 %v7525, %v7537
    %v7539 = vpop.f32.mrf.mxu0
    %7540 = vdwg.mxu0
    %v7541 = vmax.f32 %v6810, 0.0
    %v7542 = vmax.f32 %v6914, 0.0
    %v7543 = vmax.f32 %v7018, 0.0
    %v7544 = vmax.f32 %v7122, 0.0
    %v7545 = vmax.f32 %v7226, 0.0
    %v7546 = vmax.f32 %v7330, 0.0
    %v7547 = vmax.f32 %v7434, 0.0
    %v7548 = vmax.f32 %v7538, 0.0
    %v7549 = vpack.c.bf16 %v7541, %v7541
    %v7550 = vpack.c.bf16 %v7542, %v7542
    %v7551 = vpack.c.bf16 %v7543, %v7543
    %v7552 = vpack.c.bf16 %v7544, %v7544
    %v7553 = vpack.c.bf16 %v7545, %v7545
    %v7554 = vpack.c.bf16 %v7546, %v7546
    %v7555 = vpack.c.bf16 %v7547, %v7547
    %v7556 = vpack.c.bf16 %v7548, %v7548
    %v7557 = vld [vmem:[#allocation11] sm:$0xff]
    %v7558 = vld [vmem:[#allocation11 + $0x8] sm:$0xff]
    %v7559 = vld [vmem:[#allocation11 + $0x10] sm:$0xff]
    %v7560 = vld [vmem:[#allocation11 + $0x18] sm:$0xff]
    %v7561 = vld [vmem:[#allocation11 + $0x20] sm:$0xff]
    %v7562 = vld [vmem:[#allocation11 + $0x28] sm:$0xff]
    %v7563 = vld [vmem:[#allocation11 + $0x30] sm:$0xff]
    %v7564 = vld [vmem:[#allocation11 + $0x38] sm:$0xff]
    %v7565 = vld [vmem:[#allocation11 + $0x40] sm:$0xff]
    %v7566 = vld [vmem:[#allocation11 + $0x48] sm:$0xff]
    %v7567 = vld [vmem:[#allocation11 + $0x50] sm:$0xff]
    %v7568 = vld [vmem:[#allocation11 + $0x58] sm:$0xff]
    %v7569 = vld [vmem:[#allocation11 + $0x60] sm:$0xff]
    %v7570 = vld [vmem:[#allocation11 + $0x68] sm:$0xff]
    %v7571 = vld [vmem:[#allocation11 + $0x70] sm:$0xff]
    %v7572 = vld [vmem:[#allocation11 + $0x78] sm:$0xff]
    %v7573 = vld [vmem:[#allocation11 + $0x80] sm:$0xff]
    %v7574 = vld [vmem:[#allocation11 + $0x88] sm:$0xff]
    %v7575 = vld [vmem:[#allocation11 + $0x90] sm:$0xff]
    %v7576 = vld [vmem:[#allocation11 + $0x98] sm:$0xff]
    %v7577 = vld [vmem:[#allocation11 + $0xa0] sm:$0xff]
    %v7578 = vld [vmem:[#allocation11 + $0xa8] sm:$0xff]
    %v7579 = vld [vmem:[#allocation11 + $0xb0] sm:$0xff]
    %v7580 = vld [vmem:[#allocation11 + $0xb8] sm:$0xff]
    %v7581 = vld [vmem:[#allocation11 + $0xc0] sm:$0xff]
    %v7582 = vld [vmem:[#allocation11 + $0xc8] sm:$0xff]
    %v7583 = vld [vmem:[#allocation11 + $0xd0] sm:$0xff]
    %v7584 = vld [vmem:[#allocation11 + $0xd8] sm:$0xff]
    %v7585 = vld [vmem:[#allocation11 + $0xe0] sm:$0xff]
    %v7586 = vld [vmem:[#allocation11 + $0xe8] sm:$0xff]
    %v7587 = vld [vmem:[#allocation11 + $0xf0] sm:$0xff]
    %v7588 = vld [vmem:[#allocation11 + $0xf8] sm:$0xff]
    %v7589 = vld [vmem:[#allocation11 + $0x100] sm:$0xff]
    %v7590 = vld [vmem:[#allocation11 + $0x108] sm:$0xff]
    %v7591 = vld [vmem:[#allocation11 + $0x110] sm:$0xff]
    %v7592 = vld [vmem:[#allocation11 + $0x118] sm:$0xff]
    %v7593 = vld [vmem:[#allocation11 + $0x120] sm:$0xff]
    %v7594 = vld [vmem:[#allocation11 + $0x128] sm:$0xff]
    %v7595 = vld [vmem:[#allocation11 + $0x130] sm:$0xff]
    %v7596 = vld [vmem:[#allocation11 + $0x138] sm:$0xff]
    %v7597 = vld [vmem:[#allocation11 + $0x140] sm:$0xff]
    %v7598 = vld [vmem:[#allocation11 + $0x148] sm:$0xff]
    %v7599 = vld [vmem:[#allocation11 + $0x150] sm:$0xff]
    %v7600 = vld [vmem:[#allocation11 + $0x158] sm:$0xff]
    %v7601 = vld [vmem:[#allocation11 + $0x160] sm:$0xff]
    %v7602 = vld [vmem:[#allocation11 + $0x168] sm:$0xff]
    %v7603 = vld [vmem:[#allocation11 + $0x170] sm:$0xff]
    %v7604 = vld [vmem:[#allocation11 + $0x178] sm:$0xff]
    %v7605 = vld [vmem:[#allocation11 + $0x180] sm:$0xff]
    %v7606 = vld [vmem:[#allocation11 + $0x188] sm:$0xff]
    %v7607 = vld [vmem:[#allocation11 + $0x190] sm:$0xff]
    %v7608 = vld [vmem:[#allocation11 + $0x198] sm:$0xff]
    %v7609 = vld [vmem:[#allocation11 + $0x1a0] sm:$0xff]
    %v7610 = vld [vmem:[#allocation11 + $0x1a8] sm:$0xff]
    %v7611 = vld [vmem:[#allocation11 + $0x1b0] sm:$0xff]
    %v7612 = vld [vmem:[#allocation11 + $0x1b8] sm:$0xff]
    %v7613 = vld [vmem:[#allocation11 + $0x1c0] sm:$0xff]
    %v7614 = vld [vmem:[#allocation11 + $0x1c8] sm:$0xff]
    %v7615 = vld [vmem:[#allocation11 + $0x1d0] sm:$0xff]
    %v7616 = vld [vmem:[#allocation11 + $0x1d8] sm:$0xff]
    %v7617 = vld [vmem:[#allocation11 + $0x1e0] sm:$0xff]
    %v7618 = vld [vmem:[#allocation11 + $0x1e8] sm:$0xff]
    %v7619 = vld [vmem:[#allocation11 + $0x1f0] sm:$0xff]
    %v7620 = vld [vmem:[#allocation11 + $0x1f8] sm:$0xff]
    %v7621 = vld [vmem:[#allocation11 + $0x200] sm:$0xff]
    %v7622 = vld [vmem:[#allocation11 + $0x208] sm:$0xff]
    %v7623 = vld [vmem:[#allocation11 + $0x210] sm:$0xff]
    %v7624 = vld [vmem:[#allocation11 + $0x218] sm:$0xff]
    %v7625 = vld [vmem:[#allocation11 + $0x220] sm:$0xff]
    %v7626 = vld [vmem:[#allocation11 + $0x228] sm:$0xff]
    %v7627 = vld [vmem:[#allocation11 + $0x230] sm:$0xff]
    %v7628 = vld [vmem:[#allocation11 + $0x238] sm:$0xff]
    %v7629 = vld [vmem:[#allocation11 + $0x240] sm:$0xff]
    %v7630 = vld [vmem:[#allocation11 + $0x248] sm:$0xff]
    %v7631 = vld [vmem:[#allocation11 + $0x250] sm:$0xff]
    %v7632 = vld [vmem:[#allocation11 + $0x258] sm:$0xff]
    %v7633 = vld [vmem:[#allocation11 + $0x260] sm:$0xff]
    %v7634 = vld [vmem:[#allocation11 + $0x268] sm:$0xff]
    %v7635 = vld [vmem:[#allocation11 + $0x270] sm:$0xff]
    %v7636 = vld [vmem:[#allocation11 + $0x278] sm:$0xff]
    %v7637 = vld [vmem:[#allocation11 + $0x280] sm:$0xff]
    %v7638 = vld [vmem:[#allocation11 + $0x288] sm:$0xff]
    %v7639 = vld [vmem:[#allocation11 + $0x290] sm:$0xff]
    %v7640 = vld [vmem:[#allocation11 + $0x298] sm:$0xff]
    %v7641 = vld [vmem:[#allocation11 + $0x2a0] sm:$0xff]
    %v7642 = vld [vmem:[#allocation11 + $0x2a8] sm:$0xff]
    %v7643 = vld [vmem:[#allocation11 + $0x2b0] sm:$0xff]
    %v7644 = vld [vmem:[#allocation11 + $0x2b8] sm:$0xff]
    %v7645 = vld [vmem:[#allocation11 + $0x2c0] sm:$0xff]
    %v7646 = vld [vmem:[#allocation11 + $0x2c8] sm:$0xff]
    %v7647 = vld [vmem:[#allocation11 + $0x2d0] sm:$0xff]
    %v7648 = vld [vmem:[#allocation11 + $0x2d8] sm:$0xff]
    %v7649 = vld [vmem:[#allocation11 + $0x2e0] sm:$0xff]
    %v7650 = vld [vmem:[#allocation11 + $0x2e8] sm:$0xff]
    %v7651 = vld [vmem:[#allocation11 + $0x2f0] sm:$0xff]
    %v7652 = vld [vmem:[#allocation11 + $0x2f8] sm:$0xff]
    %v7653 = vld [vmem:[#allocation11 + $0x300] sm:$0xff]
    %v7654 = vld [vmem:[#allocation11 + $0x308] sm:$0xff]
    %v7655 = vld [vmem:[#allocation11 + $0x310] sm:$0xff]
    %v7656 = vld [vmem:[#allocation11 + $0x318] sm:$0xff]
    %v7657 = vld [vmem:[#allocation11 + $0x320] sm:$0xff]
    %v7658 = vld [vmem:[#allocation11 + $0x328] sm:$0xff]
    %v7659 = vld [vmem:[#allocation11 + $0x330] sm:$0xff]
    %v7660 = vld [vmem:[#allocation11 + $0x338] sm:$0xff]
    %v7661 = vld [vmem:[#allocation11 + $0x340] sm:$0xff]
    %v7662 = vld [vmem:[#allocation11 + $0x348] sm:$0xff]
    %v7663 = vld [vmem:[#allocation11 + $0x350] sm:$0xff]
    %v7664 = vld [vmem:[#allocation11 + $0x358] sm:$0xff]
    %v7665 = vld [vmem:[#allocation11 + $0x360] sm:$0xff]
    %v7666 = vld [vmem:[#allocation11 + $0x368] sm:$0xff]
    %v7667 = vld [vmem:[#allocation11 + $0x370] sm:$0xff]
    %v7668 = vld [vmem:[#allocation11 + $0x378] sm:$0xff]
    %v7669 = vld [vmem:[#allocation11 + $0x380] sm:$0xff]
    %v7670 = vld [vmem:[#allocation11 + $0x388] sm:$0xff]
    %v7671 = vld [vmem:[#allocation11 + $0x390] sm:$0xff]
    %v7672 = vld [vmem:[#allocation11 + $0x398] sm:$0xff]
    %v7673 = vld [vmem:[#allocation11 + $0x3a0] sm:$0xff]
    %v7674 = vld [vmem:[#allocation11 + $0x3a8] sm:$0xff]
    %v7675 = vld [vmem:[#allocation11 + $0x3b0] sm:$0xff]
    %v7676 = vld [vmem:[#allocation11 + $0x3b8] sm:$0xff]
    %v7677 = vld [vmem:[#allocation11 + $0x3c0] sm:$0xff]
    %v7678 = vld [vmem:[#allocation11 + $0x3c8] sm:$0xff]
    %v7679 = vld [vmem:[#allocation11 + $0x3d0] sm:$0xff]
    %v7680 = vld [vmem:[#allocation11 + $0x3d8] sm:$0xff]
    %v7681 = vld [vmem:[#allocation11 + $0x3e0] sm:$0xff]
    %v7682 = vld [vmem:[#allocation11 + $0x3e8] sm:$0xff]
    %v7683 = vld [vmem:[#allocation11 + $0x3f0] sm:$0xff]
    %v7684 = vld [vmem:[#allocation11 + $0x3f8] sm:$0xff]
    %v7685 = vld [vmem:[#allocation11 + $0x400] sm:$0xff]
    %v7686 = vld [vmem:[#allocation11 + $0x408] sm:$0xff]
    %v7687 = vld [vmem:[#allocation11 + $0x410] sm:$0xff]
    %v7688 = vld [vmem:[#allocation11 + $0x418] sm:$0xff]
    %v7689 = vld [vmem:[#allocation11 + $0x420] sm:$0xff]
    %v7690 = vld [vmem:[#allocation11 + $0x428] sm:$0xff]
    %v7691 = vld [vmem:[#allocation11 + $0x430] sm:$0xff]
    %v7692 = vld [vmem:[#allocation11 + $0x438] sm:$0xff]
    %v7693 = vld [vmem:[#allocation11 + $0x440] sm:$0xff]
    %v7694 = vld [vmem:[#allocation11 + $0x448] sm:$0xff]
    %v7695 = vld [vmem:[#allocation11 + $0x450] sm:$0xff]
    %v7696 = vld [vmem:[#allocation11 + $0x458] sm:$0xff]
    %v7697 = vld [vmem:[#allocation11 + $0x460] sm:$0xff]
    %v7698 = vld [vmem:[#allocation11 + $0x468] sm:$0xff]
    %v7699 = vld [vmem:[#allocation11 + $0x470] sm:$0xff]
    %v7700 = vld [vmem:[#allocation11 + $0x478] sm:$0xff]
    %v7701 = vld [vmem:[#allocation11 + $0x480] sm:$0xff]
    %v7702 = vld [vmem:[#allocation11 + $0x488] sm:$0xff]
    %v7703 = vld [vmem:[#allocation11 + $0x490] sm:$0xff]
    %v7704 = vld [vmem:[#allocation11 + $0x498] sm:$0xff]
    %v7705 = vld [vmem:[#allocation11 + $0x4a0] sm:$0xff]
    %v7706 = vld [vmem:[#allocation11 + $0x4a8] sm:$0xff]
    %v7707 = vld [vmem:[#allocation11 + $0x4b0] sm:$0xff]
    %v7708 = vld [vmem:[#allocation11 + $0x4b8] sm:$0xff]
    %v7709 = vld [vmem:[#allocation11 + $0x4c0] sm:$0xff]
    %v7710 = vld [vmem:[#allocation11 + $0x4c8] sm:$0xff]
    %v7711 = vld [vmem:[#allocation11 + $0x4d0] sm:$0xff]
    %v7712 = vld [vmem:[#allocation11 + $0x4d8] sm:$0xff]
    %v7713 = vld [vmem:[#allocation11 + $0x4e0] sm:$0xff]
    %v7714 = vld [vmem:[#allocation11 + $0x4e8] sm:$0xff]
    %v7715 = vld [vmem:[#allocation11 + $0x4f0] sm:$0xff]
    %v7716 = vld [vmem:[#allocation11 + $0x4f8] sm:$0xff]
    %v7717 = vld [vmem:[#allocation11 + $0x500] sm:$0xff]
    %v7718 = vld [vmem:[#allocation11 + $0x508] sm:$0xff]
    %v7719 = vld [vmem:[#allocation11 + $0x510] sm:$0xff]
    %v7720 = vld [vmem:[#allocation11 + $0x518] sm:$0xff]
    %v7721 = vld [vmem:[#allocation11 + $0x520] sm:$0xff]
    %v7722 = vld [vmem:[#allocation11 + $0x528] sm:$0xff]
    %v7723 = vld [vmem:[#allocation11 + $0x530] sm:$0xff]
    %v7724 = vld [vmem:[#allocation11 + $0x538] sm:$0xff]
    %v7725 = vld [vmem:[#allocation11 + $0x540] sm:$0xff]
    %v7726 = vld [vmem:[#allocation11 + $0x548] sm:$0xff]
    %v7727 = vld [vmem:[#allocation11 + $0x550] sm:$0xff]
    %v7728 = vld [vmem:[#allocation11 + $0x558] sm:$0xff]
    %v7729 = vld [vmem:[#allocation11 + $0x560] sm:$0xff]
    %v7730 = vld [vmem:[#allocation11 + $0x568] sm:$0xff]
    %v7731 = vld [vmem:[#allocation11 + $0x570] sm:$0xff]
    %v7732 = vld [vmem:[#allocation11 + $0x578] sm:$0xff]
    %v7733 = vld [vmem:[#allocation11 + $0x580] sm:$0xff]
    %v7734 = vld [vmem:[#allocation11 + $0x588] sm:$0xff]
    %v7735 = vld [vmem:[#allocation11 + $0x590] sm:$0xff]
    %v7736 = vld [vmem:[#allocation11 + $0x598] sm:$0xff]
    %v7737 = vld [vmem:[#allocation11 + $0x5a0] sm:$0xff]
    %v7738 = vld [vmem:[#allocation11 + $0x5a8] sm:$0xff]
    %v7739 = vld [vmem:[#allocation11 + $0x5b0] sm:$0xff]
    %v7740 = vld [vmem:[#allocation11 + $0x5b8] sm:$0xff]
    %v7741 = vld [vmem:[#allocation11 + $0x5c0] sm:$0xff]
    %v7742 = vld [vmem:[#allocation11 + $0x5c8] sm:$0xff]
    %v7743 = vld [vmem:[#allocation11 + $0x5d0] sm:$0xff]
    %v7744 = vld [vmem:[#allocation11 + $0x5d8] sm:$0xff]
    %v7745 = vld [vmem:[#allocation11 + $0x5e0] sm:$0xff]
    %v7746 = vld [vmem:[#allocation11 + $0x5e8] sm:$0xff]
    %v7747 = vld [vmem:[#allocation11 + $0x5f0] sm:$0xff]
    %v7748 = vld [vmem:[#allocation11 + $0x5f8] sm:$0xff]
    %v7749 = vld [vmem:[#allocation11 + $0x600] sm:$0xff]
    %v7750 = vld [vmem:[#allocation11 + $0x608] sm:$0xff]
    %v7751 = vld [vmem:[#allocation11 + $0x610] sm:$0xff]
    %v7752 = vld [vmem:[#allocation11 + $0x618] sm:$0xff]
    %v7753 = vld [vmem:[#allocation11 + $0x620] sm:$0xff]
    %v7754 = vld [vmem:[#allocation11 + $0x628] sm:$0xff]
    %v7755 = vld [vmem:[#allocation11 + $0x630] sm:$0xff]
    %v7756 = vld [vmem:[#allocation11 + $0x638] sm:$0xff]
    %v7757 = vld [vmem:[#allocation11 + $0x640] sm:$0xff]
    %v7758 = vld [vmem:[#allocation11 + $0x648] sm:$0xff]
    %v7759 = vld [vmem:[#allocation11 + $0x650] sm:$0xff]
    %v7760 = vld [vmem:[#allocation11 + $0x658] sm:$0xff]
    %v7761 = vld [vmem:[#allocation11 + $0x660] sm:$0xff]
    %v7762 = vld [vmem:[#allocation11 + $0x668] sm:$0xff]
    %v7763 = vld [vmem:[#allocation11 + $0x670] sm:$0xff]
    %v7764 = vld [vmem:[#allocation11 + $0x678] sm:$0xff]
    %v7765 = vld [vmem:[#allocation11 + $0x680] sm:$0xff]
    %v7766 = vld [vmem:[#allocation11 + $0x688] sm:$0xff]
    %v7767 = vld [vmem:[#allocation11 + $0x690] sm:$0xff]
    %v7768 = vld [vmem:[#allocation11 + $0x698] sm:$0xff]
    %v7769 = vld [vmem:[#allocation11 + $0x6a0] sm:$0xff]
    %v7770 = vld [vmem:[#allocation11 + $0x6a8] sm:$0xff]
    %v7771 = vld [vmem:[#allocation11 + $0x6b0] sm:$0xff]
    %v7772 = vld [vmem:[#allocation11 + $0x6b8] sm:$0xff]
    %v7773 = vld [vmem:[#allocation11 + $0x6c0] sm:$0xff]
    %v7774 = vld [vmem:[#allocation11 + $0x6c8] sm:$0xff]
    %v7775 = vld [vmem:[#allocation11 + $0x6d0] sm:$0xff]
    %v7776 = vld [vmem:[#allocation11 + $0x6d8] sm:$0xff]
    %v7777 = vld [vmem:[#allocation11 + $0x6e0] sm:$0xff]
    %v7778 = vld [vmem:[#allocation11 + $0x6e8] sm:$0xff]
    %v7779 = vld [vmem:[#allocation11 + $0x6f0] sm:$0xff]
    %v7780 = vld [vmem:[#allocation11 + $0x6f8] sm:$0xff]
    %v7781 = vld [vmem:[#allocation11 + $0x700] sm:$0xff]
    %v7782 = vld [vmem:[#allocation11 + $0x708] sm:$0xff]
    %v7783 = vld [vmem:[#allocation11 + $0x710] sm:$0xff]
    %v7784 = vld [vmem:[#allocation11 + $0x718] sm:$0xff]
    %v7785 = vld [vmem:[#allocation11 + $0x720] sm:$0xff]
    %v7786 = vld [vmem:[#allocation11 + $0x728] sm:$0xff]
    %v7787 = vld [vmem:[#allocation11 + $0x730] sm:$0xff]
    %v7788 = vld [vmem:[#allocation11 + $0x738] sm:$0xff]
    %v7789 = vld [vmem:[#allocation11 + $0x740] sm:$0xff]
    %v7790 = vld [vmem:[#allocation11 + $0x748] sm:$0xff]
    %v7791 = vld [vmem:[#allocation11 + $0x750] sm:$0xff]
    %v7792 = vld [vmem:[#allocation11 + $0x758] sm:$0xff]
    %v7793 = vld [vmem:[#allocation11 + $0x760] sm:$0xff]
    %v7794 = vld [vmem:[#allocation11 + $0x768] sm:$0xff]
    %v7795 = vld [vmem:[#allocation11 + $0x770] sm:$0xff]
    %v7796 = vld [vmem:[#allocation11 + $0x778] sm:$0xff]
    %v7797 = vld [vmem:[#allocation11 + $0x780] sm:$0xff]
    %v7798 = vld [vmem:[#allocation11 + $0x788] sm:$0xff]
    %v7799 = vld [vmem:[#allocation11 + $0x790] sm:$0xff]
    %v7800 = vld [vmem:[#allocation11 + $0x798] sm:$0xff]
    %v7801 = vld [vmem:[#allocation11 + $0x7a0] sm:$0xff]
    %v7802 = vld [vmem:[#allocation11 + $0x7a8] sm:$0xff]
    %v7803 = vld [vmem:[#allocation11 + $0x7b0] sm:$0xff]
    %v7804 = vld [vmem:[#allocation11 + $0x7b8] sm:$0xff]
    %v7805 = vld [vmem:[#allocation11 + $0x7c0] sm:$0xff]
    %v7806 = vld [vmem:[#allocation11 + $0x7c8] sm:$0xff]
    %v7807 = vld [vmem:[#allocation11 + $0x7d0] sm:$0xff]
    %v7808 = vld [vmem:[#allocation11 + $0x7d8] sm:$0xff]
    %v7809 = vld [vmem:[#allocation11 + $0x7e0] sm:$0xff]
    %v7810 = vld [vmem:[#allocation11 + $0x7e8] sm:$0xff]
    %v7811 = vld [vmem:[#allocation11 + $0x7f0] sm:$0xff]
    %v7812 = vld [vmem:[#allocation11 + $0x7f8] sm:$0xff]
    %v7813 = vld [vmem:[#allocation13] sm:$0xf]
    %v7815 = vperm.slane %v7813, 0
    %v7816 = vperm.slane %v7813, 1
    %v7817 = vperm.slane %v7813, 2
    %v7818 = vperm.slane %v7813, 3
    %v8079 = vunpack.c.l.b16 %v7557
    %v8080 = vunpack.c.h.b16 %v7557
    %v8081 = vunpack.c.l.b16 %v7558
    %v8082 = vunpack.c.h.b16 %v7558
    %v8083 = vunpack.c.l.b16 %v7559
    %v8084 = vunpack.c.h.b16 %v7559
    %v8085 = vunpack.c.l.b16 %v7560
    %v8086 = vunpack.c.h.b16 %v7560
    %v8087 = vunpack.c.l.b16 %v7561
    %v8088 = vunpack.c.h.b16 %v7561
    %v8089 = vunpack.c.l.b16 %v7562
    %v8090 = vunpack.c.h.b16 %v7562
    %v8091 = vunpack.c.l.b16 %v7563
    %v8092 = vunpack.c.h.b16 %v7563
    %v8093 = vunpack.c.l.b16 %v7564
    %v8094 = vunpack.c.h.b16 %v7564
    %v8095 = vunpack.c.l.b16 %v7565
    %v8096 = vunpack.c.h.b16 %v7565
    %v8097 = vunpack.c.l.b16 %v7566
    %v8098 = vunpack.c.h.b16 %v7566
    %v8099 = vunpack.c.l.b16 %v7567
    %v8100 = vunpack.c.h.b16 %v7567
    %v8101 = vunpack.c.l.b16 %v7568
    %v8102 = vunpack.c.h.b16 %v7568
    %v8103 = vunpack.c.l.b16 %v7569
    %v8104 = vunpack.c.h.b16 %v7569
    %v8105 = vunpack.c.l.b16 %v7570
    %v8106 = vunpack.c.h.b16 %v7570
    %v8107 = vunpack.c.l.b16 %v7571
    %v8108 = vunpack.c.h.b16 %v7571
    %v8109 = vunpack.c.l.b16 %v7572
    %v8110 = vunpack.c.h.b16 %v7572
    %v8111 = vunpack.c.l.b16 %v7573
    %v8112 = vunpack.c.h.b16 %v7573
    %v8113 = vunpack.c.l.b16 %v7574
    %v8114 = vunpack.c.h.b16 %v7574
    %v8115 = vunpack.c.l.b16 %v7575
    %v8116 = vunpack.c.h.b16 %v7575
    %v8117 = vunpack.c.l.b16 %v7576
    %v8118 = vunpack.c.h.b16 %v7576
    %v8119 = vunpack.c.l.b16 %v7577
    %v8120 = vunpack.c.h.b16 %v7577
    %v8121 = vunpack.c.l.b16 %v7578
    %v8122 = vunpack.c.h.b16 %v7578
    %v8123 = vunpack.c.l.b16 %v7579
    %v8124 = vunpack.c.h.b16 %v7579
    %v8125 = vunpack.c.l.b16 %v7580
    %v8126 = vunpack.c.h.b16 %v7580
    %v8127 = vunpack.c.l.b16 %v7581
    %v8128 = vunpack.c.h.b16 %v7581
    %v8129 = vunpack.c.l.b16 %v7582
    %v8130 = vunpack.c.h.b16 %v7582
    %v8131 = vunpack.c.l.b16 %v7583
    %v8132 = vunpack.c.h.b16 %v7583
    %v8133 = vunpack.c.l.b16 %v7584
    %v8134 = vunpack.c.h.b16 %v7584
    %v8135 = vunpack.c.l.b16 %v7585
    %v8136 = vunpack.c.h.b16 %v7585
    %v8137 = vunpack.c.l.b16 %v7586
    %v8138 = vunpack.c.h.b16 %v7586
    %v8139 = vunpack.c.l.b16 %v7587
    %v8140 = vunpack.c.h.b16 %v7587
    %v8141 = vunpack.c.l.b16 %v7588
    %v8142 = vunpack.c.h.b16 %v7588
    %v8143 = vunpack.c.l.b16 %v7589
    %v8144 = vunpack.c.h.b16 %v7589
    %v8145 = vunpack.c.l.b16 %v7590
    %v8146 = vunpack.c.h.b16 %v7590
    %v8147 = vunpack.c.l.b16 %v7591
    %v8148 = vunpack.c.h.b16 %v7591
    %v8149 = vunpack.c.l.b16 %v7592
    %v8150 = vunpack.c.h.b16 %v7592
    %v8151 = vunpack.c.l.b16 %v7593
    %v8152 = vunpack.c.h.b16 %v7593
    %v8153 = vunpack.c.l.b16 %v7594
    %v8154 = vunpack.c.h.b16 %v7594
    %v8155 = vunpack.c.l.b16 %v7595
    %v8156 = vunpack.c.h.b16 %v7595
    %v8157 = vunpack.c.l.b16 %v7596
    %v8158 = vunpack.c.h.b16 %v7596
    %v8159 = vunpack.c.l.b16 %v7597
    %v8160 = vunpack.c.h.b16 %v7597
    %v8161 = vunpack.c.l.b16 %v7598
    %v8162 = vunpack.c.h.b16 %v7598
    %v8163 = vunpack.c.l.b16 %v7599
    %v8164 = vunpack.c.h.b16 %v7599
    %v8165 = vunpack.c.l.b16 %v7600
    %v8166 = vunpack.c.h.b16 %v7600
    %v8167 = vunpack.c.l.b16 %v7601
    %v8168 = vunpack.c.h.b16 %v7601
    %v8169 = vunpack.c.l.b16 %v7602
    %v8170 = vunpack.c.h.b16 %v7602
    %v8171 = vunpack.c.l.b16 %v7603
    %v8172 = vunpack.c.h.b16 %v7603
    %v8173 = vunpack.c.l.b16 %v7604
    %v8174 = vunpack.c.h.b16 %v7604
    %v8175 = vunpack.c.l.b16 %v7605
    %v8176 = vunpack.c.h.b16 %v7605
    %v8177 = vunpack.c.l.b16 %v7606
    %v8178 = vunpack.c.h.b16 %v7606
    %v8179 = vunpack.c.l.b16 %v7607
    %v8180 = vunpack.c.h.b16 %v7607
    %v8181 = vunpack.c.l.b16 %v7608
    %v8182 = vunpack.c.h.b16 %v7608
    %v8183 = vunpack.c.l.b16 %v7609
    %v8184 = vunpack.c.h.b16 %v7609
    %v8185 = vunpack.c.l.b16 %v7610
    %v8186 = vunpack.c.h.b16 %v7610
    %v8187 = vunpack.c.l.b16 %v7611
    %v8188 = vunpack.c.h.b16 %v7611
    %v8189 = vunpack.c.l.b16 %v7612
    %v8190 = vunpack.c.h.b16 %v7612
    %v8191 = vunpack.c.l.b16 %v7613
    %v8192 = vunpack.c.h.b16 %v7613
    %v8193 = vunpack.c.l.b16 %v7614
    %v8194 = vunpack.c.h.b16 %v7614
    %v8195 = vunpack.c.l.b16 %v7615
    %v8196 = vunpack.c.h.b16 %v7615
    %v8197 = vunpack.c.l.b16 %v7616
    %v8198 = vunpack.c.h.b16 %v7616
    %v8199 = vunpack.c.l.b16 %v7617
    %v8200 = vunpack.c.h.b16 %v7617
    %v8201 = vunpack.c.l.b16 %v7618
    %v8202 = vunpack.c.h.b16 %v7618
    %v8203 = vunpack.c.l.b16 %v7619
    %v8204 = vunpack.c.h.b16 %v7619
    %v8205 = vunpack.c.l.b16 %v7620
    %v8206 = vunpack.c.h.b16 %v7620
    %v8207 = vunpack.c.l.b16 %v7621
    %v8208 = vunpack.c.h.b16 %v7621
    %v8209 = vunpack.c.l.b16 %v7622
    %v8210 = vunpack.c.h.b16 %v7622
    %v8211 = vunpack.c.l.b16 %v7623
    %v8212 = vunpack.c.h.b16 %v7623
    %v8213 = vunpack.c.l.b16 %v7624
    %v8214 = vunpack.c.h.b16 %v7624
    %v8215 = vunpack.c.l.b16 %v7625
    %v8216 = vunpack.c.h.b16 %v7625
    %v8217 = vunpack.c.l.b16 %v7626
    %v8218 = vunpack.c.h.b16 %v7626
    %v8219 = vunpack.c.l.b16 %v7627
    %v8220 = vunpack.c.h.b16 %v7627
    %v8221 = vunpack.c.l.b16 %v7628
    %v8222 = vunpack.c.h.b16 %v7628
    %v8223 = vunpack.c.l.b16 %v7629
    %v8224 = vunpack.c.h.b16 %v7629
    %v8225 = vunpack.c.l.b16 %v7630
    %v8226 = vunpack.c.h.b16 %v7630
    %v8227 = vunpack.c.l.b16 %v7631
    %v8228 = vunpack.c.h.b16 %v7631
    %v8229 = vunpack.c.l.b16 %v7632
    %v8230 = vunpack.c.h.b16 %v7632
    %v8231 = vunpack.c.l.b16 %v7633
    %v8232 = vunpack.c.h.b16 %v7633
    %v8233 = vunpack.c.l.b16 %v7634
    %v8234 = vunpack.c.h.b16 %v7634
    %v8235 = vunpack.c.l.b16 %v7635
    %v8236 = vunpack.c.h.b16 %v7635
    %v8237 = vunpack.c.l.b16 %v7636
    %v8238 = vunpack.c.h.b16 %v7636
    %v8239 = vunpack.c.l.b16 %v7637
    %v8240 = vunpack.c.h.b16 %v7637
    %v8241 = vunpack.c.l.b16 %v7638
    %v8242 = vunpack.c.h.b16 %v7638
    %v8243 = vunpack.c.l.b16 %v7639
    %v8244 = vunpack.c.h.b16 %v7639
    %v8245 = vunpack.c.l.b16 %v7640
    %v8246 = vunpack.c.h.b16 %v7640
    %v8247 = vunpack.c.l.b16 %v7641
    %v8248 = vunpack.c.h.b16 %v7641
    %v8249 = vunpack.c.l.b16 %v7642
    %v8250 = vunpack.c.h.b16 %v7642
    %v8251 = vunpack.c.l.b16 %v7643
    %v8252 = vunpack.c.h.b16 %v7643
    %v8253 = vunpack.c.l.b16 %v7644
    %v8254 = vunpack.c.h.b16 %v7644
    %v8255 = vunpack.c.l.b16 %v7645
    %v8256 = vunpack.c.h.b16 %v7645
    %v8257 = vunpack.c.l.b16 %v7646
    %v8258 = vunpack.c.h.b16 %v7646
    %v8259 = vunpack.c.l.b16 %v7647
    %v8260 = vunpack.c.h.b16 %v7647
    %v8261 = vunpack.c.l.b16 %v7648
    %v8262 = vunpack.c.h.b16 %v7648
    %v8263 = vunpack.c.l.b16 %v7649
    %v8264 = vunpack.c.h.b16 %v7649
    %v8265 = vunpack.c.l.b16 %v7650
    %v8266 = vunpack.c.h.b16 %v7650
    %v8267 = vunpack.c.l.b16 %v7651
    %v8268 = vunpack.c.h.b16 %v7651
    %v8269 = vunpack.c.l.b16 %v7652
    %v8270 = vunpack.c.h.b16 %v7652
    %v8271 = vunpack.c.l.b16 %v7653
    %v8272 = vunpack.c.h.b16 %v7653
    %v8273 = vunpack.c.l.b16 %v7654
    %v8274 = vunpack.c.h.b16 %v7654
    %v8275 = vunpack.c.l.b16 %v7655
    %v8276 = vunpack.c.h.b16 %v7655
    %v8277 = vunpack.c.l.b16 %v7656
    %v8278 = vunpack.c.h.b16 %v7656
    %v8279 = vunpack.c.l.b16 %v7657
    %v8280 = vunpack.c.h.b16 %v7657
    %v8281 = vunpack.c.l.b16 %v7658
    %v8282 = vunpack.c.h.b16 %v7658
    %v8283 = vunpack.c.l.b16 %v7659
    %v8284 = vunpack.c.h.b16 %v7659
    %v8285 = vunpack.c.l.b16 %v7660
    %v8286 = vunpack.c.h.b16 %v7660
    %v8287 = vunpack.c.l.b16 %v7661
    %v8288 = vunpack.c.h.b16 %v7661
    %v8289 = vunpack.c.l.b16 %v7662
    %v8290 = vunpack.c.h.b16 %v7662
    %v8291 = vunpack.c.l.b16 %v7663
    %v8292 = vunpack.c.h.b16 %v7663
    %v8293 = vunpack.c.l.b16 %v7664
    %v8294 = vunpack.c.h.b16 %v7664
    %v8295 = vunpack.c.l.b16 %v7665
    %v8296 = vunpack.c.h.b16 %v7665
    %v8297 = vunpack.c.l.b16 %v7666
    %v8298 = vunpack.c.h.b16 %v7666
    %v8299 = vunpack.c.l.b16 %v7667
    %v8300 = vunpack.c.h.b16 %v7667
    %v8301 = vunpack.c.l.b16 %v7668
    %v8302 = vunpack.c.h.b16 %v7668
    %v8303 = vunpack.c.l.b16 %v7669
    %v8304 = vunpack.c.h.b16 %v7669
    %v8305 = vunpack.c.l.b16 %v7670
    %v8306 = vunpack.c.h.b16 %v7670
    %v8307 = vunpack.c.l.b16 %v7671
    %v8308 = vunpack.c.h.b16 %v7671
    %v8309 = vunpack.c.l.b16 %v7672
    %v8310 = vunpack.c.h.b16 %v7672
    %v8311 = vunpack.c.l.b16 %v7673
    %v8312 = vunpack.c.h.b16 %v7673
    %v8313 = vunpack.c.l.b16 %v7674
    %v8314 = vunpack.c.h.b16 %v7674
    %v8315 = vunpack.c.l.b16 %v7675
    %v8316 = vunpack.c.h.b16 %v7675
    %v8317 = vunpack.c.l.b16 %v7676
    %v8318 = vunpack.c.h.b16 %v7676
    %v8319 = vunpack.c.l.b16 %v7677
    %v8320 = vunpack.c.h.b16 %v7677
    %v8321 = vunpack.c.l.b16 %v7678
    %v8322 = vunpack.c.h.b16 %v7678
    %v8323 = vunpack.c.l.b16 %v7679
    %v8324 = vunpack.c.h.b16 %v7679
    %v8325 = vunpack.c.l.b16 %v7680
    %v8326 = vunpack.c.h.b16 %v7680
    %v8327 = vunpack.c.l.b16 %v7681
    %v8328 = vunpack.c.h.b16 %v7681
    %v8329 = vunpack.c.l.b16 %v7682
    %v8330 = vunpack.c.h.b16 %v7682
    %v8331 = vunpack.c.l.b16 %v7683
    %v8332 = vunpack.c.h.b16 %v7683
    %v8333 = vunpack.c.l.b16 %v7684
    %v8334 = vunpack.c.h.b16 %v7684
    %v8335 = vunpack.c.l.b16 %v7685
    %v8336 = vunpack.c.h.b16 %v7685
    %v8337 = vunpack.c.l.b16 %v7686
    %v8338 = vunpack.c.h.b16 %v7686
    %v8339 = vunpack.c.l.b16 %v7687
    %v8340 = vunpack.c.h.b16 %v7687
    %v8341 = vunpack.c.l.b16 %v7688
    %v8342 = vunpack.c.h.b16 %v7688
    %v8343 = vunpack.c.l.b16 %v7689
    %v8344 = vunpack.c.h.b16 %v7689
    %v8345 = vunpack.c.l.b16 %v7690
    %v8346 = vunpack.c.h.b16 %v7690
    %v8347 = vunpack.c.l.b16 %v7691
    %v8348 = vunpack.c.h.b16 %v7691
    %v8349 = vunpack.c.l.b16 %v7692
    %v8350 = vunpack.c.h.b16 %v7692
    %v8351 = vunpack.c.l.b16 %v7693
    %v8352 = vunpack.c.h.b16 %v7693
    %v8353 = vunpack.c.l.b16 %v7694
    %v8354 = vunpack.c.h.b16 %v7694
    %v8355 = vunpack.c.l.b16 %v7695
    %v8356 = vunpack.c.h.b16 %v7695
    %v8357 = vunpack.c.l.b16 %v7696
    %v8358 = vunpack.c.h.b16 %v7696
    %v8359 = vunpack.c.l.b16 %v7697
    %v8360 = vunpack.c.h.b16 %v7697
    %v8361 = vunpack.c.l.b16 %v7698
    %v8362 = vunpack.c.h.b16 %v7698
    %v8363 = vunpack.c.l.b16 %v7699
    %v8364 = vunpack.c.h.b16 %v7699
    %v8365 = vunpack.c.l.b16 %v7700
    %v8366 = vunpack.c.h.b16 %v7700
    %v8367 = vunpack.c.l.b16 %v7701
    %v8368 = vunpack.c.h.b16 %v7701
    %v8369 = vunpack.c.l.b16 %v7702
    %v8370 = vunpack.c.h.b16 %v7702
    %v8371 = vunpack.c.l.b16 %v7703
    %v8372 = vunpack.c.h.b16 %v7703
    %v8373 = vunpack.c.l.b16 %v7704
    %v8374 = vunpack.c.h.b16 %v7704
    %v8375 = vunpack.c.l.b16 %v7705
    %v8376 = vunpack.c.h.b16 %v7705
    %v8377 = vunpack.c.l.b16 %v7706
    %v8378 = vunpack.c.h.b16 %v7706
    %v8379 = vunpack.c.l.b16 %v7707
    %v8380 = vunpack.c.h.b16 %v7707
    %v8381 = vunpack.c.l.b16 %v7708
    %v8382 = vunpack.c.h.b16 %v7708
    %v8383 = vunpack.c.l.b16 %v7709
    %v8384 = vunpack.c.h.b16 %v7709
    %v8385 = vunpack.c.l.b16 %v7710
    %v8386 = vunpack.c.h.b16 %v7710
    %v8387 = vunpack.c.l.b16 %v7711
    %v8388 = vunpack.c.h.b16 %v7711
    %v8389 = vunpack.c.l.b16 %v7712
    %v8390 = vunpack.c.h.b16 %v7712
    %v8391 = vunpack.c.l.b16 %v7713
    %v8392 = vunpack.c.h.b16 %v7713
    %v8393 = vunpack.c.l.b16 %v7714
    %v8394 = vunpack.c.h.b16 %v7714
    %v8395 = vunpack.c.l.b16 %v7715
    %v8396 = vunpack.c.h.b16 %v7715
    %v8397 = vunpack.c.l.b16 %v7716
    %v8398 = vunpack.c.h.b16 %v7716
    %v8399 = vunpack.c.l.b16 %v7717
    %v8400 = vunpack.c.h.b16 %v7717
    %v8401 = vunpack.c.l.b16 %v7718
    %v8402 = vunpack.c.h.b16 %v7718
    %v8403 = vunpack.c.l.b16 %v7719
    %v8404 = vunpack.c.h.b16 %v7719
    %v8405 = vunpack.c.l.b16 %v7720
    %v8406 = vunpack.c.h.b16 %v7720
    %v8407 = vunpack.c.l.b16 %v7721
    %v8408 = vunpack.c.h.b16 %v7721
    %v8409 = vunpack.c.l.b16 %v7722
    %v8410 = vunpack.c.h.b16 %v7722
    %v8411 = vunpack.c.l.b16 %v7723
    %v8412 = vunpack.c.h.b16 %v7723
    %v8413 = vunpack.c.l.b16 %v7724
    %v8414 = vunpack.c.h.b16 %v7724
    %v8415 = vunpack.c.l.b16 %v7725
    %v8416 = vunpack.c.h.b16 %v7725
    %v8417 = vunpack.c.l.b16 %v7726
    %v8418 = vunpack.c.h.b16 %v7726
    %v8419 = vunpack.c.l.b16 %v7727
    %v8420 = vunpack.c.h.b16 %v7727
    %v8421 = vunpack.c.l.b16 %v7728
    %v8422 = vunpack.c.h.b16 %v7728
    %v8423 = vunpack.c.l.b16 %v7729
    %v8424 = vunpack.c.h.b16 %v7729
    %v8425 = vunpack.c.l.b16 %v7730
    %v8426 = vunpack.c.h.b16 %v7730
    %v8427 = vunpack.c.l.b16 %v7731
    %v8428 = vunpack.c.h.b16 %v7731
    %v8429 = vunpack.c.l.b16 %v7732
    %v8430 = vunpack.c.h.b16 %v7732
    %v8431 = vunpack.c.l.b16 %v7733
    %v8432 = vunpack.c.h.b16 %v7733
    %v8433 = vunpack.c.l.b16 %v7734
    %v8434 = vunpack.c.h.b16 %v7734
    %v8435 = vunpack.c.l.b16 %v7735
    %v8436 = vunpack.c.h.b16 %v7735
    %v8437 = vunpack.c.l.b16 %v7736
    %v8438 = vunpack.c.h.b16 %v7736
    %v8439 = vunpack.c.l.b16 %v7737
    %v8440 = vunpack.c.h.b16 %v7737
    %v8441 = vunpack.c.l.b16 %v7738
    %v8442 = vunpack.c.h.b16 %v7738
    %v8443 = vunpack.c.l.b16 %v7739
    %v8444 = vunpack.c.h.b16 %v7739
    %v8445 = vunpack.c.l.b16 %v7740
    %v8446 = vunpack.c.h.b16 %v7740
    %v8447 = vunpack.c.l.b16 %v7741
    %v8448 = vunpack.c.h.b16 %v7741
    %v8449 = vunpack.c.l.b16 %v7742
    %v8450 = vunpack.c.h.b16 %v7742
    %v8451 = vunpack.c.l.b16 %v7743
    %v8452 = vunpack.c.h.b16 %v7743
    %v8453 = vunpack.c.l.b16 %v7744
    %v8454 = vunpack.c.h.b16 %v7744
    %v8455 = vunpack.c.l.b16 %v7745
    %v8456 = vunpack.c.h.b16 %v7745
    %v8457 = vunpack.c.l.b16 %v7746
    %v8458 = vunpack.c.h.b16 %v7746
    %v8459 = vunpack.c.l.b16 %v7747
    %v8460 = vunpack.c.h.b16 %v7747
    %v8461 = vunpack.c.l.b16 %v7748
    %v8462 = vunpack.c.h.b16 %v7748
    %v8463 = vunpack.c.l.b16 %v7749
    %v8464 = vunpack.c.h.b16 %v7749
    %v8465 = vunpack.c.l.b16 %v7750
    %v8466 = vunpack.c.h.b16 %v7750
    %v8467 = vunpack.c.l.b16 %v7751
    %v8468 = vunpack.c.h.b16 %v7751
    %v8469 = vunpack.c.l.b16 %v7752
    %v8470 = vunpack.c.h.b16 %v7752
    %v8471 = vunpack.c.l.b16 %v7753
    %v8472 = vunpack.c.h.b16 %v7753
    %v8473 = vunpack.c.l.b16 %v7754
    %v8474 = vunpack.c.h.b16 %v7754
    %v8475 = vunpack.c.l.b16 %v7755
    %v8476 = vunpack.c.h.b16 %v7755
    %v8477 = vunpack.c.l.b16 %v7756
    %v8478 = vunpack.c.h.b16 %v7756
    %v8479 = vunpack.c.l.b16 %v7757
    %v8480 = vunpack.c.h.b16 %v7757
    %v8481 = vunpack.c.l.b16 %v7758
    %v8482 = vunpack.c.h.b16 %v7758
    %v8483 = vunpack.c.l.b16 %v7759
    %v8484 = vunpack.c.h.b16 %v7759
    %v8485 = vunpack.c.l.b16 %v7760
    %v8486 = vunpack.c.h.b16 %v7760
    %v8487 = vunpack.c.l.b16 %v7761
    %v8488 = vunpack.c.h.b16 %v7761
    %v8489 = vunpack.c.l.b16 %v7762
    %v8490 = vunpack.c.h.b16 %v7762
    %v8491 = vunpack.c.l.b16 %v7763
    %v8492 = vunpack.c.h.b16 %v7763
    %v8493 = vunpack.c.l.b16 %v7764
    %v8494 = vunpack.c.h.b16 %v7764
    %v8495 = vunpack.c.l.b16 %v7765
    %v8496 = vunpack.c.h.b16 %v7765
    %v8497 = vunpack.c.l.b16 %v7766
    %v8498 = vunpack.c.h.b16 %v7766
    %v8499 = vunpack.c.l.b16 %v7767
    %v8500 = vunpack.c.h.b16 %v7767
    %v8501 = vunpack.c.l.b16 %v7768
    %v8502 = vunpack.c.h.b16 %v7768
    %v8503 = vunpack.c.l.b16 %v7769
    %v8504 = vunpack.c.h.b16 %v7769
    %v8505 = vunpack.c.l.b16 %v7770
    %v8506 = vunpack.c.h.b16 %v7770
    %v8507 = vunpack.c.l.b16 %v7771
    %v8508 = vunpack.c.h.b16 %v7771
    %v8509 = vunpack.c.l.b16 %v7772
    %v8510 = vunpack.c.h.b16 %v7772
    %v8511 = vunpack.c.l.b16 %v7773
    %v8512 = vunpack.c.h.b16 %v7773
    %v8513 = vunpack.c.l.b16 %v7774
    %v8514 = vunpack.c.h.b16 %v7774
    %v8515 = vunpack.c.l.b16 %v7775
    %v8516 = vunpack.c.h.b16 %v7775
    %v8517 = vunpack.c.l.b16 %v7776
    %v8518 = vunpack.c.h.b16 %v7776
    %v8519 = vunpack.c.l.b16 %v7777
    %v8520 = vunpack.c.h.b16 %v7777
    %v8521 = vunpack.c.l.b16 %v7778
    %v8522 = vunpack.c.h.b16 %v7778
    %v8523 = vunpack.c.l.b16 %v7779
    %v8524 = vunpack.c.h.b16 %v7779
    %v8525 = vunpack.c.l.b16 %v7780
    %v8526 = vunpack.c.h.b16 %v7780
    %v8527 = vunpack.c.l.b16 %v7781
    %v8528 = vunpack.c.h.b16 %v7781
    %v8529 = vunpack.c.l.b16 %v7782
    %v8530 = vunpack.c.h.b16 %v7782
    %v8531 = vunpack.c.l.b16 %v7783
    %v8532 = vunpack.c.h.b16 %v7783
    %v8533 = vunpack.c.l.b16 %v7784
    %v8534 = vunpack.c.h.b16 %v7784
    %v8535 = vunpack.c.l.b16 %v7785
    %v8536 = vunpack.c.h.b16 %v7785
    %v8537 = vunpack.c.l.b16 %v7786
    %v8538 = vunpack.c.h.b16 %v7786
    %v8539 = vunpack.c.l.b16 %v7787
    %v8540 = vunpack.c.h.b16 %v7787
    %v8541 = vunpack.c.l.b16 %v7788
    %v8542 = vunpack.c.h.b16 %v7788
    %v8543 = vunpack.c.l.b16 %v7789
    %v8544 = vunpack.c.h.b16 %v7789
    %v8545 = vunpack.c.l.b16 %v7790
    %v8546 = vunpack.c.h.b16 %v7790
    %v8547 = vunpack.c.l.b16 %v7791
    %v8548 = vunpack.c.h.b16 %v7791
    %v8549 = vunpack.c.l.b16 %v7792
    %v8550 = vunpack.c.h.b16 %v7792
    %v8551 = vunpack.c.l.b16 %v7793
    %v8552 = vunpack.c.h.b16 %v7793
    %v8553 = vunpack.c.l.b16 %v7794
    %v8554 = vunpack.c.h.b16 %v7794
    %v8555 = vunpack.c.l.b16 %v7795
    %v8556 = vunpack.c.h.b16 %v7795
    %v8557 = vunpack.c.l.b16 %v7796
    %v8558 = vunpack.c.h.b16 %v7796
    %v8559 = vunpack.c.l.b16 %v7797
    %v8560 = vunpack.c.h.b16 %v7797
    %v8561 = vunpack.c.l.b16 %v7798
    %v8562 = vunpack.c.h.b16 %v7798
    %v8563 = vunpack.c.l.b16 %v7799
    %v8564 = vunpack.c.h.b16 %v7799
    %v8565 = vunpack.c.l.b16 %v7800
    %v8566 = vunpack.c.h.b16 %v7800
    %v8567 = vunpack.c.l.b16 %v7801
    %v8568 = vunpack.c.h.b16 %v7801
    %v8569 = vunpack.c.l.b16 %v7802
    %v8570 = vunpack.c.h.b16 %v7802
    %v8571 = vunpack.c.l.b16 %v7803
    %v8572 = vunpack.c.h.b16 %v7803
    %v8573 = vunpack.c.l.b16 %v7804
    %v8574 = vunpack.c.h.b16 %v7804
    %v8575 = vunpack.c.l.b16 %v7805
    %v8576 = vunpack.c.h.b16 %v7805
    %v8577 = vunpack.c.l.b16 %v7806
    %v8578 = vunpack.c.h.b16 %v7806
    %v8579 = vunpack.c.l.b16 %v7807
    %v8580 = vunpack.c.h.b16 %v7807
    %v8581 = vunpack.c.l.b16 %v7808
    %v8582 = vunpack.c.h.b16 %v7808
    %v8583 = vunpack.c.l.b16 %v7809
    %v8584 = vunpack.c.h.b16 %v7809
    %v8585 = vunpack.c.l.b16 %v7810
    %v8586 = vunpack.c.h.b16 %v7810
    %v8587 = vunpack.c.l.b16 %v7811
    %v8588 = vunpack.c.h.b16 %v7811
    %v8589 = vunpack.c.l.b16 %v7812
    %v8590 = vunpack.c.h.b16 %v7812
    %v8591 = vpack.c.b16 %v8083, %v8079
    %v8592 = vpack.c.b16 %v8084, %v8080
    %v8593 = vpack.c.b16 %v8085, %v8081
    %v8594 = vpack.c.b16 %v8086, %v8082
    %v8595 = vpack.c.b16 %v8091, %v8087
    %v8596 = vpack.c.b16 %v8092, %v8088
    %v8597 = vpack.c.b16 %v8093, %v8089
    %v8598 = vpack.c.b16 %v8094, %v8090
    %v8599 = vpack.c.b16 %v8099, %v8095
    %v8600 = vpack.c.b16 %v8100, %v8096
    %v8601 = vpack.c.b16 %v8101, %v8097
    %v8602 = vpack.c.b16 %v8102, %v8098
    %v8603 = vpack.c.b16 %v8107, %v8103
    %v8604 = vpack.c.b16 %v8108, %v8104
    %v8605 = vpack.c.b16 %v8109, %v8105
    %v8606 = vpack.c.b16 %v8110, %v8106
    %v8607 = vpack.c.b16 %v8115, %v8111
    %v8608 = vpack.c.b16 %v8116, %v8112
    %v8609 = vpack.c.b16 %v8117, %v8113
    %v8610 = vpack.c.b16 %v8118, %v8114
    %v8611 = vpack.c.b16 %v8123, %v8119
    %v8612 = vpack.c.b16 %v8124, %v8120
    %v8613 = vpack.c.b16 %v8125, %v8121
    %v8614 = vpack.c.b16 %v8126, %v8122
    %v8615 = vpack.c.b16 %v8131, %v8127
    %v8616 = vpack.c.b16 %v8132, %v8128
    %v8617 = vpack.c.b16 %v8133, %v8129
    %v8618 = vpack.c.b16 %v8134, %v8130
    %v8619 = vpack.c.b16 %v8139, %v8135
    %v8620 = vpack.c.b16 %v8140, %v8136
    %v8621 = vpack.c.b16 %v8141, %v8137
    %v8622 = vpack.c.b16 %v8142, %v8138
    %v8623 = vpack.c.b16 %v8147, %v8143
    %v8624 = vpack.c.b16 %v8148, %v8144
    %v8625 = vpack.c.b16 %v8149, %v8145
    %v8626 = vpack.c.b16 %v8150, %v8146
    %v8627 = vpack.c.b16 %v8155, %v8151
    %v8628 = vpack.c.b16 %v8156, %v8152
    %v8629 = vpack.c.b16 %v8157, %v8153
    %v8630 = vpack.c.b16 %v8158, %v8154
    %v8631 = vpack.c.b16 %v8163, %v8159
    %v8632 = vpack.c.b16 %v8164, %v8160
    %v8633 = vpack.c.b16 %v8165, %v8161
    %v8634 = vpack.c.b16 %v8166, %v8162
    %v8635 = vpack.c.b16 %v8171, %v8167
    %v8636 = vpack.c.b16 %v8172, %v8168
    %v8637 = vpack.c.b16 %v8173, %v8169
    %v8638 = vpack.c.b16 %v8174, %v8170
    %v8639 = vpack.c.b16 %v8179, %v8175
    %v8640 = vpack.c.b16 %v8180, %v8176
    %v8641 = vpack.c.b16 %v8181, %v8177
    %v8642 = vpack.c.b16 %v8182, %v8178
    %v8643 = vpack.c.b16 %v8187, %v8183
    %v8644 = vpack.c.b16 %v8188, %v8184
    %v8645 = vpack.c.b16 %v8189, %v8185
    %v8646 = vpack.c.b16 %v8190, %v8186
    %v8647 = vpack.c.b16 %v8195, %v8191
    %v8648 = vpack.c.b16 %v8196, %v8192
    %v8649 = vpack.c.b16 %v8197, %v8193
    %v8650 = vpack.c.b16 %v8198, %v8194
    %v8651 = vpack.c.b16 %v8203, %v8199
    %v8652 = vpack.c.b16 %v8204, %v8200
    %v8653 = vpack.c.b16 %v8205, %v8201
    %v8654 = vpack.c.b16 %v8206, %v8202
    %v8655 = vpack.c.b16 %v8211, %v8207
    %v8656 = vpack.c.b16 %v8212, %v8208
    %v8657 = vpack.c.b16 %v8213, %v8209
    %v8658 = vpack.c.b16 %v8214, %v8210
    %v8659 = vpack.c.b16 %v8219, %v8215
    %v8660 = vpack.c.b16 %v8220, %v8216
    %v8661 = vpack.c.b16 %v8221, %v8217
    %v8662 = vpack.c.b16 %v8222, %v8218
    %v8663 = vpack.c.b16 %v8227, %v8223
    %v8664 = vpack.c.b16 %v8228, %v8224
    %v8665 = vpack.c.b16 %v8229, %v8225
    %v8666 = vpack.c.b16 %v8230, %v8226
    %v8667 = vpack.c.b16 %v8235, %v8231
    %v8668 = vpack.c.b16 %v8236, %v8232
    %v8669 = vpack.c.b16 %v8237, %v8233
    %v8670 = vpack.c.b16 %v8238, %v8234
    %v8671 = vpack.c.b16 %v8243, %v8239
    %v8672 = vpack.c.b16 %v8244, %v8240
    %v8673 = vpack.c.b16 %v8245, %v8241
    %v8674 = vpack.c.b16 %v8246, %v8242
    %v8675 = vpack.c.b16 %v8251, %v8247
    %v8676 = vpack.c.b16 %v8252, %v8248
    %v8677 = vpack.c.b16 %v8253, %v8249
    %v8678 = vpack.c.b16 %v8254, %v8250
    %v8679 = vpack.c.b16 %v8259, %v8255
    %v8680 = vpack.c.b16 %v8260, %v8256
    %v8681 = vpack.c.b16 %v8261, %v8257
    %v8682 = vpack.c.b16 %v8262, %v8258
    %v8683 = vpack.c.b16 %v8267, %v8263
    %v8684 = vpack.c.b16 %v8268, %v8264
    %v8685 = vpack.c.b16 %v8269, %v8265
    %v8686 = vpack.c.b16 %v8270, %v8266
    %v8687 = vpack.c.b16 %v8275, %v8271
    %v8688 = vpack.c.b16 %v8276, %v8272
    %v8689 = vpack.c.b16 %v8277, %v8273
    %v8690 = vpack.c.b16 %v8278, %v8274
    %v8691 = vpack.c.b16 %v8283, %v8279
    %v8692 = vpack.c.b16 %v8284, %v8280
    %v8693 = vpack.c.b16 %v8285, %v8281
    %v8694 = vpack.c.b16 %v8286, %v8282
    %v8695 = vpack.c.b16 %v8291, %v8287
    %v8696 = vpack.c.b16 %v8292, %v8288
    %v8697 = vpack.c.b16 %v8293, %v8289
    %v8698 = vpack.c.b16 %v8294, %v8290
    %v8699 = vpack.c.b16 %v8299, %v8295
    %v8700 = vpack.c.b16 %v8300, %v8296
    %v8701 = vpack.c.b16 %v8301, %v8297
    %v8702 = vpack.c.b16 %v8302, %v8298
    %v8703 = vpack.c.b16 %v8307, %v8303
    %v8704 = vpack.c.b16 %v8308, %v8304
    %v8705 = vpack.c.b16 %v8309, %v8305
    %v8706 = vpack.c.b16 %v8310, %v8306
    %v8707 = vpack.c.b16 %v8315, %v8311
    %v8708 = vpack.c.b16 %v8316, %v8312
    %v8709 = vpack.c.b16 %v8317, %v8313
    %v8710 = vpack.c.b16 %v8318, %v8314
    %v8711 = vpack.c.b16 %v8323, %v8319
    %v8712 = vpack.c.b16 %v8324, %v8320
    %v8713 = vpack.c.b16 %v8325, %v8321
    %v8714 = vpack.c.b16 %v8326, %v8322
    %v8715 = vpack.c.b16 %v8331, %v8327
    %v8716 = vpack.c.b16 %v8332, %v8328
    %v8717 = vpack.c.b16 %v8333, %v8329
    %v8718 = vpack.c.b16 %v8334, %v8330
    %v8719 = vpack.c.b16 %v8339, %v8335
    %v8720 = vpack.c.b16 %v8340, %v8336
    %v8721 = vpack.c.b16 %v8341, %v8337
    %v8722 = vpack.c.b16 %v8342, %v8338
    %v8723 = vpack.c.b16 %v8347, %v8343
    %v8724 = vpack.c.b16 %v8348, %v8344
    %v8725 = vpack.c.b16 %v8349, %v8345
    %v8726 = vpack.c.b16 %v8350, %v8346
    %v8727 = vpack.c.b16 %v8355, %v8351
    %v8728 = vpack.c.b16 %v8356, %v8352
    %v8729 = vpack.c.b16 %v8357, %v8353
    %v8730 = vpack.c.b16 %v8358, %v8354
    %v8731 = vpack.c.b16 %v8363, %v8359
    %v8732 = vpack.c.b16 %v8364, %v8360
    %v8733 = vpack.c.b16 %v8365, %v8361
    %v8734 = vpack.c.b16 %v8366, %v8362
    %v8735 = vpack.c.b16 %v8371, %v8367
    %v8736 = vpack.c.b16 %v8372, %v8368
    %v8737 = vpack.c.b16 %v8373, %v8369
    %v8738 = vpack.c.b16 %v8374, %v8370
    %v8739 = vpack.c.b16 %v8379, %v8375
    %v8740 = vpack.c.b16 %v8380, %v8376
    %v8741 = vpack.c.b16 %v8381, %v8377
    %v8742 = vpack.c.b16 %v8382, %v8378
    %v8743 = vpack.c.b16 %v8387, %v8383
    %v8744 = vpack.c.b16 %v8388, %v8384
    %v8745 = vpack.c.b16 %v8389, %v8385
    %v8746 = vpack.c.b16 %v8390, %v8386
    %v8747 = vpack.c.b16 %v8395, %v8391
    %v8748 = vpack.c.b16 %v8396, %v8392
    %v8749 = vpack.c.b16 %v8397, %v8393
    %v8750 = vpack.c.b16 %v8398, %v8394
    %v8751 = vpack.c.b16 %v8403, %v8399
    %v8752 = vpack.c.b16 %v8404, %v8400
    %v8753 = vpack.c.b16 %v8405, %v8401
    %v8754 = vpack.c.b16 %v8406, %v8402
    %v8755 = vpack.c.b16 %v8411, %v8407
    %v8756 = vpack.c.b16 %v8412, %v8408
    %v8757 = vpack.c.b16 %v8413, %v8409
    %v8758 = vpack.c.b16 %v8414, %v8410
    %v8759 = vpack.c.b16 %v8419, %v8415
    %v8760 = vpack.c.b16 %v8420, %v8416
    %v8761 = vpack.c.b16 %v8421, %v8417
    %v8762 = vpack.c.b16 %v8422, %v8418
    %v8763 = vpack.c.b16 %v8427, %v8423
    %v8764 = vpack.c.b16 %v8428, %v8424
    %v8765 = vpack.c.b16 %v8429, %v8425
    %v8766 = vpack.c.b16 %v8430, %v8426
    %v8767 = vpack.c.b16 %v8435, %v8431
    %v8768 = vpack.c.b16 %v8436, %v8432
    %v8769 = vpack.c.b16 %v8437, %v8433
    %v8770 = vpack.c.b16 %v8438, %v8434
    %v8771 = vpack.c.b16 %v8443, %v8439
    %v8772 = vpack.c.b16 %v8444, %v8440
    %v8773 = vpack.c.b16 %v8445, %v8441
    %v8774 = vpack.c.b16 %v8446, %v8442
    %v8775 = vpack.c.b16 %v8451, %v8447
    %v8776 = vpack.c.b16 %v8452, %v8448
    %v8777 = vpack.c.b16 %v8453, %v8449
    %v8778 = vpack.c.b16 %v8454, %v8450
    %v8779 = vpack.c.b16 %v8459, %v8455
    %v8780 = vpack.c.b16 %v8460, %v8456
    %v8781 = vpack.c.b16 %v8461, %v8457
    %v8782 = vpack.c.b16 %v8462, %v8458
    %v8783 = vpack.c.b16 %v8467, %v8463
    %v8784 = vpack.c.b16 %v8468, %v8464
    %v8785 = vpack.c.b16 %v8469, %v8465
    %v8786 = vpack.c.b16 %v8470, %v8466
    %v8787 = vpack.c.b16 %v8475, %v8471
    %v8788 = vpack.c.b16 %v8476, %v8472
    %v8789 = vpack.c.b16 %v8477, %v8473
    %v8790 = vpack.c.b16 %v8478, %v8474
    %v8791 = vpack.c.b16 %v8483, %v8479
    %v8792 = vpack.c.b16 %v8484, %v8480
    %v8793 = vpack.c.b16 %v8485, %v8481
    %v8794 = vpack.c.b16 %v8486, %v8482
    %v8795 = vpack.c.b16 %v8491, %v8487
    %v8796 = vpack.c.b16 %v8492, %v8488
    %v8797 = vpack.c.b16 %v8493, %v8489
    %v8798 = vpack.c.b16 %v8494, %v8490
    %v8799 = vpack.c.b16 %v8499, %v8495
    %v8800 = vpack.c.b16 %v8500, %v8496
    %v8801 = vpack.c.b16 %v8501, %v8497
    %v8802 = vpack.c.b16 %v8502, %v8498
    %v8803 = vpack.c.b16 %v8507, %v8503
    %v8804 = vpack.c.b16 %v8508, %v8504
    %v8805 = vpack.c.b16 %v8509, %v8505
    %v8806 = vpack.c.b16 %v8510, %v8506
    %v8807 = vpack.c.b16 %v8515, %v8511
    %v8808 = vpack.c.b16 %v8516, %v8512
    %v8809 = vpack.c.b16 %v8517, %v8513
    %v8810 = vpack.c.b16 %v8518, %v8514
    %v8811 = vpack.c.b16 %v8523, %v8519
    %v8812 = vpack.c.b16 %v8524, %v8520
    %v8813 = vpack.c.b16 %v8525, %v8521
    %v8814 = vpack.c.b16 %v8526, %v8522
    %v8815 = vpack.c.b16 %v8531, %v8527
    %v8816 = vpack.c.b16 %v8532, %v8528
    %v8817 = vpack.c.b16 %v8533, %v8529
    %v8818 = vpack.c.b16 %v8534, %v8530
    %v8819 = vpack.c.b16 %v8539, %v8535
    %v8820 = vpack.c.b16 %v8540, %v8536
    %v8821 = vpack.c.b16 %v8541, %v8537
    %v8822 = vpack.c.b16 %v8542, %v8538
    %v8823 = vpack.c.b16 %v8547, %v8543
    %v8824 = vpack.c.b16 %v8548, %v8544
    %v8825 = vpack.c.b16 %v8549, %v8545
    %v8826 = vpack.c.b16 %v8550, %v8546
    %v8827 = vpack.c.b16 %v8555, %v8551
    %v8828 = vpack.c.b16 %v8556, %v8552
    %v8829 = vpack.c.b16 %v8557, %v8553
    %v8830 = vpack.c.b16 %v8558, %v8554
    %v8831 = vpack.c.b16 %v8563, %v8559
    %v8832 = vpack.c.b16 %v8564, %v8560
    %v8833 = vpack.c.b16 %v8565, %v8561
    %v8834 = vpack.c.b16 %v8566, %v8562
    %v8835 = vpack.c.b16 %v8571, %v8567
    %v8836 = vpack.c.b16 %v8572, %v8568
    %v8837 = vpack.c.b16 %v8573, %v8569
    %v8838 = vpack.c.b16 %v8574, %v8570
    %v8839 = vpack.c.b16 %v8579, %v8575
    %v8840 = vpack.c.b16 %v8580, %v8576
    %v8841 = vpack.c.b16 %v8581, %v8577
    %v8842 = vpack.c.b16 %v8582, %v8578
    %v8843 = vpack.c.b16 %v8587, %v8583
    %v8844 = vpack.c.b16 %v8588, %v8584
    %v8845 = vpack.c.b16 %v8589, %v8585
    %v8846 = vpack.c.b16 %v8590, %v8586
    %9103 = vmatpush.bf16.msra.mxu0 %v8619
    %9104 = vmatpush.bf16.msra.mxu0 %v8615
    %9105 = vmatpush.bf16.msra.mxu0 %v8611
    %9106 = vmatpush.bf16.msra.mxu0 %v8607
    %9107 = vmatpush.bf16.msra.mxu0 %v8603
    %9108 = vmatpush.bf16.msra.mxu0 %v8599
    %9109 = vmatpush.bf16.msra.mxu0 %v8595
    %9110 = vmatpush.bf16.msra.mxu0 %v8591
    %9111 = vmatmul.bf16.gmra.mxu0 %v7549
    %v9112 = vpop.f32.mrf.mxu0
    %v9113 = vadd.f32 %v7815, %v9112
    %v9114 = vpop.f32.mrf.mxu0
    %9115 = vdwg.mxu0
    %9116 = vmatpush.bf16.msra.mxu0 %v8651
    %9117 = vmatpush.bf16.msra.mxu0 %v8647
    %9118 = vmatpush.bf16.msra.mxu0 %v8643
    %9119 = vmatpush.bf16.msra.mxu0 %v8639
    %9120 = vmatpush.bf16.msra.mxu0 %v8635
    %9121 = vmatpush.bf16.msra.mxu0 %v8631
    %9122 = vmatpush.bf16.msra.mxu0 %v8627
    %9123 = vmatpush.bf16.msra.mxu0 %v8623
    %9124 = vmatmul.bf16.gmra.mxu0 %v7550
    %v9125 = vpop.f32.mrf.mxu0
    %v9126 = vadd.f32 %v9113, %v9125
    %v9127 = vpop.f32.mrf.mxu0
    %9128 = vdwg.mxu0
    %9129 = vmatpush.bf16.msra.mxu0 %v8683
    %9130 = vmatpush.bf16.msra.mxu0 %v8679
    %9131 = vmatpush.bf16.msra.mxu0 %v8675
    %9132 = vmatpush.bf16.msra.mxu0 %v8671
    %9133 = vmatpush.bf16.msra.mxu0 %v8667
    %9134 = vmatpush.bf16.msra.mxu0 %v8663
    %9135 = vmatpush.bf16.msra.mxu0 %v8659
    %9136 = vmatpush.bf16.msra.mxu0 %v8655
    %9137 = vmatmul.bf16.gmra.mxu0 %v7551
    %v9138 = vpop.f32.mrf.mxu0
    %v9139 = vadd.f32 %v9126, %v9138
    %v9140 = vpop.f32.mrf.mxu0
    %9141 = vdwg.mxu0
    %9142 = vmatpush.bf16.msra.mxu0 %v8715
    %9143 = vmatpush.bf16.msra.mxu0 %v8711
    %9144 = vmatpush.bf16.msra.mxu0 %v8707
    %9145 = vmatpush.bf16.msra.mxu0 %v8703
    %9146 = vmatpush.bf16.msra.mxu0 %v8699
    %9147 = vmatpush.bf16.msra.mxu0 %v8695
    %9148 = vmatpush.bf16.msra.mxu0 %v8691
    %9149 = vmatpush.bf16.msra.mxu0 %v8687
    %9150 = vmatmul.bf16.gmra.mxu0 %v7552
    %v9151 = vpop.f32.mrf.mxu0
    %v9152 = vadd.f32 %v9139, %v9151
    %v9153 = vpop.f32.mrf.mxu0
    %9154 = vdwg.mxu0
    %9155 = vmatpush.bf16.msra.mxu0 %v8747
    %9156 = vmatpush.bf16.msra.mxu0 %v8743
    %9157 = vmatpush.bf16.msra.mxu0 %v8739
    %9158 = vmatpush.bf16.msra.mxu0 %v8735
    %9159 = vmatpush.bf16.msra.mxu0 %v8731
    %9160 = vmatpush.bf16.msra.mxu0 %v8727
    %9161 = vmatpush.bf16.msra.mxu0 %v8723
    %9162 = vmatpush.bf16.msra.mxu0 %v8719
    %9163 = vmatmul.bf16.gmra.mxu0 %v7553
    %v9164 = vpop.f32.mrf.mxu0
    %v9165 = vadd.f32 %v9152, %v9164
    %v9166 = vpop.f32.mrf.mxu0
    %9167 = vdwg.mxu0
    %9168 = vmatpush.bf16.msra.mxu0 %v8779
    %9169 = vmatpush.bf16.msra.mxu0 %v8775
    %9170 = vmatpush.bf16.msra.mxu0 %v8771
    %9171 = vmatpush.bf16.msra.mxu0 %v8767
    %9172 = vmatpush.bf16.msra.mxu0 %v8763
    %9173 = vmatpush.bf16.msra.mxu0 %v8759
    %9174 = vmatpush.bf16.msra.mxu0 %v8755
    %9175 = vmatpush.bf16.msra.mxu0 %v8751
    %9176 = vmatmul.bf16.gmra.mxu0 %v7554
    %v9177 = vpop.f32.mrf.mxu0
    %v9178 = vadd.f32 %v9165, %v9177
    %v9179 = vpop.f32.mrf.mxu0
    %9180 = vdwg.mxu0
    %9181 = vmatpush.bf16.msra.mxu0 %v8811
    %9182 = vmatpush.bf16.msra.mxu0 %v8807
    %9183 = vmatpush.bf16.msra.mxu0 %v8803
    %9184 = vmatpush.bf16.msra.mxu0 %v8799
    %9185 = vmatpush.bf16.msra.mxu0 %v8795
    %9186 = vmatpush.bf16.msra.mxu0 %v8791
    %9187 = vmatpush.bf16.msra.mxu0 %v8787
    %9188 = vmatpush.bf16.msra.mxu0 %v8783
    %9189 = vmatmul.bf16.gmra.mxu0 %v7555
    %v9190 = vpop.f32.mrf.mxu0
    %v9191 = vadd.f32 %v9178, %v9190
    %v9192 = vpop.f32.mrf.mxu0
    %9193 = vdwg.mxu0
    %9194 = vmatpush.bf16.msra.mxu0 %v8843
    %9195 = vmatpush.bf16.msra.mxu0 %v8839
    %9196 = vmatpush.bf16.msra.mxu0 %v8835
    %9197 = vmatpush.bf16.msra.mxu0 %v8831
    %9198 = vmatpush.bf16.msra.mxu0 %v8827
    %9199 = vmatpush.bf16.msra.mxu0 %v8823
    %9200 = vmatpush.bf16.msra.mxu0 %v8819
    %9201 = vmatpush.bf16.msra.mxu0 %v8815
    %9202 = vmatmul.bf16.gmra.mxu0 %v7556
    %v9203 = vpop.f32.mrf.mxu0
    %v9204 = vadd.f32 %v9191, %v9203
    %v9205 = vpop.f32.mrf.mxu0
    %9206 = vdwg.mxu0
    %9207 = vmatpush.bf16.msra.mxu0 %v8620
    %9208 = vmatpush.bf16.msra.mxu0 %v8616
    %9209 = vmatpush.bf16.msra.mxu0 %v8612
    %9210 = vmatpush.bf16.msra.mxu0 %v8608
    %9211 = vmatpush.bf16.msra.mxu0 %v8604
    %9212 = vmatpush.bf16.msra.mxu0 %v8600
    %9213 = vmatpush.bf16.msra.mxu0 %v8596
    %9214 = vmatpush.bf16.msra.mxu0 %v8592
    %9215 = vmatmul.bf16.gmra.mxu0 %v7549
    %v9216 = vpop.f32.mrf.mxu0
    %v9217 = vadd.f32 %v7816, %v9216
    %v9218 = vpop.f32.mrf.mxu0
    %9219 = vdwg.mxu0
    %9220 = vmatpush.bf16.msra.mxu0 %v8652
    %9221 = vmatpush.bf16.msra.mxu0 %v8648
    %9222 = vmatpush.bf16.msra.mxu0 %v8644
    %9223 = vmatpush.bf16.msra.mxu0 %v8640
    %9224 = vmatpush.bf16.msra.mxu0 %v8636
    %9225 = vmatpush.bf16.msra.mxu0 %v8632
    %9226 = vmatpush.bf16.msra.mxu0 %v8628
    %9227 = vmatpush.bf16.msra.mxu0 %v8624
    %9228 = vmatmul.bf16.gmra.mxu0 %v7550
    %v9229 = vpop.f32.mrf.mxu0
    %v9230 = vadd.f32 %v9217, %v9229
    %v9231 = vpop.f32.mrf.mxu0
    %9232 = vdwg.mxu0
    %9233 = vmatpush.bf16.msra.mxu0 %v8684
    %9234 = vmatpush.bf16.msra.mxu0 %v8680
    %9235 = vmatpush.bf16.msra.mxu0 %v8676
    %9236 = vmatpush.bf16.msra.mxu0 %v8672
    %9237 = vmatpush.bf16.msra.mxu0 %v8668
    %9238 = vmatpush.bf16.msra.mxu0 %v8664
    %9239 = vmatpush.bf16.msra.mxu0 %v8660
    %9240 = vmatpush.bf16.msra.mxu0 %v8656
    %9241 = vmatmul.bf16.gmra.mxu0 %v7551
    %v9242 = vpop.f32.mrf.mxu0
    %v9243 = vadd.f32 %v9230, %v9242
    %v9244 = vpop.f32.mrf.mxu0
    %9245 = vdwg.mxu0
    %9246 = vmatpush.bf16.msra.mxu0 %v8716
    %9247 = vmatpush.bf16.msra.mxu0 %v8712
    %9248 = vmatpush.bf16.msra.mxu0 %v8708
    %9249 = vmatpush.bf16.msra.mxu0 %v8704
    %9250 = vmatpush.bf16.msra.mxu0 %v8700
    %9251 = vmatpush.bf16.msra.mxu0 %v8696
    %9252 = vmatpush.bf16.msra.mxu0 %v8692
    %9253 = vmatpush.bf16.msra.mxu0 %v8688
    %9254 = vmatmul.bf16.gmra.mxu0 %v7552
    %v9255 = vpop.f32.mrf.mxu0
    %v9256 = vadd.f32 %v9243, %v9255
    %v9257 = vpop.f32.mrf.mxu0
    %9258 = vdwg.mxu0
    %9259 = vmatpush.bf16.msra.mxu0 %v8748
    %9260 = vmatpush.bf16.msra.mxu0 %v8744
    %9261 = vmatpush.bf16.msra.mxu0 %v8740
    %9262 = vmatpush.bf16.msra.mxu0 %v8736
    %9263 = vmatpush.bf16.msra.mxu0 %v8732
    %9264 = vmatpush.bf16.msra.mxu0 %v8728
    %9265 = vmatpush.bf16.msra.mxu0 %v8724
    %9266 = vmatpush.bf16.msra.mxu0 %v8720
    %9267 = vmatmul.bf16.gmra.mxu0 %v7553
    %v9268 = vpop.f32.mrf.mxu0
    %v9269 = vadd.f32 %v9256, %v9268
    %v9270 = vpop.f32.mrf.mxu0
    %9271 = vdwg.mxu0
    %9272 = vmatpush.bf16.msra.mxu0 %v8780
    %9273 = vmatpush.bf16.msra.mxu0 %v8776
    %9274 = vmatpush.bf16.msra.mxu0 %v8772
    %9275 = vmatpush.bf16.msra.mxu0 %v8768
    %9276 = vmatpush.bf16.msra.mxu0 %v8764
    %9277 = vmatpush.bf16.msra.mxu0 %v8760
    %9278 = vmatpush.bf16.msra.mxu0 %v8756
    %9279 = vmatpush.bf16.msra.mxu0 %v8752
    %9280 = vmatmul.bf16.gmra.mxu0 %v7554
    %v9281 = vpop.f32.mrf.mxu0
    %v9282 = vadd.f32 %v9269, %v9281
    %v9283 = vpop.f32.mrf.mxu0
    %9284 = vdwg.mxu0
    %9285 = vmatpush.bf16.msra.mxu0 %v8812
    %9286 = vmatpush.bf16.msra.mxu0 %v8808
    %9287 = vmatpush.bf16.msra.mxu0 %v8804
    %9288 = vmatpush.bf16.msra.mxu0 %v8800
    %9289 = vmatpush.bf16.msra.mxu0 %v8796
    %9290 = vmatpush.bf16.msra.mxu0 %v8792
    %9291 = vmatpush.bf16.msra.mxu0 %v8788
    %9292 = vmatpush.bf16.msra.mxu0 %v8784
    %9293 = vmatmul.bf16.gmra.mxu0 %v7555
    %v9294 = vpop.f32.mrf.mxu0
    %v9295 = vadd.f32 %v9282, %v9294
    %v9296 = vpop.f32.mrf.mxu0
    %9297 = vdwg.mxu0
    %9298 = vmatpush.bf16.msra.mxu0 %v8844
    %9299 = vmatpush.bf16.msra.mxu0 %v8840
    %9300 = vmatpush.bf16.msra.mxu0 %v8836
    %9301 = vmatpush.bf16.msra.mxu0 %v8832
    %9302 = vmatpush.bf16.msra.mxu0 %v8828
    %9303 = vmatpush.bf16.msra.mxu0 %v8824
    %9304 = vmatpush.bf16.msra.mxu0 %v8820
    %9305 = vmatpush.bf16.msra.mxu0 %v8816
    %9306 = vmatmul.bf16.gmra.mxu0 %v7556
    %v9307 = vpop.f32.mrf.mxu0
    %v9308 = vadd.f32 %v9295, %v9307
    %v9309 = vpop.f32.mrf.mxu0
    %9310 = vdwg.mxu0
    %9311 = vmatpush.bf16.msra.mxu0 %v8621
    %9312 = vmatpush.bf16.msra.mxu0 %v8617
    %9313 = vmatpush.bf16.msra.mxu0 %v8613
    %9314 = vmatpush.bf16.msra.mxu0 %v8609
    %9315 = vmatpush.bf16.msra.mxu0 %v8605
    %9316 = vmatpush.bf16.msra.mxu0 %v8601
    %9317 = vmatpush.bf16.msra.mxu0 %v8597
    %9318 = vmatpush.bf16.msra.mxu0 %v8593
    %9319 = vmatmul.bf16.gmra.mxu0 %v7549
    %v9320 = vpop.f32.mrf.mxu0
    %v9321 = vadd.f32 %v7817, %v9320
    %v9322 = vpop.f32.mrf.mxu0
    %9323 = vdwg.mxu0
    %9324 = vmatpush.bf16.msra.mxu0 %v8653
    %9325 = vmatpush.bf16.msra.mxu0 %v8649
    %9326 = vmatpush.bf16.msra.mxu0 %v8645
    %9327 = vmatpush.bf16.msra.mxu0 %v8641
    %9328 = vmatpush.bf16.msra.mxu0 %v8637
    %9329 = vmatpush.bf16.msra.mxu0 %v8633
    %9330 = vmatpush.bf16.msra.mxu0 %v8629
    %9331 = vmatpush.bf16.msra.mxu0 %v8625
    %9332 = vmatmul.bf16.gmra.mxu0 %v7550
    %v9333 = vpop.f32.mrf.mxu0
    %v9334 = vadd.f32 %v9321, %v9333
    %v9335 = vpop.f32.mrf.mxu0
    %9336 = vdwg.mxu0
    %9337 = vmatpush.bf16.msra.mxu0 %v8685
    %9338 = vmatpush.bf16.msra.mxu0 %v8681
    %9339 = vmatpush.bf16.msra.mxu0 %v8677
    %9340 = vmatpush.bf16.msra.mxu0 %v8673
    %9341 = vmatpush.bf16.msra.mxu0 %v8669
    %9342 = vmatpush.bf16.msra.mxu0 %v8665
    %9343 = vmatpush.bf16.msra.mxu0 %v8661
    %9344 = vmatpush.bf16.msra.mxu0 %v8657
    %9345 = vmatmul.bf16.gmra.mxu0 %v7551
    %v9346 = vpop.f32.mrf.mxu0
    %v9347 = vadd.f32 %v9334, %v9346
    %v9348 = vpop.f32.mrf.mxu0
    %9349 = vdwg.mxu0
    %9350 = vmatpush.bf16.msra.mxu0 %v8717
    %9351 = vmatpush.bf16.msra.mxu0 %v8713
    %9352 = vmatpush.bf16.msra.mxu0 %v8709
    %9353 = vmatpush.bf16.msra.mxu0 %v8705
    %9354 = vmatpush.bf16.msra.mxu0 %v8701
    %9355 = vmatpush.bf16.msra.mxu0 %v8697
    %9356 = vmatpush.bf16.msra.mxu0 %v8693
    %9357 = vmatpush.bf16.msra.mxu0 %v8689
    %9358 = vmatmul.bf16.gmra.mxu0 %v7552
    %v9359 = vpop.f32.mrf.mxu0
    %v9360 = vadd.f32 %v9347, %v9359
    %v9361 = vpop.f32.mrf.mxu0
    %9362 = vdwg.mxu0
    %9363 = vmatpush.bf16.msra.mxu0 %v8749
    %9364 = vmatpush.bf16.msra.mxu0 %v8745
    %9365 = vmatpush.bf16.msra.mxu0 %v8741
    %9366 = vmatpush.bf16.msra.mxu0 %v8737
    %9367 = vmatpush.bf16.msra.mxu0 %v8733
    %9368 = vmatpush.bf16.msra.mxu0 %v8729
    %9369 = vmatpush.bf16.msra.mxu0 %v8725
    %9370 = vmatpush.bf16.msra.mxu0 %v8721
    %9371 = vmatmul.bf16.gmra.mxu0 %v7553
    %v9372 = vpop.f32.mrf.mxu0
    %v9373 = vadd.f32 %v9360, %v9372
    %v9374 = vpop.f32.mrf.mxu0
    %9375 = vdwg.mxu0
    %9376 = vmatpush.bf16.msra.mxu0 %v8781
    %9377 = vmatpush.bf16.msra.mxu0 %v8777
    %9378 = vmatpush.bf16.msra.mxu0 %v8773
    %9379 = vmatpush.bf16.msra.mxu0 %v8769
    %9380 = vmatpush.bf16.msra.mxu0 %v8765
    %9381 = vmatpush.bf16.msra.mxu0 %v8761
    %9382 = vmatpush.bf16.msra.mxu0 %v8757
    %9383 = vmatpush.bf16.msra.mxu0 %v8753
    %9384 = vmatmul.bf16.gmra.mxu0 %v7554
    %v9385 = vpop.f32.mrf.mxu0
    %v9386 = vadd.f32 %v9373, %v9385
    %v9387 = vpop.f32.mrf.mxu0
    %9388 = vdwg.mxu0
    %9389 = vmatpush.bf16.msra.mxu0 %v8813
    %9390 = vmatpush.bf16.msra.mxu0 %v8809
    %9391 = vmatpush.bf16.msra.mxu0 %v8805
    %9392 = vmatpush.bf16.msra.mxu0 %v8801
    %9393 = vmatpush.bf16.msra.mxu0 %v8797
    %9394 = vmatpush.bf16.msra.mxu0 %v8793
    %9395 = vmatpush.bf16.msra.mxu0 %v8789
    %9396 = vmatpush.bf16.msra.mxu0 %v8785
    %9397 = vmatmul.bf16.gmra.mxu0 %v7555
    %v9398 = vpop.f32.mrf.mxu0
    %v9399 = vadd.f32 %v9386, %v9398
    %v9400 = vpop.f32.mrf.mxu0
    %9401 = vdwg.mxu0
    %9402 = vmatpush.bf16.msra.mxu0 %v8845
    %9403 = vmatpush.bf16.msra.mxu0 %v8841
    %9404 = vmatpush.bf16.msra.mxu0 %v8837
    %9405 = vmatpush.bf16.msra.mxu0 %v8833
    %9406 = vmatpush.bf16.msra.mxu0 %v8829
    %9407 = vmatpush.bf16.msra.mxu0 %v8825
    %9408 = vmatpush.bf16.msra.mxu0 %v8821
    %9409 = vmatpush.bf16.msra.mxu0 %v8817
    %9410 = vmatmul.bf16.gmra.mxu0 %v7556
    %v9411 = vpop.f32.mrf.mxu0
    %v9412 = vadd.f32 %v9399, %v9411
    %v9413 = vpop.f32.mrf.mxu0
    %9414 = vdwg.mxu0
    %9415 = vmatpush.bf16.msra.mxu0 %v8622
    %9416 = vmatpush.bf16.msra.mxu0 %v8618
    %9417 = vmatpush.bf16.msra.mxu0 %v8614
    %9418 = vmatpush.bf16.msra.mxu0 %v8610
    %9419 = vmatpush.bf16.msra.mxu0 %v8606
    %9420 = vmatpush.bf16.msra.mxu0 %v8602
    %9421 = vmatpush.bf16.msra.mxu0 %v8598
    %9422 = vmatpush.bf16.msra.mxu0 %v8594
    %9423 = vmatmul.bf16.gmra.mxu0 %v7549
    %v9424 = vpop.f32.mrf.mxu0
    %v9425 = vadd.f32 %v7818, %v9424
    %v9426 = vpop.f32.mrf.mxu0
    %9427 = vdwg.mxu0
    %9428 = vmatpush.bf16.msra.mxu0 %v8654
    %9429 = vmatpush.bf16.msra.mxu0 %v8650
    %9430 = vmatpush.bf16.msra.mxu0 %v8646
    %9431 = vmatpush.bf16.msra.mxu0 %v8642
    %9432 = vmatpush.bf16.msra.mxu0 %v8638
    %9433 = vmatpush.bf16.msra.mxu0 %v8634
    %9434 = vmatpush.bf16.msra.mxu0 %v8630
    %9435 = vmatpush.bf16.msra.mxu0 %v8626
    %9436 = vmatmul.bf16.gmra.mxu0 %v7550
    %v9437 = vpop.f32.mrf.mxu0
    %v9438 = vadd.f32 %v9425, %v9437
    %v9439 = vpop.f32.mrf.mxu0
    %9440 = vdwg.mxu0
    %9441 = vmatpush.bf16.msra.mxu0 %v8686
    %9442 = vmatpush.bf16.msra.mxu0 %v8682
    %9443 = vmatpush.bf16.msra.mxu0 %v8678
    %9444 = vmatpush.bf16.msra.mxu0 %v8674
    %9445 = vmatpush.bf16.msra.mxu0 %v8670
    %9446 = vmatpush.bf16.msra.mxu0 %v8666
    %9447 = vmatpush.bf16.msra.mxu0 %v8662
    %9448 = vmatpush.bf16.msra.mxu0 %v8658
    %9449 = vmatmul.bf16.gmra.mxu0 %v7551
    %v9450 = vpop.f32.mrf.mxu0
    %v9451 = vadd.f32 %v9438, %v9450
    %v9452 = vpop.f32.mrf.mxu0
    %9453 = vdwg.mxu0
    %9454 = vmatpush.bf16.msra.mxu0 %v8718
    %9455 = vmatpush.bf16.msra.mxu0 %v8714
    %9456 = vmatpush.bf16.msra.mxu0 %v8710
    %9457 = vmatpush.bf16.msra.mxu0 %v8706
    %9458 = vmatpush.bf16.msra.mxu0 %v8702
    %9459 = vmatpush.bf16.msra.mxu0 %v8698
    %9460 = vmatpush.bf16.msra.mxu0 %v8694
    %9461 = vmatpush.bf16.msra.mxu0 %v8690
    %9462 = vmatmul.bf16.gmra.mxu0 %v7552
    %v9463 = vpop.f32.mrf.mxu0
    %v9464 = vadd.f32 %v9451, %v9463
    %v9465 = vpop.f32.mrf.mxu0
    %9466 = vdwg.mxu0
    %9467 = vmatpush.bf16.msra.mxu0 %v8750
    %9468 = vmatpush.bf16.msra.mxu0 %v8746
    %9469 = vmatpush.bf16.msra.mxu0 %v8742
    %9470 = vmatpush.bf16.msra.mxu0 %v8738
    %9471 = vmatpush.bf16.msra.mxu0 %v8734
    %9472 = vmatpush.bf16.msra.mxu0 %v8730
    %9473 = vmatpush.bf16.msra.mxu0 %v8726
    %9474 = vmatpush.bf16.msra.mxu0 %v8722
    %9475 = vmatmul.bf16.gmra.mxu0 %v7553
    %v9476 = vpop.f32.mrf.mxu0
    %v9477 = vadd.f32 %v9464, %v9476
    %v9478 = vpop.f32.mrf.mxu0
    %9479 = vdwg.mxu0
    %9480 = vmatpush.bf16.msra.mxu0 %v8782
    %9481 = vmatpush.bf16.msra.mxu0 %v8778
    %9482 = vmatpush.bf16.msra.mxu0 %v8774
    %9483 = vmatpush.bf16.msra.mxu0 %v8770
    %9484 = vmatpush.bf16.msra.mxu0 %v8766
    %9485 = vmatpush.bf16.msra.mxu0 %v8762
    %9486 = vmatpush.bf16.msra.mxu0 %v8758
    %9487 = vmatpush.bf16.msra.mxu0 %v8754
    %9488 = vmatmul.bf16.gmra.mxu0 %v7554
    %v9489 = vpop.f32.mrf.mxu0
    %v9490 = vadd.f32 %v9477, %v9489
    %v9491 = vpop.f32.mrf.mxu0
    %9492 = vdwg.mxu0
    %9493 = vmatpush.bf16.msra.mxu0 %v8814
    %9494 = vmatpush.bf16.msra.mxu0 %v8810
    %9495 = vmatpush.bf16.msra.mxu0 %v8806
    %9496 = vmatpush.bf16.msra.mxu0 %v8802
    %9497 = vmatpush.bf16.msra.mxu0 %v8798
    %9498 = vmatpush.bf16.msra.mxu0 %v8794
    %9499 = vmatpush.bf16.msra.mxu0 %v8790
    %9500 = vmatpush.bf16.msra.mxu0 %v8786
    %9501 = vmatmul.bf16.gmra.mxu0 %v7555
    %v9502 = vpop.f32.mrf.mxu0
    %v9503 = vadd.f32 %v9490, %v9502
    %v9504 = vpop.f32.mrf.mxu0
    %9505 = vdwg.mxu0
    %9506 = vmatpush.bf16.msra.mxu0 %v8846
    %9507 = vmatpush.bf16.msra.mxu0 %v8842
    %9508 = vmatpush.bf16.msra.mxu0 %v8838
    %9509 = vmatpush.bf16.msra.mxu0 %v8834
    %9510 = vmatpush.bf16.msra.mxu0 %v8830
    %9511 = vmatpush.bf16.msra.mxu0 %v8826
    %9512 = vmatpush.bf16.msra.mxu0 %v8822
    %9513 = vmatpush.bf16.msra.mxu0 %v8818
    %9514 = vmatmul.bf16.gmra.mxu0 %v7556
    %v9515 = vpop.f32.mrf.mxu0
    %v9516 = vadd.f32 %v9503, %v9515
    %v9517 = vpop.f32.mrf.mxu0
    %9518 = vdwg.mxu0
    %v9519 = vld [vmem:[#allocation2] sm:$0xff]
    %v9520 = vld [vmem:[#allocation2 + $0x8] sm:$0xff]
    %v9521 = vmul.f32 %v9412, 0.5
    %v9522 = vmul.f32 %v9516, 0.5
    %v9523 = vmul.f32 %v9521, 1.442695
    %v9524 = vpow.pop %v9523
    %v9525 = vmul.f32 %v9522, 1.442695
    %v9526 = vpow.pop %v9525
    %v9527 = vmul.f32 %v9519, %v9524
    %v9528 = vmul.f32 %v9520, %v9526
    %v9529 = vadd.f32 %v9204, %v9527
    %v9530 = vadd.f32 %v9308, %v9528
    %v9531 = vpack.c.bf16 %v9529, %v9529
    %v9532 = vpack.c.bf16 %v9530, %v9530
    %v9533 = vld [vmem:[%s8] sm:$0xf]
    %v9534 = vld [vmem:[%s8 + $0x4] sm:$0xf]
    %v9535 = vld [vmem:[%s8 + $0x8] sm:$0xf]
    %v9536 = vld [vmem:[%s8 + $0xc] sm:$0xf]
    %v9537 = vld [vmem:[%s8 + $0x10] sm:$0xf]
    %v9538 = vld [vmem:[%s8 + $0x14] sm:$0xf]
    %v9539 = vld [vmem:[%s8 + $0x18] sm:$0xf]
    %v9540 = vld [vmem:[%s8 + $0x1c] sm:$0xf]
    %v9541 = vld [vmem:[%s8 + $0x20] sm:$0xf]
    %v9542 = vld [vmem:[%s8 + $0x24] sm:$0xf]
    %v9543 = vld [vmem:[%s8 + $0x28] sm:$0xf]
    %v9544 = vld [vmem:[%s8 + $0x2c] sm:$0xf]
    %v9545 = vld [vmem:[%s8 + $0x30] sm:$0xf]
    %v9546 = vld [vmem:[%s8 + $0x34] sm:$0xf]
    %v9547 = vld [vmem:[%s8 + $0x38] sm:$0xf]
    %v9548 = vld [vmem:[%s8 + $0x3c] sm:$0xf]
    %v9549 = vld [vmem:[%s8 + $0x40] sm:$0xf]
    %v9550 = vld [vmem:[%s8 + $0x44] sm:$0xf]
    %v9551 = vld [vmem:[%s8 + $0x48] sm:$0xf]
    %v9552 = vld [vmem:[%s8 + $0x4c] sm:$0xf]
    %v9553 = vld [vmem:[%s8 + $0x50] sm:$0xf]
    %v9554 = vld [vmem:[%s8 + $0x54] sm:$0xf]
    %v9555 = vld [vmem:[%s8 + $0x58] sm:$0xf]
    %v9556 = vld [vmem:[%s8 + $0x5c] sm:$0xf]
    %v9557 = vld [vmem:[%s8 + $0x60] sm:$0xf]
    %v9558 = vld [vmem:[%s8 + $0x64] sm:$0xf]
    %v9559 = vld [vmem:[%s8 + $0x68] sm:$0xf]
    %v9560 = vld [vmem:[%s8 + $0x6c] sm:$0xf]
    %v9561 = vld [vmem:[%s8 + $0x70] sm:$0xf]
    %v9562 = vld [vmem:[%s8 + $0x74] sm:$0xf]
    %v9563 = vld [vmem:[%s8 + $0x78] sm:$0xf]
    %v9564 = vld [vmem:[%s8 + $0x7c] sm:$0xf]
    %v9565 = vld [vmem:[#allocation14] sm:$0x1]
    %v9567 = vperm.slane %v9565, 0
    %v9601 = vunpack.c.l.b16 %v9533
    %v9602 = vunpack.c.l.b16 %v9534
    %v9603 = vunpack.c.l.b16 %v9535
    %v9604 = vunpack.c.l.b16 %v9536
    %v9605 = vunpack.c.l.b16 %v9537
    %v9606 = vunpack.c.l.b16 %v9538
    %v9607 = vunpack.c.l.b16 %v9539
    %v9608 = vunpack.c.l.b16 %v9540
    %v9609 = vunpack.c.l.b16 %v9541
    %v9610 = vunpack.c.l.b16 %v9542
    %v9611 = vunpack.c.l.b16 %v9543
    %v9612 = vunpack.c.l.b16 %v9544
    %v9613 = vunpack.c.l.b16 %v9545
    %v9614 = vunpack.c.l.b16 %v9546
    %v9615 = vunpack.c.l.b16 %v9547
    %v9616 = vunpack.c.l.b16 %v9548
    %v9617 = vunpack.c.l.b16 %v9549
    %v9618 = vunpack.c.l.b16 %v9550
    %v9619 = vunpack.c.l.b16 %v9551
    %v9620 = vunpack.c.l.b16 %v9552
    %v9621 = vunpack.c.l.b16 %v9553
    %v9622 = vunpack.c.l.b16 %v9554
    %v9623 = vunpack.c.l.b16 %v9555
    %v9624 = vunpack.c.l.b16 %v9556
    %v9625 = vunpack.c.l.b16 %v9557
    %v9626 = vunpack.c.l.b16 %v9558
    %v9627 = vunpack.c.l.b16 %v9559
    %v9628 = vunpack.c.l.b16 %v9560
    %v9629 = vunpack.c.l.b16 %v9561
    %v9630 = vunpack.c.l.b16 %v9562
    %v9631 = vunpack.c.l.b16 %v9563
    %v9632 = vunpack.c.l.b16 %v9564
    %v9633 = vpack.c.b16 %v9602, %v9601
    %v9634 = vpack.c.b16 %v9604, %v9603
    %v9635 = vpack.c.b16 %v9606, %v9605
    %v9636 = vpack.c.b16 %v9608, %v9607
    %v9637 = vpack.c.b16 %v9610, %v9609
    %v9638 = vpack.c.b16 %v9612, %v9611
    %v9639 = vpack.c.b16 %v9614, %v9613
    %v9640 = vpack.c.b16 %v9616, %v9615
    %v9641 = vpack.c.b16 %v9618, %v9617
    %v9642 = vpack.c.b16 %v9620, %v9619
    %v9643 = vpack.c.b16 %v9622, %v9621
    %v9644 = vpack.c.b16 %v9624, %v9623
    %v9645 = vpack.c.b16 %v9626, %v9625
    %v9646 = vpack.c.b16 %v9628, %v9627
    %v9647 = vpack.c.b16 %v9630, %v9629
    %v9648 = vpack.c.b16 %v9632, %v9631
    %9665 = vmatpush.bf16.msra.mxu0 %v9640
    %9666 = vmatpush.bf16.msra.mxu0 %v9639
    %9667 = vmatpush.bf16.msra.mxu0 %v9638
    %9668 = vmatpush.bf16.msra.mxu0 %v9637
    %9669 = vmatpush.bf16.msra.mxu0 %v9636
    %9670 = vmatpush.bf16.msra.mxu0 %v9635
    %9671 = vmatpush.bf16.msra.mxu0 %v9634
    %9672 = vmatpush.bf16.msra.mxu0 %v9633
    %9673 = vmatmul.bf16.gmra.mxu0 %v9531
    %v9674 = vpop.f32.mrf.mxu0
    %v9675 = vadd.f32 %v9567, %v9674
    %v9676 = vpop.f32.mrf.mxu0
    %9677 = vdwg.mxu0
    %9678 = vmatpush.bf16.msra.mxu0 %v9648
    %9679 = vmatpush.bf16.msra.mxu0 %v9647
    %9680 = vmatpush.bf16.msra.mxu0 %v9646
    %9681 = vmatpush.bf16.msra.mxu0 %v9645
    %9682 = vmatpush.bf16.msra.mxu0 %v9644
    %9683 = vmatpush.bf16.msra.mxu0 %v9643
    %9684 = vmatpush.bf16.msra.mxu0 %v9642
    %9685 = vmatpush.bf16.msra.mxu0 %v9641
    %9686 = vmatmul.bf16.gmra.mxu0 %v9532
    %v9687 = vpop.f32.mrf.mxu0
    %v9688 = vadd.f32 %v9675, %v9687
    %v9689 = vpop.f32.mrf.mxu0
    %9690 = vdwg.mxu0
    %9691 = vst [vmem:[#allocation16] sm:$0xff] %v9688
    %9692 = vst [vmem:[#allocation17] sm:$0xff] %v9204
    %9693 = vst [vmem:[#allocation17 + $0x8] sm:$0xff] %v9308
    %9694 = vst [vmem:[#allocation19] sm:$0xff] %v9412
    %9695 = vst [vmem:[#allocation19 + $0x8] sm:$0xff] %v9516
    // Predicated region
    $region74: #{_lambda_.1} parent=1 // pred_check
      _
    $region75: #{_lambda_.1} parent=1 // pred_check_branch
      %9697 = sbr.rel (0) target = $region77
    $region76: #{_lambda_.1} parent=1 // pred_region
      %9699 = vsyncadd [#allocation4], 0
      %s9701 = sshll.u32 [#allocation16], 4
      %s9702 = int_to_ptr.vmem [resolvable:$true] %s9701
      %s9703 = sshll.u32 %s10, 4
      %s9704 = int_to_ptr.hbm [resolvable:$true] %s9703
      %9706 = dma.vmem_to_hbm [thread:$0]  %s9702, 128, %s9704, [#allocation4]
    $region77: #{_lambda_.1} parent=1 // pred_fallthru
      _
    // Predicated region
    $region78: #{_lambda_.1} parent=1 // pred_check
      _
    $region79: #{_lambda_.1} parent=1 // pred_check_branch
      %9708 = sbr.rel (0) target = $region81
    $region80: #{_lambda_.1} parent=1 // pred_region
      %9710 = vsyncadd [#allocation18], 0
      %s9712 = sshll.u32 [#allocation17], 4
      %s9713 = int_to_ptr.vmem [resolvable:$true] %s9712
      %s9714 = sshll.u32 %s11, 4
      %s9715 = int_to_ptr.hbm [resolvable:$true] %s9714
      %9717 = dma.vmem_to_hbm [thread:$0]  %s9713, 256, %s9715, [#allocation18]
    $region81: #{_lambda_.1} parent=1 // pred_fallthru
      _
    // Predicated region
    $region82: #{_lambda_.1} parent=1 // pred_check
      _
    $region83: #{_lambda_.1} parent=1 // pred_check_branch
      %9719 = sbr.rel (0) target = $region85
    $region84: #{_lambda_.1} parent=1 // pred_region
      %9721 = vsyncadd [#allocation18], 0
      %s9723 = sshll.u32 [#allocation19], 4
      %s9724 = int_to_ptr.vmem [resolvable:$true] %s9723
      %s9725 = sshll.u32 %s12, 4
      %s9726 = int_to_ptr.hbm [resolvable:$true] %s9725
      %9728 = dma.vmem_to_hbm [thread:$0]  %s9724, 256, %s9726, [#allocation18]
    $region85: #{_lambda_.1} parent=1 // pred_fallthru
      _
    // Predicated region
    $region86: #{_lambda_.1} parent=1 // pred_check
      _
    $region87: #{_lambda_.1} parent=1 // pred_check_branch
      %9730 = sbr.rel (0) target = $region89
    $region88: #{_lambda_.1} parent=1 // pred_region
      %9732 = dma.done [#allocation4], 128
    $region89: #{_lambda_.1} parent=1 // pred_fallthru
      _
    // Predicated region
    $region90: #{_lambda_.1} parent=1 // pred_check
      _
    $region91: #{_lambda_.1} parent=1 // pred_check_branch
      %9734 = sbr.rel (0) target = $region93
    $region92: #{_lambda_.1} parent=1 // pred_region
      %9736 = dma.done [#allocation18], 256
    $region93: #{_lambda_.1} parent=1 // pred_fallthru
      _
    // Predicated region
    $region94: #{_lambda_.1} parent=1 // pred_check
      _
    $region95: #{_lambda_.1} parent=1 // pred_check_branch
      %9738 = sbr.rel (0) target = $region97
    $region96: #{_lambda_.1} parent=1 // pred_region
      %9740 = dma.done [#allocation18], 256
    $region97: #{_lambda_.1} parent=1 // pred_fallthru
      _
    %9741 = vsyncpa [#allocation3], 1
    %9742 = vsyncpa [#allocation6], 1
    %9743 = vsyncpa [#allocation9], 1
    %9744 = vsyncpa [#allocation12], 1
    %9745 = vsyncpa [#allocation15], 1
    %9746 = vsyncpa [#allocation4], 1
    %9747 = vsyncpa [#allocation18], 1

</llo_original>
